<compile_context>
chip_gen: v7x
topology: tpu7x:2x2x1
jax: 0.10.0
libtpu: 0.0.40
codegen_flags: <defaults>
</compile_context>

<pallas_src>
import functools

import jax
import jax.numpy as jnp
from jax.experimental import pallas as pl
from jax.experimental.pallas import tpu as pltpu


def _lstm_fc_kernel(x_ref, packa_ref, rhs_ref, packc_ref, out_ref,
                    xw_ref, hcat_ref):
    """Single-invocation 2-layer LSTM + FC head.

    Shapes (all zero-padded, f32):
      x_ref    : (T*Bp, I)       time-major input rows
      packa_ref: (I+2, 4*Hp)     rows: [W_ih0^T (I rows); b0; b1] (gate-lane padded)
      rhs_ref  : (2*Hp, 8*Hp)    cols [0:4Hp)  = [W_hh0^T ; 0]      (layer-0 hidden path)
                                 cols [4Hp:8Hp)= [W_ih1^T ; W_hh1^T] (layer-1 gates)
      packc_ref: (Hp+1, OFp)     rows: [W_fc^T (Hp rows); b_fc]
      out_ref  : (Bp, OFp)
      xw_ref   : (T*Bp, 4*Hp)    scratch: precomputed x @ W_ih0^T + b0
      hcat_ref : (Bp, 2*Hp)      scratch: persistent [h0 | h1] matmul LHS
    """
    bp = out_ref.shape[0]
    t_total = x_ref.shape[0] // bp
    in_dim = x_ref.shape[1]
    hp = hcat_ref.shape[1] // 2
    four_hp = 4 * hp

    wih0 = packa_ref[0:in_dim, :]
    b0 = packa_ref[in_dim:in_dim + 1, :]
    b1 = packa_ref[in_dim + 1:in_dim + 2, :]

    # Input->gates path for all timesteps, hoisted out of the recurrence.
    if in_dim == 1:
        # K=1 "matmul" as a VPU broadcast multiply: no MXU launch in the prologue.
        xw_ref[...] = x_ref[...] * wih0 + b0
    else:
        xw_ref[...] = jnp.dot(x_ref[...], wih0,
                              preferred_element_type=jnp.float32) + b0

    # Persistent [h0 | h1] LHS; padded lanes stay exactly 0 throughout.
    hcat_ref[...] = jnp.zeros_like(hcat_ref)

    def _sigmoid(v):
        # Exact identity; single native EUP tanh instead of exp + divide.
        return 0.5 * jnp.tanh(0.5 * v) + 0.5

    def gate_math(gates, c):
        # PyTorch gate order (i, f, g, o); each block is Hp (multiple of 128)
        # lanes wide, so every slice below is whole-vreg lane-aligned.
        i_g = _sigmoid(gates[:, 0 * hp:1 * hp])
        f_g = _sigmoid(gates[:, 1 * hp:2 * hp])
        g_g = jnp.tanh(gates[:, 2 * hp:3 * hp])
        o_g = _sigmoid(gates[:, 3 * hp:4 * hp])
        c_new = f_g * c + i_g * g_g
        h_new = o_g * jnp.tanh(c_new)
        return h_new, c_new

    def step(t, carry):
        p0, c0, c1 = carry                      # p0 = h0[t-1] @ W_hh0^T
        row = pl.multiple_of(t * bp, 8)         # bp multiple of 8 -> aligned load
        # Layer 0: precomputed x-path slice + carried hidden-path partial.
        g0 = xw_ref[pl.ds(row, bp), :] + p0
        h0, c0 = gate_math(g0, c0)
        hcat_ref[:, 0:hp] = h0                  # h1[t-1] already in lanes [hp:2hp)
        # ONE fused matmul: layer-1 gates for step t AND layer-0 hidden-path
        # partial for step t+1.
        fused = jnp.dot(hcat_ref[...], rhs_ref[...],
                        preferred_element_type=jnp.float32)
        p0_next = fused[:, 0:four_hp]
        g1 = fused[:, four_hp:2 * four_hp] + b1
        h1, c1 = gate_math(g1, c1)
        hcat_ref[:, hp:2 * hp] = h1
        return p0_next, c0, c1

    z_g = jnp.zeros((bp, four_hp), jnp.float32)
    z_h = jnp.zeros((bp, hp), jnp.float32)
    jax.lax.fori_loop(0, t_total, step, (z_g, z_h, z_h), unroll=True)

    # FC head on the final layer-1 hidden state (lanes [hp:2hp) of hcat);
    # OFp-lane-dense store.
    wfc = packc_ref[0:hp, :]
    bfc = packc_ref[hp:hp + 1, :]
    out_ref[...] = jnp.dot(hcat_ref[:, hp:2 * hp], wfc,
                           preferred_element_type=jnp.float32) + bfc


def _round_up(n, m):
    return ((n + m - 1) // m) * m


def _pad_gate_cols(w_t, h, hp):
    """w_t: (in_dim, 4*h), gate blocks (i,f,g,o) along columns.
    Zero-pads each gate block to hp lanes -> (in_dim, 4*hp)."""
    blocks = [jnp.pad(w_t[:, k * h:(k + 1) * h], ((0, 0), (0, hp - h)))
              for k in range(4)]
    return jnp.concatenate(blocks, axis=1)


def _prepare_kernel_params(p, hp, ofp):
    """Transpose / stack / zero-pad PyTorch-layout weights into 3 packed slabs."""
    h = p["w_hh0"].shape[1]
    of = p["w_fc"].shape[0]

    # pack_a: [W_ih0^T ; b0 ; b1]  -> (I+2, 4Hp)
    wih0 = _pad_gate_cols(p["w_ih0"].T, h, hp)                        # (I, 4Hp)
    b0 = _pad_gate_cols((p["b_ih0"] + p["b_hh0"])[None, :], h, hp)    # (1, 4Hp)
    b1 = _pad_gate_cols((p["b_ih1"] + p["b_hh1"])[None, :], h, hp)    # (1, 4Hp)
    pack_a = jnp.concatenate([wih0, b0, b1], axis=0)

    # rhs: (2Hp, 8Hp) fused recurrence RHS.
    whh0 = jnp.pad(_pad_gate_cols(p["w_hh0"].T, h, hp), ((0, hp - h), (0, 0)))
    wih1 = jnp.pad(_pad_gate_cols(p["w_ih1"].T, h, hp), ((0, hp - h), (0, 0)))
    whh1 = jnp.pad(_pad_gate_cols(p["w_hh1"].T, h, hp), ((0, hp - h), (0, 0)))
    rhs_left = jnp.concatenate([whh0, jnp.zeros((hp, 4 * hp), jnp.float32)],
                               axis=0)                                # (2Hp, 4Hp)
    rhs_right = jnp.concatenate([wih1, whh1], axis=0)                 # (2Hp, 4Hp)
    rhs = jnp.concatenate([rhs_left, rhs_right], axis=1)              # (2Hp, 8Hp)

    # pack_c: [W_fc^T ; b_fc] -> (Hp+1, OFp)
    wfc = jnp.pad(p["w_fc"].T, ((0, hp - h), (0, ofp - of)))          # (Hp, OFp)
    bfc = jnp.pad(p["b_fc"][None, :], ((0, 0), (0, ofp - of)))        # (1, OFp)
    pack_c = jnp.concatenate([wfc, bfc], axis=0)

    return pack_a, rhs, pack_c


@functools.partial(jax.jit, static_argnames=("future_steps", "output_size"))
def motion_predictor_multistep(x, params, *, future_steps, output_size):
    """x: (B, T, I) float32. Returns (B, future_steps, output_size)."""
    b, t, i = x.shape
    h = params["w_hh0"].shape[1]
    of = future_steps * output_size

    hp = _round_up(h, 128)     # per-gate lane padding (lane-aligned gate slices)
    ofp = _round_up(of, 128)   # lane-dense output slab
    bp = _round_up(b, 8)       # sublane-aligned batch (free: B=2 already uses 8 sublanes)

    pack_a, rhs, pack_c = _prepare_kernel_params(params, hp, ofp)

    # Time-major rows so step t owns rows [t*bp, (t+1)*bp) of the precomputed
    # input->gates activations.
    x_p = jnp.pad(x.astype(jnp.float32), ((0, bp - b), (0, 0), (0, 0)))
    x_tm = jnp.transpose(x_p, (1, 0, 2)).reshape(t * bp, i)

    out = pl.pallas_call(
        _lstm_fc_kernel,
        out_shape=jax.ShapeDtypeStruct((bp, ofp), jnp.float32),
        scratch_shapes=[pltpu.VMEM((t * bp, 4 * hp), jnp.float32),   # xw
                        pltpu.VMEM((bp, 2 * hp), jnp.float32)],      # [h0 | h1]
    )(x_tm, pack_a, rhs, pack_c)

    return out[:b, :of].reshape(b, future_steps, output_size)


def make_params(key, input_size, hidden_size, future_steps, output_size):
    """Deterministic synthetic parameters in PyTorch nn.LSTM / nn.Linear layout."""
    h = hidden_size
    ks = jax.random.split(key, 10)
    scale = 1.0 / jnp.sqrt(h)

    def u(k, shape):
        return jax.random.uniform(k, shape, jnp.float32, -scale, scale)

    of = future_steps * output_size
    return {
        "w_ih0": u(ks[0], (4 * h, input_size)),
        "w_hh0": u(ks[1], (4 * h, h)),
        "b_ih0": u(ks[2], (4 * h,)),
        "b_hh0": u(ks[3], (4 * h,)),
        "w_ih1": u(ks[4], (4 * h, h)),
        "w_hh1": u(ks[5], (4 * h, h)),
        "b_ih1": u(ks[6], (4 * h,)),
        "b_hh1": u(ks[7], (4 * h,)),
        "w_fc": u(ks[8], (of, h)),
        "b_fc": u(ks[9], (of,)),
    }


def reference_forward(x, p, *, future_steps, output_size):
    """Pure-JAX reference of the PyTorch forward (for a sanity check)."""
    B, T, I = x.shape
    H = p["w_hh0"].shape[1]

    def cell(x_in, h, c, w_ih, w_hh, b_ih, b_hh):
        g = x_in @ w_ih.T + h @ w_hh.T + b_ih + b_hh
        i = jax.nn.sigmoid(g[:, 0:H])
        f = jax.nn.sigmoid(g[:, H:2 * H])
        gg = jnp.tanh(g[:, 2 * H:3 * H])
        o = jax.nn.sigmoid(g[:, 3 * H:4 * H])
        c_new = f * c + i * gg
        return o * jnp.tanh(c_new), c_new

    h0 = c0 = h1 = c1 = jnp.zeros((B, H), jnp.float32)
    for t in range(T):
        h0, c0 = cell(x[:, t, :], h0, c0,
                      p["w_ih0"], p["w_hh0"], p["b_ih0"], p["b_hh0"])
        h1, c1 = cell(h0, h1, c1,
                      p["w_ih1"], p["w_hh1"], p["b_ih1"], p["b_hh1"])
    out = h1 @ p["w_fc"].T + p["b_fc"]
    return out.reshape(B, future_steps, output_size)


if __name__ == "__main__":
    # Shapes implied by the module: input_size=1, hidden_size=64, num_layers=2,
    # output_size=1, future_steps=5; batch=2, seq=8.
    B, T, I = 2, 8, 1
    H, F, O = 64, 5, 1

    key = jax.random.PRNGKey(0)
    kx, kp = jax.random.split(key)
    x = jax.random.normal(kx, (B, T, I), jnp.float32)
    params = make_params(kp, I, H, F, O)

    out = motion_predictor_multistep(x, params, future_steps=F, output_size=O)
    out = jax.block_until_ready(out)

    ref = reference_forward(x, params, future_steps=F, output_size=O)
    assert out.shape == (B, F, O)
    assert jnp.allclose(out, ref, rtol=1e-4, atol=1e-5), (
        float(jnp.max(jnp.abs(out - ref))))

    print("KERNEL_OK")
</pallas_src>

<mosaic_0001>
module attributes {stable_mosaic.version = 11 : i64} {
  func.func @_lstm_fc_kernel(%arg0: memref<64x1xf32, #tpu.memory_space<vmem>>, %arg1: memref<3x512xf32, #tpu.memory_space<vmem>>, %arg2: memref<256x1024xf32, #tpu.memory_space<vmem>>, %arg3: memref<129x128xf32, #tpu.memory_space<vmem>>, %arg4: memref<8x128xf32, #tpu.memory_space<vmem>>, %arg5: memref<64x512xf32, #tpu.memory_space<vmem>>, %arg6: memref<8x256xf32, #tpu.memory_space<vmem>>) attributes {dimension_semantics = [], scalar_prefetch = 0 : i64, scratch_operands = 2 : i64, tpu.core_type = #tpu.core_type<tc>} {
    %c0 = arith.constant 0 : index
    %c0_0 = arith.constant 0 : index
    %0 = vector.load %arg1[%c0, %c0_0] : memref<3x512xf32, #tpu.memory_space<vmem>>, vector<1x512xf32>
    %c1 = arith.constant 1 : index
    %c0_1 = arith.constant 0 : index
    %1 = vector.load %arg1[%c1, %c0_1] : memref<3x512xf32, #tpu.memory_space<vmem>>, vector<1x512xf32>
    %c2 = arith.constant 2 : index
    %c0_2 = arith.constant 0 : index
    %2 = vector.load %arg1[%c2, %c0_2] : memref<3x512xf32, #tpu.memory_space<vmem>>, vector<1x512xf32>
    %c0_3 = arith.constant 0 : index
    %c0_4 = arith.constant 0 : index
    %3 = vector.load %arg0[%c0_3, %c0_4] : memref<64x1xf32, #tpu.memory_space<vmem>>, vector<64x1xf32>
    %4 = vector.broadcast %3 : vector<64x1xf32> to vector<64x512xf32>
    %5 = vector.broadcast %0 : vector<1x512xf32> to vector<64x512xf32>
    %6 = arith.mulf %4, %5 : vector<64x512xf32>
    %7 = vector.broadcast %1 : vector<1x512xf32> to vector<64x512xf32>
    %8 = arith.addf %6, %7 : vector<64x512xf32>
    %c0_5 = arith.constant 0 : index
    %c0_6 = arith.constant 0 : index
    %9 = vector.load %arg5[%c0_5, %c0_6] : memref<64x512xf32, #tpu.memory_space<vmem>>, vector<64x512xf32>
    tpu.vector_store %arg5[%c0_5, %c0_6], %8 {strides = array<i32>} : memref<64x512xf32, #tpu.memory_space<vmem>>, vector<64x512xf32>,
    %cst = arith.constant 0.000000e+00 : f32
    %10 = vector.broadcast %cst : f32 to vector<8x256xf32>
    %c0_7 = arith.constant 0 : index
    %c0_8 = arith.constant 0 : index
    %11 = vector.load %arg6[%c0_7, %c0_8] : memref<8x256xf32, #tpu.memory_space<vmem>>, vector<8x256xf32>
    tpu.vector_store %arg6[%c0_7, %c0_8], %10 {strides = array<i32>} : memref<8x256xf32, #tpu.memory_space<vmem>>, vector<8x256xf32>,
    %cst_9 = arith.constant 0.000000e+00 : f32
    %12 = vector.broadcast %cst_9 : f32 to vector<8x512xf32>
    %cst_10 = arith.constant 0.000000e+00 : f32
    %13 = vector.broadcast %cst_10 : f32 to vector<8x128xf32>
    %c0_i32 = arith.constant 0 : i32
    %c8_i32 = arith.constant 8 : i32
    %14 = arith.muli %c0_i32, %c8_i32 : i32
    %15 = tpu.assume_multiple %14, 8 : i32
    %16 = arith.index_cast %15 : i32 to index
    %c0_11 = arith.constant 0 : index
    %17 = vector.load %arg5[%16, %c0_11] : memref<64x512xf32, #tpu.memory_space<vmem>>, vector<8x512xf32>
    %18 = arith.addf %17, %12 : vector<8x512xf32>
    %19 = vector.extract_strided_slice %18 {offsets = [0, 0], sizes = [8, 128], strides = [1, 1]} : vector<8x512xf32> to vector<8x128xf32>
    %cst_12 = arith.constant 5.000000e-01 : f32
    %20 = vector.broadcast %cst_12 : f32 to vector<8x128xf32>
    %21 = arith.mulf %20, %19 : vector<8x128xf32>
    %22 = math.tanh %21 : vector<8x128xf32>
    %cst_13 = arith.constant 5.000000e-01 : f32
    %23 = vector.broadcast %cst_13 : f32 to vector<8x128xf32>
    %24 = arith.mulf %23, %22 : vector<8x128xf32>
    %cst_14 = arith.constant 5.000000e-01 : f32
    %25 = vector.broadcast %cst_14 : f32 to vector<8x128xf32>
    %26 = arith.addf %24, %25 : vector<8x128xf32>
    %27 = vector.extract_strided_slice %18 {offsets = [0, 128], sizes = [8, 128], strides = [1, 1]} : vector<8x512xf32> to vector<8x128xf32>
    %cst_15 = arith.constant 5.000000e-01 : f32
    %28 = vector.broadcast %cst_15 : f32 to vector<8x128xf32>
    %29 = arith.mulf %28, %27 : vector<8x128xf32>
    %30 = math.tanh %29 : vector<8x128xf32>
    %cst_16 = arith.constant 5.000000e-01 : f32
    %31 = vector.broadcast %cst_16 : f32 to vector<8x128xf32>
    %32 = arith.mulf %31, %30 : vector<8x128xf32>
    %cst_17 = arith.constant 5.000000e-01 : f32
    %33 = vector.broadcast %cst_17 : f32 to vector<8x128xf32>
    %34 = arith.addf %32, %33 : vector<8x128xf32>
    %35 = vector.extract_strided_slice %18 {offsets = [0, 256], sizes = [8, 128], strides = [1, 1]} : vector<8x512xf32> to vector<8x128xf32>
    %36 = math.tanh %35 : vector<8x128xf32>
    %37 = vector.extract_strided_slice %18 {offsets = [0, 384], sizes = [8, 128], strides = [1, 1]} : vector<8x512xf32> to vector<8x128xf32>
    %cst_18 = arith.constant 5.000000e-01 : f32
    %38 = vector.broadcast %cst_18 : f32 to vector<8x128xf32>
    %39 = arith.mulf %38, %37 : vector<8x128xf32>
    %40 = math.tanh %39 : vector<8x128xf32>
    %cst_19 = arith.constant 5.000000e-01 : f32
    %41 = vector.broadcast %cst_19 : f32 to vector<8x128xf32>
    %42 = arith.mulf %41, %40 : vector<8x128xf32>
    %cst_20 = arith.constant 5.000000e-01 : f32
    %43 = vector.broadcast %cst_20 : f32 to vector<8x128xf32>
    %44 = arith.addf %42, %43 : vector<8x128xf32>
    %45 = arith.mulf %34, %13 : vector<8x128xf32>
    %46 = arith.mulf %26, %36 : vector<8x128xf32>
    %47 = arith.addf %45, %46 : vector<8x128xf32>
    %48 = math.tanh %47 : vector<8x128xf32>
    %49 = arith.mulf %44, %48 : vector<8x128xf32>
    %c0_21 = arith.constant 0 : index
    %c0_22 = arith.constant 0 : index
    %50 = vector.load %arg6[%c0_21, %c0_22] : memref<8x256xf32, #tpu.memory_space<vmem>>, vector<8x128xf32>
    tpu.vector_store %arg6[%c0_21, %c0_22], %49 {strides = array<i32>} : memref<8x256xf32, #tpu.memory_space<vmem>>, vector<8x128xf32>,
    %c0_23 = arith.constant 0 : index
    %c0_24 = arith.constant 0 : index
    %51 = vector.load %arg6[%c0_23, %c0_24] : memref<8x256xf32, #tpu.memory_space<vmem>>, vector<8x256xf32>
    %c0_25 = arith.constant 0 : index
    %c0_26 = arith.constant 0 : index
    %52 = vector.load %arg2[%c0_25, %c0_26] : memref<256x1024xf32, #tpu.memory_space<vmem>>, vector<256x1024xf32>
    %cst_27 = arith.constant dense<0.000000e+00> : vector<8x1024xf32>
    %53 = tpu.matmul %51, %52, %cst_27 {dimension_numbers = #tpu.dot_dimension_numbers<[1], [0], [0], [1], [0, 0, 1, 1], [], []>} : vector<8x256xf32>, vector<256x1024xf32>, vector<8x1024xf32> -> vector<8x1024xf32>
    %54 = vector.extract_strided_slice %53 {offsets = [0, 0], sizes = [8, 512], strides = [1, 1]} : vector<8x1024xf32> to vector<8x512xf32>
    %55 = vector.extract_strided_slice %53 {offsets = [0, 512], sizes = [8, 512], strides = [1, 1]} : vector<8x1024xf32> to vector<8x512xf32>
    %56 = vector.broadcast %2 : vector<1x512xf32> to vector<8x512xf32>
    %57 = arith.addf %55, %56 : vector<8x512xf32>
    %58 = vector.extract_strided_slice %57 {offsets = [0, 0], sizes = [8, 128], strides = [1, 1]} : vector<8x512xf32> to vector<8x128xf32>
    %cst_28 = arith.constant 5.000000e-01 : f32
    %59 = vector.broadcast %cst_28 : f32 to vector<8x128xf32>
    %60 = arith.mulf %59, %58 : vector<8x128xf32>
    %61 = math.tanh %60 : vector<8x128xf32>
    %cst_29 = arith.constant 5.000000e-01 : f32
    %62 = vector.broadcast %cst_29 : f32 to vector<8x128xf32>
    %63 = arith.mulf %62, %61 : vector<8x128xf32>
    %cst_30 = arith.constant 5.000000e-01 : f32
    %64 = vector.broadcast %cst_30 : f32 to vector<8x128xf32>
    %65 = arith.addf %63, %64 : vector<8x128xf32>
    %66 = vector.extract_strided_slice %57 {offsets = [0, 128], sizes = [8, 128], strides = [1, 1]} : vector<8x512xf32> to vector<8x128xf32>
    %cst_31 = arith.constant 5.000000e-01 : f32
    %67 = vector.broadcast %cst_31 : f32 to vector<8x128xf32>
    %68 = arith.mulf %67, %66 : vector<8x128xf32>
    %69 = math.tanh %68 : vector<8x128xf32>
    %cst_32 = arith.constant 5.000000e-01 : f32
    %70 = vector.broadcast %cst_32 : f32 to vector<8x128xf32>
    %71 = arith.mulf %70, %69 : vector<8x128xf32>
    %cst_33 = arith.constant 5.000000e-01 : f32
    %72 = vector.broadcast %cst_33 : f32 to vector<8x128xf32>
    %73 = arith.addf %71, %72 : vector<8x128xf32>
    %74 = vector.extract_strided_slice %57 {offsets = [0, 256], sizes = [8, 128], strides = [1, 1]} : vector<8x512xf32> to vector<8x128xf32>
    %75 = math.tanh %74 : vector<8x128xf32>
    %76 = vector.extract_strided_slice %57 {offsets = [0, 384], sizes = [8, 128], strides = [1, 1]} : vector<8x512xf32> to vector<8x128xf32>
    %cst_34 = arith.constant 5.000000e-01 : f32
    %77 = vector.broadcast %cst_34 : f32 to vector<8x128xf32>
    %78 = arith.mulf %77, %76 : vector<8x128xf32>
    %79 = math.tanh %78 : vector<8x128xf32>
    %cst_35 = arith.constant 5.000000e-01 : f32
    %80 = vector.broadcast %cst_35 : f32 to vector<8x128xf32>
    %81 = arith.mulf %80, %79 : vector<8x128xf32>
    %cst_36 = arith.constant 5.000000e-01 : f32
    %82 = vector.broadcast %cst_36 : f32 to vector<8x128xf32>
    %83 = arith.addf %81, %82 : vector<8x128xf32>
    %84 = arith.mulf %73, %13 : vector<8x128xf32>
    %85 = arith.mulf %65, %75 : vector<8x128xf32>
    %86 = arith.addf %84, %85 : vector<8x128xf32>
    %87 = math.tanh %86 : vector<8x128xf32>
    %88 = arith.mulf %83, %87 : vector<8x128xf32>
    %c0_37 = arith.constant 0 : index
    %c128 = arith.constant 128 : index
    %89 = vector.load %arg6[%c0_37, %c128] : memref<8x256xf32, #tpu.memory_space<vmem>>, vector<8x128xf32>
    tpu.vector_store %arg6[%c0_37, %c128], %88 {strides = array<i32>} : memref<8x256xf32, #tpu.memory_space<vmem>>, vector<8x128xf32>,
    %c1_i32 = arith.constant 1 : i32
    %c8_i32_38 = arith.constant 8 : i32
    %90 = arith.muli %c1_i32, %c8_i32_38 : i32
    %91 = tpu.assume_multiple %90, 8 : i32
    %92 = arith.index_cast %91 : i32 to index
    %c0_39 = arith.constant 0 : index
    %93 = vector.load %arg5[%92, %c0_39] : memref<64x512xf32, #tpu.memory_space<vmem>>, vector<8x512xf32>
    %94 = arith.addf %93, %54 : vector<8x512xf32>
    %95 = vector.extract_strided_slice %94 {offsets = [0, 0], sizes = [8, 128], strides = [1, 1]} : vector<8x512xf32> to vector<8x128xf32>
    %cst_40 = arith.constant 5.000000e-01 : f32
    %96 = vector.broadcast %cst_40 : f32 to vector<8x128xf32>
    %97 = arith.mulf %96, %95 : vector<8x128xf32>
    %98 = math.tanh %97 : vector<8x128xf32>
    %cst_41 = arith.constant 5.000000e-01 : f32
    %99 = vector.broadcast %cst_41 : f32 to vector<8x128xf32>
    %100 = arith.mulf %99, %98 : vector<8x128xf32>
    %cst_42 = arith.constant 5.000000e-01 : f32
    %101 = vector.broadcast %cst_42 : f32 to vector<8x128xf32>
    %102 = arith.addf %100, %101 : vector<8x128xf32>
    %103 = vector.extract_strided_slice %94 {offsets = [0, 128], sizes = [8, 128], strides = [1, 1]} : vector<8x512xf32> to vector<8x128xf32>
    %cst_43 = arith.constant 5.000000e-01 : f32
    %104 = vector.broadcast %cst_43 : f32 to vector<8x128xf32>
    %105 = arith.mulf %104, %103 : vector<8x128xf32>
    %106 = math.tanh %105 : vector<8x128xf32>
    %cst_44 = arith.constant 5.000000e-01 : f32
    %107 = vector.broadcast %cst_44 : f32 to vector<8x128xf32>
    %108 = arith.mulf %107, %106 : vector<8x128xf32>
    %cst_45 = arith.constant 5.000000e-01 : f32
    %109 = vector.broadcast %cst_45 : f32 to vector<8x128xf32>
    %110 = arith.addf %108, %109 : vector<8x128xf32>
    %111 = vector.extract_strided_slice %94 {offsets = [0, 256], sizes = [8, 128], strides = [1, 1]} : vector<8x512xf32> to vector<8x128xf32>
    %112 = math.tanh %111 : vector<8x128xf32>
    %113 = vector.extract_strided_slice %94 {offsets = [0, 384], sizes = [8, 128], strides = [1, 1]} : vector<8x512xf32> to vector<8x128xf32>
    %cst_46 = arith.constant 5.000000e-01 : f32
    %114 = vector.broadcast %cst_46 : f32 to vector<8x128xf32>
    %115 = arith.mulf %114, %113 : vector<8x128xf32>
    %116 = math.tanh %115 : vector<8x128xf32>
    %cst_47 = arith.constant 5.000000e-01 : f32
    %117 = vector.broadcast %cst_47 : f32 to vector<8x128xf32>
    %118 = arith.mulf %117, %116 : vector<8x128xf32>
    %cst_48 = arith.constant 5.000000e-01 : f32
    %119 = vector.broadcast %cst_48 : f32 to vector<8x128xf32>
    %120 = arith.addf %118, %119 : vector<8x128xf32>
    %121 = arith.mulf %110, %47 : vector<8x128xf32>
    %122 = arith.mulf %102, %112 : vector<8x128xf32>
    %123 = arith.addf %121, %122 : vector<8x128xf32>
    %124 = math.tanh %123 : vector<8x128xf32>
    %125 = arith.mulf %120, %124 : vector<8x128xf32>
    %c0_49 = arith.constant 0 : index
    %c0_50 = arith.constant 0 : index
    %126 = vector.load %arg6[%c0_49, %c0_50] : memref<8x256xf32, #tpu.memory_space<vmem>>, vector<8x128xf32>
    tpu.vector_store %arg6[%c0_49, %c0_50], %125 {strides = array<i32>} : memref<8x256xf32, #tpu.memory_space<vmem>>, vector<8x128xf32>,
    %c0_51 = arith.constant 0 : index
    %c0_52 = arith.constant 0 : index
    %127 = vector.load %arg6[%c0_51, %c0_52] : memref<8x256xf32, #tpu.memory_space<vmem>>, vector<8x256xf32>
    %c0_53 = arith.constant 0 : index
    %c0_54 = arith.constant 0 : index
    %128 = vector.load %arg2[%c0_53, %c0_54] : memref<256x1024xf32, #tpu.memory_space<vmem>>, vector<256x1024xf32>
    %cst_55 = arith.constant dense<0.000000e+00> : vector<8x1024xf32>
    %129 = tpu.matmul %127, %128, %cst_55 {dimension_numbers = #tpu.dot_dimension_numbers<[1], [0], [0], [1], [0, 0, 1, 1], [], []>} : vector<8x256xf32>, vector<256x1024xf32>, vector<8x1024xf32> -> vector<8x1024xf32>
    %130 = vector.extract_strided_slice %129 {offsets = [0, 0], sizes = [8, 512], strides = [1, 1]} : vector<8x1024xf32> to vector<8x512xf32>
    %131 = vector.extract_strided_slice %129 {offsets = [0, 512], sizes = [8, 512], strides = [1, 1]} : vector<8x1024xf32> to vector<8x512xf32>
    %132 = vector.broadcast %2 : vector<1x512xf32> to vector<8x512xf32>
    %133 = arith.addf %131, %132 : vector<8x512xf32>
    %134 = vector.extract_strided_slice %133 {offsets = [0, 0], sizes = [8, 128], strides = [1, 1]} : vector<8x512xf32> to vector<8x128xf32>
    %cst_56 = arith.constant 5.000000e-01 : f32
    %135 = vector.broadcast %cst_56 : f32 to vector<8x128xf32>
    %136 = arith.mulf %135, %134 : vector<8x128xf32>
    %137 = math.tanh %136 : vector<8x128xf32>
    %cst_57 = arith.constant 5.000000e-01 : f32
    %138 = vector.broadcast %cst_57 : f32 to vector<8x128xf32>
    %139 = arith.mulf %138, %137 : vector<8x128xf32>
    %cst_58 = arith.constant 5.000000e-01 : f32
    %140 = vector.broadcast %cst_58 : f32 to vector<8x128xf32>
    %141 = arith.addf %139, %140 : vector<8x128xf32>
    %142 = vector.extract_strided_slice %133 {offsets = [0, 128], sizes = [8, 128], strides = [1, 1]} : vector<8x512xf32> to vector<8x128xf32>
    %cst_59 = arith.constant 5.000000e-01 : f32
    %143 = vector.broadcast %cst_59 : f32 to vector<8x128xf32>
    %144 = arith.mulf %143, %142 : vector<8x128xf32>
    %145 = math.tanh %144 : vector<8x128xf32>
    %cst_60 = arith.constant 5.000000e-01 : f32
    %146 = vector.broadcast %cst_60 : f32 to vector<8x128xf32>
    %147 = arith.mulf %146, %145 : vector<8x128xf32>
    %cst_61 = arith.constant 5.000000e-01 : f32
    %148 = vector.broadcast %cst_61 : f32 to vector<8x128xf32>
    %149 = arith.addf %147, %148 : vector<8x128xf32>
    %150 = vector.extract_strided_slice %133 {offsets = [0, 256], sizes = [8, 128], strides = [1, 1]} : vector<8x512xf32> to vector<8x128xf32>
    %151 = math.tanh %150 : vector<8x128xf32>
    %152 = vector.extract_strided_slice %133 {offsets = [0, 384], sizes = [8, 128], strides = [1, 1]} : vector<8x512xf32> to vector<8x128xf32>
    %cst_62 = arith.constant 5.000000e-01 : f32
    %153 = vector.broadcast %cst_62 : f32 to vector<8x128xf32>
    %154 = arith.mulf %153, %152 : vector<8x128xf32>
    %155 = math.tanh %154 : vector<8x128xf32>
    %cst_63 = arith.constant 5.000000e-01 : f32
    %156 = vector.broadcast %cst_63 : f32 to vector<8x128xf32>
    %157 = arith.mulf %156, %155 : vector<8x128xf32>
    %cst_64 = arith.constant 5.000000e-01 : f32
    %158 = vector.broadcast %cst_64 : f32 to vector<8x128xf32>
    %159 = arith.addf %157, %158 : vector<8x128xf32>
    %160 = arith.mulf %149, %86 : vector<8x128xf32>
    %161 = arith.mulf %141, %151 : vector<8x128xf32>
    %162 = arith.addf %160, %161 : vector<8x128xf32>
    %163 = math.tanh %162 : vector<8x128xf32>
    %164 = arith.mulf %159, %163 : vector<8x128xf32>
    %c0_65 = arith.constant 0 : index
    %c128_66 = arith.constant 128 : index
    %165 = vector.load %arg6[%c0_65, %c128_66] : memref<8x256xf32, #tpu.memory_space<vmem>>, vector<8x128xf32>
    tpu.vector_store %arg6[%c0_65, %c128_66], %164 {strides = array<i32>} : memref<8x256xf32, #tpu.memory_space<vmem>>, vector<8x128xf32>,
    %c2_i32 = arith.constant 2 : i32
    %c8_i32_67 = arith.constant 8 : i32
    %166 = arith.muli %c2_i32, %c8_i32_67 : i32
    %167 = tpu.assume_multiple %166, 8 : i32
    %168 = arith.index_cast %167 : i32 to index
    %c0_68 = arith.constant 0 : index
    %169 = vector.load %arg5[%168, %c0_68] : memref<64x512xf32, #tpu.memory_space<vmem>>, vector<8x512xf32>
    %170 = arith.addf %169, %130 : vector<8x512xf32>
    %171 = vector.extract_strided_slice %170 {offsets = [0, 0], sizes = [8, 128], strides = [1, 1]} : vector<8x512xf32> to vector<8x128xf32>
    %cst_69 = arith.constant 5.000000e-01 : f32
    %172 = vector.broadcast %cst_69 : f32 to vector<8x128xf32>
    %173 = arith.mulf %172, %171 : vector<8x128xf32>
    %174 = math.tanh %173 : vector<8x128xf32>
    %cst_70 = arith.constant 5.000000e-01 : f32
    %175 = vector.broadcast %cst_70 : f32 to vector<8x128xf32>
    %176 = arith.mulf %175, %174 : vector<8x128xf32>
    %cst_71 = arith.constant 5.000000e-01 : f32
    %177 = vector.broadcast %cst_71 : f32 to vector<8x128xf32>
    %178 = arith.addf %176, %177 : vector<8x128xf32>
    %179 = vector.extract_strided_slice %170 {offsets = [0, 128], sizes = [8, 128], strides = [1, 1]} : vector<8x512xf32> to vector<8x128xf32>
    %cst_72 = arith.constant 5.000000e-01 : f32
    %180 = vector.broadcast %cst_72 : f32 to vector<8x128xf32>
    %181 = arith.mulf %180, %179 : vector<8x128xf32>
    %182 = math.tanh %181 : vector<8x128xf32>
    %cst_73 = arith.constant 5.000000e-01 : f32
    %183 = vector.broadcast %cst_73 : f32 to vector<8x128xf32>
    %184 = arith.mulf %183, %182 : vector<8x128xf32>
    %cst_74 = arith.constant 5.000000e-01 : f32
    %185 = vector.broadcast %cst_74 : f32 to vector<8x128xf32>
    %186 = arith.addf %184, %185 : vector<8x128xf32>
    %187 = vector.extract_strided_slice %170 {offsets = [0, 256], sizes = [8, 128], strides = [1, 1]} : vector<8x512xf32> to vector<8x128xf32>
    %188 = math.tanh %187 : vector<8x128xf32>
    %189 = vector.extract_strided_slice %170 {offsets = [0, 384], sizes = [8, 128], strides = [1, 1]} : vector<8x512xf32> to vector<8x128xf32>
    %cst_75 = arith.constant 5.000000e-01 : f32
    %190 = vector.broadcast %cst_75 : f32 to vector<8x128xf32>
    %191 = arith.mulf %190, %189 : vector<8x128xf32>
    %192 = math.tanh %191 : vector<8x128xf32>
    %cst_76 = arith.constant 5.000000e-01 : f32
    %193 = vector.broadcast %cst_76 : f32 to vector<8x128xf32>
    %194 = arith.mulf %193, %192 : vector<8x128xf32>
    %cst_77 = arith.constant 5.000000e-01 : f32
    %195 = vector.broadcast %cst_77 : f32 to vector<8x128xf32>
    %196 = arith.addf %194, %195 : vector<8x128xf32>
    %197 = arith.mulf %186, %123 : vector<8x128xf32>
    %198 = arith.mulf %178, %188 : vector<8x128xf32>
    %199 = arith.addf %197, %198 : vector<8x128xf32>
    %200 = math.tanh %199 : vector<8x128xf32>
    %201 = arith.mulf %196, %200 : vector<8x128xf32>
    %c0_78 = arith.constant 0 : index
    %c0_79 = arith.constant 0 : index
    %202 = vector.load %arg6[%c0_78, %c0_79] : memref<8x256xf32, #tpu.memory_space<vmem>>, vector<8x128xf32>
    tpu.vector_store %arg6[%c0_78, %c0_79], %201 {strides = array<i32>} : memref<8x256xf32, #tpu.memory_space<vmem>>, vector<8x128xf32>,
    %c0_80 = arith.constant 0 : index
    %c0_81 = arith.constant 0 : index
    %203 = vector.load %arg6[%c0_80, %c0_81] : memref<8x256xf32, #tpu.memory_space<vmem>>, vector<8x256xf32>
    %c0_82 = arith.constant 0 : index
    %c0_83 = arith.constant 0 : index
    %204 = vector.load %arg2[%c0_82, %c0_83] : memref<256x1024xf32, #tpu.memory_space<vmem>>, vector<256x1024xf32>
    %cst_84 = arith.constant dense<0.000000e+00> : vector<8x1024xf32>
    %205 = tpu.matmul %203, %204, %cst_84 {dimension_numbers = #tpu.dot_dimension_numbers<[1], [0], [0], [1], [0, 0, 1, 1], [], []>} : vector<8x256xf32>, vector<256x1024xf32>, vector<8x1024xf32> -> vector<8x1024xf32>
    %206 = vector.extract_strided_slice %205 {offsets = [0, 0], sizes = [8, 512], strides = [1, 1]} : vector<8x1024xf32> to vector<8x512xf32>
    %207 = vector.extract_strided_slice %205 {offsets = [0, 512], sizes = [8, 512], strides = [1, 1]} : vector<8x1024xf32> to vector<8x512xf32>
    %208 = vector.broadcast %2 : vector<1x512xf32> to vector<8x512xf32>
    %209 = arith.addf %207, %208 : vector<8x512xf32>
    %210 = vector.extract_strided_slice %209 {offsets = [0, 0], sizes = [8, 128], strides = [1, 1]} : vector<8x512xf32> to vector<8x128xf32>
    %cst_85 = arith.constant 5.000000e-01 : f32
    %211 = vector.broadcast %cst_85 : f32 to vector<8x128xf32>
    %212 = arith.mulf %211, %210 : vector<8x128xf32>
    %213 = math.tanh %212 : vector<8x128xf32>
    %cst_86 = arith.constant 5.000000e-01 : f32
    %214 = vector.broadcast %cst_86 : f32 to vector<8x128xf32>
    %215 = arith.mulf %214, %213 : vector<8x128xf32>
    %cst_87 = arith.constant 5.000000e-01 : f32
    %216 = vector.broadcast %cst_87 : f32 to vector<8x128xf32>
    %217 = arith.addf %215, %216 : vector<8x128xf32>
    %218 = vector.extract_strided_slice %209 {offsets = [0, 128], sizes = [8, 128], strides = [1, 1]} : vector<8x512xf32> to vector<8x128xf32>
    %cst_88 = arith.constant 5.000000e-01 : f32
    %219 = vector.broadcast %cst_88 : f32 to vector<8x128xf32>
    %220 = arith.mulf %219, %218 : vector<8x128xf32>
    %221 = math.tanh %220 : vector<8x128xf32>
    %cst_89 = arith.constant 5.000000e-01 : f32
    %222 = vector.broadcast %cst_89 : f32 to vector<8x128xf32>
    %223 = arith.mulf %222, %221 : vector<8x128xf32>
    %cst_90 = arith.constant 5.000000e-01 : f32
    %224 = vector.broadcast %cst_90 : f32 to vector<8x128xf32>
    %225 = arith.addf %223, %224 : vector<8x128xf32>
    %226 = vector.extract_strided_slice %209 {offsets = [0, 256], sizes = [8, 128], strides = [1, 1]} : vector<8x512xf32> to vector<8x128xf32>
    %227 = math.tanh %226 : vector<8x128xf32>
    %228 = vector.extract_strided_slice %209 {offsets = [0, 384], sizes = [8, 128], strides = [1, 1]} : vector<8x512xf32> to vector<8x128xf32>
    %cst_91 = arith.constant 5.000000e-01 : f32
    %229 = vector.broadcast %cst_91 : f32 to vector<8x128xf32>
    %230 = arith.mulf %229, %228 : vector<8x128xf32>
    %231 = math.tanh %230 : vector<8x128xf32>
    %cst_92 = arith.constant 5.000000e-01 : f32
    %232 = vector.broadcast %cst_92 : f32 to vector<8x128xf32>
    %233 = arith.mulf %232, %231 : vector<8x128xf32>
    %cst_93 = arith.constant 5.000000e-01 : f32
    %234 = vector.broadcast %cst_93 : f32 to vector<8x128xf32>
    %235 = arith.addf %233, %234 : vector<8x128xf32>
    %236 = arith.mulf %225, %162 : vector<8x128xf32>
    %237 = arith.mulf %217, %227 : vector<8x128xf32>
    %238 = arith.addf %236, %237 : vector<8x128xf32>
    %239 = math.tanh %238 : vector<8x128xf32>
    %240 = arith.mulf %235, %239 : vector<8x128xf32>
    %c0_94 = arith.constant 0 : index
    %c128_95 = arith.constant 128 : index
    %241 = vector.load %arg6[%c0_94, %c128_95] : memref<8x256xf32, #tpu.memory_space<vmem>>, vector<8x128xf32>
    tpu.vector_store %arg6[%c0_94, %c128_95], %240 {strides = array<i32>} : memref<8x256xf32, #tpu.memory_space<vmem>>, vector<8x128xf32>,
    %c3_i32 = arith.constant 3 : i32
    %c8_i32_96 = arith.constant 8 : i32
    %242 = arith.muli %c3_i32, %c8_i32_96 : i32
    %243 = tpu.assume_multiple %242, 8 : i32
    %244 = arith.index_cast %243 : i32 to index
    %c0_97 = arith.constant 0 : index
    %245 = vector.load %arg5[%244, %c0_97] : memref<64x512xf32, #tpu.memory_space<vmem>>, vector<8x512xf32>
    %246 = arith.addf %245, %206 : vector<8x512xf32>
    %247 = vector.extract_strided_slice %246 {offsets = [0, 0], sizes = [8, 128], strides = [1, 1]} : vector<8x512xf32> to vector<8x128xf32>
    %cst_98 = arith.constant 5.000000e-01 : f32
    %248 = vector.broadcast %cst_98 : f32 to vector<8x128xf32>
    %249 = arith.mulf %248, %247 : vector<8x128xf32>
    %250 = math.tanh %249 : vector<8x128xf32>
    %cst_99 = arith.constant 5.000000e-01 : f32
    %251 = vector.broadcast %cst_99 : f32 to vector<8x128xf32>
    %252 = arith.mulf %251, %250 : vector<8x128xf32>
    %cst_100 = arith.constant 5.000000e-01 : f32
    %253 = vector.broadcast %cst_100 : f32 to vector<8x128xf32>
    %254 = arith.addf %252, %253 : vector<8x128xf32>
    %255 = vector.extract_strided_slice %246 {offsets = [0, 128], sizes = [8, 128], strides = [1, 1]} : vector<8x512xf32> to vector<8x128xf32>
    %cst_101 = arith.constant 5.000000e-01 : f32
    %256 = vector.broadcast %cst_101 : f32 to vector<8x128xf32>
    %257 = arith.mulf %256, %255 : vector<8x128xf32>
    %258 = math.tanh %257 : vector<8x128xf32>
    %cst_102 = arith.constant 5.000000e-01 : f32
    %259 = vector.broadcast %cst_102 : f32 to vector<8x128xf32>
    %260 = arith.mulf %259, %258 : vector<8x128xf32>
    %cst_103 = arith.constant 5.000000e-01 : f32
    %261 = vector.broadcast %cst_103 : f32 to vector<8x128xf32>
    %262 = arith.addf %260, %261 : vector<8x128xf32>
    %263 = vector.extract_strided_slice %246 {offsets = [0, 256], sizes = [8, 128], strides = [1, 1]} : vector<8x512xf32> to vector<8x128xf32>
    %264 = math.tanh %263 : vector<8x128xf32>
    %265 = vector.extract_strided_slice %246 {offsets = [0, 384], sizes = [8, 128], strides = [1, 1]} : vector<8x512xf32> to vector<8x128xf32>
    %cst_104 = arith.constant 5.000000e-01 : f32
    %266 = vector.broadcast %cst_104 : f32 to vector<8x128xf32>
    %267 = arith.mulf %266, %265 : vector<8x128xf32>
    %268 = math.tanh %267 : vector<8x128xf32>
    %cst_105 = arith.constant 5.000000e-01 : f32
    %269 = vector.broadcast %cst_105 : f32 to vector<8x128xf32>
    %270 = arith.mulf %269, %268 : vector<8x128xf32>
    %cst_106 = arith.constant 5.000000e-01 : f32
    %271 = vector.broadcast %cst_106 : f32 to vector<8x128xf32>
    %272 = arith.addf %270, %271 : vector<8x128xf32>
    %273 = arith.mulf %262, %199 : vector<8x128xf32>
    %274 = arith.mulf %254, %264 : vector<8x128xf32>
    %275 = arith.addf %273, %274 : vector<8x128xf32>
    %276 = math.tanh %275 : vector<8x128xf32>
    %277 = arith.mulf %272, %276 : vector<8x128xf32>
    %c0_107 = arith.constant 0 : index
    %c0_108 = arith.constant 0 : index
    %278 = vector.load %arg6[%c0_107, %c0_108] : memref<8x256xf32, #tpu.memory_space<vmem>>, vector<8x128xf32>
    tpu.vector_store %arg6[%c0_107, %c0_108], %277 {strides = array<i32>} : memref<8x256xf32, #tpu.memory_space<vmem>>, vector<8x128xf32>,
    %c0_109 = arith.constant 0 : index
    %c0_110 = arith.constant 0 : index
    %279 = vector.load %arg6[%c0_109, %c0_110] : memref<8x256xf32, #tpu.memory_space<vmem>>, vector<8x256xf32>
    %c0_111 = arith.constant 0 : index
    %c0_112 = arith.constant 0 : index
    %280 = vector.load %arg2[%c0_111, %c0_112] : memref<256x1024xf32, #tpu.memory_space<vmem>>, vector<256x1024xf32>
    %cst_113 = arith.constant dense<0.000000e+00> : vector<8x1024xf32>
    %281 = tpu.matmul %279, %280, %cst_113 {dimension_numbers = #tpu.dot_dimension_numbers<[1], [0], [0], [1], [0, 0, 1, 1], [], []>} : vector<8x256xf32>, vector<256x1024xf32>, vector<8x1024xf32> -> vector<8x1024xf32>
    %282 = vector.extract_strided_slice %281 {offsets = [0, 0], sizes = [8, 512], strides = [1, 1]} : vector<8x1024xf32> to vector<8x512xf32>
    %283 = vector.extract_strided_slice %281 {offsets = [0, 512], sizes = [8, 512], strides = [1, 1]} : vector<8x1024xf32> to vector<8x512xf32>
    %284 = vector.broadcast %2 : vector<1x512xf32> to vector<8x512xf32>
    %285 = arith.addf %283, %284 : vector<8x512xf32>
    %286 = vector.extract_strided_slice %285 {offsets = [0, 0], sizes = [8, 128], strides = [1, 1]} : vector<8x512xf32> to vector<8x128xf32>
    %cst_114 = arith.constant 5.000000e-01 : f32
    %287 = vector.broadcast %cst_114 : f32 to vector<8x128xf32>
    %288 = arith.mulf %287, %286 : vector<8x128xf32>
    %289 = math.tanh %288 : vector<8x128xf32>
    %cst_115 = arith.constant 5.000000e-01 : f32
    %290 = vector.broadcast %cst_115 : f32 to vector<8x128xf32>
    %291 = arith.mulf %290, %289 : vector<8x128xf32>
    %cst_116 = arith.constant 5.000000e-01 : f32
    %292 = vector.broadcast %cst_116 : f32 to vector<8x128xf32>
    %293 = arith.addf %291, %292 : vector<8x128xf32>
    %294 = vector.extract_strided_slice %285 {offsets = [0, 128], sizes = [8, 128], strides = [1, 1]} : vector<8x512xf32> to vector<8x128xf32>
    %cst_117 = arith.constant 5.000000e-01 : f32
    %295 = vector.broadcast %cst_117 : f32 to vector<8x128xf32>
    %296 = arith.mulf %295, %294 : vector<8x128xf32>
    %297 = math.tanh %296 : vector<8x128xf32>
    %cst_118 = arith.constant 5.000000e-01 : f32
    %298 = vector.broadcast %cst_118 : f32 to vector<8x128xf32>
    %299 = arith.mulf %298, %297 : vector<8x128xf32>
    %cst_119 = arith.constant 5.000000e-01 : f32
    %300 = vector.broadcast %cst_119 : f32 to vector<8x128xf32>
    %301 = arith.addf %299, %300 : vector<8x128xf32>
    %302 = vector.extract_strided_slice %285 {offsets = [0, 256], sizes = [8, 128], strides = [1, 1]} : vector<8x512xf32> to vector<8x128xf32>
    %303 = math.tanh %302 : vector<8x128xf32>
    %304 = vector.extract_strided_slice %285 {offsets = [0, 384], sizes = [8, 128], strides = [1, 1]} : vector<8x512xf32> to vector<8x128xf32>
    %cst_120 = arith.constant 5.000000e-01 : f32
    %305 = vector.broadcast %cst_120 : f32 to vector<8x128xf32>
    %306 = arith.mulf %305, %304 : vector<8x128xf32>
    %307 = math.tanh %306 : vector<8x128xf32>
    %cst_121 = arith.constant 5.000000e-01 : f32
    %308 = vector.broadcast %cst_121 : f32 to vector<8x128xf32>
    %309 = arith.mulf %308, %307 : vector<8x128xf32>
    %cst_122 = arith.constant 5.000000e-01 : f32
    %310 = vector.broadcast %cst_122 : f32 to vector<8x128xf32>
    %311 = arith.addf %309, %310 : vector<8x128xf32>
    %312 = arith.mulf %301, %238 : vector<8x128xf32>
    %313 = arith.mulf %293, %303 : vector<8x128xf32>
    %314 = arith.addf %312, %313 : vector<8x128xf32>
    %315 = math.tanh %314 : vector<8x128xf32>
    %316 = arith.mulf %311, %315 : vector<8x128xf32>
    %c0_123 = arith.constant 0 : index
    %c128_124 = arith.constant 128 : index
    %317 = vector.load %arg6[%c0_123, %c128_124] : memref<8x256xf32, #tpu.memory_space<vmem>>, vector<8x128xf32>
    tpu.vector_store %arg6[%c0_123, %c128_124], %316 {strides = array<i32>} : memref<8x256xf32, #tpu.memory_space<vmem>>, vector<8x128xf32>,
    %c4_i32 = arith.constant 4 : i32
    %c8_i32_125 = arith.constant 8 : i32
    %318 = arith.muli %c4_i32, %c8_i32_125 : i32
    %319 = tpu.assume_multiple %318, 8 : i32
    %320 = arith.index_cast %319 : i32 to index
    %c0_126 = arith.constant 0 : index
    %321 = vector.load %arg5[%320, %c0_126] : memref<64x512xf32, #tpu.memory_space<vmem>>, vector<8x512xf32>
    %322 = arith.addf %321, %282 : vector<8x512xf32>
    %323 = vector.extract_strided_slice %322 {offsets = [0, 0], sizes = [8, 128], strides = [1, 1]} : vector<8x512xf32> to vector<8x128xf32>
    %cst_127 = arith.constant 5.000000e-01 : f32
    %324 = vector.broadcast %cst_127 : f32 to vector<8x128xf32>
    %325 = arith.mulf %324, %323 : vector<8x128xf32>
    %326 = math.tanh %325 : vector<8x128xf32>
    %cst_128 = arith.constant 5.000000e-01 : f32
    %327 = vector.broadcast %cst_128 : f32 to vector<8x128xf32>
    %328 = arith.mulf %327, %326 : vector<8x128xf32>
    %cst_129 = arith.constant 5.000000e-01 : f32
    %329 = vector.broadcast %cst_129 : f32 to vector<8x128xf32>
    %330 = arith.addf %328, %329 : vector<8x128xf32>
    %331 = vector.extract_strided_slice %322 {offsets = [0, 128], sizes = [8, 128], strides = [1, 1]} : vector<8x512xf32> to vector<8x128xf32>
    %cst_130 = arith.constant 5.000000e-01 : f32
    %332 = vector.broadcast %cst_130 : f32 to vector<8x128xf32>
    %333 = arith.mulf %332, %331 : vector<8x128xf32>
    %334 = math.tanh %333 : vector<8x128xf32>
    %cst_131 = arith.constant 5.000000e-01 : f32
    %335 = vector.broadcast %cst_131 : f32 to vector<8x128xf32>
    %336 = arith.mulf %335, %334 : vector<8x128xf32>
    %cst_132 = arith.constant 5.000000e-01 : f32
    %337 = vector.broadcast %cst_132 : f32 to vector<8x128xf32>
    %338 = arith.addf %336, %337 : vector<8x128xf32>
    %339 = vector.extract_strided_slice %322 {offsets = [0, 256], sizes = [8, 128], strides = [1, 1]} : vector<8x512xf32> to vector<8x128xf32>
    %340 = math.tanh %339 : vector<8x128xf32>
    %341 = vector.extract_strided_slice %322 {offsets = [0, 384], sizes = [8, 128], strides = [1, 1]} : vector<8x512xf32> to vector<8x128xf32>
    %cst_133 = arith.constant 5.000000e-01 : f32
    %342 = vector.broadcast %cst_133 : f32 to vector<8x128xf32>
    %343 = arith.mulf %342, %341 : vector<8x128xf32>
    %344 = math.tanh %343 : vector<8x128xf32>
    %cst_134 = arith.constant 5.000000e-01 : f32
    %345 = vector.broadcast %cst_134 : f32 to vector<8x128xf32>
    %346 = arith.mulf %345, %344 : vector<8x128xf32>
    %cst_135 = arith.constant 5.000000e-01 : f32
    %347 = vector.broadcast %cst_135 : f32 to vector<8x128xf32>
    %348 = arith.addf %346, %347 : vector<8x128xf32>
    %349 = arith.mulf %338, %275 : vector<8x128xf32>
    %350 = arith.mulf %330, %340 : vector<8x128xf32>
    %351 = arith.addf %349, %350 : vector<8x128xf32>
    %352 = math.tanh %351 : vector<8x128xf32>
    %353 = arith.mulf %348, %352 : vector<8x128xf32>
    %c0_136 = arith.constant 0 : index
    %c0_137 = arith.constant 0 : index
    %354 = vector.load %arg6[%c0_136, %c0_137] : memref<8x256xf32, #tpu.memory_space<vmem>>, vector<8x128xf32>
    tpu.vector_store %arg6[%c0_136, %c0_137], %353 {strides = array<i32>} : memref<8x256xf32, #tpu.memory_space<vmem>>, vector<8x128xf32>,
    %c0_138 = arith.constant 0 : index
    %c0_139 = arith.constant 0 : index
    %355 = vector.load %arg6[%c0_138, %c0_139] : memref<8x256xf32, #tpu.memory_space<vmem>>, vector<8x256xf32>
    %c0_140 = arith.constant 0 : index
    %c0_141 = arith.constant 0 : index
    %356 = vector.load %arg2[%c0_140, %c0_141] : memref<256x1024xf32, #tpu.memory_space<vmem>>, vector<256x1024xf32>
    %cst_142 = arith.constant dense<0.000000e+00> : vector<8x1024xf32>
    %357 = tpu.matmul %355, %356, %cst_142 {dimension_numbers = #tpu.dot_dimension_numbers<[1], [0], [0], [1], [0, 0, 1, 1], [], []>} : vector<8x256xf32>, vector<256x1024xf32>, vector<8x1024xf32> -> vector<8x1024xf32>
    %358 = vector.extract_strided_slice %357 {offsets = [0, 0], sizes = [8, 512], strides = [1, 1]} : vector<8x1024xf32> to vector<8x512xf32>
    %359 = vector.extract_strided_slice %357 {offsets = [0, 512], sizes = [8, 512], strides = [1, 1]} : vector<8x1024xf32> to vector<8x512xf32>
    %360 = vector.broadcast %2 : vector<1x512xf32> to vector<8x512xf32>
    %361 = arith.addf %359, %360 : vector<8x512xf32>
    %362 = vector.extract_strided_slice %361 {offsets = [0, 0], sizes = [8, 128], strides = [1, 1]} : vector<8x512xf32> to vector<8x128xf32>
    %cst_143 = arith.constant 5.000000e-01 : f32
    %363 = vector.broadcast %cst_143 : f32 to vector<8x128xf32>
    %364 = arith.mulf %363, %362 : vector<8x128xf32>
    %365 = math.tanh %364 : vector<8x128xf32>
    %cst_144 = arith.constant 5.000000e-01 : f32
    %366 = vector.broadcast %cst_144 : f32 to vector<8x128xf32>
    %367 = arith.mulf %366, %365 : vector<8x128xf32>
    %cst_145 = arith.constant 5.000000e-01 : f32
    %368 = vector.broadcast %cst_145 : f32 to vector<8x128xf32>
    %369 = arith.addf %367, %368 : vector<8x128xf32>
    %370 = vector.extract_strided_slice %361 {offsets = [0, 128], sizes = [8, 128], strides = [1, 1]} : vector<8x512xf32> to vector<8x128xf32>
    %cst_146 = arith.constant 5.000000e-01 : f32
    %371 = vector.broadcast %cst_146 : f32 to vector<8x128xf32>
    %372 = arith.mulf %371, %370 : vector<8x128xf32>
    %373 = math.tanh %372 : vector<8x128xf32>
    %cst_147 = arith.constant 5.000000e-01 : f32
    %374 = vector.broadcast %cst_147 : f32 to vector<8x128xf32>
    %375 = arith.mulf %374, %373 : vector<8x128xf32>
    %cst_148 = arith.constant 5.000000e-01 : f32
    %376 = vector.broadcast %cst_148 : f32 to vector<8x128xf32>
    %377 = arith.addf %375, %376 : vector<8x128xf32>
    %378 = vector.extract_strided_slice %361 {offsets = [0, 256], sizes = [8, 128], strides = [1, 1]} : vector<8x512xf32> to vector<8x128xf32>
    %379 = math.tanh %378 : vector<8x128xf32>
    %380 = vector.extract_strided_slice %361 {offsets = [0, 384], sizes = [8, 128], strides = [1, 1]} : vector<8x512xf32> to vector<8x128xf32>
    %cst_149 = arith.constant 5.000000e-01 : f32
    %381 = vector.broadcast %cst_149 : f32 to vector<8x128xf32>
    %382 = arith.mulf %381, %380 : vector<8x128xf32>
    %383 = math.tanh %382 : vector<8x128xf32>
    %cst_150 = arith.constant 5.000000e-01 : f32
    %384 = vector.broadcast %cst_150 : f32 to vector<8x128xf32>
    %385 = arith.mulf %384, %383 : vector<8x128xf32>
    %cst_151 = arith.constant 5.000000e-01 : f32
    %386 = vector.broadcast %cst_151 : f32 to vector<8x128xf32>
    %387 = arith.addf %385, %386 : vector<8x128xf32>
    %388 = arith.mulf %377, %314 : vector<8x128xf32>
    %389 = arith.mulf %369, %379 : vector<8x128xf32>
    %390 = arith.addf %388, %389 : vector<8x128xf32>
    %391 = math.tanh %390 : vector<8x128xf32>
    %392 = arith.mulf %387, %391 : vector<8x128xf32>
    %c0_152 = arith.constant 0 : index
    %c128_153 = arith.constant 128 : index
    %393 = vector.load %arg6[%c0_152, %c128_153] : memref<8x256xf32, #tpu.memory_space<vmem>>, vector<8x128xf32>
    tpu.vector_store %arg6[%c0_152, %c128_153], %392 {strides = array<i32>} : memref<8x256xf32, #tpu.memory_space<vmem>>, vector<8x128xf32>,
    %c5_i32 = arith.constant 5 : i32
    %c8_i32_154 = arith.constant 8 : i32
    %394 = arith.muli %c5_i32, %c8_i32_154 : i32
    %395 = tpu.assume_multiple %394, 8 : i32
    %396 = arith.index_cast %395 : i32 to index
    %c0_155 = arith.constant 0 : index
    %397 = vector.load %arg5[%396, %c0_155] : memref<64x512xf32, #tpu.memory_space<vmem>>, vector<8x512xf32>
    %398 = arith.addf %397, %358 : vector<8x512xf32>
    %399 = vector.extract_strided_slice %398 {offsets = [0, 0], sizes = [8, 128], strides = [1, 1]} : vector<8x512xf32> to vector<8x128xf32>
    %cst_156 = arith.constant 5.000000e-01 : f32
    %400 = vector.broadcast %cst_156 : f32 to vector<8x128xf32>
    %401 = arith.mulf %400, %399 : vector<8x128xf32>
    %402 = math.tanh %401 : vector<8x128xf32>
    %cst_157 = arith.constant 5.000000e-01 : f32
    %403 = vector.broadcast %cst_157 : f32 to vector<8x128xf32>
    %404 = arith.mulf %403, %402 : vector<8x128xf32>
    %cst_158 = arith.constant 5.000000e-01 : f32
    %405 = vector.broadcast %cst_158 : f32 to vector<8x128xf32>
    %406 = arith.addf %404, %405 : vector<8x128xf32>
    %407 = vector.extract_strided_slice %398 {offsets = [0, 128], sizes = [8, 128], strides = [1, 1]} : vector<8x512xf32> to vector<8x128xf32>
    %cst_159 = arith.constant 5.000000e-01 : f32
    %408 = vector.broadcast %cst_159 : f32 to vector<8x128xf32>
    %409 = arith.mulf %408, %407 : vector<8x128xf32>
    %410 = math.tanh %409 : vector<8x128xf32>
    %cst_160 = arith.constant 5.000000e-01 : f32
    %411 = vector.broadcast %cst_160 : f32 to vector<8x128xf32>
    %412 = arith.mulf %411, %410 : vector<8x128xf32>
    %cst_161 = arith.constant 5.000000e-01 : f32
    %413 = vector.broadcast %cst_161 : f32 to vector<8x128xf32>
    %414 = arith.addf %412, %413 : vector<8x128xf32>
    %415 = vector.extract_strided_slice %398 {offsets = [0, 256], sizes = [8, 128], strides = [1, 1]} : vector<8x512xf32> to vector<8x128xf32>
    %416 = math.tanh %415 : vector<8x128xf32>
    %417 = vector.extract_strided_slice %398 {offsets = [0, 384], sizes = [8, 128], strides = [1, 1]} : vector<8x512xf32> to vector<8x128xf32>
    %cst_162 = arith.constant 5.000000e-01 : f32
    %418 = vector.broadcast %cst_162 : f32 to vector<8x128xf32>
    %419 = arith.mulf %418, %417 : vector<8x128xf32>
    %420 = math.tanh %419 : vector<8x128xf32>
    %cst_163 = arith.constant 5.000000e-01 : f32
    %421 = vector.broadcast %cst_163 : f32 to vector<8x128xf32>
    %422 = arith.mulf %421, %420 : vector<8x128xf32>
    %cst_164 = arith.constant 5.000000e-01 : f32
    %423 = vector.broadcast %cst_164 : f32 to vector<8x128xf32>
    %424 = arith.addf %422, %423 : vector<8x128xf32>
    %425 = arith.mulf %414, %351 : vector<8x128xf32>
    %426 = arith.mulf %406, %416 : vector<8x128xf32>
    %427 = arith.addf %425, %426 : vector<8x128xf32>
    %428 = math.tanh %427 : vector<8x128xf32>
    %429 = arith.mulf %424, %428 : vector<8x128xf32>
    %c0_165 = arith.constant 0 : index
    %c0_166 = arith.constant 0 : index
    %430 = vector.load %arg6[%c0_165, %c0_166] : memref<8x256xf32, #tpu.memory_space<vmem>>, vector<8x128xf32>
    tpu.vector_store %arg6[%c0_165, %c0_166], %429 {strides = array<i32>} : memref<8x256xf32, #tpu.memory_space<vmem>>, vector<8x128xf32>,
    %c0_167 = arith.constant 0 : index
    %c0_168 = arith.constant 0 : index
    %431 = vector.load %arg6[%c0_167, %c0_168] : memref<8x256xf32, #tpu.memory_space<vmem>>, vector<8x256xf32>
    %c0_169 = arith.constant 0 : index
    %c0_170 = arith.constant 0 : index
    %432 = vector.load %arg2[%c0_169, %c0_170] : memref<256x1024xf32, #tpu.memory_space<vmem>>, vector<256x1024xf32>
    %cst_171 = arith.constant dense<0.000000e+00> : vector<8x1024xf32>
    %433 = tpu.matmul %431, %432, %cst_171 {dimension_numbers = #tpu.dot_dimension_numbers<[1], [0], [0], [1], [0, 0, 1, 1], [], []>} : vector<8x256xf32>, vector<256x1024xf32>, vector<8x1024xf32> -> vector<8x1024xf32>
    %434 = vector.extract_strided_slice %433 {offsets = [0, 0], sizes = [8, 512], strides = [1, 1]} : vector<8x1024xf32> to vector<8x512xf32>
    %435 = vector.extract_strided_slice %433 {offsets = [0, 512], sizes = [8, 512], strides = [1, 1]} : vector<8x1024xf32> to vector<8x512xf32>
    %436 = vector.broadcast %2 : vector<1x512xf32> to vector<8x512xf32>
    %437 = arith.addf %435, %436 : vector<8x512xf32>
    %438 = vector.extract_strided_slice %437 {offsets = [0, 0], sizes = [8, 128], strides = [1, 1]} : vector<8x512xf32> to vector<8x128xf32>
    %cst_172 = arith.constant 5.000000e-01 : f32
    %439 = vector.broadcast %cst_172 : f32 to vector<8x128xf32>
    %440 = arith.mulf %439, %438 : vector<8x128xf32>
    %441 = math.tanh %440 : vector<8x128xf32>
    %cst_173 = arith.constant 5.000000e-01 : f32
    %442 = vector.broadcast %cst_173 : f32 to vector<8x128xf32>
    %443 = arith.mulf %442, %441 : vector<8x128xf32>
    %cst_174 = arith.constant 5.000000e-01 : f32
    %444 = vector.broadcast %cst_174 : f32 to vector<8x128xf32>
    %445 = arith.addf %443, %444 : vector<8x128xf32>
    %446 = vector.extract_strided_slice %437 {offsets = [0, 128], sizes = [8, 128], strides = [1, 1]} : vector<8x512xf32> to vector<8x128xf32>
    %cst_175 = arith.constant 5.000000e-01 : f32
    %447 = vector.broadcast %cst_175 : f32 to vector<8x128xf32>
    %448 = arith.mulf %447, %446 : vector<8x128xf32>
    %449 = math.tanh %448 : vector<8x128xf32>
    %cst_176 = arith.constant 5.000000e-01 : f32
    %450 = vector.broadcast %cst_176 : f32 to vector<8x128xf32>
    %451 = arith.mulf %450, %449 : vector<8x128xf32>
    %cst_177 = arith.constant 5.000000e-01 : f32
    %452 = vector.broadcast %cst_177 : f32 to vector<8x128xf32>
    %453 = arith.addf %451, %452 : vector<8x128xf32>
    %454 = vector.extract_strided_slice %437 {offsets = [0, 256], sizes = [8, 128], strides = [1, 1]} : vector<8x512xf32> to vector<8x128xf32>
    %455 = math.tanh %454 : vector<8x128xf32>
    %456 = vector.extract_strided_slice %437 {offsets = [0, 384], sizes = [8, 128], strides = [1, 1]} : vector<8x512xf32> to vector<8x128xf32>
    %cst_178 = arith.constant 5.000000e-01 : f32
    %457 = vector.broadcast %cst_178 : f32 to vector<8x128xf32>
    %458 = arith.mulf %457, %456 : vector<8x128xf32>
    %459 = math.tanh %458 : vector<8x128xf32>
    %cst_179 = arith.constant 5.000000e-01 : f32
    %460 = vector.broadcast %cst_179 : f32 to vector<8x128xf32>
    %461 = arith.mulf %460, %459 : vector<8x128xf32>
    %cst_180 = arith.constant 5.000000e-01 : f32
    %462 = vector.broadcast %cst_180 : f32 to vector<8x128xf32>
    %463 = arith.addf %461, %462 : vector<8x128xf32>
    %464 = arith.mulf %453, %390 : vector<8x128xf32>
    %465 = arith.mulf %445, %455 : vector<8x128xf32>
    %466 = arith.addf %464, %465 : vector<8x128xf32>
    %467 = math.tanh %466 : vector<8x128xf32>
    %468 = arith.mulf %463, %467 : vector<8x128xf32>
    %c0_181 = arith.constant 0 : index
    %c128_182 = arith.constant 128 : index
    %469 = vector.load %arg6[%c0_181, %c128_182] : memref<8x256xf32, #tpu.memory_space<vmem>>, vector<8x128xf32>
    tpu.vector_store %arg6[%c0_181, %c128_182], %468 {strides = array<i32>} : memref<8x256xf32, #tpu.memory_space<vmem>>, vector<8x128xf32>,
    %c6_i32 = arith.constant 6 : i32
    %c8_i32_183 = arith.constant 8 : i32
    %470 = arith.muli %c6_i32, %c8_i32_183 : i32
    %471 = tpu.assume_multiple %470, 8 : i32
    %472 = arith.index_cast %471 : i32 to index
    %c0_184 = arith.constant 0 : index
    %473 = vector.load %arg5[%472, %c0_184] : memref<64x512xf32, #tpu.memory_space<vmem>>, vector<8x512xf32>
    %474 = arith.addf %473, %434 : vector<8x512xf32>
    %475 = vector.extract_strided_slice %474 {offsets = [0, 0], sizes = [8, 128], strides = [1, 1]} : vector<8x512xf32> to vector<8x128xf32>
    %cst_185 = arith.constant 5.000000e-01 : f32
    %476 = vector.broadcast %cst_185 : f32 to vector<8x128xf32>
    %477 = arith.mulf %476, %475 : vector<8x128xf32>
    %478 = math.tanh %477 : vector<8x128xf32>
    %cst_186 = arith.constant 5.000000e-01 : f32
    %479 = vector.broadcast %cst_186 : f32 to vector<8x128xf32>
    %480 = arith.mulf %479, %478 : vector<8x128xf32>
    %cst_187 = arith.constant 5.000000e-01 : f32
    %481 = vector.broadcast %cst_187 : f32 to vector<8x128xf32>
    %482 = arith.addf %480, %481 : vector<8x128xf32>
    %483 = vector.extract_strided_slice %474 {offsets = [0, 128], sizes = [8, 128], strides = [1, 1]} : vector<8x512xf32> to vector<8x128xf32>
    %cst_188 = arith.constant 5.000000e-01 : f32
    %484 = vector.broadcast %cst_188 : f32 to vector<8x128xf32>
    %485 = arith.mulf %484, %483 : vector<8x128xf32>
    %486 = math.tanh %485 : vector<8x128xf32>
    %cst_189 = arith.constant 5.000000e-01 : f32
    %487 = vector.broadcast %cst_189 : f32 to vector<8x128xf32>
    %488 = arith.mulf %487, %486 : vector<8x128xf32>
    %cst_190 = arith.constant 5.000000e-01 : f32
    %489 = vector.broadcast %cst_190 : f32 to vector<8x128xf32>
    %490 = arith.addf %488, %489 : vector<8x128xf32>
    %491 = vector.extract_strided_slice %474 {offsets = [0, 256], sizes = [8, 128], strides = [1, 1]} : vector<8x512xf32> to vector<8x128xf32>
    %492 = math.tanh %491 : vector<8x128xf32>
    %493 = vector.extract_strided_slice %474 {offsets = [0, 384], sizes = [8, 128], strides = [1, 1]} : vector<8x512xf32> to vector<8x128xf32>
    %cst_191 = arith.constant 5.000000e-01 : f32
    %494 = vector.broadcast %cst_191 : f32 to vector<8x128xf32>
    %495 = arith.mulf %494, %493 : vector<8x128xf32>
    %496 = math.tanh %495 : vector<8x128xf32>
    %cst_192 = arith.constant 5.000000e-01 : f32
    %497 = vector.broadcast %cst_192 : f32 to vector<8x128xf32>
    %498 = arith.mulf %497, %496 : vector<8x128xf32>
    %cst_193 = arith.constant 5.000000e-01 : f32
    %499 = vector.broadcast %cst_193 : f32 to vector<8x128xf32>
    %500 = arith.addf %498, %499 : vector<8x128xf32>
    %501 = arith.mulf %490, %427 : vector<8x128xf32>
    %502 = arith.mulf %482, %492 : vector<8x128xf32>
    %503 = arith.addf %501, %502 : vector<8x128xf32>
    %504 = math.tanh %503 : vector<8x128xf32>
    %505 = arith.mulf %500, %504 : vector<8x128xf32>
    %c0_194 = arith.constant 0 : index
    %c0_195 = arith.constant 0 : index
    %506 = vector.load %arg6[%c0_194, %c0_195] : memref<8x256xf32, #tpu.memory_space<vmem>>, vector<8x128xf32>
    tpu.vector_store %arg6[%c0_194, %c0_195], %505 {strides = array<i32>} : memref<8x256xf32, #tpu.memory_space<vmem>>, vector<8x128xf32>,
    %c0_196 = arith.constant 0 : index
    %c0_197 = arith.constant 0 : index
    %507 = vector.load %arg6[%c0_196, %c0_197] : memref<8x256xf32, #tpu.memory_space<vmem>>, vector<8x256xf32>
    %c0_198 = arith.constant 0 : index
    %c0_199 = arith.constant 0 : index
    %508 = vector.load %arg2[%c0_198, %c0_199] : memref<256x1024xf32, #tpu.memory_space<vmem>>, vector<256x1024xf32>
    %cst_200 = arith.constant dense<0.000000e+00> : vector<8x1024xf32>
    %509 = tpu.matmul %507, %508, %cst_200 {dimension_numbers = #tpu.dot_dimension_numbers<[1], [0], [0], [1], [0, 0, 1, 1], [], []>} : vector<8x256xf32>, vector<256x1024xf32>, vector<8x1024xf32> -> vector<8x1024xf32>
    %510 = vector.extract_strided_slice %509 {offsets = [0, 0], sizes = [8, 512], strides = [1, 1]} : vector<8x1024xf32> to vector<8x512xf32>
    %511 = vector.extract_strided_slice %509 {offsets = [0, 512], sizes = [8, 512], strides = [1, 1]} : vector<8x1024xf32> to vector<8x512xf32>
    %512 = vector.broadcast %2 : vector<1x512xf32> to vector<8x512xf32>
    %513 = arith.addf %511, %512 : vector<8x512xf32>
    %514 = vector.extract_strided_slice %513 {offsets = [0, 0], sizes = [8, 128], strides = [1, 1]} : vector<8x512xf32> to vector<8x128xf32>
    %cst_201 = arith.constant 5.000000e-01 : f32
    %515 = vector.broadcast %cst_201 : f32 to vector<8x128xf32>
    %516 = arith.mulf %515, %514 : vector<8x128xf32>
    %517 = math.tanh %516 : vector<8x128xf32>
    %cst_202 = arith.constant 5.000000e-01 : f32
    %518 = vector.broadcast %cst_202 : f32 to vector<8x128xf32>
    %519 = arith.mulf %518, %517 : vector<8x128xf32>
    %cst_203 = arith.constant 5.000000e-01 : f32
    %520 = vector.broadcast %cst_203 : f32 to vector<8x128xf32>
    %521 = arith.addf %519, %520 : vector<8x128xf32>
    %522 = vector.extract_strided_slice %513 {offsets = [0, 128], sizes = [8, 128], strides = [1, 1]} : vector<8x512xf32> to vector<8x128xf32>
    %cst_204 = arith.constant 5.000000e-01 : f32
    %523 = vector.broadcast %cst_204 : f32 to vector<8x128xf32>
    %524 = arith.mulf %523, %522 : vector<8x128xf32>
    %525 = math.tanh %524 : vector<8x128xf32>
    %cst_205 = arith.constant 5.000000e-01 : f32
    %526 = vector.broadcast %cst_205 : f32 to vector<8x128xf32>
    %527 = arith.mulf %526, %525 : vector<8x128xf32>
    %cst_206 = arith.constant 5.000000e-01 : f32
    %528 = vector.broadcast %cst_206 : f32 to vector<8x128xf32>
    %529 = arith.addf %527, %528 : vector<8x128xf32>
    %530 = vector.extract_strided_slice %513 {offsets = [0, 256], sizes = [8, 128], strides = [1, 1]} : vector<8x512xf32> to vector<8x128xf32>
    %531 = math.tanh %530 : vector<8x128xf32>
    %532 = vector.extract_strided_slice %513 {offsets = [0, 384], sizes = [8, 128], strides = [1, 1]} : vector<8x512xf32> to vector<8x128xf32>
    %cst_207 = arith.constant 5.000000e-01 : f32
    %533 = vector.broadcast %cst_207 : f32 to vector<8x128xf32>
    %534 = arith.mulf %533, %532 : vector<8x128xf32>
    %535 = math.tanh %534 : vector<8x128xf32>
    %cst_208 = arith.constant 5.000000e-01 : f32
    %536 = vector.broadcast %cst_208 : f32 to vector<8x128xf32>
    %537 = arith.mulf %536, %535 : vector<8x128xf32>
    %cst_209 = arith.constant 5.000000e-01 : f32
    %538 = vector.broadcast %cst_209 : f32 to vector<8x128xf32>
    %539 = arith.addf %537, %538 : vector<8x128xf32>
    %540 = arith.mulf %529, %466 : vector<8x128xf32>
    %541 = arith.mulf %521, %531 : vector<8x128xf32>
    %542 = arith.addf %540, %541 : vector<8x128xf32>
    %543 = math.tanh %542 : vector<8x128xf32>
    %544 = arith.mulf %539, %543 : vector<8x128xf32>
    %c0_210 = arith.constant 0 : index
    %c128_211 = arith.constant 128 : index
    %545 = vector.load %arg6[%c0_210, %c128_211] : memref<8x256xf32, #tpu.memory_space<vmem>>, vector<8x128xf32>
    tpu.vector_store %arg6[%c0_210, %c128_211], %544 {strides = array<i32>} : memref<8x256xf32, #tpu.memory_space<vmem>>, vector<8x128xf32>,
    %c7_i32 = arith.constant 7 : i32
    %c8_i32_212 = arith.constant 8 : i32
    %546 = arith.muli %c7_i32, %c8_i32_212 : i32
    %547 = tpu.assume_multiple %546, 8 : i32
    %548 = arith.index_cast %547 : i32 to index
    %c0_213 = arith.constant 0 : index
    %549 = vector.load %arg5[%548, %c0_213] : memref<64x512xf32, #tpu.memory_space<vmem>>, vector<8x512xf32>
    %550 = arith.addf %549, %510 : vector<8x512xf32>
    %551 = vector.extract_strided_slice %550 {offsets = [0, 0], sizes = [8, 128], strides = [1, 1]} : vector<8x512xf32> to vector<8x128xf32>
    %cst_214 = arith.constant 5.000000e-01 : f32
    %552 = vector.broadcast %cst_214 : f32 to vector<8x128xf32>
    %553 = arith.mulf %552, %551 : vector<8x128xf32>
    %554 = math.tanh %553 : vector<8x128xf32>
    %cst_215 = arith.constant 5.000000e-01 : f32
    %555 = vector.broadcast %cst_215 : f32 to vector<8x128xf32>
    %556 = arith.mulf %555, %554 : vector<8x128xf32>
    %cst_216 = arith.constant 5.000000e-01 : f32
    %557 = vector.broadcast %cst_216 : f32 to vector<8x128xf32>
    %558 = arith.addf %556, %557 : vector<8x128xf32>
    %559 = vector.extract_strided_slice %550 {offsets = [0, 128], sizes = [8, 128], strides = [1, 1]} : vector<8x512xf32> to vector<8x128xf32>
    %cst_217 = arith.constant 5.000000e-01 : f32
    %560 = vector.broadcast %cst_217 : f32 to vector<8x128xf32>
    %561 = arith.mulf %560, %559 : vector<8x128xf32>
    %562 = math.tanh %561 : vector<8x128xf32>
    %cst_218 = arith.constant 5.000000e-01 : f32
    %563 = vector.broadcast %cst_218 : f32 to vector<8x128xf32>
    %564 = arith.mulf %563, %562 : vector<8x128xf32>
    %cst_219 = arith.constant 5.000000e-01 : f32
    %565 = vector.broadcast %cst_219 : f32 to vector<8x128xf32>
    %566 = arith.addf %564, %565 : vector<8x128xf32>
    %567 = vector.extract_strided_slice %550 {offsets = [0, 256], sizes = [8, 128], strides = [1, 1]} : vector<8x512xf32> to vector<8x128xf32>
    %568 = math.tanh %567 : vector<8x128xf32>
    %569 = vector.extract_strided_slice %550 {offsets = [0, 384], sizes = [8, 128], strides = [1, 1]} : vector<8x512xf32> to vector<8x128xf32>
    %cst_220 = arith.constant 5.000000e-01 : f32
    %570 = vector.broadcast %cst_220 : f32 to vector<8x128xf32>
    %571 = arith.mulf %570, %569 : vector<8x128xf32>
    %572 = math.tanh %571 : vector<8x128xf32>
    %cst_221 = arith.constant 5.000000e-01 : f32
    %573 = vector.broadcast %cst_221 : f32 to vector<8x128xf32>
    %574 = arith.mulf %573, %572 : vector<8x128xf32>
    %cst_222 = arith.constant 5.000000e-01 : f32
    %575 = vector.broadcast %cst_222 : f32 to vector<8x128xf32>
    %576 = arith.addf %574, %575 : vector<8x128xf32>
    %577 = arith.mulf %566, %503 : vector<8x128xf32>
    %578 = arith.mulf %558, %568 : vector<8x128xf32>
    %579 = arith.addf %577, %578 : vector<8x128xf32>
    %580 = math.tanh %579 : vector<8x128xf32>
    %581 = arith.mulf %576, %580 : vector<8x128xf32>
    %c0_223 = arith.constant 0 : index
    %c0_224 = arith.constant 0 : index
    %582 = vector.load %arg6[%c0_223, %c0_224] : memref<8x256xf32, #tpu.memory_space<vmem>>, vector<8x128xf32>
    tpu.vector_store %arg6[%c0_223, %c0_224], %581 {strides = array<i32>} : memref<8x256xf32, #tpu.memory_space<vmem>>, vector<8x128xf32>,
    %c0_225 = arith.constant 0 : index
    %c0_226 = arith.constant 0 : index
    %583 = vector.load %arg6[%c0_225, %c0_226] : memref<8x256xf32, #tpu.memory_space<vmem>>, vector<8x256xf32>
    %c0_227 = arith.constant 0 : index
    %c0_228 = arith.constant 0 : index
    %584 = vector.load %arg2[%c0_227, %c0_228] : memref<256x1024xf32, #tpu.memory_space<vmem>>, vector<256x1024xf32>
    %cst_229 = arith.constant dense<0.000000e+00> : vector<8x1024xf32>
    %585 = tpu.matmul %583, %584, %cst_229 {dimension_numbers = #tpu.dot_dimension_numbers<[1], [0], [0], [1], [0, 0, 1, 1], [], []>} : vector<8x256xf32>, vector<256x1024xf32>, vector<8x1024xf32> -> vector<8x1024xf32>
    %586 = vector.extract_strided_slice %585 {offsets = [0, 0], sizes = [8, 512], strides = [1, 1]} : vector<8x1024xf32> to vector<8x512xf32>
    %587 = vector.extract_strided_slice %585 {offsets = [0, 512], sizes = [8, 512], strides = [1, 1]} : vector<8x1024xf32> to vector<8x512xf32>
    %588 = vector.broadcast %2 : vector<1x512xf32> to vector<8x512xf32>
    %589 = arith.addf %587, %588 : vector<8x512xf32>
    %590 = vector.extract_strided_slice %589 {offsets = [0, 0], sizes = [8, 128], strides = [1, 1]} : vector<8x512xf32> to vector<8x128xf32>
    %cst_230 = arith.constant 5.000000e-01 : f32
    %591 = vector.broadcast %cst_230 : f32 to vector<8x128xf32>
    %592 = arith.mulf %591, %590 : vector<8x128xf32>
    %593 = math.tanh %592 : vector<8x128xf32>
    %cst_231 = arith.constant 5.000000e-01 : f32
    %594 = vector.broadcast %cst_231 : f32 to vector<8x128xf32>
    %595 = arith.mulf %594, %593 : vector<8x128xf32>
    %cst_232 = arith.constant 5.000000e-01 : f32
    %596 = vector.broadcast %cst_232 : f32 to vector<8x128xf32>
    %597 = arith.addf %595, %596 : vector<8x128xf32>
    %598 = vector.extract_strided_slice %589 {offsets = [0, 128], sizes = [8, 128], strides = [1, 1]} : vector<8x512xf32> to vector<8x128xf32>
    %cst_233 = arith.constant 5.000000e-01 : f32
    %599 = vector.broadcast %cst_233 : f32 to vector<8x128xf32>
    %600 = arith.mulf %599, %598 : vector<8x128xf32>
    %601 = math.tanh %600 : vector<8x128xf32>
    %cst_234 = arith.constant 5.000000e-01 : f32
    %602 = vector.broadcast %cst_234 : f32 to vector<8x128xf32>
    %603 = arith.mulf %602, %601 : vector<8x128xf32>
    %cst_235 = arith.constant 5.000000e-01 : f32
    %604 = vector.broadcast %cst_235 : f32 to vector<8x128xf32>
    %605 = arith.addf %603, %604 : vector<8x128xf32>
    %606 = vector.extract_strided_slice %589 {offsets = [0, 256], sizes = [8, 128], strides = [1, 1]} : vector<8x512xf32> to vector<8x128xf32>
    %607 = math.tanh %606 : vector<8x128xf32>
    %608 = vector.extract_strided_slice %589 {offsets = [0, 384], sizes = [8, 128], strides = [1, 1]} : vector<8x512xf32> to vector<8x128xf32>
    %cst_236 = arith.constant 5.000000e-01 : f32
    %609 = vector.broadcast %cst_236 : f32 to vector<8x128xf32>
    %610 = arith.mulf %609, %608 : vector<8x128xf32>
    %611 = math.tanh %610 : vector<8x128xf32>
    %cst_237 = arith.constant 5.000000e-01 : f32
    %612 = vector.broadcast %cst_237 : f32 to vector<8x128xf32>
    %613 = arith.mulf %612, %611 : vector<8x128xf32>
    %cst_238 = arith.constant 5.000000e-01 : f32
    %614 = vector.broadcast %cst_238 : f32 to vector<8x128xf32>
    %615 = arith.addf %613, %614 : vector<8x128xf32>
    %616 = arith.mulf %605, %542 : vector<8x128xf32>
    %617 = arith.mulf %597, %607 : vector<8x128xf32>
    %618 = arith.addf %616, %617 : vector<8x128xf32>
    %619 = math.tanh %618 : vector<8x128xf32>
    %620 = arith.mulf %615, %619 : vector<8x128xf32>
    %c0_239 = arith.constant 0 : index
    %c128_240 = arith.constant 128 : index
    %621 = vector.load %arg6[%c0_239, %c128_240] : memref<8x256xf32, #tpu.memory_space<vmem>>, vector<8x128xf32>
    tpu.vector_store %arg6[%c0_239, %c128_240], %620 {strides = array<i32>} : memref<8x256xf32, #tpu.memory_space<vmem>>, vector<8x128xf32>,
    %c8_i32_241 = arith.constant 8 : i32
    %c0_242 = arith.constant 0 : index
    %c0_243 = arith.constant 0 : index
    %622 = vector.load %arg3[%c0_242, %c0_243] : memref<129x128xf32, #tpu.memory_space<vmem>>, vector<128x128xf32>
    %c128_244 = arith.constant 128 : index
    %c0_245 = arith.constant 0 : index
    %623 = vector.load %arg3[%c128_244, %c0_245] : memref<129x128xf32, #tpu.memory_space<vmem>>, vector<1x128xf32>
    %c0_246 = arith.constant 0 : index
    %c128_247 = arith.constant 128 : index
    %624 = vector.load %arg6[%c0_246, %c128_247] : memref<8x256xf32, #tpu.memory_space<vmem>>, vector<8x128xf32>
    %cst_248 = arith.constant dense<0.000000e+00> : vector<8x128xf32>
    %625 = tpu.matmul %624, %622, %cst_248 {dimension_numbers = #tpu.dot_dimension_numbers<[1], [0], [0], [1], [0, 0, 1, 1], [], []>} : vector<8x128xf32>, vector<128x128xf32>, vector<8x128xf32> -> vector<8x128xf32>
    %626 = vector.broadcast %623 : vector<1x128xf32> to vector<8x128xf32>
    %627 = arith.addf %625, %626 : vector<8x128xf32>
    %c0_249 = arith.constant 0 : index
    %c0_250 = arith.constant 0 : index
    %628 = vector.load %arg4[%c0_249, %c0_250] : memref<8x128xf32, #tpu.memory_space<vmem>>, vector<8x128xf32>
    tpu.vector_store %arg4[%c0_249, %c0_250], %627 {strides = array<i32>} : memref<8x128xf32, #tpu.memory_space<vmem>>, vector<8x128xf32>,
    return
  }
}

</mosaic_0001>

<llo_original>
// kernel: motion_predictor_multistep.1
$region0: #{motion_predictor_multistep.1}
  #allocation0 [shape = 'u32[]', space=smem, size = 0x4, offset = 0x4, fixed_abs, tag = 'smem constant byte address 0x4 - core index']
  #allocation1 [shape = 'u32[144,128]{1,0:T(1,128)}', space=vmem, size = 0x12000, scoped, tag = 'internal scratch']
  #allocation2 [shape = 'f32[64,512]{1,0:T(8,128)}', space=vmem, size = 0x20000, scoped, tag = 'scratch operand']
  #allocation3 [shape = 'f32[8,256]{1,0:T(8,128)}', space=vmem, size = 0x2000, scoped, tag = 'scratch operand']
  %s0 = inlined_call_operand.vmem [shape: f32[64,1], index: 0, kind: input, shape index: {}]
  %s1 = inlined_call_operand.vmem [shape: f32[3,512], index: 1, kind: input, shape index: {}]
  %s2 = inlined_call_operand.vmem [shape: f32[256,1024], index: 2, kind: input, shape index: {}]
  %s3 = inlined_call_operand.vmem [shape: f32[129,128], index: 3, kind: input, shape index: {}]
  %s4 = inlined_call_operand.vmem [shape: f32[8,128], index: 4, kind: output, shape index: {}]
  %s5 = sld [smem:[#allocation0]]
  $region26: #{motion_predictor_multistep.1} parent=0
    _
  %s7 = ssub.s32 1, %s5
  %s8 = scalar_select 0, %s7, %s5
  // Predicated region
  $region2: #{motion_predictor_multistep.1} parent=0 // pred_check
    _
  $region3: #{motion_predictor_multistep.1} parent=0 // pred_check_branch
    %10 = sbr.rel (0) target = $region5
  $region4: #{motion_predictor_multistep.1} parent=0 // pred_region
    _
  $region5: #{motion_predictor_multistep.1} parent=0 // pred_fallthru
    _
  // Predicated region
  $region6: #{motion_predictor_multistep.1} parent=0 // pred_check
    _
  $region7: #{motion_predictor_multistep.1} parent=0 // pred_check_branch
    %12 = sbr.rel (0) target = $region9
  $region8: #{motion_predictor_multistep.1} parent=0 // pred_region
    _
  $region9: #{motion_predictor_multistep.1} parent=0 // pred_fallthru
    _
  // Predicated region
  $region10: #{motion_predictor_multistep.1} parent=0 // pred_check
    _
  $region11: #{motion_predictor_multistep.1} parent=0 // pred_check_branch
    %14 = sbr.rel (0) target = $region13
  $region12: #{motion_predictor_multistep.1} parent=0 // pred_region
    _
  $region13: #{motion_predictor_multistep.1} parent=0 // pred_fallthru
    _
  // Predicated region
  $region14: #{motion_predictor_multistep.1} parent=0 // pred_check
    _
  $region15: #{motion_predictor_multistep.1} parent=0 // pred_check_branch
    %16 = sbr.rel (0) target = $region17
  $region16: #{motion_predictor_multistep.1} parent=0 // pred_region
    _
  $region17: #{motion_predictor_multistep.1} parent=0 // pred_fallthru
    _
  %v17 = vld [vmem:[%s1] ss:$4 sm:$0xf]
  %s18 = scalar_lea.vmem %s1, 1
  %v19 = vld [vmem:[%s18] ss:$4 sm:$0xf]
  %s20 = scalar_lea.vmem %s1, 2
  %v21 = vld [vmem:[%s20] ss:$4 sm:$0xf]
  %v22 = vld [vmem:[%s0] sm:$0xff]
  %v23 = vld [vmem:[%s0 + $0x8] sm:$0xff]
  %v24 = vld [vmem:[%s0 + $0x10] sm:$0xff]
  %v25 = vld [vmem:[%s0 + $0x18] sm:$0xff]
  %v26 = vld [vmem:[%s0 + $0x20] sm:$0xff]
  %v27 = vld [vmem:[%s0 + $0x28] sm:$0xff]
  %v28 = vld [vmem:[%s0 + $0x30] sm:$0xff]
  %v29 = vld [vmem:[%s0 + $0x38] sm:$0xff]
  %31 = vset.pattern.permute.xlu0 0
  %32 = vperm.xlu0 %31, %v22
  %v33 = vpop.permute.xlu0 %32
  %36 = vset.pattern.permute.xlu0 0
  %37 = vperm.xlu0 %36, %v23
  %v38 = vpop.permute.xlu0 %37
  %41 = vset.pattern.permute.xlu0 0
  %42 = vperm.xlu0 %41, %v24
  %v43 = vpop.permute.xlu0 %42
  %46 = vset.pattern.permute.xlu0 0
  %47 = vperm.xlu0 %46, %v25
  %v48 = vpop.permute.xlu0 %47
  %51 = vset.pattern.permute.xlu0 0
  %52 = vperm.xlu0 %51, %v26
  %v53 = vpop.permute.xlu0 %52
  %56 = vset.pattern.permute.xlu0 0
  %57 = vperm.xlu0 %56, %v27
  %v58 = vpop.permute.xlu0 %57
  %61 = vset.pattern.permute.xlu0 0
  %62 = vperm.xlu0 %61, %v28
  %v63 = vpop.permute.xlu0 %62
  %66 = vset.pattern.permute.xlu0 0
  %67 = vperm.xlu0 %66, %v29
  %v68 = vpop.permute.xlu0 %67
  %v71 = vlaneseq
  %v72 = vshrl.u32 %v71, 7
  %v73 = vsub.s32 0, %v72
  %v74 = vrot.slane %v17, %v73
  %v75 = vlaneseq
  %v76 = vshrl.u32 %v75, 7
  %v77 = vsub.s32 1, %v76
  %v78 = vrot.slane %v17, %v77
  %v79 = vlaneseq
  %v80 = vshrl.u32 %v79, 7
  %v81 = vsub.s32 2, %v80
  %v82 = vrot.slane %v17, %v81
  %v83 = vlaneseq
  %v84 = vshrl.u32 %v83, 7
  %v85 = vsub.s32 3, %v84
  %v86 = vrot.slane %v17, %v85
  %v91 = vmul.f32 %v33, %v74
  %v92 = vmul.f32 %v33, %v78
  %v93 = vmul.f32 %v33, %v82
  %v94 = vmul.f32 %v33, %v86
  %v95 = vmul.f32 %v38, %v74
  %v96 = vmul.f32 %v38, %v78
  %v97 = vmul.f32 %v38, %v82
  %v98 = vmul.f32 %v38, %v86
  %v99 = vmul.f32 %v43, %v74
  %v100 = vmul.f32 %v43, %v78
  %v101 = vmul.f32 %v43, %v82
  %v102 = vmul.f32 %v43, %v86
  %v103 = vmul.f32 %v48, %v74
  %v104 = vmul.f32 %v48, %v78
  %v105 = vmul.f32 %v48, %v82
  %v106 = vmul.f32 %v48, %v86
  %v107 = vmul.f32 %v53, %v74
  %v108 = vmul.f32 %v53, %v78
  %v109 = vmul.f32 %v53, %v82
  %v110 = vmul.f32 %v53, %v86
  %v111 = vmul.f32 %v58, %v74
  %v112 = vmul.f32 %v58, %v78
  %v113 = vmul.f32 %v58, %v82
  %v114 = vmul.f32 %v58, %v86
  %v115 = vmul.f32 %v63, %v74
  %v116 = vmul.f32 %v63, %v78
  %v117 = vmul.f32 %v63, %v82
  %v118 = vmul.f32 %v63, %v86
  %v119 = vmul.f32 %v68, %v74
  %v120 = vmul.f32 %v68, %v78
  %v121 = vmul.f32 %v68, %v82
  %v122 = vmul.f32 %v68, %v86
  %v124 = vlaneseq
  %v125 = vshrl.u32 %v124, 7
  %v126 = vsub.s32 0, %v125
  %v127 = vrot.slane %v19, %v126
  %v128 = vlaneseq
  %v129 = vshrl.u32 %v128, 7
  %v130 = vsub.s32 1, %v129
  %v131 = vrot.slane %v19, %v130
  %v132 = vlaneseq
  %v133 = vshrl.u32 %v132, 7
  %v134 = vsub.s32 2, %v133
  %v135 = vrot.slane %v19, %v134
  %v136 = vlaneseq
  %v137 = vshrl.u32 %v136, 7
  %v138 = vsub.s32 3, %v137
  %v139 = vrot.slane %v19, %v138
  %v144 = vadd.f32 %v91, %v127
  %v145 = vadd.f32 %v92, %v131
  %v146 = vadd.f32 %v93, %v135
  %v147 = vadd.f32 %v94, %v139
  %v148 = vadd.f32 %v95, %v127
  %v149 = vadd.f32 %v96, %v131
  %v150 = vadd.f32 %v97, %v135
  %v151 = vadd.f32 %v98, %v139
  %v152 = vadd.f32 %v99, %v127
  %v153 = vadd.f32 %v100, %v131
  %v154 = vadd.f32 %v101, %v135
  %v155 = vadd.f32 %v102, %v139
  %v156 = vadd.f32 %v103, %v127
  %v157 = vadd.f32 %v104, %v131
  %v158 = vadd.f32 %v105, %v135
  %v159 = vadd.f32 %v106, %v139
  %v160 = vadd.f32 %v107, %v127
  %v161 = vadd.f32 %v108, %v131
  %v162 = vadd.f32 %v109, %v135
  %v163 = vadd.f32 %v110, %v139
  %v164 = vadd.f32 %v111, %v127
  %v165 = vadd.f32 %v112, %v131
  %v166 = vadd.f32 %v113, %v135
  %v167 = vadd.f32 %v114, %v139
  %v168 = vadd.f32 %v115, %v127
  %v169 = vadd.f32 %v116, %v131
  %v170 = vadd.f32 %v117, %v135
  %v171 = vadd.f32 %v118, %v139
  %v172 = vadd.f32 %v119, %v127
  %v173 = vadd.f32 %v120, %v131
  %v174 = vadd.f32 %v121, %v135
  %v175 = vadd.f32 %v122, %v139
  %176 = vst [vmem:[#allocation2] sm:$0xff] %v144
  %177 = vst [vmem:[#allocation2 + $0x8] sm:$0xff] %v145
  %178 = vst [vmem:[#allocation2 + $0x10] sm:$0xff] %v146
  %179 = vst [vmem:[#allocation2 + $0x18] sm:$0xff] %v147
  %180 = vst [vmem:[#allocation2 + $0x20] sm:$0xff] %v148
  %181 = vst [vmem:[#allocation2 + $0x28] sm:$0xff] %v149
  %182 = vst [vmem:[#allocation2 + $0x30] sm:$0xff] %v150
  %183 = vst [vmem:[#allocation2 + $0x38] sm:$0xff] %v151
  %184 = vst [vmem:[#allocation2 + $0x40] sm:$0xff] %v152
  %185 = vst [vmem:[#allocation2 + $0x48] sm:$0xff] %v153
  %186 = vst [vmem:[#allocation2 + $0x50] sm:$0xff] %v154
  %187 = vst [vmem:[#allocation2 + $0x58] sm:$0xff] %v155
  %188 = vst [vmem:[#allocation2 + $0x60] sm:$0xff] %v156
  %189 = vst [vmem:[#allocation2 + $0x68] sm:$0xff] %v157
  %190 = vst [vmem:[#allocation2 + $0x70] sm:$0xff] %v158
  %191 = vst [vmem:[#allocation2 + $0x78] sm:$0xff] %v159
  %192 = vst [vmem:[#allocation2 + $0x80] sm:$0xff] %v160
  %193 = vst [vmem:[#allocation2 + $0x88] sm:$0xff] %v161
  %194 = vst [vmem:[#allocation2 + $0x90] sm:$0xff] %v162
  %195 = vst [vmem:[#allocation2 + $0x98] sm:$0xff] %v163
  %196 = vst [vmem:[#allocation2 + $0xa0] sm:$0xff] %v164
  %197 = vst [vmem:[#allocation2 + $0xa8] sm:$0xff] %v165
  %198 = vst [vmem:[#allocation2 + $0xb0] sm:$0xff] %v166
  %199 = vst [vmem:[#allocation2 + $0xb8] sm:$0xff] %v167
  %200 = vst [vmem:[#allocation2 + $0xc0] sm:$0xff] %v168
  %201 = vst [vmem:[#allocation2 + $0xc8] sm:$0xff] %v169
  %202 = vst [vmem:[#allocation2 + $0xd0] sm:$0xff] %v170
  %203 = vst [vmem:[#allocation2 + $0xd8] sm:$0xff] %v171
  %204 = vst [vmem:[#allocation2 + $0xe0] sm:$0xff] %v172
  %205 = vst [vmem:[#allocation2 + $0xe8] sm:$0xff] %v173
  %206 = vst [vmem:[#allocation2 + $0xf0] sm:$0xff] %v174
  %207 = vst [vmem:[#allocation2 + $0xf8] sm:$0xff] %v175
  %208 = vst [vmem:[#allocation3] sm:$0xff] 0.0
  %209 = vst [vmem:[#allocation3 + $0x8] sm:$0xff] 0.0
  %s210 = smul.u32 0, 4
  %s211 = smul.addr %s210, 8
  %s212 = scalar_lea.vmem [#allocation2], %s211
  %v213 = vld [vmem:[%s212] sm:$0xff]
  %v214 = vld [vmem:[%s212 + $0x8] sm:$0xff]
  %v215 = vld [vmem:[%s212 + $0x10] sm:$0xff]
  %v216 = vld [vmem:[%s212 + $0x18] sm:$0xff]
  %v217 = vadd.f32 %v213, 0.0
  %v218 = vadd.f32 %v214, 0.0
  %v219 = vadd.f32 %v215, 0.0
  %v220 = vadd.f32 %v216, 0.0
  %v221 = vmul.f32 %v217, 0.5
  %v222 = vtanh.pop %v221
  %v223 = vmul.f32 %v222, 0.5
  %v224 = vadd.f32 %v223, 0.5
  %v225 = vmul.f32 %v218, 0.5
  %v226 = vtanh.pop %v225
  %v227 = vmul.f32 %v226, 0.5
  %v228 = vadd.f32 %v227, 0.5
  %v229 = vtanh.pop %v219
  %v230 = vmul.f32 %v220, 0.5
  %v231 = vtanh.pop %v230
  %v232 = vmul.f32 %v231, 0.5
  %v233 = vadd.f32 %v232, 0.5
  %v234 = vmul.f32 %v228, 0.0
  %v235 = vmul.f32 %v224, %v229
  %v236 = vadd.f32 %v234, %v235
  %v237 = vtanh.pop %v236
  %v238 = vmul.f32 %v233, %v237
  %239 = vst [vmem:[#allocation3] sm:$0xff] %v238
  %v240 = vld [vmem:[#allocation3] sm:$0xff]
  %v241 = vld [vmem:[#allocation3 + $0x8] sm:$0xff]
  %v242 = vld [vmem:[%s2] sm:$0xff]
  %v243 = vld [vmem:[%s2 + $0x8] sm:$0xff]
  %v244 = vld [vmem:[%s2 + $0x10] sm:$0xff]
  %v245 = vld [vmem:[%s2 + $0x18] sm:$0xff]
  %v246 = vld [vmem:[%s2 + $0x20] sm:$0xff]
  %v247 = vld [vmem:[%s2 + $0x28] sm:$0xff]
  %v248 = vld [vmem:[%s2 + $0x30] sm:$0xff]
  %v249 = vld [vmem:[%s2 + $0x38] sm:$0xff]
  %v250 = vld [vmem:[%s2 + $0x40] sm:$0xff]
  %v251 = vld [vmem:[%s2 + $0x48] sm:$0xff]
  %v252 = vld [vmem:[%s2 + $0x50] sm:$0xff]
  %v253 = vld [vmem:[%s2 + $0x58] sm:$0xff]
  %v254 = vld [vmem:[%s2 + $0x60] sm:$0xff]
  %v255 = vld [vmem:[%s2 + $0x68] sm:$0xff]
  %v256 = vld [vmem:[%s2 + $0x70] sm:$0xff]
  %v257 = vld [vmem:[%s2 + $0x78] sm:$0xff]
  %v258 = vld [vmem:[%s2 + $0x80] sm:$0xff]
  %v259 = vld [vmem:[%s2 + $0x88] sm:$0xff]
  %v260 = vld [vmem:[%s2 + $0x90] sm:$0xff]
  %v261 = vld [vmem:[%s2 + $0x98] sm:$0xff]
  %v262 = vld [vmem:[%s2 + $0xa0] sm:$0xff]
  %v263 = vld [vmem:[%s2 + $0xa8] sm:$0xff]
  %v264 = vld [vmem:[%s2 + $0xb0] sm:$0xff]
  %v265 = vld [vmem:[%s2 + $0xb8] sm:$0xff]
  %v266 = vld [vmem:[%s2 + $0xc0] sm:$0xff]
  %v267 = vld [vmem:[%s2 + $0xc8] sm:$0xff]
  %v268 = vld [vmem:[%s2 + $0xd0] sm:$0xff]
  %v269 = vld [vmem:[%s2 + $0xd8] sm:$0xff]
  %v270 = vld [vmem:[%s2 + $0xe0] sm:$0xff]
  %v271 = vld [vmem:[%s2 + $0xe8] sm:$0xff]
  %v272 = vld [vmem:[%s2 + $0xf0] sm:$0xff]
  %v273 = vld [vmem:[%s2 + $0xf8] sm:$0xff]
  %v274 = vld [vmem:[%s2 + $0x100] sm:$0xff]
  %v275 = vld [vmem:[%s2 + $0x108] sm:$0xff]
  %v276 = vld [vmem:[%s2 + $0x110] sm:$0xff]
  %v277 = vld [vmem:[%s2 + $0x118] sm:$0xff]
  %v278 = vld [vmem:[%s2 + $0x120] sm:$0xff]
  %v279 = vld [vmem:[%s2 + $0x128] sm:$0xff]
  %v280 = vld [vmem:[%s2 + $0x130] sm:$0xff]
  %v281 = vld [vmem:[%s2 + $0x138] sm:$0xff]
  %v282 = vld [vmem:[%s2 + $0x140] sm:$0xff]
  %v283 = vld [vmem:[%s2 + $0x148] sm:$0xff]
  %v284 = vld [vmem:[%s2 + $0x150] sm:$0xff]
  %v285 = vld [vmem:[%s2 + $0x158] sm:$0xff]
  %v286 = vld [vmem:[%s2 + $0x160] sm:$0xff]
  %v287 = vld [vmem:[%s2 + $0x168] sm:$0xff]
  %v288 = vld [vmem:[%s2 + $0x170] sm:$0xff]
  %v289 = vld [vmem:[%s2 + $0x178] sm:$0xff]
  %v290 = vld [vmem:[%s2 + $0x180] sm:$0xff]
  %v291 = vld [vmem:[%s2 + $0x188] sm:$0xff]
  %v292 = vld [vmem:[%s2 + $0x190] sm:$0xff]
  %v293 = vld [vmem:[%s2 + $0x198] sm:$0xff]
  %v294 = vld [vmem:[%s2 + $0x1a0] sm:$0xff]
  %v295 = vld [vmem:[%s2 + $0x1a8] sm:$0xff]
  %v296 = vld [vmem:[%s2 + $0x1b0] sm:$0xff]
  %v297 = vld [vmem:[%s2 + $0x1b8] sm:$0xff]
  %v298 = vld [vmem:[%s2 + $0x1c0] sm:$0xff]
  %v299 = vld [vmem:[%s2 + $0x1c8] sm:$0xff]
  %v300 = vld [vmem:[%s2 + $0x1d0] sm:$0xff]
  %v301 = vld [vmem:[%s2 + $0x1d8] sm:$0xff]
  %v302 = vld [vmem:[%s2 + $0x1e0] sm:$0xff]
  %v303 = vld [vmem:[%s2 + $0x1e8] sm:$0xff]
  %v304 = vld [vmem:[%s2 + $0x1f0] sm:$0xff]
  %v305 = vld [vmem:[%s2 + $0x1f8] sm:$0xff]
  %v306 = vld [vmem:[%s2 + $0x200] sm:$0xff]
  %v307 = vld [vmem:[%s2 + $0x208] sm:$0xff]
  %v308 = vld [vmem:[%s2 + $0x210] sm:$0xff]
  %v309 = vld [vmem:[%s2 + $0x218] sm:$0xff]
  %v310 = vld [vmem:[%s2 + $0x220] sm:$0xff]
  %v311 = vld [vmem:[%s2 + $0x228] sm:$0xff]
  %v312 = vld [vmem:[%s2 + $0x230] sm:$0xff]
  %v313 = vld [vmem:[%s2 + $0x238] sm:$0xff]
  %v314 = vld [vmem:[%s2 + $0x240] sm:$0xff]
  %v315 = vld [vmem:[%s2 + $0x248] sm:$0xff]
  %v316 = vld [vmem:[%s2 + $0x250] sm:$0xff]
  %v317 = vld [vmem:[%s2 + $0x258] sm:$0xff]
  %v318 = vld [vmem:[%s2 + $0x260] sm:$0xff]
  %v319 = vld [vmem:[%s2 + $0x268] sm:$0xff]
  %v320 = vld [vmem:[%s2 + $0x270] sm:$0xff]
  %v321 = vld [vmem:[%s2 + $0x278] sm:$0xff]
  %v322 = vld [vmem:[%s2 + $0x280] sm:$0xff]
  %v323 = vld [vmem:[%s2 + $0x288] sm:$0xff]
  %v324 = vld [vmem:[%s2 + $0x290] sm:$0xff]
  %v325 = vld [vmem:[%s2 + $0x298] sm:$0xff]
  %v326 = vld [vmem:[%s2 + $0x2a0] sm:$0xff]
  %v327 = vld [vmem:[%s2 + $0x2a8] sm:$0xff]
  %v328 = vld [vmem:[%s2 + $0x2b0] sm:$0xff]
  %v329 = vld [vmem:[%s2 + $0x2b8] sm:$0xff]
  %v330 = vld [vmem:[%s2 + $0x2c0] sm:$0xff]
  %v331 = vld [vmem:[%s2 + $0x2c8] sm:$0xff]
  %v332 = vld [vmem:[%s2 + $0x2d0] sm:$0xff]
  %v333 = vld [vmem:[%s2 + $0x2d8] sm:$0xff]
  %v334 = vld [vmem:[%s2 + $0x2e0] sm:$0xff]
  %v335 = vld [vmem:[%s2 + $0x2e8] sm:$0xff]
  %v336 = vld [vmem:[%s2 + $0x2f0] sm:$0xff]
  %v337 = vld [vmem:[%s2 + $0x2f8] sm:$0xff]
  %v338 = vld [vmem:[%s2 + $0x300] sm:$0xff]
  %v339 = vld [vmem:[%s2 + $0x308] sm:$0xff]
  %v340 = vld [vmem:[%s2 + $0x310] sm:$0xff]
  %v341 = vld [vmem:[%s2 + $0x318] sm:$0xff]
  %v342 = vld [vmem:[%s2 + $0x320] sm:$0xff]
  %v343 = vld [vmem:[%s2 + $0x328] sm:$0xff]
  %v344 = vld [vmem:[%s2 + $0x330] sm:$0xff]
  %v345 = vld [vmem:[%s2 + $0x338] sm:$0xff]
  %v346 = vld [vmem:[%s2 + $0x340] sm:$0xff]
  %v347 = vld [vmem:[%s2 + $0x348] sm:$0xff]
  %v348 = vld [vmem:[%s2 + $0x350] sm:$0xff]
  %v349 = vld [vmem:[%s2 + $0x358] sm:$0xff]
  %v350 = vld [vmem:[%s2 + $0x360] sm:$0xff]
  %v351 = vld [vmem:[%s2 + $0x368] sm:$0xff]
  %v352 = vld [vmem:[%s2 + $0x370] sm:$0xff]
  %v353 = vld [vmem:[%s2 + $0x378] sm:$0xff]
  %v354 = vld [vmem:[%s2 + $0x380] sm:$0xff]
  %v355 = vld [vmem:[%s2 + $0x388] sm:$0xff]
  %v356 = vld [vmem:[%s2 + $0x390] sm:$0xff]
  %v357 = vld [vmem:[%s2 + $0x398] sm:$0xff]
  %v358 = vld [vmem:[%s2 + $0x3a0] sm:$0xff]
  %v359 = vld [vmem:[%s2 + $0x3a8] sm:$0xff]
  %v360 = vld [vmem:[%s2 + $0x3b0] sm:$0xff]
  %v361 = vld [vmem:[%s2 + $0x3b8] sm:$0xff]
  %v362 = vld [vmem:[%s2 + $0x3c0] sm:$0xff]
  %v363 = vld [vmem:[%s2 + $0x3c8] sm:$0xff]
  %v364 = vld [vmem:[%s2 + $0x3d0] sm:$0xff]
  %v365 = vld [vmem:[%s2 + $0x3d8] sm:$0xff]
  %v366 = vld [vmem:[%s2 + $0x3e0] sm:$0xff]
  %v367 = vld [vmem:[%s2 + $0x3e8] sm:$0xff]
  %v368 = vld [vmem:[%s2 + $0x3f0] sm:$0xff]
  %v369 = vld [vmem:[%s2 + $0x3f8] sm:$0xff]
  %v370 = vld [vmem:[%s2 + $0x400] sm:$0xff]
  %v371 = vld [vmem:[%s2 + $0x408] sm:$0xff]
  %v372 = vld [vmem:[%s2 + $0x410] sm:$0xff]
  %v373 = vld [vmem:[%s2 + $0x418] sm:$0xff]
  %v374 = vld [vmem:[%s2 + $0x420] sm:$0xff]
  %v375 = vld [vmem:[%s2 + $0x428] sm:$0xff]
  %v376 = vld [vmem:[%s2 + $0x430] sm:$0xff]
  %v377 = vld [vmem:[%s2 + $0x438] sm:$0xff]
  %v378 = vld [vmem:[%s2 + $0x440] sm:$0xff]
  %v379 = vld [vmem:[%s2 + $0x448] sm:$0xff]
  %v380 = vld [vmem:[%s2 + $0x450] sm:$0xff]
  %v381 = vld [vmem:[%s2 + $0x458] sm:$0xff]
  %v382 = vld [vmem:[%s2 + $0x460] sm:$0xff]
  %v383 = vld [vmem:[%s2 + $0x468] sm:$0xff]
  %v384 = vld [vmem:[%s2 + $0x470] sm:$0xff]
  %v385 = vld [vmem:[%s2 + $0x478] sm:$0xff]
  %v386 = vld [vmem:[%s2 + $0x480] sm:$0xff]
  %v387 = vld [vmem:[%s2 + $0x488] sm:$0xff]
  %v388 = vld [vmem:[%s2 + $0x490] sm:$0xff]
  %v389 = vld [vmem:[%s2 + $0x498] sm:$0xff]
  %v390 = vld [vmem:[%s2 + $0x4a0] sm:$0xff]
  %v391 = vld [vmem:[%s2 + $0x4a8] sm:$0xff]
  %v392 = vld [vmem:[%s2 + $0x4b0] sm:$0xff]
  %v393 = vld [vmem:[%s2 + $0x4b8] sm:$0xff]
  %v394 = vld [vmem:[%s2 + $0x4c0] sm:$0xff]
  %v395 = vld [vmem:[%s2 + $0x4c8] sm:$0xff]
  %v396 = vld [vmem:[%s2 + $0x4d0] sm:$0xff]
  %v397 = vld [vmem:[%s2 + $0x4d8] sm:$0xff]
  %v398 = vld [vmem:[%s2 + $0x4e0] sm:$0xff]
  %v399 = vld [vmem:[%s2 + $0x4e8] sm:$0xff]
  %v400 = vld [vmem:[%s2 + $0x4f0] sm:$0xff]
  %v401 = vld [vmem:[%s2 + $0x4f8] sm:$0xff]
  %v402 = vld [vmem:[%s2 + $0x500] sm:$0xff]
  %v403 = vld [vmem:[%s2 + $0x508] sm:$0xff]
  %v404 = vld [vmem:[%s2 + $0x510] sm:$0xff]
  %v405 = vld [vmem:[%s2 + $0x518] sm:$0xff]
  %v406 = vld [vmem:[%s2 + $0x520] sm:$0xff]
  %v407 = vld [vmem:[%s2 + $0x528] sm:$0xff]
  %v408 = vld [vmem:[%s2 + $0x530] sm:$0xff]
  %v409 = vld [vmem:[%s2 + $0x538] sm:$0xff]
  %v410 = vld [vmem:[%s2 + $0x540] sm:$0xff]
  %v411 = vld [vmem:[%s2 + $0x548] sm:$0xff]
  %v412 = vld [vmem:[%s2 + $0x550] sm:$0xff]
  %v413 = vld [vmem:[%s2 + $0x558] sm:$0xff]
  %v414 = vld [vmem:[%s2 + $0x560] sm:$0xff]
  %v415 = vld [vmem:[%s2 + $0x568] sm:$0xff]
  %v416 = vld [vmem:[%s2 + $0x570] sm:$0xff]
  %v417 = vld [vmem:[%s2 + $0x578] sm:$0xff]
  %v418 = vld [vmem:[%s2 + $0x580] sm:$0xff]
  %v419 = vld [vmem:[%s2 + $0x588] sm:$0xff]
  %v420 = vld [vmem:[%s2 + $0x590] sm:$0xff]
  %v421 = vld [vmem:[%s2 + $0x598] sm:$0xff]
  %v422 = vld [vmem:[%s2 + $0x5a0] sm:$0xff]
  %v423 = vld [vmem:[%s2 + $0x5a8] sm:$0xff]
  %v424 = vld [vmem:[%s2 + $0x5b0] sm:$0xff]
  %v425 = vld [vmem:[%s2 + $0x5b8] sm:$0xff]
  %v426 = vld [vmem:[%s2 + $0x5c0] sm:$0xff]
  %v427 = vld [vmem:[%s2 + $0x5c8] sm:$0xff]
  %v428 = vld [vmem:[%s2 + $0x5d0] sm:$0xff]
  %v429 = vld [vmem:[%s2 + $0x5d8] sm:$0xff]
  %v430 = vld [vmem:[%s2 + $0x5e0] sm:$0xff]
  %v431 = vld [vmem:[%s2 + $0x5e8] sm:$0xff]
  %v432 = vld [vmem:[%s2 + $0x5f0] sm:$0xff]
  %v433 = vld [vmem:[%s2 + $0x5f8] sm:$0xff]
  %v434 = vld [vmem:[%s2 + $0x600] sm:$0xff]
  %v435 = vld [vmem:[%s2 + $0x608] sm:$0xff]
  %v436 = vld [vmem:[%s2 + $0x610] sm:$0xff]
  %v437 = vld [vmem:[%s2 + $0x618] sm:$0xff]
  %v438 = vld [vmem:[%s2 + $0x620] sm:$0xff]
  %v439 = vld [vmem:[%s2 + $0x628] sm:$0xff]
  %v440 = vld [vmem:[%s2 + $0x630] sm:$0xff]
  %v441 = vld [vmem:[%s2 + $0x638] sm:$0xff]
  %v442 = vld [vmem:[%s2 + $0x640] sm:$0xff]
  %v443 = vld [vmem:[%s2 + $0x648] sm:$0xff]
  %v444 = vld [vmem:[%s2 + $0x650] sm:$0xff]
  %v445 = vld [vmem:[%s2 + $0x658] sm:$0xff]
  %v446 = vld [vmem:[%s2 + $0x660] sm:$0xff]
  %v447 = vld [vmem:[%s2 + $0x668] sm:$0xff]
  %v448 = vld [vmem:[%s2 + $0x670] sm:$0xff]
  %v449 = vld [vmem:[%s2 + $0x678] sm:$0xff]
  %v450 = vld [vmem:[%s2 + $0x680] sm:$0xff]
  %v451 = vld [vmem:[%s2 + $0x688] sm:$0xff]
  %v452 = vld [vmem:[%s2 + $0x690] sm:$0xff]
  %v453 = vld [vmem:[%s2 + $0x698] sm:$0xff]
  %v454 = vld [vmem:[%s2 + $0x6a0] sm:$0xff]
  %v455 = vld [vmem:[%s2 + $0x6a8] sm:$0xff]
  %v456 = vld [vmem:[%s2 + $0x6b0] sm:$0xff]
  %v457 = vld [vmem:[%s2 + $0x6b8] sm:$0xff]
  %v458 = vld [vmem:[%s2 + $0x6c0] sm:$0xff]
  %v459 = vld [vmem:[%s2 + $0x6c8] sm:$0xff]
  %v460 = vld [vmem:[%s2 + $0x6d0] sm:$0xff]
  %v461 = vld [vmem:[%s2 + $0x6d8] sm:$0xff]
  %v462 = vld [vmem:[%s2 + $0x6e0] sm:$0xff]
  %v463 = vld [vmem:[%s2 + $0x6e8] sm:$0xff]
  %v464 = vld [vmem:[%s2 + $0x6f0] sm:$0xff]
  %v465 = vld [vmem:[%s2 + $0x6f8] sm:$0xff]
  %v466 = vld [vmem:[%s2 + $0x700] sm:$0xff]
  %v467 = vld [vmem:[%s2 + $0x708] sm:$0xff]
  %v468 = vld [vmem:[%s2 + $0x710] sm:$0xff]
  %v469 = vld [vmem:[%s2 + $0x718] sm:$0xff]
  %v470 = vld [vmem:[%s2 + $0x720] sm:$0xff]
  %v471 = vld [vmem:[%s2 + $0x728] sm:$0xff]
  %v472 = vld [vmem:[%s2 + $0x730] sm:$0xff]
  %v473 = vld [vmem:[%s2 + $0x738] sm:$0xff]
  %v474 = vld [vmem:[%s2 + $0x740] sm:$0xff]
  %v475 = vld [vmem:[%s2 + $0x748] sm:$0xff]
  %v476 = vld [vmem:[%s2 + $0x750] sm:$0xff]
  %v477 = vld [vmem:[%s2 + $0x758] sm:$0xff]
  %v478 = vld [vmem:[%s2 + $0x760] sm:$0xff]
  %v479 = vld [vmem:[%s2 + $0x768] sm:$0xff]
  %v480 = vld [vmem:[%s2 + $0x770] sm:$0xff]
  %v481 = vld [vmem:[%s2 + $0x778] sm:$0xff]
  %v482 = vld [vmem:[%s2 + $0x780] sm:$0xff]
  %v483 = vld [vmem:[%s2 + $0x788] sm:$0xff]
  %v484 = vld [vmem:[%s2 + $0x790] sm:$0xff]
  %v485 = vld [vmem:[%s2 + $0x798] sm:$0xff]
  %v486 = vld [vmem:[%s2 + $0x7a0] sm:$0xff]
  %v487 = vld [vmem:[%s2 + $0x7a8] sm:$0xff]
  %v488 = vld [vmem:[%s2 + $0x7b0] sm:$0xff]
  %v489 = vld [vmem:[%s2 + $0x7b8] sm:$0xff]
  %v490 = vld [vmem:[%s2 + $0x7c0] sm:$0xff]
  %v491 = vld [vmem:[%s2 + $0x7c8] sm:$0xff]
  %v492 = vld [vmem:[%s2 + $0x7d0] sm:$0xff]
  %v493 = vld [vmem:[%s2 + $0x7d8] sm:$0xff]
  %v494 = vld [vmem:[%s2 + $0x7e0] sm:$0xff]
  %v495 = vld [vmem:[%s2 + $0x7e8] sm:$0xff]
  %v496 = vld [vmem:[%s2 + $0x7f0] sm:$0xff]
  %v497 = vld [vmem:[%s2 + $0x7f8] sm:$0xff]
  %498 = vmatprep.subr.mxu0 %v243
  %499 = vmatpush1.msra.mxu0 %v242
  %500 = vmatprep.subr.mxu0 %v251
  %501 = vmatpush1.msra.mxu0 %v250
  %502 = vmatprep.subr.mxu0 %v259
  %503 = vmatpush1.msra.mxu0 %v258
  %504 = vmatprep.subr.mxu0 %v267
  %505 = vmatpush1.msra.mxu0 %v266
  %506 = vmatprep.subr.mxu0 %v275
  %507 = vmatpush1.msra.mxu0 %v274
  %508 = vmatprep.subr.mxu0 %v283
  %509 = vmatpush1.msra.mxu0 %v282
  %510 = vmatprep.subr.mxu0 %v291
  %511 = vmatpush1.msra.mxu0 %v290
  %512 = vmatprep.subr.mxu0 %v299
  %513 = vmatpush1.msra.mxu0 %v298
  %514 = vmatprep.subr.mxu0 %v307
  %515 = vmatpush1.msra.mxu0 %v306
  %516 = vmatprep.subr.mxu0 %v315
  %517 = vmatpush1.msra.mxu0 %v314
  %518 = vmatprep.subr.mxu0 %v323
  %519 = vmatpush1.msra.mxu0 %v322
  %520 = vmatprep.subr.mxu0 %v331
  %521 = vmatpush1.msra.mxu0 %v330
  %522 = vmatprep.subr.mxu0 %v339
  %523 = vmatpush1.msra.mxu0 %v338
  %524 = vmatprep.subr.mxu0 %v347
  %525 = vmatpush1.msra.mxu0 %v346
  %526 = vmatprep.subr.mxu0 %v355
  %527 = vmatpush1.msra.mxu0 %v354
  %528 = vmatprep.subr.mxu0 %v363
  %529 = vmatpush1.msra.mxu0 %v362
  %530 = vmatprep.subr.mxu0 %v371
  %531 = vmatpush1.msra.mxu0 %v370
  %532 = vmatprep.subr.mxu0 %v379
  %533 = vmatpush1.msra.mxu0 %v378
  %534 = vmatprep.subr.mxu0 %v387
  %535 = vmatpush1.msra.mxu0 %v386
  %536 = vmatprep.subr.mxu0 %v395
  %537 = vmatpush1.msra.mxu0 %v394
  %538 = vmatprep.subr.mxu0 %v403
  %539 = vmatpush1.msra.mxu0 %v402
  %540 = vmatprep.subr.mxu0 %v411
  %541 = vmatpush1.msra.mxu0 %v410
  %542 = vmatprep.subr.mxu0 %v419
  %543 = vmatpush1.msra.mxu0 %v418
  %544 = vmatprep.subr.mxu0 %v427
  %545 = vmatpush1.msra.mxu0 %v426
  %546 = vmatprep.subr.mxu0 %v435
  %547 = vmatpush1.msra.mxu0 %v434
  %548 = vmatprep.subr.mxu0 %v443
  %549 = vmatpush1.msra.mxu0 %v442
  %550 = vmatprep.subr.mxu0 %v451
  %551 = vmatpush1.msra.mxu0 %v450
  %552 = vmatprep.subr.mxu0 %v459
  %553 = vmatpush1.msra.mxu0 %v458
  %554 = vmatprep.subr.mxu0 %v467
  %555 = vmatpush1.msra.mxu0 %v466
  %556 = vmatprep.subr.mxu0 %v475
  %557 = vmatpush1.msra.mxu0 %v474
  %558 = vmatprep.subr.mxu0 %v483
  %559 = vmatpush1.msra.mxu0 %v482
  %560 = vmatprep.subr.mxu0 %v491
  %561 = vmatpush1.msra.mxu0 %v490
  %562 = vmatprep.mubr.f32.mxu0 %v241
  %563 = vmatmul.mubr.f32.gmra.mrb[0].mxu0 %v240
  %v564 = vpop.f32.mrb[0].mxu0
  %v565 = vadd.f32 0.0, %v564
  %v566 = vpop.f32.mrb[0].mxu0
  %v567 = vadd.f32 0.0, %v566
  %568 = vdwg.mxu0
  %569 = vmatprep.subr.mxu0 %v245
  %570 = vmatpush1.msra.mxu0 %v244
  %571 = vmatprep.subr.mxu0 %v253
  %572 = vmatpush1.msra.mxu0 %v252
  %573 = vmatprep.subr.mxu0 %v261
  %574 = vmatpush1.msra.mxu0 %v260
  %575 = vmatprep.subr.mxu0 %v269
  %576 = vmatpush1.msra.mxu0 %v268
  %577 = vmatprep.subr.mxu0 %v277
  %578 = vmatpush1.msra.mxu0 %v276
  %579 = vmatprep.subr.mxu0 %v285
  %580 = vmatpush1.msra.mxu0 %v284
  %581 = vmatprep.subr.mxu0 %v293
  %582 = vmatpush1.msra.mxu0 %v292
  %583 = vmatprep.subr.mxu0 %v301
  %584 = vmatpush1.msra.mxu0 %v300
  %585 = vmatprep.subr.mxu0 %v309
  %586 = vmatpush1.msra.mxu0 %v308
  %587 = vmatprep.subr.mxu0 %v317
  %588 = vmatpush1.msra.mxu0 %v316
  %589 = vmatprep.subr.mxu0 %v325
  %590 = vmatpush1.msra.mxu0 %v324
  %591 = vmatprep.subr.mxu0 %v333
  %592 = vmatpush1.msra.mxu0 %v332
  %593 = vmatprep.subr.mxu0 %v341
  %594 = vmatpush1.msra.mxu0 %v340
  %595 = vmatprep.subr.mxu0 %v349
  %596 = vmatpush1.msra.mxu0 %v348
  %597 = vmatprep.subr.mxu0 %v357
  %598 = vmatpush1.msra.mxu0 %v356
  %599 = vmatprep.subr.mxu0 %v365
  %600 = vmatpush1.msra.mxu0 %v364
  %601 = vmatprep.subr.mxu0 %v373
  %602 = vmatpush1.msra.mxu0 %v372
  %603 = vmatprep.subr.mxu0 %v381
  %604 = vmatpush1.msra.mxu0 %v380
  %605 = vmatprep.subr.mxu0 %v389
  %606 = vmatpush1.msra.mxu0 %v388
  %607 = vmatprep.subr.mxu0 %v397
  %608 = vmatpush1.msra.mxu0 %v396
  %609 = vmatprep.subr.mxu0 %v405
  %610 = vmatpush1.msra.mxu0 %v404
  %611 = vmatprep.subr.mxu0 %v413
  %612 = vmatpush1.msra.mxu0 %v412
  %613 = vmatprep.subr.mxu0 %v421
  %614 = vmatpush1.msra.mxu0 %v420
  %615 = vmatprep.subr.mxu0 %v429
  %616 = vmatpush1.msra.mxu0 %v428
  %617 = vmatprep.subr.mxu0 %v437
  %618 = vmatpush1.msra.mxu0 %v436
  %619 = vmatprep.subr.mxu0 %v445
  %620 = vmatpush1.msra.mxu0 %v444
  %621 = vmatprep.subr.mxu0 %v453
  %622 = vmatpush1.msra.mxu0 %v452
  %623 = vmatprep.subr.mxu0 %v461
  %624 = vmatpush1.msra.mxu0 %v460
  %625 = vmatprep.subr.mxu0 %v469
  %626 = vmatpush1.msra.mxu0 %v468
  %627 = vmatprep.subr.mxu0 %v477
  %628 = vmatpush1.msra.mxu0 %v476
  %629 = vmatprep.subr.mxu0 %v485
  %630 = vmatpush1.msra.mxu0 %v484
  %631 = vmatprep.subr.mxu0 %v493
  %632 = vmatpush1.msra.mxu0 %v492
  %633 = vmatprep.mubr.f32.mxu0 %v241
  %634 = vmatmul.mubr.f32.gmra.mrb[0].mxu0 %v240
  %v635 = vpop.f32.mrb[0].mxu0
  %v636 = vadd.f32 0.0, %v635
  %v637 = vpop.f32.mrb[0].mxu0
  %v638 = vadd.f32 0.0, %v637
  %639 = vdwg.mxu0
  %640 = vmatprep.subr.mxu0 %v247
  %641 = vmatpush1.msra.mxu0 %v246
  %642 = vmatprep.subr.mxu0 %v255
  %643 = vmatpush1.msra.mxu0 %v254
  %644 = vmatprep.subr.mxu0 %v263
  %645 = vmatpush1.msra.mxu0 %v262
  %646 = vmatprep.subr.mxu0 %v271
  %647 = vmatpush1.msra.mxu0 %v270
  %648 = vmatprep.subr.mxu0 %v279
  %649 = vmatpush1.msra.mxu0 %v278
  %650 = vmatprep.subr.mxu0 %v287
  %651 = vmatpush1.msra.mxu0 %v286
  %652 = vmatprep.subr.mxu0 %v295
  %653 = vmatpush1.msra.mxu0 %v294
  %654 = vmatprep.subr.mxu0 %v303
  %655 = vmatpush1.msra.mxu0 %v302
  %656 = vmatprep.subr.mxu0 %v311
  %657 = vmatpush1.msra.mxu0 %v310
  %658 = vmatprep.subr.mxu0 %v319
  %659 = vmatpush1.msra.mxu0 %v318
  %660 = vmatprep.subr.mxu0 %v327
  %661 = vmatpush1.msra.mxu0 %v326
  %662 = vmatprep.subr.mxu0 %v335
  %663 = vmatpush1.msra.mxu0 %v334
  %664 = vmatprep.subr.mxu0 %v343
  %665 = vmatpush1.msra.mxu0 %v342
  %666 = vmatprep.subr.mxu0 %v351
  %667 = vmatpush1.msra.mxu0 %v350
  %668 = vmatprep.subr.mxu0 %v359
  %669 = vmatpush1.msra.mxu0 %v358
  %670 = vmatprep.subr.mxu0 %v367
  %671 = vmatpush1.msra.mxu0 %v366
  %672 = vmatprep.subr.mxu0 %v375
  %673 = vmatpush1.msra.mxu0 %v374
  %674 = vmatprep.subr.mxu0 %v383
  %675 = vmatpush1.msra.mxu0 %v382
  %676 = vmatprep.subr.mxu0 %v391
  %677 = vmatpush1.msra.mxu0 %v390
  %678 = vmatprep.subr.mxu0 %v399
  %679 = vmatpush1.msra.mxu0 %v398
  %680 = vmatprep.subr.mxu0 %v407
  %681 = vmatpush1.msra.mxu0 %v406
  %682 = vmatprep.subr.mxu0 %v415
  %683 = vmatpush1.msra.mxu0 %v414
  %684 = vmatprep.subr.mxu0 %v423
  %685 = vmatpush1.msra.mxu0 %v422
  %686 = vmatprep.subr.mxu0 %v431
  %687 = vmatpush1.msra.mxu0 %v430
  %688 = vmatprep.subr.mxu0 %v439
  %689 = vmatpush1.msra.mxu0 %v438
  %690 = vmatprep.subr.mxu0 %v447
  %691 = vmatpush1.msra.mxu0 %v446
  %692 = vmatprep.subr.mxu0 %v455
  %693 = vmatpush1.msra.mxu0 %v454
  %694 = vmatprep.subr.mxu0 %v463
  %695 = vmatpush1.msra.mxu0 %v462
  %696 = vmatprep.subr.mxu0 %v471
  %697 = vmatpush1.msra.mxu0 %v470
  %698 = vmatprep.subr.mxu0 %v479
  %699 = vmatpush1.msra.mxu0 %v478
  %700 = vmatprep.subr.mxu0 %v487
  %701 = vmatpush1.msra.mxu0 %v486
  %702 = vmatprep.subr.mxu0 %v495
  %703 = vmatpush1.msra.mxu0 %v494
  %704 = vmatprep.mubr.f32.mxu0 %v241
  %705 = vmatmul.mubr.f32.gmra.mrb[0].mxu0 %v240
  %v706 = vpop.f32.mrb[0].mxu0
  %v707 = vadd.f32 0.0, %v706
  %v708 = vpop.f32.mrb[0].mxu0
  %v709 = vadd.f32 0.0, %v708
  %710 = vdwg.mxu0
  %711 = vmatprep.subr.mxu0 %v249
  %712 = vmatpush1.msra.mxu0 %v248
  %713 = vmatprep.subr.mxu0 %v257
  %714 = vmatpush1.msra.mxu0 %v256
  %715 = vmatprep.subr.mxu0 %v265
  %716 = vmatpush1.msra.mxu0 %v264
  %717 = vmatprep.subr.mxu0 %v273
  %718 = vmatpush1.msra.mxu0 %v272
  %719 = vmatprep.subr.mxu0 %v281
  %720 = vmatpush1.msra.mxu0 %v280
  %721 = vmatprep.subr.mxu0 %v289
  %722 = vmatpush1.msra.mxu0 %v288
  %723 = vmatprep.subr.mxu0 %v297
  %724 = vmatpush1.msra.mxu0 %v296
  %725 = vmatprep.subr.mxu0 %v305
  %726 = vmatpush1.msra.mxu0 %v304
  %727 = vmatprep.subr.mxu0 %v313
  %728 = vmatpush1.msra.mxu0 %v312
  %729 = vmatprep.subr.mxu0 %v321
  %730 = vmatpush1.msra.mxu0 %v320
  %731 = vmatprep.subr.mxu0 %v329
  %732 = vmatpush1.msra.mxu0 %v328
  %733 = vmatprep.subr.mxu0 %v337
  %734 = vmatpush1.msra.mxu0 %v336
  %735 = vmatprep.subr.mxu0 %v345
  %736 = vmatpush1.msra.mxu0 %v344
  %737 = vmatprep.subr.mxu0 %v353
  %738 = vmatpush1.msra.mxu0 %v352
  %739 = vmatprep.subr.mxu0 %v361
  %740 = vmatpush1.msra.mxu0 %v360
  %741 = vmatprep.subr.mxu0 %v369
  %742 = vmatpush1.msra.mxu0 %v368
  %743 = vmatprep.subr.mxu0 %v377
  %744 = vmatpush1.msra.mxu0 %v376
  %745 = vmatprep.subr.mxu0 %v385
  %746 = vmatpush1.msra.mxu0 %v384
  %747 = vmatprep.subr.mxu0 %v393
  %748 = vmatpush1.msra.mxu0 %v392
  %749 = vmatprep.subr.mxu0 %v401
  %750 = vmatpush1.msra.mxu0 %v400
  %751 = vmatprep.subr.mxu0 %v409
  %752 = vmatpush1.msra.mxu0 %v408
  %753 = vmatprep.subr.mxu0 %v417
  %754 = vmatpush1.msra.mxu0 %v416
  %755 = vmatprep.subr.mxu0 %v425
  %756 = vmatpush1.msra.mxu0 %v424
  %757 = vmatprep.subr.mxu0 %v433
  %758 = vmatpush1.msra.mxu0 %v432
  %759 = vmatprep.subr.mxu0 %v441
  %760 = vmatpush1.msra.mxu0 %v440
  %761 = vmatprep.subr.mxu0 %v449
  %762 = vmatpush1.msra.mxu0 %v448
  %763 = vmatprep.subr.mxu0 %v457
  %764 = vmatpush1.msra.mxu0 %v456
  %765 = vmatprep.subr.mxu0 %v465
  %766 = vmatpush1.msra.mxu0 %v464
  %767 = vmatprep.subr.mxu0 %v473
  %768 = vmatpush1.msra.mxu0 %v472
  %769 = vmatprep.subr.mxu0 %v481
  %770 = vmatpush1.msra.mxu0 %v480
  %771 = vmatprep.subr.mxu0 %v489
  %772 = vmatpush1.msra.mxu0 %v488
  %773 = vmatprep.subr.mxu0 %v497
  %774 = vmatpush1.msra.mxu0 %v496
  %775 = vmatprep.mubr.f32.mxu0 %v241
  %776 = vmatmul.mubr.f32.gmra.mrb[0].mxu0 %v240
  %v777 = vpop.f32.mrb[0].mxu0
  %v778 = vadd.f32 0.0, %v777
  %v779 = vpop.f32.mrb[0].mxu0
  %v780 = vadd.f32 0.0, %v779
  %781 = vdwg.mxu0
  %v783 = vlaneseq
  %v784 = vshrl.u32 %v783, 7
  %v785 = vsub.s32 0, %v784
  %v786 = vrot.slane %v21, %v785
  %v787 = vlaneseq
  %v788 = vshrl.u32 %v787, 7
  %v789 = vsub.s32 1, %v788
  %v790 = vrot.slane %v21, %v789
  %v791 = vlaneseq
  %v792 = vshrl.u32 %v791, 7
  %v793 = vsub.s32 2, %v792
  %v794 = vrot.slane %v21, %v793
  %v795 = vlaneseq
  %v796 = vshrl.u32 %v795, 7
  %v797 = vsub.s32 3, %v796
  %v798 = vrot.slane %v21, %v797
  %v803 = vadd.f32 %v707, %v786
  %v804 = vadd.f32 %v709, %v790
  %v805 = vadd.f32 %v778, %v794
  %v806 = vadd.f32 %v780, %v798
  %v807 = vmul.f32 %v803, 0.5
  %v808 = vtanh.pop %v807
  %v809 = vmul.f32 %v808, 0.5
  %v810 = vadd.f32 %v809, 0.5
  %v811 = vmul.f32 %v804, 0.5
  %v812 = vtanh.pop %v811
  %v813 = vmul.f32 %v812, 0.5
  %v814 = vadd.f32 %v813, 0.5
  %v815 = vtanh.pop %v805
  %v816 = vmul.f32 %v806, 0.5
  %v817 = vtanh.pop %v816
  %v818 = vmul.f32 %v817, 0.5
  %v819 = vadd.f32 %v818, 0.5
  %v820 = vmul.f32 %v814, 0.0
  %v821 = vmul.f32 %v810, %v815
  %v822 = vadd.f32 %v820, %v821
  %v823 = vtanh.pop %v822
  %v824 = vmul.f32 %v819, %v823
  %825 = vst [vmem:[#allocation3 + $0x8] sm:$0xff] %v824
  %s826 = smul.u32 1, 4
  %s827 = smul.addr %s826, 8
  %s828 = scalar_lea.vmem [#allocation2], %s827
  %v829 = vld [vmem:[%s828] sm:$0xff]
  %v830 = vld [vmem:[%s828 + $0x8] sm:$0xff]
  %v831 = vld [vmem:[%s828 + $0x10] sm:$0xff]
  %v832 = vld [vmem:[%s828 + $0x18] sm:$0xff]
  %v833 = vadd.f32 %v829, %v565
  %v834 = vadd.f32 %v830, %v567
  %v835 = vadd.f32 %v831, %v636
  %v836 = vadd.f32 %v832, %v638
  %v837 = vmul.f32 %v833, 0.5
  %v838 = vtanh.pop %v837
  %v839 = vmul.f32 %v838, 0.5
  %v840 = vadd.f32 %v839, 0.5
  %v841 = vmul.f32 %v834, 0.5
  %v842 = vtanh.pop %v841
  %v843 = vmul.f32 %v842, 0.5
  %v844 = vadd.f32 %v843, 0.5
  %v845 = vtanh.pop %v835
  %v846 = vmul.f32 %v836, 0.5
  %v847 = vtanh.pop %v846
  %v848 = vmul.f32 %v847, 0.5
  %v849 = vadd.f32 %v848, 0.5
  %v850 = vmul.f32 %v844, %v236
  %v851 = vmul.f32 %v840, %v845
  %v852 = vadd.f32 %v850, %v851
  %v853 = vtanh.pop %v852
  %v854 = vmul.f32 %v849, %v853
  %855 = vst [vmem:[#allocation3] sm:$0xff] %v854
  %v856 = vld [vmem:[#allocation3] sm:$0xff]
  %v857 = vld [vmem:[#allocation3 + $0x8] sm:$0xff]
  %v858 = vld [vmem:[%s2] sm:$0xff]
  %v859 = vld [vmem:[%s2 + $0x8] sm:$0xff]
  %v860 = vld [vmem:[%s2 + $0x10] sm:$0xff]
  %v861 = vld [vmem:[%s2 + $0x18] sm:$0xff]
  %v862 = vld [vmem:[%s2 + $0x20] sm:$0xff]
  %v863 = vld [vmem:[%s2 + $0x28] sm:$0xff]
  %v864 = vld [vmem:[%s2 + $0x30] sm:$0xff]
  %v865 = vld [vmem:[%s2 + $0x38] sm:$0xff]
  %v866 = vld [vmem:[%s2 + $0x40] sm:$0xff]
  %v867 = vld [vmem:[%s2 + $0x48] sm:$0xff]
  %v868 = vld [vmem:[%s2 + $0x50] sm:$0xff]
  %v869 = vld [vmem:[%s2 + $0x58] sm:$0xff]
  %v870 = vld [vmem:[%s2 + $0x60] sm:$0xff]
  %v871 = vld [vmem:[%s2 + $0x68] sm:$0xff]
  %v872 = vld [vmem:[%s2 + $0x70] sm:$0xff]
  %v873 = vld [vmem:[%s2 + $0x78] sm:$0xff]
  %v874 = vld [vmem:[%s2 + $0x80] sm:$0xff]
  %v875 = vld [vmem:[%s2 + $0x88] sm:$0xff]
  %v876 = vld [vmem:[%s2 + $0x90] sm:$0xff]
  %v877 = vld [vmem:[%s2 + $0x98] sm:$0xff]
  %v878 = vld [vmem:[%s2 + $0xa0] sm:$0xff]
  %v879 = vld [vmem:[%s2 + $0xa8] sm:$0xff]
  %v880 = vld [vmem:[%s2 + $0xb0] sm:$0xff]
  %v881 = vld [vmem:[%s2 + $0xb8] sm:$0xff]
  %v882 = vld [vmem:[%s2 + $0xc0] sm:$0xff]
  %v883 = vld [vmem:[%s2 + $0xc8] sm:$0xff]
  %v884 = vld [vmem:[%s2 + $0xd0] sm:$0xff]
  %v885 = vld [vmem:[%s2 + $0xd8] sm:$0xff]
  %v886 = vld [vmem:[%s2 + $0xe0] sm:$0xff]
  %v887 = vld [vmem:[%s2 + $0xe8] sm:$0xff]
  %v888 = vld [vmem:[%s2 + $0xf0] sm:$0xff]
  %v889 = vld [vmem:[%s2 + $0xf8] sm:$0xff]
  %v890 = vld [vmem:[%s2 + $0x100] sm:$0xff]
  %v891 = vld [vmem:[%s2 + $0x108] sm:$0xff]
  %v892 = vld [vmem:[%s2 + $0x110] sm:$0xff]
  %v893 = vld [vmem:[%s2 + $0x118] sm:$0xff]
  %v894 = vld [vmem:[%s2 + $0x120] sm:$0xff]
  %v895 = vld [vmem:[%s2 + $0x128] sm:$0xff]
  %v896 = vld [vmem:[%s2 + $0x130] sm:$0xff]
  %v897 = vld [vmem:[%s2 + $0x138] sm:$0xff]
  %v898 = vld [vmem:[%s2 + $0x140] sm:$0xff]
  %v899 = vld [vmem:[%s2 + $0x148] sm:$0xff]
  %v900 = vld [vmem:[%s2 + $0x150] sm:$0xff]
  %v901 = vld [vmem:[%s2 + $0x158] sm:$0xff]
  %v902 = vld [vmem:[%s2 + $0x160] sm:$0xff]
  %v903 = vld [vmem:[%s2 + $0x168] sm:$0xff]
  %v904 = vld [vmem:[%s2 + $0x170] sm:$0xff]
  %v905 = vld [vmem:[%s2 + $0x178] sm:$0xff]
  %v906 = vld [vmem:[%s2 + $0x180] sm:$0xff]
  %v907 = vld [vmem:[%s2 + $0x188] sm:$0xff]
  %v908 = vld [vmem:[%s2 + $0x190] sm:$0xff]
  %v909 = vld [vmem:[%s2 + $0x198] sm:$0xff]
  %v910 = vld [vmem:[%s2 + $0x1a0] sm:$0xff]
  %v911 = vld [vmem:[%s2 + $0x1a8] sm:$0xff]
  %v912 = vld [vmem:[%s2 + $0x1b0] sm:$0xff]
  %v913 = vld [vmem:[%s2 + $0x1b8] sm:$0xff]
  %v914 = vld [vmem:[%s2 + $0x1c0] sm:$0xff]
  %v915 = vld [vmem:[%s2 + $0x1c8] sm:$0xff]
  %v916 = vld [vmem:[%s2 + $0x1d0] sm:$0xff]
  %v917 = vld [vmem:[%s2 + $0x1d8] sm:$0xff]
  %v918 = vld [vmem:[%s2 + $0x1e0] sm:$0xff]
  %v919 = vld [vmem:[%s2 + $0x1e8] sm:$0xff]
  %v920 = vld [vmem:[%s2 + $0x1f0] sm:$0xff]
  %v921 = vld [vmem:[%s2 + $0x1f8] sm:$0xff]
  %v922 = vld [vmem:[%s2 + $0x200] sm:$0xff]
  %v923 = vld [vmem:[%s2 + $0x208] sm:$0xff]
  %v924 = vld [vmem:[%s2 + $0x210] sm:$0xff]
  %v925 = vld [vmem:[%s2 + $0x218] sm:$0xff]
  %v926 = vld [vmem:[%s2 + $0x220] sm:$0xff]
  %v927 = vld [vmem:[%s2 + $0x228] sm:$0xff]
  %v928 = vld [vmem:[%s2 + $0x230] sm:$0xff]
  %v929 = vld [vmem:[%s2 + $0x238] sm:$0xff]
  %v930 = vld [vmem:[%s2 + $0x240] sm:$0xff]
  %v931 = vld [vmem:[%s2 + $0x248] sm:$0xff]
  %v932 = vld [vmem:[%s2 + $0x250] sm:$0xff]
  %v933 = vld [vmem:[%s2 + $0x258] sm:$0xff]
  %v934 = vld [vmem:[%s2 + $0x260] sm:$0xff]
  %v935 = vld [vmem:[%s2 + $0x268] sm:$0xff]
  %v936 = vld [vmem:[%s2 + $0x270] sm:$0xff]
  %v937 = vld [vmem:[%s2 + $0x278] sm:$0xff]
  %v938 = vld [vmem:[%s2 + $0x280] sm:$0xff]
  %v939 = vld [vmem:[%s2 + $0x288] sm:$0xff]
  %v940 = vld [vmem:[%s2 + $0x290] sm:$0xff]
  %v941 = vld [vmem:[%s2 + $0x298] sm:$0xff]
  %v942 = vld [vmem:[%s2 + $0x2a0] sm:$0xff]
  %v943 = vld [vmem:[%s2 + $0x2a8] sm:$0xff]
  %v944 = vld [vmem:[%s2 + $0x2b0] sm:$0xff]
  %v945 = vld [vmem:[%s2 + $0x2b8] sm:$0xff]
  %v946 = vld [vmem:[%s2 + $0x2c0] sm:$0xff]
  %v947 = vld [vmem:[%s2 + $0x2c8] sm:$0xff]
  %v948 = vld [vmem:[%s2 + $0x2d0] sm:$0xff]
  %v949 = vld [vmem:[%s2 + $0x2d8] sm:$0xff]
  %v950 = vld [vmem:[%s2 + $0x2e0] sm:$0xff]
  %v951 = vld [vmem:[%s2 + $0x2e8] sm:$0xff]
  %v952 = vld [vmem:[%s2 + $0x2f0] sm:$0xff]
  %v953 = vld [vmem:[%s2 + $0x2f8] sm:$0xff]
  %v954 = vld [vmem:[%s2 + $0x300] sm:$0xff]
  %v955 = vld [vmem:[%s2 + $0x308] sm:$0xff]
  %v956 = vld [vmem:[%s2 + $0x310] sm:$0xff]
  %v957 = vld [vmem:[%s2 + $0x318] sm:$0xff]
  %v958 = vld [vmem:[%s2 + $0x320] sm:$0xff]
  %v959 = vld [vmem:[%s2 + $0x328] sm:$0xff]
  %v960 = vld [vmem:[%s2 + $0x330] sm:$0xff]
  %v961 = vld [vmem:[%s2 + $0x338] sm:$0xff]
  %v962 = vld [vmem:[%s2 + $0x340] sm:$0xff]
  %v963 = vld [vmem:[%s2 + $0x348] sm:$0xff]
  %v964 = vld [vmem:[%s2 + $0x350] sm:$0xff]
  %v965 = vld [vmem:[%s2 + $0x358] sm:$0xff]
  %v966 = vld [vmem:[%s2 + $0x360] sm:$0xff]
  %v967 = vld [vmem:[%s2 + $0x368] sm:$0xff]
  %v968 = vld [vmem:[%s2 + $0x370] sm:$0xff]
  %v969 = vld [vmem:[%s2 + $0x378] sm:$0xff]
  %v970 = vld [vmem:[%s2 + $0x380] sm:$0xff]
  %v971 = vld [vmem:[%s2 + $0x388] sm:$0xff]
  %v972 = vld [vmem:[%s2 + $0x390] sm:$0xff]
  %v973 = vld [vmem:[%s2 + $0x398] sm:$0xff]
  %v974 = vld [vmem:[%s2 + $0x3a0] sm:$0xff]
  %v975 = vld [vmem:[%s2 + $0x3a8] sm:$0xff]
  %v976 = vld [vmem:[%s2 + $0x3b0] sm:$0xff]
  %v977 = vld [vmem:[%s2 + $0x3b8] sm:$0xff]
  %v978 = vld [vmem:[%s2 + $0x3c0] sm:$0xff]
  %v979 = vld [vmem:[%s2 + $0x3c8] sm:$0xff]
  %v980 = vld [vmem:[%s2 + $0x3d0] sm:$0xff]
  %v981 = vld [vmem:[%s2 + $0x3d8] sm:$0xff]
  %v982 = vld [vmem:[%s2 + $0x3e0] sm:$0xff]
  %v983 = vld [vmem:[%s2 + $0x3e8] sm:$0xff]
  %v984 = vld [vmem:[%s2 + $0x3f0] sm:$0xff]
  %v985 = vld [vmem:[%s2 + $0x3f8] sm:$0xff]
  %v986 = vld [vmem:[%s2 + $0x400] sm:$0xff]
  %v987 = vld [vmem:[%s2 + $0x408] sm:$0xff]
  %v988 = vld [vmem:[%s2 + $0x410] sm:$0xff]
  %v989 = vld [vmem:[%s2 + $0x418] sm:$0xff]
  %v990 = vld [vmem:[%s2 + $0x420] sm:$0xff]
  %v991 = vld [vmem:[%s2 + $0x428] sm:$0xff]
  %v992 = vld [vmem:[%s2 + $0x430] sm:$0xff]
  %v993 = vld [vmem:[%s2 + $0x438] sm:$0xff]
  %v994 = vld [vmem:[%s2 + $0x440] sm:$0xff]
  %v995 = vld [vmem:[%s2 + $0x448] sm:$0xff]
  %v996 = vld [vmem:[%s2 + $0x450] sm:$0xff]
  %v997 = vld [vmem:[%s2 + $0x458] sm:$0xff]
  %v998 = vld [vmem:[%s2 + $0x460] sm:$0xff]
  %v999 = vld [vmem:[%s2 + $0x468] sm:$0xff]
  %v1000 = vld [vmem:[%s2 + $0x470] sm:$0xff]
  %v1001 = vld [vmem:[%s2 + $0x478] sm:$0xff]
  %v1002 = vld [vmem:[%s2 + $0x480] sm:$0xff]
  %v1003 = vld [vmem:[%s2 + $0x488] sm:$0xff]
  %v1004 = vld [vmem:[%s2 + $0x490] sm:$0xff]
  %v1005 = vld [vmem:[%s2 + $0x498] sm:$0xff]
  %v1006 = vld [vmem:[%s2 + $0x4a0] sm:$0xff]
  %v1007 = vld [vmem:[%s2 + $0x4a8] sm:$0xff]
  %v1008 = vld [vmem:[%s2 + $0x4b0] sm:$0xff]
  %v1009 = vld [vmem:[%s2 + $0x4b8] sm:$0xff]
  %v1010 = vld [vmem:[%s2 + $0x4c0] sm:$0xff]
  %v1011 = vld [vmem:[%s2 + $0x4c8] sm:$0xff]
  %v1012 = vld [vmem:[%s2 + $0x4d0] sm:$0xff]
  %v1013 = vld [vmem:[%s2 + $0x4d8] sm:$0xff]
  %v1014 = vld [vmem:[%s2 + $0x4e0] sm:$0xff]
  %v1015 = vld [vmem:[%s2 + $0x4e8] sm:$0xff]
  %v1016 = vld [vmem:[%s2 + $0x4f0] sm:$0xff]
  %v1017 = vld [vmem:[%s2 + $0x4f8] sm:$0xff]
  %v1018 = vld [vmem:[%s2 + $0x500] sm:$0xff]
  %v1019 = vld [vmem:[%s2 + $0x508] sm:$0xff]
  %v1020 = vld [vmem:[%s2 + $0x510] sm:$0xff]
  %v1021 = vld [vmem:[%s2 + $0x518] sm:$0xff]
  %v1022 = vld [vmem:[%s2 + $0x520] sm:$0xff]
  %v1023 = vld [vmem:[%s2 + $0x528] sm:$0xff]
  %v1024 = vld [vmem:[%s2 + $0x530] sm:$0xff]
  %v1025 = vld [vmem:[%s2 + $0x538] sm:$0xff]
  %v1026 = vld [vmem:[%s2 + $0x540] sm:$0xff]
  %v1027 = vld [vmem:[%s2 + $0x548] sm:$0xff]
  %v1028 = vld [vmem:[%s2 + $0x550] sm:$0xff]
  %v1029 = vld [vmem:[%s2 + $0x558] sm:$0xff]
  %v1030 = vld [vmem:[%s2 + $0x560] sm:$0xff]
  %v1031 = vld [vmem:[%s2 + $0x568] sm:$0xff]
  %v1032 = vld [vmem:[%s2 + $0x570] sm:$0xff]
  %v1033 = vld [vmem:[%s2 + $0x578] sm:$0xff]
  %v1034 = vld [vmem:[%s2 + $0x580] sm:$0xff]
  %v1035 = vld [vmem:[%s2 + $0x588] sm:$0xff]
  %v1036 = vld [vmem:[%s2 + $0x590] sm:$0xff]
  %v1037 = vld [vmem:[%s2 + $0x598] sm:$0xff]
  %v1038 = vld [vmem:[%s2 + $0x5a0] sm:$0xff]
  %v1039 = vld [vmem:[%s2 + $0x5a8] sm:$0xff]
  %v1040 = vld [vmem:[%s2 + $0x5b0] sm:$0xff]
  %v1041 = vld [vmem:[%s2 + $0x5b8] sm:$0xff]
  %v1042 = vld [vmem:[%s2 + $0x5c0] sm:$0xff]
  %v1043 = vld [vmem:[%s2 + $0x5c8] sm:$0xff]
  %v1044 = vld [vmem:[%s2 + $0x5d0] sm:$0xff]
  %v1045 = vld [vmem:[%s2 + $0x5d8] sm:$0xff]
  %v1046 = vld [vmem:[%s2 + $0x5e0] sm:$0xff]
  %v1047 = vld [vmem:[%s2 + $0x5e8] sm:$0xff]
  %v1048 = vld [vmem:[%s2 + $0x5f0] sm:$0xff]
  %v1049 = vld [vmem:[%s2 + $0x5f8] sm:$0xff]
  %v1050 = vld [vmem:[%s2 + $0x600] sm:$0xff]
  %v1051 = vld [vmem:[%s2 + $0x608] sm:$0xff]
  %v1052 = vld [vmem:[%s2 + $0x610] sm:$0xff]
  %v1053 = vld [vmem:[%s2 + $0x618] sm:$0xff]
  %v1054 = vld [vmem:[%s2 + $0x620] sm:$0xff]
  %v1055 = vld [vmem:[%s2 + $0x628] sm:$0xff]
  %v1056 = vld [vmem:[%s2 + $0x630] sm:$0xff]
  %v1057 = vld [vmem:[%s2 + $0x638] sm:$0xff]
  %v1058 = vld [vmem:[%s2 + $0x640] sm:$0xff]
  %v1059 = vld [vmem:[%s2 + $0x648] sm:$0xff]
  %v1060 = vld [vmem:[%s2 + $0x650] sm:$0xff]
  %v1061 = vld [vmem:[%s2 + $0x658] sm:$0xff]
  %v1062 = vld [vmem:[%s2 + $0x660] sm:$0xff]
  %v1063 = vld [vmem:[%s2 + $0x668] sm:$0xff]
  %v1064 = vld [vmem:[%s2 + $0x670] sm:$0xff]
  %v1065 = vld [vmem:[%s2 + $0x678] sm:$0xff]
  %v1066 = vld [vmem:[%s2 + $0x680] sm:$0xff]
  %v1067 = vld [vmem:[%s2 + $0x688] sm:$0xff]
  %v1068 = vld [vmem:[%s2 + $0x690] sm:$0xff]
  %v1069 = vld [vmem:[%s2 + $0x698] sm:$0xff]
  %v1070 = vld [vmem:[%s2 + $0x6a0] sm:$0xff]
  %v1071 = vld [vmem:[%s2 + $0x6a8] sm:$0xff]
  %v1072 = vld [vmem:[%s2 + $0x6b0] sm:$0xff]
  %v1073 = vld [vmem:[%s2 + $0x6b8] sm:$0xff]
  %v1074 = vld [vmem:[%s2 + $0x6c0] sm:$0xff]
  %v1075 = vld [vmem:[%s2 + $0x6c8] sm:$0xff]
  %v1076 = vld [vmem:[%s2 + $0x6d0] sm:$0xff]
  %v1077 = vld [vmem:[%s2 + $0x6d8] sm:$0xff]
  %v1078 = vld [vmem:[%s2 + $0x6e0] sm:$0xff]
  %v1079 = vld [vmem:[%s2 + $0x6e8] sm:$0xff]
  %v1080 = vld [vmem:[%s2 + $0x6f0] sm:$0xff]
  %v1081 = vld [vmem:[%s2 + $0x6f8] sm:$0xff]
  %v1082 = vld [vmem:[%s2 + $0x700] sm:$0xff]
  %v1083 = vld [vmem:[%s2 + $0x708] sm:$0xff]
  %v1084 = vld [vmem:[%s2 + $0x710] sm:$0xff]
  %v1085 = vld [vmem:[%s2 + $0x718] sm:$0xff]
  %v1086 = vld [vmem:[%s2 + $0x720] sm:$0xff]
  %v1087 = vld [vmem:[%s2 + $0x728] sm:$0xff]
  %v1088 = vld [vmem:[%s2 + $0x730] sm:$0xff]
  %v1089 = vld [vmem:[%s2 + $0x738] sm:$0xff]
  %v1090 = vld [vmem:[%s2 + $0x740] sm:$0xff]
  %v1091 = vld [vmem:[%s2 + $0x748] sm:$0xff]
  %v1092 = vld [vmem:[%s2 + $0x750] sm:$0xff]
  %v1093 = vld [vmem:[%s2 + $0x758] sm:$0xff]
  %v1094 = vld [vmem:[%s2 + $0x760] sm:$0xff]
  %v1095 = vld [vmem:[%s2 + $0x768] sm:$0xff]
  %v1096 = vld [vmem:[%s2 + $0x770] sm:$0xff]
  %v1097 = vld [vmem:[%s2 + $0x778] sm:$0xff]
  %v1098 = vld [vmem:[%s2 + $0x780] sm:$0xff]
  %v1099 = vld [vmem:[%s2 + $0x788] sm:$0xff]
  %v1100 = vld [vmem:[%s2 + $0x790] sm:$0xff]
  %v1101 = vld [vmem:[%s2 + $0x798] sm:$0xff]
  %v1102 = vld [vmem:[%s2 + $0x7a0] sm:$0xff]
  %v1103 = vld [vmem:[%s2 + $0x7a8] sm:$0xff]
  %v1104 = vld [vmem:[%s2 + $0x7b0] sm:$0xff]
  %v1105 = vld [vmem:[%s2 + $0x7b8] sm:$0xff]
  %v1106 = vld [vmem:[%s2 + $0x7c0] sm:$0xff]
  %v1107 = vld [vmem:[%s2 + $0x7c8] sm:$0xff]
  %v1108 = vld [vmem:[%s2 + $0x7d0] sm:$0xff]
  %v1109 = vld [vmem:[%s2 + $0x7d8] sm:$0xff]
  %v1110 = vld [vmem:[%s2 + $0x7e0] sm:$0xff]
  %v1111 = vld [vmem:[%s2 + $0x7e8] sm:$0xff]
  %v1112 = vld [vmem:[%s2 + $0x7f0] sm:$0xff]
  %v1113 = vld [vmem:[%s2 + $0x7f8] sm:$0xff]
  %1114 = vmatprep.subr.mxu0 %v859
  %1115 = vmatpush1.msra.mxu0 %v858
  %1116 = vmatprep.subr.mxu0 %v867
  %1117 = vmatpush1.msra.mxu0 %v866
  %1118 = vmatprep.subr.mxu0 %v875
  %1119 = vmatpush1.msra.mxu0 %v874
  %1120 = vmatprep.subr.mxu0 %v883
  %1121 = vmatpush1.msra.mxu0 %v882
  %1122 = vmatprep.subr.mxu0 %v891
  %1123 = vmatpush1.msra.mxu0 %v890
  %1124 = vmatprep.subr.mxu0 %v899
  %1125 = vmatpush1.msra.mxu0 %v898
  %1126 = vmatprep.subr.mxu0 %v907
  %1127 = vmatpush1.msra.mxu0 %v906
  %1128 = vmatprep.subr.mxu0 %v915
  %1129 = vmatpush1.msra.mxu0 %v914
  %1130 = vmatprep.subr.mxu0 %v923
  %1131 = vmatpush1.msra.mxu0 %v922
  %1132 = vmatprep.subr.mxu0 %v931
  %1133 = vmatpush1.msra.mxu0 %v930
  %1134 = vmatprep.subr.mxu0 %v939
  %1135 = vmatpush1.msra.mxu0 %v938
  %1136 = vmatprep.subr.mxu0 %v947
  %1137 = vmatpush1.msra.mxu0 %v946
  %1138 = vmatprep.subr.mxu0 %v955
  %1139 = vmatpush1.msra.mxu0 %v954
  %1140 = vmatprep.subr.mxu0 %v963
  %1141 = vmatpush1.msra.mxu0 %v962
  %1142 = vmatprep.subr.mxu0 %v971
  %1143 = vmatpush1.msra.mxu0 %v970
  %1144 = vmatprep.subr.mxu0 %v979
  %1145 = vmatpush1.msra.mxu0 %v978
  %1146 = vmatprep.subr.mxu0 %v987
  %1147 = vmatpush1.msra.mxu0 %v986
  %1148 = vmatprep.subr.mxu0 %v995
  %1149 = vmatpush1.msra.mxu0 %v994
  %1150 = vmatprep.subr.mxu0 %v1003
  %1151 = vmatpush1.msra.mxu0 %v1002
  %1152 = vmatprep.subr.mxu0 %v1011
  %1153 = vmatpush1.msra.mxu0 %v1010
  %1154 = vmatprep.subr.mxu0 %v1019
  %1155 = vmatpush1.msra.mxu0 %v1018
  %1156 = vmatprep.subr.mxu0 %v1027
  %1157 = vmatpush1.msra.mxu0 %v1026
  %1158 = vmatprep.subr.mxu0 %v1035
  %1159 = vmatpush1.msra.mxu0 %v1034
  %1160 = vmatprep.subr.mxu0 %v1043
  %1161 = vmatpush1.msra.mxu0 %v1042
  %1162 = vmatprep.subr.mxu0 %v1051
  %1163 = vmatpush1.msra.mxu0 %v1050
  %1164 = vmatprep.subr.mxu0 %v1059
  %1165 = vmatpush1.msra.mxu0 %v1058
  %1166 = vmatprep.subr.mxu0 %v1067
  %1167 = vmatpush1.msra.mxu0 %v1066
  %1168 = vmatprep.subr.mxu0 %v1075
  %1169 = vmatpush1.msra.mxu0 %v1074
  %1170 = vmatprep.subr.mxu0 %v1083
  %1171 = vmatpush1.msra.mxu0 %v1082
  %1172 = vmatprep.subr.mxu0 %v1091
  %1173 = vmatpush1.msra.mxu0 %v1090
  %1174 = vmatprep.subr.mxu0 %v1099
  %1175 = vmatpush1.msra.mxu0 %v1098
  %1176 = vmatprep.subr.mxu0 %v1107
  %1177 = vmatpush1.msra.mxu0 %v1106
  %1178 = vmatprep.mubr.f32.mxu0 %v857
  %1179 = vmatmul.mubr.f32.gmra.mrb[0].mxu0 %v856
  %v1180 = vpop.f32.mrb[0].mxu0
  %v1181 = vadd.f32 0.0, %v1180
  %v1182 = vpop.f32.mrb[0].mxu0
  %v1183 = vadd.f32 0.0, %v1182
  %1184 = vdwg.mxu0
  %1185 = vmatprep.subr.mxu0 %v861
  %1186 = vmatpush1.msra.mxu0 %v860
  %1187 = vmatprep.subr.mxu0 %v869
  %1188 = vmatpush1.msra.mxu0 %v868
  %1189 = vmatprep.subr.mxu0 %v877
  %1190 = vmatpush1.msra.mxu0 %v876
  %1191 = vmatprep.subr.mxu0 %v885
  %1192 = vmatpush1.msra.mxu0 %v884
  %1193 = vmatprep.subr.mxu0 %v893
  %1194 = vmatpush1.msra.mxu0 %v892
  %1195 = vmatprep.subr.mxu0 %v901
  %1196 = vmatpush1.msra.mxu0 %v900
  %1197 = vmatprep.subr.mxu0 %v909
  %1198 = vmatpush1.msra.mxu0 %v908
  %1199 = vmatprep.subr.mxu0 %v917
  %1200 = vmatpush1.msra.mxu0 %v916
  %1201 = vmatprep.subr.mxu0 %v925
  %1202 = vmatpush1.msra.mxu0 %v924
  %1203 = vmatprep.subr.mxu0 %v933
  %1204 = vmatpush1.msra.mxu0 %v932
  %1205 = vmatprep.subr.mxu0 %v941
  %1206 = vmatpush1.msra.mxu0 %v940
  %1207 = vmatprep.subr.mxu0 %v949
  %1208 = vmatpush1.msra.mxu0 %v948
  %1209 = vmatprep.subr.mxu0 %v957
  %1210 = vmatpush1.msra.mxu0 %v956
  %1211 = vmatprep.subr.mxu0 %v965
  %1212 = vmatpush1.msra.mxu0 %v964
  %1213 = vmatprep.subr.mxu0 %v973
  %1214 = vmatpush1.msra.mxu0 %v972
  %1215 = vmatprep.subr.mxu0 %v981
  %1216 = vmatpush1.msra.mxu0 %v980
  %1217 = vmatprep.subr.mxu0 %v989
  %1218 = vmatpush1.msra.mxu0 %v988
  %1219 = vmatprep.subr.mxu0 %v997
  %1220 = vmatpush1.msra.mxu0 %v996
  %1221 = vmatprep.subr.mxu0 %v1005
  %1222 = vmatpush1.msra.mxu0 %v1004
  %1223 = vmatprep.subr.mxu0 %v1013
  %1224 = vmatpush1.msra.mxu0 %v1012
  %1225 = vmatprep.subr.mxu0 %v1021
  %1226 = vmatpush1.msra.mxu0 %v1020
  %1227 = vmatprep.subr.mxu0 %v1029
  %1228 = vmatpush1.msra.mxu0 %v1028
  %1229 = vmatprep.subr.mxu0 %v1037
  %1230 = vmatpush1.msra.mxu0 %v1036
  %1231 = vmatprep.subr.mxu0 %v1045
  %1232 = vmatpush1.msra.mxu0 %v1044
  %1233 = vmatprep.subr.mxu0 %v1053
  %1234 = vmatpush1.msra.mxu0 %v1052
  %1235 = vmatprep.subr.mxu0 %v1061
  %1236 = vmatpush1.msra.mxu0 %v1060
  %1237 = vmatprep.subr.mxu0 %v1069
  %1238 = vmatpush1.msra.mxu0 %v1068
  %1239 = vmatprep.subr.mxu0 %v1077
  %1240 = vmatpush1.msra.mxu0 %v1076
  %1241 = vmatprep.subr.mxu0 %v1085
  %1242 = vmatpush1.msra.mxu0 %v1084
  %1243 = vmatprep.subr.mxu0 %v1093
  %1244 = vmatpush1.msra.mxu0 %v1092
  %1245 = vmatprep.subr.mxu0 %v1101
  %1246 = vmatpush1.msra.mxu0 %v1100
  %1247 = vmatprep.subr.mxu0 %v1109
  %1248 = vmatpush1.msra.mxu0 %v1108
  %1249 = vmatprep.mubr.f32.mxu0 %v857
  %1250 = vmatmul.mubr.f32.gmra.mrb[0].mxu0 %v856
  %v1251 = vpop.f32.mrb[0].mxu0
  %v1252 = vadd.f32 0.0, %v1251
  %v1253 = vpop.f32.mrb[0].mxu0
  %v1254 = vadd.f32 0.0, %v1253
  %1255 = vdwg.mxu0
  %1256 = vmatprep.subr.mxu0 %v863
  %1257 = vmatpush1.msra.mxu0 %v862
  %1258 = vmatprep.subr.mxu0 %v871
  %1259 = vmatpush1.msra.mxu0 %v870
  %1260 = vmatprep.subr.mxu0 %v879
  %1261 = vmatpush1.msra.mxu0 %v878
  %1262 = vmatprep.subr.mxu0 %v887
  %1263 = vmatpush1.msra.mxu0 %v886
  %1264 = vmatprep.subr.mxu0 %v895
  %1265 = vmatpush1.msra.mxu0 %v894
  %1266 = vmatprep.subr.mxu0 %v903
  %1267 = vmatpush1.msra.mxu0 %v902
  %1268 = vmatprep.subr.mxu0 %v911
  %1269 = vmatpush1.msra.mxu0 %v910
  %1270 = vmatprep.subr.mxu0 %v919
  %1271 = vmatpush1.msra.mxu0 %v918
  %1272 = vmatprep.subr.mxu0 %v927
  %1273 = vmatpush1.msra.mxu0 %v926
  %1274 = vmatprep.subr.mxu0 %v935
  %1275 = vmatpush1.msra.mxu0 %v934
  %1276 = vmatprep.subr.mxu0 %v943
  %1277 = vmatpush1.msra.mxu0 %v942
  %1278 = vmatprep.subr.mxu0 %v951
  %1279 = vmatpush1.msra.mxu0 %v950
  %1280 = vmatprep.subr.mxu0 %v959
  %1281 = vmatpush1.msra.mxu0 %v958
  %1282 = vmatprep.subr.mxu0 %v967
  %1283 = vmatpush1.msra.mxu0 %v966
  %1284 = vmatprep.subr.mxu0 %v975
  %1285 = vmatpush1.msra.mxu0 %v974
  %1286 = vmatprep.subr.mxu0 %v983
  %1287 = vmatpush1.msra.mxu0 %v982
  %1288 = vmatprep.subr.mxu0 %v991
  %1289 = vmatpush1.msra.mxu0 %v990
  %1290 = vmatprep.subr.mxu0 %v999
  %1291 = vmatpush1.msra.mxu0 %v998
  %1292 = vmatprep.subr.mxu0 %v1007
  %1293 = vmatpush1.msra.mxu0 %v1006
  %1294 = vmatprep.subr.mxu0 %v1015
  %1295 = vmatpush1.msra.mxu0 %v1014
  %1296 = vmatprep.subr.mxu0 %v1023
  %1297 = vmatpush1.msra.mxu0 %v1022
  %1298 = vmatprep.subr.mxu0 %v1031
  %1299 = vmatpush1.msra.mxu0 %v1030
  %1300 = vmatprep.subr.mxu0 %v1039
  %1301 = vmatpush1.msra.mxu0 %v1038
  %1302 = vmatprep.subr.mxu0 %v1047
  %1303 = vmatpush1.msra.mxu0 %v1046
  %1304 = vmatprep.subr.mxu0 %v1055
  %1305 = vmatpush1.msra.mxu0 %v1054
  %1306 = vmatprep.subr.mxu0 %v1063
  %1307 = vmatpush1.msra.mxu0 %v1062
  %1308 = vmatprep.subr.mxu0 %v1071
  %1309 = vmatpush1.msra.mxu0 %v1070
  %1310 = vmatprep.subr.mxu0 %v1079
  %1311 = vmatpush1.msra.mxu0 %v1078
  %1312 = vmatprep.subr.mxu0 %v1087
  %1313 = vmatpush1.msra.mxu0 %v1086
  %1314 = vmatprep.subr.mxu0 %v1095
  %1315 = vmatpush1.msra.mxu0 %v1094
  %1316 = vmatprep.subr.mxu0 %v1103
  %1317 = vmatpush1.msra.mxu0 %v1102
  %1318 = vmatprep.subr.mxu0 %v1111
  %1319 = vmatpush1.msra.mxu0 %v1110
  %1320 = vmatprep.mubr.f32.mxu0 %v857
  %1321 = vmatmul.mubr.f32.gmra.mrb[0].mxu0 %v856
  %v1322 = vpop.f32.mrb[0].mxu0
  %v1323 = vadd.f32 0.0, %v1322
  %v1324 = vpop.f32.mrb[0].mxu0
  %v1325 = vadd.f32 0.0, %v1324
  %1326 = vdwg.mxu0
  %1327 = vmatprep.subr.mxu0 %v865
  %1328 = vmatpush1.msra.mxu0 %v864
  %1329 = vmatprep.subr.mxu0 %v873
  %1330 = vmatpush1.msra.mxu0 %v872
  %1331 = vmatprep.subr.mxu0 %v881
  %1332 = vmatpush1.msra.mxu0 %v880
  %1333 = vmatprep.subr.mxu0 %v889
  %1334 = vmatpush1.msra.mxu0 %v888
  %1335 = vmatprep.subr.mxu0 %v897
  %1336 = vmatpush1.msra.mxu0 %v896
  %1337 = vmatprep.subr.mxu0 %v905
  %1338 = vmatpush1.msra.mxu0 %v904
  %1339 = vmatprep.subr.mxu0 %v913
  %1340 = vmatpush1.msra.mxu0 %v912
  %1341 = vmatprep.subr.mxu0 %v921
  %1342 = vmatpush1.msra.mxu0 %v920
  %1343 = vmatprep.subr.mxu0 %v929
  %1344 = vmatpush1.msra.mxu0 %v928
  %1345 = vmatprep.subr.mxu0 %v937
  %1346 = vmatpush1.msra.mxu0 %v936
  %1347 = vmatprep.subr.mxu0 %v945
  %1348 = vmatpush1.msra.mxu0 %v944
  %1349 = vmatprep.subr.mxu0 %v953
  %1350 = vmatpush1.msra.mxu0 %v952
  %1351 = vmatprep.subr.mxu0 %v961
  %1352 = vmatpush1.msra.mxu0 %v960
  %1353 = vmatprep.subr.mxu0 %v969
  %1354 = vmatpush1.msra.mxu0 %v968
  %1355 = vmatprep.subr.mxu0 %v977
  %1356 = vmatpush1.msra.mxu0 %v976
  %1357 = vmatprep.subr.mxu0 %v985
  %1358 = vmatpush1.msra.mxu0 %v984
  %1359 = vmatprep.subr.mxu0 %v993
  %1360 = vmatpush1.msra.mxu0 %v992
  %1361 = vmatprep.subr.mxu0 %v1001
  %1362 = vmatpush1.msra.mxu0 %v1000
  %1363 = vmatprep.subr.mxu0 %v1009
  %1364 = vmatpush1.msra.mxu0 %v1008
  %1365 = vmatprep.subr.mxu0 %v1017
  %1366 = vmatpush1.msra.mxu0 %v1016
  %1367 = vmatprep.subr.mxu0 %v1025
  %1368 = vmatpush1.msra.mxu0 %v1024
  %1369 = vmatprep.subr.mxu0 %v1033
  %1370 = vmatpush1.msra.mxu0 %v1032
  %1371 = vmatprep.subr.mxu0 %v1041
  %1372 = vmatpush1.msra.mxu0 %v1040
  %1373 = vmatprep.subr.mxu0 %v1049
  %1374 = vmatpush1.msra.mxu0 %v1048
  %1375 = vmatprep.subr.mxu0 %v1057
  %1376 = vmatpush1.msra.mxu0 %v1056
  %1377 = vmatprep.subr.mxu0 %v1065
  %1378 = vmatpush1.msra.mxu0 %v1064
  %1379 = vmatprep.subr.mxu0 %v1073
  %1380 = vmatpush1.msra.mxu0 %v1072
  %1381 = vmatprep.subr.mxu0 %v1081
  %1382 = vmatpush1.msra.mxu0 %v1080
  %1383 = vmatprep.subr.mxu0 %v1089
  %1384 = vmatpush1.msra.mxu0 %v1088
  %1385 = vmatprep.subr.mxu0 %v1097
  %1386 = vmatpush1.msra.mxu0 %v1096
  %1387 = vmatprep.subr.mxu0 %v1105
  %1388 = vmatpush1.msra.mxu0 %v1104
  %1389 = vmatprep.subr.mxu0 %v1113
  %1390 = vmatpush1.msra.mxu0 %v1112
  %1391 = vmatprep.mubr.f32.mxu0 %v857
  %1392 = vmatmul.mubr.f32.gmra.mrb[0].mxu0 %v856
  %v1393 = vpop.f32.mrb[0].mxu0
  %v1394 = vadd.f32 0.0, %v1393
  %v1395 = vpop.f32.mrb[0].mxu0
  %v1396 = vadd.f32 0.0, %v1395
  %1397 = vdwg.mxu0
  %v1398 = vadd.f32 %v1323, %v786
  %v1399 = vadd.f32 %v1325, %v790
  %v1400 = vadd.f32 %v1394, %v794
  %v1401 = vadd.f32 %v1396, %v798
  %v1402 = vmul.f32 %v1398, 0.5
  %v1403 = vtanh.pop %v1402
  %v1404 = vmul.f32 %v1403, 0.5
  %v1405 = vadd.f32 %v1404, 0.5
  %v1406 = vmul.f32 %v1399, 0.5
  %v1407 = vtanh.pop %v1406
  %v1408 = vmul.f32 %v1407, 0.5
  %v1409 = vadd.f32 %v1408, 0.5
  %v1410 = vtanh.pop %v1400
  %v1411 = vmul.f32 %v1401, 0.5
  %v1412 = vtanh.pop %v1411
  %v1413 = vmul.f32 %v1412, 0.5
  %v1414 = vadd.f32 %v1413, 0.5
  %v1415 = vmul.f32 %v1409, %v822
  %v1416 = vmul.f32 %v1405, %v1410
  %v1417 = vadd.f32 %v1415, %v1416
  %v1418 = vtanh.pop %v1417
  %v1419 = vmul.f32 %v1414, %v1418
  %1420 = vst [vmem:[#allocation3 + $0x8] sm:$0xff] %v1419
  %s1421 = smul.u32 2, 4
  %s1422 = smul.addr %s1421, 8
  %s1423 = scalar_lea.vmem [#allocation2], %s1422
  %v1424 = vld [vmem:[%s1423] sm:$0xff]
  %v1425 = vld [vmem:[%s1423 + $0x8] sm:$0xff]
  %v1426 = vld [vmem:[%s1423 + $0x10] sm:$0xff]
  %v1427 = vld [vmem:[%s1423 + $0x18] sm:$0xff]
  %v1428 = vadd.f32 %v1424, %v1181
  %v1429 = vadd.f32 %v1425, %v1183
  %v1430 = vadd.f32 %v1426, %v1252
  %v1431 = vadd.f32 %v1427, %v1254
  %v1432 = vmul.f32 %v1428, 0.5
  %v1433 = vtanh.pop %v1432
  %v1434 = vmul.f32 %v1433, 0.5
  %v1435 = vadd.f32 %v1434, 0.5
  %v1436 = vmul.f32 %v1429, 0.5
  %v1437 = vtanh.pop %v1436
  %v1438 = vmul.f32 %v1437, 0.5
  %v1439 = vadd.f32 %v1438, 0.5
  %v1440 = vtanh.pop %v1430
  %v1441 = vmul.f32 %v1431, 0.5
  %v1442 = vtanh.pop %v1441
  %v1443 = vmul.f32 %v1442, 0.5
  %v1444 = vadd.f32 %v1443, 0.5
  %v1445 = vmul.f32 %v1439, %v852
  %v1446 = vmul.f32 %v1435, %v1440
  %v1447 = vadd.f32 %v1445, %v1446
  %v1448 = vtanh.pop %v1447
  %v1449 = vmul.f32 %v1444, %v1448
  %1450 = vst [vmem:[#allocation3] sm:$0xff] %v1449
  %v1451 = vld [vmem:[#allocation3] sm:$0xff]
  %v1452 = vld [vmem:[#allocation3 + $0x8] sm:$0xff]
  %v1453 = vld [vmem:[%s2] sm:$0xff]
  %v1454 = vld [vmem:[%s2 + $0x8] sm:$0xff]
  %v1455 = vld [vmem:[%s2 + $0x10] sm:$0xff]
  %v1456 = vld [vmem:[%s2 + $0x18] sm:$0xff]
  %v1457 = vld [vmem:[%s2 + $0x20] sm:$0xff]
  %v1458 = vld [vmem:[%s2 + $0x28] sm:$0xff]
  %v1459 = vld [vmem:[%s2 + $0x30] sm:$0xff]
  %v1460 = vld [vmem:[%s2 + $0x38] sm:$0xff]
  %v1461 = vld [vmem:[%s2 + $0x40] sm:$0xff]
  %v1462 = vld [vmem:[%s2 + $0x48] sm:$0xff]
  %v1463 = vld [vmem:[%s2 + $0x50] sm:$0xff]
  %v1464 = vld [vmem:[%s2 + $0x58] sm:$0xff]
  %v1465 = vld [vmem:[%s2 + $0x60] sm:$0xff]
  %v1466 = vld [vmem:[%s2 + $0x68] sm:$0xff]
  %v1467 = vld [vmem:[%s2 + $0x70] sm:$0xff]
  %v1468 = vld [vmem:[%s2 + $0x78] sm:$0xff]
  %v1469 = vld [vmem:[%s2 + $0x80] sm:$0xff]
  %v1470 = vld [vmem:[%s2 + $0x88] sm:$0xff]
  %v1471 = vld [vmem:[%s2 + $0x90] sm:$0xff]
  %v1472 = vld [vmem:[%s2 + $0x98] sm:$0xff]
  %v1473 = vld [vmem:[%s2 + $0xa0] sm:$0xff]
  %v1474 = vld [vmem:[%s2 + $0xa8] sm:$0xff]
  %v1475 = vld [vmem:[%s2 + $0xb0] sm:$0xff]
  %v1476 = vld [vmem:[%s2 + $0xb8] sm:$0xff]
  %v1477 = vld [vmem:[%s2 + $0xc0] sm:$0xff]
  %v1478 = vld [vmem:[%s2 + $0xc8] sm:$0xff]
  %v1479 = vld [vmem:[%s2 + $0xd0] sm:$0xff]
  %v1480 = vld [vmem:[%s2 + $0xd8] sm:$0xff]
  %v1481 = vld [vmem:[%s2 + $0xe0] sm:$0xff]
  %v1482 = vld [vmem:[%s2 + $0xe8] sm:$0xff]
  %v1483 = vld [vmem:[%s2 + $0xf0] sm:$0xff]
  %v1484 = vld [vmem:[%s2 + $0xf8] sm:$0xff]
  %v1485 = vld [vmem:[%s2 + $0x100] sm:$0xff]
  %v1486 = vld [vmem:[%s2 + $0x108] sm:$0xff]
  %v1487 = vld [vmem:[%s2 + $0x110] sm:$0xff]
  %v1488 = vld [vmem:[%s2 + $0x118] sm:$0xff]
  %v1489 = vld [vmem:[%s2 + $0x120] sm:$0xff]
  %v1490 = vld [vmem:[%s2 + $0x128] sm:$0xff]
  %v1491 = vld [vmem:[%s2 + $0x130] sm:$0xff]
  %v1492 = vld [vmem:[%s2 + $0x138] sm:$0xff]
  %v1493 = vld [vmem:[%s2 + $0x140] sm:$0xff]
  %v1494 = vld [vmem:[%s2 + $0x148] sm:$0xff]
  %v1495 = vld [vmem:[%s2 + $0x150] sm:$0xff]
  %v1496 = vld [vmem:[%s2 + $0x158] sm:$0xff]
  %v1497 = vld [vmem:[%s2 + $0x160] sm:$0xff]
  %v1498 = vld [vmem:[%s2 + $0x168] sm:$0xff]
  %v1499 = vld [vmem:[%s2 + $0x170] sm:$0xff]
  %v1500 = vld [vmem:[%s2 + $0x178] sm:$0xff]
  %v1501 = vld [vmem:[%s2 + $0x180] sm:$0xff]
  %v1502 = vld [vmem:[%s2 + $0x188] sm:$0xff]
  %v1503 = vld [vmem:[%s2 + $0x190] sm:$0xff]
  %v1504 = vld [vmem:[%s2 + $0x198] sm:$0xff]
  %v1505 = vld [vmem:[%s2 + $0x1a0] sm:$0xff]
  %v1506 = vld [vmem:[%s2 + $0x1a8] sm:$0xff]
  %v1507 = vld [vmem:[%s2 + $0x1b0] sm:$0xff]
  %v1508 = vld [vmem:[%s2 + $0x1b8] sm:$0xff]
  %v1509 = vld [vmem:[%s2 + $0x1c0] sm:$0xff]
  %v1510 = vld [vmem:[%s2 + $0x1c8] sm:$0xff]
  %v1511 = vld [vmem:[%s2 + $0x1d0] sm:$0xff]
  %v1512 = vld [vmem:[%s2 + $0x1d8] sm:$0xff]
  %v1513 = vld [vmem:[%s2 + $0x1e0] sm:$0xff]
  %v1514 = vld [vmem:[%s2 + $0x1e8] sm:$0xff]
  %v1515 = vld [vmem:[%s2 + $0x1f0] sm:$0xff]
  %v1516 = vld [vmem:[%s2 + $0x1f8] sm:$0xff]
  %v1517 = vld [vmem:[%s2 + $0x200] sm:$0xff]
  %v1518 = vld [vmem:[%s2 + $0x208] sm:$0xff]
  %v1519 = vld [vmem:[%s2 + $0x210] sm:$0xff]
  %v1520 = vld [vmem:[%s2 + $0x218] sm:$0xff]
  %v1521 = vld [vmem:[%s2 + $0x220] sm:$0xff]
  %v1522 = vld [vmem:[%s2 + $0x228] sm:$0xff]
  %v1523 = vld [vmem:[%s2 + $0x230] sm:$0xff]
  %v1524 = vld [vmem:[%s2 + $0x238] sm:$0xff]
  %v1525 = vld [vmem:[%s2 + $0x240] sm:$0xff]
  %v1526 = vld [vmem:[%s2 + $0x248] sm:$0xff]
  %v1527 = vld [vmem:[%s2 + $0x250] sm:$0xff]
  %v1528 = vld [vmem:[%s2 + $0x258] sm:$0xff]
  %v1529 = vld [vmem:[%s2 + $0x260] sm:$0xff]
  %v1530 = vld [vmem:[%s2 + $0x268] sm:$0xff]
  %v1531 = vld [vmem:[%s2 + $0x270] sm:$0xff]
  %v1532 = vld [vmem:[%s2 + $0x278] sm:$0xff]
  %v1533 = vld [vmem:[%s2 + $0x280] sm:$0xff]
  %v1534 = vld [vmem:[%s2 + $0x288] sm:$0xff]
  %v1535 = vld [vmem:[%s2 + $0x290] sm:$0xff]
  %v1536 = vld [vmem:[%s2 + $0x298] sm:$0xff]
  %v1537 = vld [vmem:[%s2 + $0x2a0] sm:$0xff]
  %v1538 = vld [vmem:[%s2 + $0x2a8] sm:$0xff]
  %v1539 = vld [vmem:[%s2 + $0x2b0] sm:$0xff]
  %v1540 = vld [vmem:[%s2 + $0x2b8] sm:$0xff]
  %v1541 = vld [vmem:[%s2 + $0x2c0] sm:$0xff]
  %v1542 = vld [vmem:[%s2 + $0x2c8] sm:$0xff]
  %v1543 = vld [vmem:[%s2 + $0x2d0] sm:$0xff]
  %v1544 = vld [vmem:[%s2 + $0x2d8] sm:$0xff]
  %v1545 = vld [vmem:[%s2 + $0x2e0] sm:$0xff]
  %v1546 = vld [vmem:[%s2 + $0x2e8] sm:$0xff]
  %v1547 = vld [vmem:[%s2 + $0x2f0] sm:$0xff]
  %v1548 = vld [vmem:[%s2 + $0x2f8] sm:$0xff]
  %v1549 = vld [vmem:[%s2 + $0x300] sm:$0xff]
  %v1550 = vld [vmem:[%s2 + $0x308] sm:$0xff]
  %v1551 = vld [vmem:[%s2 + $0x310] sm:$0xff]
  %v1552 = vld [vmem:[%s2 + $0x318] sm:$0xff]
  %v1553 = vld [vmem:[%s2 + $0x320] sm:$0xff]
  %v1554 = vld [vmem:[%s2 + $0x328] sm:$0xff]
  %v1555 = vld [vmem:[%s2 + $0x330] sm:$0xff]
  %v1556 = vld [vmem:[%s2 + $0x338] sm:$0xff]
  %v1557 = vld [vmem:[%s2 + $0x340] sm:$0xff]
  %v1558 = vld [vmem:[%s2 + $0x348] sm:$0xff]
  %v1559 = vld [vmem:[%s2 + $0x350] sm:$0xff]
  %v1560 = vld [vmem:[%s2 + $0x358] sm:$0xff]
  %v1561 = vld [vmem:[%s2 + $0x360] sm:$0xff]
  %v1562 = vld [vmem:[%s2 + $0x368] sm:$0xff]
  %v1563 = vld [vmem:[%s2 + $0x370] sm:$0xff]
  %v1564 = vld [vmem:[%s2 + $0x378] sm:$0xff]
  %v1565 = vld [vmem:[%s2 + $0x380] sm:$0xff]
  %v1566 = vld [vmem:[%s2 + $0x388] sm:$0xff]
  %v1567 = vld [vmem:[%s2 + $0x390] sm:$0xff]
  %v1568 = vld [vmem:[%s2 + $0x398] sm:$0xff]
  %v1569 = vld [vmem:[%s2 + $0x3a0] sm:$0xff]
  %v1570 = vld [vmem:[%s2 + $0x3a8] sm:$0xff]
  %v1571 = vld [vmem:[%s2 + $0x3b0] sm:$0xff]
  %v1572 = vld [vmem:[%s2 + $0x3b8] sm:$0xff]
  %v1573 = vld [vmem:[%s2 + $0x3c0] sm:$0xff]
  %v1574 = vld [vmem:[%s2 + $0x3c8] sm:$0xff]
  %v1575 = vld [vmem:[%s2 + $0x3d0] sm:$0xff]
  %v1576 = vld [vmem:[%s2 + $0x3d8] sm:$0xff]
  %v1577 = vld [vmem:[%s2 + $0x3e0] sm:$0xff]
  %v1578 = vld [vmem:[%s2 + $0x3e8] sm:$0xff]
  %v1579 = vld [vmem:[%s2 + $0x3f0] sm:$0xff]
  %v1580 = vld [vmem:[%s2 + $0x3f8] sm:$0xff]
  %v1581 = vld [vmem:[%s2 + $0x400] sm:$0xff]
  %v1582 = vld [vmem:[%s2 + $0x408] sm:$0xff]
  %v1583 = vld [vmem:[%s2 + $0x410] sm:$0xff]
  %v1584 = vld [vmem:[%s2 + $0x418] sm:$0xff]
  %v1585 = vld [vmem:[%s2 + $0x420] sm:$0xff]
  %v1586 = vld [vmem:[%s2 + $0x428] sm:$0xff]
  %v1587 = vld [vmem:[%s2 + $0x430] sm:$0xff]
  %v1588 = vld [vmem:[%s2 + $0x438] sm:$0xff]
  %v1589 = vld [vmem:[%s2 + $0x440] sm:$0xff]
  %v1590 = vld [vmem:[%s2 + $0x448] sm:$0xff]
  %v1591 = vld [vmem:[%s2 + $0x450] sm:$0xff]
  %v1592 = vld [vmem:[%s2 + $0x458] sm:$0xff]
  %v1593 = vld [vmem:[%s2 + $0x460] sm:$0xff]
  %v1594 = vld [vmem:[%s2 + $0x468] sm:$0xff]
  %v1595 = vld [vmem:[%s2 + $0x470] sm:$0xff]
  %v1596 = vld [vmem:[%s2 + $0x478] sm:$0xff]
  %v1597 = vld [vmem:[%s2 + $0x480] sm:$0xff]
  %v1598 = vld [vmem:[%s2 + $0x488] sm:$0xff]
  %v1599 = vld [vmem:[%s2 + $0x490] sm:$0xff]
  %v1600 = vld [vmem:[%s2 + $0x498] sm:$0xff]
  %v1601 = vld [vmem:[%s2 + $0x4a0] sm:$0xff]
  %v1602 = vld [vmem:[%s2 + $0x4a8] sm:$0xff]
  %v1603 = vld [vmem:[%s2 + $0x4b0] sm:$0xff]
  %v1604 = vld [vmem:[%s2 + $0x4b8] sm:$0xff]
  %v1605 = vld [vmem:[%s2 + $0x4c0] sm:$0xff]
  %v1606 = vld [vmem:[%s2 + $0x4c8] sm:$0xff]
  %v1607 = vld [vmem:[%s2 + $0x4d0] sm:$0xff]
  %v1608 = vld [vmem:[%s2 + $0x4d8] sm:$0xff]
  %v1609 = vld [vmem:[%s2 + $0x4e0] sm:$0xff]
  %v1610 = vld [vmem:[%s2 + $0x4e8] sm:$0xff]
  %v1611 = vld [vmem:[%s2 + $0x4f0] sm:$0xff]
  %v1612 = vld [vmem:[%s2 + $0x4f8] sm:$0xff]
  %v1613 = vld [vmem:[%s2 + $0x500] sm:$0xff]
  %v1614 = vld [vmem:[%s2 + $0x508] sm:$0xff]
  %v1615 = vld [vmem:[%s2 + $0x510] sm:$0xff]
  %v1616 = vld [vmem:[%s2 + $0x518] sm:$0xff]
  %v1617 = vld [vmem:[%s2 + $0x520] sm:$0xff]
  %v1618 = vld [vmem:[%s2 + $0x528] sm:$0xff]
  %v1619 = vld [vmem:[%s2 + $0x530] sm:$0xff]
  %v1620 = vld [vmem:[%s2 + $0x538] sm:$0xff]
  %v1621 = vld [vmem:[%s2 + $0x540] sm:$0xff]
  %v1622 = vld [vmem:[%s2 + $0x548] sm:$0xff]
  %v1623 = vld [vmem:[%s2 + $0x550] sm:$0xff]
  %v1624 = vld [vmem:[%s2 + $0x558] sm:$0xff]
  %v1625 = vld [vmem:[%s2 + $0x560] sm:$0xff]
  %v1626 = vld [vmem:[%s2 + $0x568] sm:$0xff]
  %v1627 = vld [vmem:[%s2 + $0x570] sm:$0xff]
  %v1628 = vld [vmem:[%s2 + $0x578] sm:$0xff]
  %v1629 = vld [vmem:[%s2 + $0x580] sm:$0xff]
  %v1630 = vld [vmem:[%s2 + $0x588] sm:$0xff]
  %v1631 = vld [vmem:[%s2 + $0x590] sm:$0xff]
  %v1632 = vld [vmem:[%s2 + $0x598] sm:$0xff]
  %v1633 = vld [vmem:[%s2 + $0x5a0] sm:$0xff]
  %v1634 = vld [vmem:[%s2 + $0x5a8] sm:$0xff]
  %v1635 = vld [vmem:[%s2 + $0x5b0] sm:$0xff]
  %v1636 = vld [vmem:[%s2 + $0x5b8] sm:$0xff]
  %v1637 = vld [vmem:[%s2 + $0x5c0] sm:$0xff]
  %v1638 = vld [vmem:[%s2 + $0x5c8] sm:$0xff]
  %v1639 = vld [vmem:[%s2 + $0x5d0] sm:$0xff]
  %v1640 = vld [vmem:[%s2 + $0x5d8] sm:$0xff]
  %v1641 = vld [vmem:[%s2 + $0x5e0] sm:$0xff]
  %v1642 = vld [vmem:[%s2 + $0x5e8] sm:$0xff]
  %v1643 = vld [vmem:[%s2 + $0x5f0] sm:$0xff]
  %v1644 = vld [vmem:[%s2 + $0x5f8] sm:$0xff]
  %v1645 = vld [vmem:[%s2 + $0x600] sm:$0xff]
  %v1646 = vld [vmem:[%s2 + $0x608] sm:$0xff]
  %v1647 = vld [vmem:[%s2 + $0x610] sm:$0xff]
  %v1648 = vld [vmem:[%s2 + $0x618] sm:$0xff]
  %v1649 = vld [vmem:[%s2 + $0x620] sm:$0xff]
  %v1650 = vld [vmem:[%s2 + $0x628] sm:$0xff]
  %v1651 = vld [vmem:[%s2 + $0x630] sm:$0xff]
  %v1652 = vld [vmem:[%s2 + $0x638] sm:$0xff]
  %v1653 = vld [vmem:[%s2 + $0x640] sm:$0xff]
  %v1654 = vld [vmem:[%s2 + $0x648] sm:$0xff]
  %v1655 = vld [vmem:[%s2 + $0x650] sm:$0xff]
  %v1656 = vld [vmem:[%s2 + $0x658] sm:$0xff]
  %v1657 = vld [vmem:[%s2 + $0x660] sm:$0xff]
  %v1658 = vld [vmem:[%s2 + $0x668] sm:$0xff]
  %v1659 = vld [vmem:[%s2 + $0x670] sm:$0xff]
  %v1660 = vld [vmem:[%s2 + $0x678] sm:$0xff]
  %v1661 = vld [vmem:[%s2 + $0x680] sm:$0xff]
  %v1662 = vld [vmem:[%s2 + $0x688] sm:$0xff]
  %v1663 = vld [vmem:[%s2 + $0x690] sm:$0xff]
  %v1664 = vld [vmem:[%s2 + $0x698] sm:$0xff]
  %v1665 = vld [vmem:[%s2 + $0x6a0] sm:$0xff]
  %v1666 = vld [vmem:[%s2 + $0x6a8] sm:$0xff]
  %v1667 = vld [vmem:[%s2 + $0x6b0] sm:$0xff]
  %v1668 = vld [vmem:[%s2 + $0x6b8] sm:$0xff]
  %v1669 = vld [vmem:[%s2 + $0x6c0] sm:$0xff]
  %v1670 = vld [vmem:[%s2 + $0x6c8] sm:$0xff]
  %v1671 = vld [vmem:[%s2 + $0x6d0] sm:$0xff]
  %v1672 = vld [vmem:[%s2 + $0x6d8] sm:$0xff]
  %v1673 = vld [vmem:[%s2 + $0x6e0] sm:$0xff]
  %v1674 = vld [vmem:[%s2 + $0x6e8] sm:$0xff]
  %v1675 = vld [vmem:[%s2 + $0x6f0] sm:$0xff]
  %v1676 = vld [vmem:[%s2 + $0x6f8] sm:$0xff]
  %v1677 = vld [vmem:[%s2 + $0x700] sm:$0xff]
  %v1678 = vld [vmem:[%s2 + $0x708] sm:$0xff]
  %v1679 = vld [vmem:[%s2 + $0x710] sm:$0xff]
  %v1680 = vld [vmem:[%s2 + $0x718] sm:$0xff]
  %v1681 = vld [vmem:[%s2 + $0x720] sm:$0xff]
  %v1682 = vld [vmem:[%s2 + $0x728] sm:$0xff]
  %v1683 = vld [vmem:[%s2 + $0x730] sm:$0xff]
  %v1684 = vld [vmem:[%s2 + $0x738] sm:$0xff]
  %v1685 = vld [vmem:[%s2 + $0x740] sm:$0xff]
  %v1686 = vld [vmem:[%s2 + $0x748] sm:$0xff]
  %v1687 = vld [vmem:[%s2 + $0x750] sm:$0xff]
  %v1688 = vld [vmem:[%s2 + $0x758] sm:$0xff]
  %v1689 = vld [vmem:[%s2 + $0x760] sm:$0xff]
  %v1690 = vld [vmem:[%s2 + $0x768] sm:$0xff]
  %v1691 = vld [vmem:[%s2 + $0x770] sm:$0xff]
  %v1692 = vld [vmem:[%s2 + $0x778] sm:$0xff]
  %v1693 = vld [vmem:[%s2 + $0x780] sm:$0xff]
  %v1694 = vld [vmem:[%s2 + $0x788] sm:$0xff]
  %v1695 = vld [vmem:[%s2 + $0x790] sm:$0xff]
  %v1696 = vld [vmem:[%s2 + $0x798] sm:$0xff]
  %v1697 = vld [vmem:[%s2 + $0x7a0] sm:$0xff]
  %v1698 = vld [vmem:[%s2 + $0x7a8] sm:$0xff]
  %v1699 = vld [vmem:[%s2 + $0x7b0] sm:$0xff]
  %v1700 = vld [vmem:[%s2 + $0x7b8] sm:$0xff]
  %v1701 = vld [vmem:[%s2 + $0x7c0] sm:$0xff]
  %v1702 = vld [vmem:[%s2 + $0x7c8] sm:$0xff]
  %v1703 = vld [vmem:[%s2 + $0x7d0] sm:$0xff]
  %v1704 = vld [vmem:[%s2 + $0x7d8] sm:$0xff]
  %v1705 = vld [vmem:[%s2 + $0x7e0] sm:$0xff]
  %v1706 = vld [vmem:[%s2 + $0x7e8] sm:$0xff]
  %v1707 = vld [vmem:[%s2 + $0x7f0] sm:$0xff]
  %v1708 = vld [vmem:[%s2 + $0x7f8] sm:$0xff]
  %1709 = vmatprep.subr.mxu0 %v1454
  %1710 = vmatpush1.msra.mxu0 %v1453
  %1711 = vmatprep.subr.mxu0 %v1462
  %1712 = vmatpush1.msra.mxu0 %v1461
  %1713 = vmatprep.subr.mxu0 %v1470
  %1714 = vmatpush1.msra.mxu0 %v1469
  %1715 = vmatprep.subr.mxu0 %v1478
  %1716 = vmatpush1.msra.mxu0 %v1477
  %1717 = vmatprep.subr.mxu0 %v1486
  %1718 = vmatpush1.msra.mxu0 %v1485
  %1719 = vmatprep.subr.mxu0 %v1494
  %1720 = vmatpush1.msra.mxu0 %v1493
  %1721 = vmatprep.subr.mxu0 %v1502
  %1722 = vmatpush1.msra.mxu0 %v1501
  %1723 = vmatprep.subr.mxu0 %v1510
  %1724 = vmatpush1.msra.mxu0 %v1509
  %1725 = vmatprep.subr.mxu0 %v1518
  %1726 = vmatpush1.msra.mxu0 %v1517
  %1727 = vmatprep.subr.mxu0 %v1526
  %1728 = vmatpush1.msra.mxu0 %v1525
  %1729 = vmatprep.subr.mxu0 %v1534
  %1730 = vmatpush1.msra.mxu0 %v1533
  %1731 = vmatprep.subr.mxu0 %v1542
  %1732 = vmatpush1.msra.mxu0 %v1541
  %1733 = vmatprep.subr.mxu0 %v1550
  %1734 = vmatpush1.msra.mxu0 %v1549
  %1735 = vmatprep.subr.mxu0 %v1558
  %1736 = vmatpush1.msra.mxu0 %v1557
  %1737 = vmatprep.subr.mxu0 %v1566
  %1738 = vmatpush1.msra.mxu0 %v1565
  %1739 = vmatprep.subr.mxu0 %v1574
  %1740 = vmatpush1.msra.mxu0 %v1573
  %1741 = vmatprep.subr.mxu0 %v1582
  %1742 = vmatpush1.msra.mxu0 %v1581
  %1743 = vmatprep.subr.mxu0 %v1590
  %1744 = vmatpush1.msra.mxu0 %v1589
  %1745 = vmatprep.subr.mxu0 %v1598
  %1746 = vmatpush1.msra.mxu0 %v1597
  %1747 = vmatprep.subr.mxu0 %v1606
  %1748 = vmatpush1.msra.mxu0 %v1605
  %1749 = vmatprep.subr.mxu0 %v1614
  %1750 = vmatpush1.msra.mxu0 %v1613
  %1751 = vmatprep.subr.mxu0 %v1622
  %1752 = vmatpush1.msra.mxu0 %v1621
  %1753 = vmatprep.subr.mxu0 %v1630
  %1754 = vmatpush1.msra.mxu0 %v1629
  %1755 = vmatprep.subr.mxu0 %v1638
  %1756 = vmatpush1.msra.mxu0 %v1637
  %1757 = vmatprep.subr.mxu0 %v1646
  %1758 = vmatpush1.msra.mxu0 %v1645
  %1759 = vmatprep.subr.mxu0 %v1654
  %1760 = vmatpush1.msra.mxu0 %v1653
  %1761 = vmatprep.subr.mxu0 %v1662
  %1762 = vmatpush1.msra.mxu0 %v1661
  %1763 = vmatprep.subr.mxu0 %v1670
  %1764 = vmatpush1.msra.mxu0 %v1669
  %1765 = vmatprep.subr.mxu0 %v1678
  %1766 = vmatpush1.msra.mxu0 %v1677
  %1767 = vmatprep.subr.mxu0 %v1686
  %1768 = vmatpush1.msra.mxu0 %v1685
  %1769 = vmatprep.subr.mxu0 %v1694
  %1770 = vmatpush1.msra.mxu0 %v1693
  %1771 = vmatprep.subr.mxu0 %v1702
  %1772 = vmatpush1.msra.mxu0 %v1701
  %1773 = vmatprep.mubr.f32.mxu0 %v1452
  %1774 = vmatmul.mubr.f32.gmra.mrb[0].mxu0 %v1451
  %v1775 = vpop.f32.mrb[0].mxu0
  %v1776 = vadd.f32 0.0, %v1775
  %v1777 = vpop.f32.mrb[0].mxu0
  %v1778 = vadd.f32 0.0, %v1777
  %1779 = vdwg.mxu0
  %1780 = vmatprep.subr.mxu0 %v1456
  %1781 = vmatpush1.msra.mxu0 %v1455
  %1782 = vmatprep.subr.mxu0 %v1464
  %1783 = vmatpush1.msra.mxu0 %v1463
  %1784 = vmatprep.subr.mxu0 %v1472
  %1785 = vmatpush1.msra.mxu0 %v1471
  %1786 = vmatprep.subr.mxu0 %v1480
  %1787 = vmatpush1.msra.mxu0 %v1479
  %1788 = vmatprep.subr.mxu0 %v1488
  %1789 = vmatpush1.msra.mxu0 %v1487
  %1790 = vmatprep.subr.mxu0 %v1496
  %1791 = vmatpush1.msra.mxu0 %v1495
  %1792 = vmatprep.subr.mxu0 %v1504
  %1793 = vmatpush1.msra.mxu0 %v1503
  %1794 = vmatprep.subr.mxu0 %v1512
  %1795 = vmatpush1.msra.mxu0 %v1511
  %1796 = vmatprep.subr.mxu0 %v1520
  %1797 = vmatpush1.msra.mxu0 %v1519
  %1798 = vmatprep.subr.mxu0 %v1528
  %1799 = vmatpush1.msra.mxu0 %v1527
  %1800 = vmatprep.subr.mxu0 %v1536
  %1801 = vmatpush1.msra.mxu0 %v1535
  %1802 = vmatprep.subr.mxu0 %v1544
  %1803 = vmatpush1.msra.mxu0 %v1543
  %1804 = vmatprep.subr.mxu0 %v1552
  %1805 = vmatpush1.msra.mxu0 %v1551
  %1806 = vmatprep.subr.mxu0 %v1560
  %1807 = vmatpush1.msra.mxu0 %v1559
  %1808 = vmatprep.subr.mxu0 %v1568
  %1809 = vmatpush1.msra.mxu0 %v1567
  %1810 = vmatprep.subr.mxu0 %v1576
  %1811 = vmatpush1.msra.mxu0 %v1575
  %1812 = vmatprep.subr.mxu0 %v1584
  %1813 = vmatpush1.msra.mxu0 %v1583
  %1814 = vmatprep.subr.mxu0 %v1592
  %1815 = vmatpush1.msra.mxu0 %v1591
  %1816 = vmatprep.subr.mxu0 %v1600
  %1817 = vmatpush1.msra.mxu0 %v1599
  %1818 = vmatprep.subr.mxu0 %v1608
  %1819 = vmatpush1.msra.mxu0 %v1607
  %1820 = vmatprep.subr.mxu0 %v1616
  %1821 = vmatpush1.msra.mxu0 %v1615
  %1822 = vmatprep.subr.mxu0 %v1624
  %1823 = vmatpush1.msra.mxu0 %v1623
  %1824 = vmatprep.subr.mxu0 %v1632
  %1825 = vmatpush1.msra.mxu0 %v1631
  %1826 = vmatprep.subr.mxu0 %v1640
  %1827 = vmatpush1.msra.mxu0 %v1639
  %1828 = vmatprep.subr.mxu0 %v1648
  %1829 = vmatpush1.msra.mxu0 %v1647
  %1830 = vmatprep.subr.mxu0 %v1656
  %1831 = vmatpush1.msra.mxu0 %v1655
  %1832 = vmatprep.subr.mxu0 %v1664
  %1833 = vmatpush1.msra.mxu0 %v1663
  %1834 = vmatprep.subr.mxu0 %v1672
  %1835 = vmatpush1.msra.mxu0 %v1671
  %1836 = vmatprep.subr.mxu0 %v1680
  %1837 = vmatpush1.msra.mxu0 %v1679
  %1838 = vmatprep.subr.mxu0 %v1688
  %1839 = vmatpush1.msra.mxu0 %v1687
  %1840 = vmatprep.subr.mxu0 %v1696
  %1841 = vmatpush1.msra.mxu0 %v1695
  %1842 = vmatprep.subr.mxu0 %v1704
  %1843 = vmatpush1.msra.mxu0 %v1703
  %1844 = vmatprep.mubr.f32.mxu0 %v1452
  %1845 = vmatmul.mubr.f32.gmra.mrb[0].mxu0 %v1451
  %v1846 = vpop.f32.mrb[0].mxu0
  %v1847 = vadd.f32 0.0, %v1846
  %v1848 = vpop.f32.mrb[0].mxu0
  %v1849 = vadd.f32 0.0, %v1848
  %1850 = vdwg.mxu0
  %1851 = vmatprep.subr.mxu0 %v1458
  %1852 = vmatpush1.msra.mxu0 %v1457
  %1853 = vmatprep.subr.mxu0 %v1466
  %1854 = vmatpush1.msra.mxu0 %v1465
  %1855 = vmatprep.subr.mxu0 %v1474
  %1856 = vmatpush1.msra.mxu0 %v1473
  %1857 = vmatprep.subr.mxu0 %v1482
  %1858 = vmatpush1.msra.mxu0 %v1481
  %1859 = vmatprep.subr.mxu0 %v1490
  %1860 = vmatpush1.msra.mxu0 %v1489
  %1861 = vmatprep.subr.mxu0 %v1498
  %1862 = vmatpush1.msra.mxu0 %v1497
  %1863 = vmatprep.subr.mxu0 %v1506
  %1864 = vmatpush1.msra.mxu0 %v1505
  %1865 = vmatprep.subr.mxu0 %v1514
  %1866 = vmatpush1.msra.mxu0 %v1513
  %1867 = vmatprep.subr.mxu0 %v1522
  %1868 = vmatpush1.msra.mxu0 %v1521
  %1869 = vmatprep.subr.mxu0 %v1530
  %1870 = vmatpush1.msra.mxu0 %v1529
  %1871 = vmatprep.subr.mxu0 %v1538
  %1872 = vmatpush1.msra.mxu0 %v1537
  %1873 = vmatprep.subr.mxu0 %v1546
  %1874 = vmatpush1.msra.mxu0 %v1545
  %1875 = vmatprep.subr.mxu0 %v1554
  %1876 = vmatpush1.msra.mxu0 %v1553
  %1877 = vmatprep.subr.mxu0 %v1562
  %1878 = vmatpush1.msra.mxu0 %v1561
  %1879 = vmatprep.subr.mxu0 %v1570
  %1880 = vmatpush1.msra.mxu0 %v1569
  %1881 = vmatprep.subr.mxu0 %v1578
  %1882 = vmatpush1.msra.mxu0 %v1577
  %1883 = vmatprep.subr.mxu0 %v1586
  %1884 = vmatpush1.msra.mxu0 %v1585
  %1885 = vmatprep.subr.mxu0 %v1594
  %1886 = vmatpush1.msra.mxu0 %v1593
  %1887 = vmatprep.subr.mxu0 %v1602
  %1888 = vmatpush1.msra.mxu0 %v1601
  %1889 = vmatprep.subr.mxu0 %v1610
  %1890 = vmatpush1.msra.mxu0 %v1609
  %1891 = vmatprep.subr.mxu0 %v1618
  %1892 = vmatpush1.msra.mxu0 %v1617
  %1893 = vmatprep.subr.mxu0 %v1626
  %1894 = vmatpush1.msra.mxu0 %v1625
  %1895 = vmatprep.subr.mxu0 %v1634
  %1896 = vmatpush1.msra.mxu0 %v1633
  %1897 = vmatprep.subr.mxu0 %v1642
  %1898 = vmatpush1.msra.mxu0 %v1641
  %1899 = vmatprep.subr.mxu0 %v1650
  %1900 = vmatpush1.msra.mxu0 %v1649
  %1901 = vmatprep.subr.mxu0 %v1658
  %1902 = vmatpush1.msra.mxu0 %v1657
  %1903 = vmatprep.subr.mxu0 %v1666
  %1904 = vmatpush1.msra.mxu0 %v1665
  %1905 = vmatprep.subr.mxu0 %v1674
  %1906 = vmatpush1.msra.mxu0 %v1673
  %1907 = vmatprep.subr.mxu0 %v1682
  %1908 = vmatpush1.msra.mxu0 %v1681
  %1909 = vmatprep.subr.mxu0 %v1690
  %1910 = vmatpush1.msra.mxu0 %v1689
  %1911 = vmatprep.subr.mxu0 %v1698
  %1912 = vmatpush1.msra.mxu0 %v1697
  %1913 = vmatprep.subr.mxu0 %v1706
  %1914 = vmatpush1.msra.mxu0 %v1705
  %1915 = vmatprep.mubr.f32.mxu0 %v1452
  %1916 = vmatmul.mubr.f32.gmra.mrb[0].mxu0 %v1451
  %v1917 = vpop.f32.mrb[0].mxu0
  %v1918 = vadd.f32 0.0, %v1917
  %v1919 = vpop.f32.mrb[0].mxu0
  %v1920 = vadd.f32 0.0, %v1919
  %1921 = vdwg.mxu0
  %1922 = vmatprep.subr.mxu0 %v1460
  %1923 = vmatpush1.msra.mxu0 %v1459
  %1924 = vmatprep.subr.mxu0 %v1468
  %1925 = vmatpush1.msra.mxu0 %v1467
  %1926 = vmatprep.subr.mxu0 %v1476
  %1927 = vmatpush1.msra.mxu0 %v1475
  %1928 = vmatprep.subr.mxu0 %v1484
  %1929 = vmatpush1.msra.mxu0 %v1483
  %1930 = vmatprep.subr.mxu0 %v1492
  %1931 = vmatpush1.msra.mxu0 %v1491
  %1932 = vmatprep.subr.mxu0 %v1500
  %1933 = vmatpush1.msra.mxu0 %v1499
  %1934 = vmatprep.subr.mxu0 %v1508
  %1935 = vmatpush1.msra.mxu0 %v1507
  %1936 = vmatprep.subr.mxu0 %v1516
  %1937 = vmatpush1.msra.mxu0 %v1515
  %1938 = vmatprep.subr.mxu0 %v1524
  %1939 = vmatpush1.msra.mxu0 %v1523
  %1940 = vmatprep.subr.mxu0 %v1532
  %1941 = vmatpush1.msra.mxu0 %v1531
  %1942 = vmatprep.subr.mxu0 %v1540
  %1943 = vmatpush1.msra.mxu0 %v1539
  %1944 = vmatprep.subr.mxu0 %v1548
  %1945 = vmatpush1.msra.mxu0 %v1547
  %1946 = vmatprep.subr.mxu0 %v1556
  %1947 = vmatpush1.msra.mxu0 %v1555
  %1948 = vmatprep.subr.mxu0 %v1564
  %1949 = vmatpush1.msra.mxu0 %v1563
  %1950 = vmatprep.subr.mxu0 %v1572
  %1951 = vmatpush1.msra.mxu0 %v1571
  %1952 = vmatprep.subr.mxu0 %v1580
  %1953 = vmatpush1.msra.mxu0 %v1579
  %1954 = vmatprep.subr.mxu0 %v1588
  %1955 = vmatpush1.msra.mxu0 %v1587
  %1956 = vmatprep.subr.mxu0 %v1596
  %1957 = vmatpush1.msra.mxu0 %v1595
  %1958 = vmatprep.subr.mxu0 %v1604
  %1959 = vmatpush1.msra.mxu0 %v1603
  %1960 = vmatprep.subr.mxu0 %v1612
  %1961 = vmatpush1.msra.mxu0 %v1611
  %1962 = vmatprep.subr.mxu0 %v1620
  %1963 = vmatpush1.msra.mxu0 %v1619
  %1964 = vmatprep.subr.mxu0 %v1628
  %1965 = vmatpush1.msra.mxu0 %v1627
  %1966 = vmatprep.subr.mxu0 %v1636
  %1967 = vmatpush1.msra.mxu0 %v1635
  %1968 = vmatprep.subr.mxu0 %v1644
  %1969 = vmatpush1.msra.mxu0 %v1643
  %1970 = vmatprep.subr.mxu0 %v1652
  %1971 = vmatpush1.msra.mxu0 %v1651
  %1972 = vmatprep.subr.mxu0 %v1660
  %1973 = vmatpush1.msra.mxu0 %v1659
  %1974 = vmatprep.subr.mxu0 %v1668
  %1975 = vmatpush1.msra.mxu0 %v1667
  %1976 = vmatprep.subr.mxu0 %v1676
  %1977 = vmatpush1.msra.mxu0 %v1675
  %1978 = vmatprep.subr.mxu0 %v1684
  %1979 = vmatpush1.msra.mxu0 %v1683
  %1980 = vmatprep.subr.mxu0 %v1692
  %1981 = vmatpush1.msra.mxu0 %v1691
  %1982 = vmatprep.subr.mxu0 %v1700
  %1983 = vmatpush1.msra.mxu0 %v1699
  %1984 = vmatprep.subr.mxu0 %v1708
  %1985 = vmatpush1.msra.mxu0 %v1707
  %1986 = vmatprep.mubr.f32.mxu0 %v1452
  %1987 = vmatmul.mubr.f32.gmra.mrb[0].mxu0 %v1451
  %v1988 = vpop.f32.mrb[0].mxu0
  %v1989 = vadd.f32 0.0, %v1988
  %v1990 = vpop.f32.mrb[0].mxu0
  %v1991 = vadd.f32 0.0, %v1990
  %1992 = vdwg.mxu0
  %v1993 = vadd.f32 %v1918, %v786
  %v1994 = vadd.f32 %v1920, %v790
  %v1995 = vadd.f32 %v1989, %v794
  %v1996 = vadd.f32 %v1991, %v798
  %v1997 = vmul.f32 %v1993, 0.5
  %v1998 = vtanh.pop %v1997
  %v1999 = vmul.f32 %v1998, 0.5
  %v2000 = vadd.f32 %v1999, 0.5
  %v2001 = vmul.f32 %v1994, 0.5
  %v2002 = vtanh.pop %v2001
  %v2003 = vmul.f32 %v2002, 0.5
  %v2004 = vadd.f32 %v2003, 0.5
  %v2005 = vtanh.pop %v1995
  %v2006 = vmul.f32 %v1996, 0.5
  %v2007 = vtanh.pop %v2006
  %v2008 = vmul.f32 %v2007, 0.5
  %v2009 = vadd.f32 %v2008, 0.5
  %v2010 = vmul.f32 %v2004, %v1417
  %v2011 = vmul.f32 %v2000, %v2005
  %v2012 = vadd.f32 %v2010, %v2011
  %v2013 = vtanh.pop %v2012
  %v2014 = vmul.f32 %v2009, %v2013
  %2015 = vst [vmem:[#allocation3 + $0x8] sm:$0xff] %v2014
  %s2016 = smul.u32 3, 4
  %s2017 = smul.addr %s2016, 8
  %s2018 = scalar_lea.vmem [#allocation2], %s2017
  %v2019 = vld [vmem:[%s2018] sm:$0xff]
  %v2020 = vld [vmem:[%s2018 + $0x8] sm:$0xff]
  %v2021 = vld [vmem:[%s2018 + $0x10] sm:$0xff]
  %v2022 = vld [vmem:[%s2018 + $0x18] sm:$0xff]
  %v2023 = vadd.f32 %v2019, %v1776
  %v2024 = vadd.f32 %v2020, %v1778
  %v2025 = vadd.f32 %v2021, %v1847
  %v2026 = vadd.f32 %v2022, %v1849
  %v2027 = vmul.f32 %v2023, 0.5
  %v2028 = vtanh.pop %v2027
  %v2029 = vmul.f32 %v2028, 0.5
  %v2030 = vadd.f32 %v2029, 0.5
  %v2031 = vmul.f32 %v2024, 0.5
  %v2032 = vtanh.pop %v2031
  %v2033 = vmul.f32 %v2032, 0.5
  %v2034 = vadd.f32 %v2033, 0.5
  %v2035 = vtanh.pop %v2025
  %v2036 = vmul.f32 %v2026, 0.5
  %v2037 = vtanh.pop %v2036
  %v2038 = vmul.f32 %v2037, 0.5
  %v2039 = vadd.f32 %v2038, 0.5
  %v2040 = vmul.f32 %v2034, %v1447
  %v2041 = vmul.f32 %v2030, %v2035
  %v2042 = vadd.f32 %v2040, %v2041
  %v2043 = vtanh.pop %v2042
  %v2044 = vmul.f32 %v2039, %v2043
  %2045 = vst [vmem:[#allocation3] sm:$0xff] %v2044
  %v2046 = vld [vmem:[#allocation3] sm:$0xff]
  %v2047 = vld [vmem:[#allocation3 + $0x8] sm:$0xff]
  %v2048 = vld [vmem:[%s2] sm:$0xff]
  %v2049 = vld [vmem:[%s2 + $0x8] sm:$0xff]
  %v2050 = vld [vmem:[%s2 + $0x10] sm:$0xff]
  %v2051 = vld [vmem:[%s2 + $0x18] sm:$0xff]
  %v2052 = vld [vmem:[%s2 + $0x20] sm:$0xff]
  %v2053 = vld [vmem:[%s2 + $0x28] sm:$0xff]
  %v2054 = vld [vmem:[%s2 + $0x30] sm:$0xff]
  %v2055 = vld [vmem:[%s2 + $0x38] sm:$0xff]
  %v2056 = vld [vmem:[%s2 + $0x40] sm:$0xff]
  %v2057 = vld [vmem:[%s2 + $0x48] sm:$0xff]
  %v2058 = vld [vmem:[%s2 + $0x50] sm:$0xff]
  %v2059 = vld [vmem:[%s2 + $0x58] sm:$0xff]
  %v2060 = vld [vmem:[%s2 + $0x60] sm:$0xff]
  %v2061 = vld [vmem:[%s2 + $0x68] sm:$0xff]
  %v2062 = vld [vmem:[%s2 + $0x70] sm:$0xff]
  %v2063 = vld [vmem:[%s2 + $0x78] sm:$0xff]
  %v2064 = vld [vmem:[%s2 + $0x80] sm:$0xff]
  %v2065 = vld [vmem:[%s2 + $0x88] sm:$0xff]
  %v2066 = vld [vmem:[%s2 + $0x90] sm:$0xff]
  %v2067 = vld [vmem:[%s2 + $0x98] sm:$0xff]
  %v2068 = vld [vmem:[%s2 + $0xa0] sm:$0xff]
  %v2069 = vld [vmem:[%s2 + $0xa8] sm:$0xff]
  %v2070 = vld [vmem:[%s2 + $0xb0] sm:$0xff]
  %v2071 = vld [vmem:[%s2 + $0xb8] sm:$0xff]
  %v2072 = vld [vmem:[%s2 + $0xc0] sm:$0xff]
  %v2073 = vld [vmem:[%s2 + $0xc8] sm:$0xff]
  %v2074 = vld [vmem:[%s2 + $0xd0] sm:$0xff]
  %v2075 = vld [vmem:[%s2 + $0xd8] sm:$0xff]
  %v2076 = vld [vmem:[%s2 + $0xe0] sm:$0xff]
  %v2077 = vld [vmem:[%s2 + $0xe8] sm:$0xff]
  %v2078 = vld [vmem:[%s2 + $0xf0] sm:$0xff]
  %v2079 = vld [vmem:[%s2 + $0xf8] sm:$0xff]
  %v2080 = vld [vmem:[%s2 + $0x100] sm:$0xff]
  %v2081 = vld [vmem:[%s2 + $0x108] sm:$0xff]
  %v2082 = vld [vmem:[%s2 + $0x110] sm:$0xff]
  %v2083 = vld [vmem:[%s2 + $0x118] sm:$0xff]
  %v2084 = vld [vmem:[%s2 + $0x120] sm:$0xff]
  %v2085 = vld [vmem:[%s2 + $0x128] sm:$0xff]
  %v2086 = vld [vmem:[%s2 + $0x130] sm:$0xff]
  %v2087 = vld [vmem:[%s2 + $0x138] sm:$0xff]
  %v2088 = vld [vmem:[%s2 + $0x140] sm:$0xff]
  %v2089 = vld [vmem:[%s2 + $0x148] sm:$0xff]
  %v2090 = vld [vmem:[%s2 + $0x150] sm:$0xff]
  %v2091 = vld [vmem:[%s2 + $0x158] sm:$0xff]
  %v2092 = vld [vmem:[%s2 + $0x160] sm:$0xff]
  %v2093 = vld [vmem:[%s2 + $0x168] sm:$0xff]
  %v2094 = vld [vmem:[%s2 + $0x170] sm:$0xff]
  %v2095 = vld [vmem:[%s2 + $0x178] sm:$0xff]
  %v2096 = vld [vmem:[%s2 + $0x180] sm:$0xff]
  %v2097 = vld [vmem:[%s2 + $0x188] sm:$0xff]
  %v2098 = vld [vmem:[%s2 + $0x190] sm:$0xff]
  %v2099 = vld [vmem:[%s2 + $0x198] sm:$0xff]
  %v2100 = vld [vmem:[%s2 + $0x1a0] sm:$0xff]
  %v2101 = vld [vmem:[%s2 + $0x1a8] sm:$0xff]
  %v2102 = vld [vmem:[%s2 + $0x1b0] sm:$0xff]
  %v2103 = vld [vmem:[%s2 + $0x1b8] sm:$0xff]
  %v2104 = vld [vmem:[%s2 + $0x1c0] sm:$0xff]
  %v2105 = vld [vmem:[%s2 + $0x1c8] sm:$0xff]
  %v2106 = vld [vmem:[%s2 + $0x1d0] sm:$0xff]
  %v2107 = vld [vmem:[%s2 + $0x1d8] sm:$0xff]
  %v2108 = vld [vmem:[%s2 + $0x1e0] sm:$0xff]
  %v2109 = vld [vmem:[%s2 + $0x1e8] sm:$0xff]
  %v2110 = vld [vmem:[%s2 + $0x1f0] sm:$0xff]
  %v2111 = vld [vmem:[%s2 + $0x1f8] sm:$0xff]
  %v2112 = vld [vmem:[%s2 + $0x200] sm:$0xff]
  %v2113 = vld [vmem:[%s2 + $0x208] sm:$0xff]
  %v2114 = vld [vmem:[%s2 + $0x210] sm:$0xff]
  %v2115 = vld [vmem:[%s2 + $0x218] sm:$0xff]
  %v2116 = vld [vmem:[%s2 + $0x220] sm:$0xff]
  %v2117 = vld [vmem:[%s2 + $0x228] sm:$0xff]
  %v2118 = vld [vmem:[%s2 + $0x230] sm:$0xff]
  %v2119 = vld [vmem:[%s2 + $0x238] sm:$0xff]
  %v2120 = vld [vmem:[%s2 + $0x240] sm:$0xff]
  %v2121 = vld [vmem:[%s2 + $0x248] sm:$0xff]
  %v2122 = vld [vmem:[%s2 + $0x250] sm:$0xff]
  %v2123 = vld [vmem:[%s2 + $0x258] sm:$0xff]
  %v2124 = vld [vmem:[%s2 + $0x260] sm:$0xff]
  %v2125 = vld [vmem:[%s2 + $0x268] sm:$0xff]
  %v2126 = vld [vmem:[%s2 + $0x270] sm:$0xff]
  %v2127 = vld [vmem:[%s2 + $0x278] sm:$0xff]
  %v2128 = vld [vmem:[%s2 + $0x280] sm:$0xff]
  %v2129 = vld [vmem:[%s2 + $0x288] sm:$0xff]
  %v2130 = vld [vmem:[%s2 + $0x290] sm:$0xff]
  %v2131 = vld [vmem:[%s2 + $0x298] sm:$0xff]
  %v2132 = vld [vmem:[%s2 + $0x2a0] sm:$0xff]
  %v2133 = vld [vmem:[%s2 + $0x2a8] sm:$0xff]
  %v2134 = vld [vmem:[%s2 + $0x2b0] sm:$0xff]
  %v2135 = vld [vmem:[%s2 + $0x2b8] sm:$0xff]
  %v2136 = vld [vmem:[%s2 + $0x2c0] sm:$0xff]
  %v2137 = vld [vmem:[%s2 + $0x2c8] sm:$0xff]
  %v2138 = vld [vmem:[%s2 + $0x2d0] sm:$0xff]
  %v2139 = vld [vmem:[%s2 + $0x2d8] sm:$0xff]
  %v2140 = vld [vmem:[%s2 + $0x2e0] sm:$0xff]
  %v2141 = vld [vmem:[%s2 + $0x2e8] sm:$0xff]
  %v2142 = vld [vmem:[%s2 + $0x2f0] sm:$0xff]
  %v2143 = vld [vmem:[%s2 + $0x2f8] sm:$0xff]
  %v2144 = vld [vmem:[%s2 + $0x300] sm:$0xff]
  %v2145 = vld [vmem:[%s2 + $0x308] sm:$0xff]
  %v2146 = vld [vmem:[%s2 + $0x310] sm:$0xff]
  %v2147 = vld [vmem:[%s2 + $0x318] sm:$0xff]
  %v2148 = vld [vmem:[%s2 + $0x320] sm:$0xff]
  %v2149 = vld [vmem:[%s2 + $0x328] sm:$0xff]
  %v2150 = vld [vmem:[%s2 + $0x330] sm:$0xff]
  %v2151 = vld [vmem:[%s2 + $0x338] sm:$0xff]
  %v2152 = vld [vmem:[%s2 + $0x340] sm:$0xff]
  %v2153 = vld [vmem:[%s2 + $0x348] sm:$0xff]
  %v2154 = vld [vmem:[%s2 + $0x350] sm:$0xff]
  %v2155 = vld [vmem:[%s2 + $0x358] sm:$0xff]
  %v2156 = vld [vmem:[%s2 + $0x360] sm:$0xff]
  %v2157 = vld [vmem:[%s2 + $0x368] sm:$0xff]
  %v2158 = vld [vmem:[%s2 + $0x370] sm:$0xff]
  %v2159 = vld [vmem:[%s2 + $0x378] sm:$0xff]
  %v2160 = vld [vmem:[%s2 + $0x380] sm:$0xff]
  %v2161 = vld [vmem:[%s2 + $0x388] sm:$0xff]
  %v2162 = vld [vmem:[%s2 + $0x390] sm:$0xff]
  %v2163 = vld [vmem:[%s2 + $0x398] sm:$0xff]
  %v2164 = vld [vmem:[%s2 + $0x3a0] sm:$0xff]
  %v2165 = vld [vmem:[%s2 + $0x3a8] sm:$0xff]
  %v2166 = vld [vmem:[%s2 + $0x3b0] sm:$0xff]
  %v2167 = vld [vmem:[%s2 + $0x3b8] sm:$0xff]
  %v2168 = vld [vmem:[%s2 + $0x3c0] sm:$0xff]
  %v2169 = vld [vmem:[%s2 + $0x3c8] sm:$0xff]
  %v2170 = vld [vmem:[%s2 + $0x3d0] sm:$0xff]
  %v2171 = vld [vmem:[%s2 + $0x3d8] sm:$0xff]
  %v2172 = vld [vmem:[%s2 + $0x3e0] sm:$0xff]
  %v2173 = vld [vmem:[%s2 + $0x3e8] sm:$0xff]
  %v2174 = vld [vmem:[%s2 + $0x3f0] sm:$0xff]
  %v2175 = vld [vmem:[%s2 + $0x3f8] sm:$0xff]
  %v2176 = vld [vmem:[%s2 + $0x400] sm:$0xff]
  %v2177 = vld [vmem:[%s2 + $0x408] sm:$0xff]
  %v2178 = vld [vmem:[%s2 + $0x410] sm:$0xff]
  %v2179 = vld [vmem:[%s2 + $0x418] sm:$0xff]
  %v2180 = vld [vmem:[%s2 + $0x420] sm:$0xff]
  %v2181 = vld [vmem:[%s2 + $0x428] sm:$0xff]
  %v2182 = vld [vmem:[%s2 + $0x430] sm:$0xff]
  %v2183 = vld [vmem:[%s2 + $0x438] sm:$0xff]
  %v2184 = vld [vmem:[%s2 + $0x440] sm:$0xff]
  %v2185 = vld [vmem:[%s2 + $0x448] sm:$0xff]
  %v2186 = vld [vmem:[%s2 + $0x450] sm:$0xff]
  %v2187 = vld [vmem:[%s2 + $0x458] sm:$0xff]
  %v2188 = vld [vmem:[%s2 + $0x460] sm:$0xff]
  %v2189 = vld [vmem:[%s2 + $0x468] sm:$0xff]
  %v2190 = vld [vmem:[%s2 + $0x470] sm:$0xff]
  %v2191 = vld [vmem:[%s2 + $0x478] sm:$0xff]
  %v2192 = vld [vmem:[%s2 + $0x480] sm:$0xff]
  %v2193 = vld [vmem:[%s2 + $0x488] sm:$0xff]
  %v2194 = vld [vmem:[%s2 + $0x490] sm:$0xff]
  %v2195 = vld [vmem:[%s2 + $0x498] sm:$0xff]
  %v2196 = vld [vmem:[%s2 + $0x4a0] sm:$0xff]
  %v2197 = vld [vmem:[%s2 + $0x4a8] sm:$0xff]
  %v2198 = vld [vmem:[%s2 + $0x4b0] sm:$0xff]
  %v2199 = vld [vmem:[%s2 + $0x4b8] sm:$0xff]
  %v2200 = vld [vmem:[%s2 + $0x4c0] sm:$0xff]
  %v2201 = vld [vmem:[%s2 + $0x4c8] sm:$0xff]
  %v2202 = vld [vmem:[%s2 + $0x4d0] sm:$0xff]
  %v2203 = vld [vmem:[%s2 + $0x4d8] sm:$0xff]
  %v2204 = vld [vmem:[%s2 + $0x4e0] sm:$0xff]
  %v2205 = vld [vmem:[%s2 + $0x4e8] sm:$0xff]
  %v2206 = vld [vmem:[%s2 + $0x4f0] sm:$0xff]
  %v2207 = vld [vmem:[%s2 + $0x4f8] sm:$0xff]
  %v2208 = vld [vmem:[%s2 + $0x500] sm:$0xff]
  %v2209 = vld [vmem:[%s2 + $0x508] sm:$0xff]
  %v2210 = vld [vmem:[%s2 + $0x510] sm:$0xff]
  %v2211 = vld [vmem:[%s2 + $0x518] sm:$0xff]
  %v2212 = vld [vmem:[%s2 + $0x520] sm:$0xff]
  %v2213 = vld [vmem:[%s2 + $0x528] sm:$0xff]
  %v2214 = vld [vmem:[%s2 + $0x530] sm:$0xff]
  %v2215 = vld [vmem:[%s2 + $0x538] sm:$0xff]
  %v2216 = vld [vmem:[%s2 + $0x540] sm:$0xff]
  %v2217 = vld [vmem:[%s2 + $0x548] sm:$0xff]
  %v2218 = vld [vmem:[%s2 + $0x550] sm:$0xff]
  %v2219 = vld [vmem:[%s2 + $0x558] sm:$0xff]
  %v2220 = vld [vmem:[%s2 + $0x560] sm:$0xff]
  %v2221 = vld [vmem:[%s2 + $0x568] sm:$0xff]
  %v2222 = vld [vmem:[%s2 + $0x570] sm:$0xff]
  %v2223 = vld [vmem:[%s2 + $0x578] sm:$0xff]
  %v2224 = vld [vmem:[%s2 + $0x580] sm:$0xff]
  %v2225 = vld [vmem:[%s2 + $0x588] sm:$0xff]
  %v2226 = vld [vmem:[%s2 + $0x590] sm:$0xff]
  %v2227 = vld [vmem:[%s2 + $0x598] sm:$0xff]
  %v2228 = vld [vmem:[%s2 + $0x5a0] sm:$0xff]
  %v2229 = vld [vmem:[%s2 + $0x5a8] sm:$0xff]
  %v2230 = vld [vmem:[%s2 + $0x5b0] sm:$0xff]
  %v2231 = vld [vmem:[%s2 + $0x5b8] sm:$0xff]
  %v2232 = vld [vmem:[%s2 + $0x5c0] sm:$0xff]
  %v2233 = vld [vmem:[%s2 + $0x5c8] sm:$0xff]
  %v2234 = vld [vmem:[%s2 + $0x5d0] sm:$0xff]
  %v2235 = vld [vmem:[%s2 + $0x5d8] sm:$0xff]
  %v2236 = vld [vmem:[%s2 + $0x5e0] sm:$0xff]
  %v2237 = vld [vmem:[%s2 + $0x5e8] sm:$0xff]
  %v2238 = vld [vmem:[%s2 + $0x5f0] sm:$0xff]
  %v2239 = vld [vmem:[%s2 + $0x5f8] sm:$0xff]
  %v2240 = vld [vmem:[%s2 + $0x600] sm:$0xff]
  %v2241 = vld [vmem:[%s2 + $0x608] sm:$0xff]
  %v2242 = vld [vmem:[%s2 + $0x610] sm:$0xff]
  %v2243 = vld [vmem:[%s2 + $0x618] sm:$0xff]
  %v2244 = vld [vmem:[%s2 + $0x620] sm:$0xff]
  %v2245 = vld [vmem:[%s2 + $0x628] sm:$0xff]
  %v2246 = vld [vmem:[%s2 + $0x630] sm:$0xff]
  %v2247 = vld [vmem:[%s2 + $0x638] sm:$0xff]
  %v2248 = vld [vmem:[%s2 + $0x640] sm:$0xff]
  %v2249 = vld [vmem:[%s2 + $0x648] sm:$0xff]
  %v2250 = vld [vmem:[%s2 + $0x650] sm:$0xff]
  %v2251 = vld [vmem:[%s2 + $0x658] sm:$0xff]
  %v2252 = vld [vmem:[%s2 + $0x660] sm:$0xff]
  %v2253 = vld [vmem:[%s2 + $0x668] sm:$0xff]
  %v2254 = vld [vmem:[%s2 + $0x670] sm:$0xff]
  %v2255 = vld [vmem:[%s2 + $0x678] sm:$0xff]
  %v2256 = vld [vmem:[%s2 + $0x680] sm:$0xff]
  %v2257 = vld [vmem:[%s2 + $0x688] sm:$0xff]
  %v2258 = vld [vmem:[%s2 + $0x690] sm:$0xff]
  %v2259 = vld [vmem:[%s2 + $0x698] sm:$0xff]
  %v2260 = vld [vmem:[%s2 + $0x6a0] sm:$0xff]
  %v2261 = vld [vmem:[%s2 + $0x6a8] sm:$0xff]
  %v2262 = vld [vmem:[%s2 + $0x6b0] sm:$0xff]
  %v2263 = vld [vmem:[%s2 + $0x6b8] sm:$0xff]
  %v2264 = vld [vmem:[%s2 + $0x6c0] sm:$0xff]
  %v2265 = vld [vmem:[%s2 + $0x6c8] sm:$0xff]
  %v2266 = vld [vmem:[%s2 + $0x6d0] sm:$0xff]
  %v2267 = vld [vmem:[%s2 + $0x6d8] sm:$0xff]
  %v2268 = vld [vmem:[%s2 + $0x6e0] sm:$0xff]
  %v2269 = vld [vmem:[%s2 + $0x6e8] sm:$0xff]
  %v2270 = vld [vmem:[%s2 + $0x6f0] sm:$0xff]
  %v2271 = vld [vmem:[%s2 + $0x6f8] sm:$0xff]
  %v2272 = vld [vmem:[%s2 + $0x700] sm:$0xff]
  %v2273 = vld [vmem:[%s2 + $0x708] sm:$0xff]
  %v2274 = vld [vmem:[%s2 + $0x710] sm:$0xff]
  %v2275 = vld [vmem:[%s2 + $0x718] sm:$0xff]
  %v2276 = vld [vmem:[%s2 + $0x720] sm:$0xff]
  %v2277 = vld [vmem:[%s2 + $0x728] sm:$0xff]
  %v2278 = vld [vmem:[%s2 + $0x730] sm:$0xff]
  %v2279 = vld [vmem:[%s2 + $0x738] sm:$0xff]
  %v2280 = vld [vmem:[%s2 + $0x740] sm:$0xff]
  %v2281 = vld [vmem:[%s2 + $0x748] sm:$0xff]
  %v2282 = vld [vmem:[%s2 + $0x750] sm:$0xff]
  %v2283 = vld [vmem:[%s2 + $0x758] sm:$0xff]
  %v2284 = vld [vmem:[%s2 + $0x760] sm:$0xff]
  %v2285 = vld [vmem:[%s2 + $0x768] sm:$0xff]
  %v2286 = vld [vmem:[%s2 + $0x770] sm:$0xff]
  %v2287 = vld [vmem:[%s2 + $0x778] sm:$0xff]
  %v2288 = vld [vmem:[%s2 + $0x780] sm:$0xff]
  %v2289 = vld [vmem:[%s2 + $0x788] sm:$0xff]
  %v2290 = vld [vmem:[%s2 + $0x790] sm:$0xff]
  %v2291 = vld [vmem:[%s2 + $0x798] sm:$0xff]
  %v2292 = vld [vmem:[%s2 + $0x7a0] sm:$0xff]
  %v2293 = vld [vmem:[%s2 + $0x7a8] sm:$0xff]
  %v2294 = vld [vmem:[%s2 + $0x7b0] sm:$0xff]
  %v2295 = vld [vmem:[%s2 + $0x7b8] sm:$0xff]
  %v2296 = vld [vmem:[%s2 + $0x7c0] sm:$0xff]
  %v2297 = vld [vmem:[%s2 + $0x7c8] sm:$0xff]
  %v2298 = vld [vmem:[%s2 + $0x7d0] sm:$0xff]
  %v2299 = vld [vmem:[%s2 + $0x7d8] sm:$0xff]
  %v2300 = vld [vmem:[%s2 + $0x7e0] sm:$0xff]
  %v2301 = vld [vmem:[%s2 + $0x7e8] sm:$0xff]
  %v2302 = vld [vmem:[%s2 + $0x7f0] sm:$0xff]
  %v2303 = vld [vmem:[%s2 + $0x7f8] sm:$0xff]
  %2304 = vmatprep.subr.mxu0 %v2049
  %2305 = vmatpush1.msra.mxu0 %v2048
  %2306 = vmatprep.subr.mxu0 %v2057
  %2307 = vmatpush1.msra.mxu0 %v2056
  %2308 = vmatprep.subr.mxu0 %v2065
  %2309 = vmatpush1.msra.mxu0 %v2064
  %2310 = vmatprep.subr.mxu0 %v2073
  %2311 = vmatpush1.msra.mxu0 %v2072
  %2312 = vmatprep.subr.mxu0 %v2081
  %2313 = vmatpush1.msra.mxu0 %v2080
  %2314 = vmatprep.subr.mxu0 %v2089
  %2315 = vmatpush1.msra.mxu0 %v2088
  %2316 = vmatprep.subr.mxu0 %v2097
  %2317 = vmatpush1.msra.mxu0 %v2096
  %2318 = vmatprep.subr.mxu0 %v2105
  %2319 = vmatpush1.msra.mxu0 %v2104
  %2320 = vmatprep.subr.mxu0 %v2113
  %2321 = vmatpush1.msra.mxu0 %v2112
  %2322 = vmatprep.subr.mxu0 %v2121
  %2323 = vmatpush1.msra.mxu0 %v2120
  %2324 = vmatprep.subr.mxu0 %v2129
  %2325 = vmatpush1.msra.mxu0 %v2128
  %2326 = vmatprep.subr.mxu0 %v2137
  %2327 = vmatpush1.msra.mxu0 %v2136
  %2328 = vmatprep.subr.mxu0 %v2145
  %2329 = vmatpush1.msra.mxu0 %v2144
  %2330 = vmatprep.subr.mxu0 %v2153
  %2331 = vmatpush1.msra.mxu0 %v2152
  %2332 = vmatprep.subr.mxu0 %v2161
  %2333 = vmatpush1.msra.mxu0 %v2160
  %2334 = vmatprep.subr.mxu0 %v2169
  %2335 = vmatpush1.msra.mxu0 %v2168
  %2336 = vmatprep.subr.mxu0 %v2177
  %2337 = vmatpush1.msra.mxu0 %v2176
  %2338 = vmatprep.subr.mxu0 %v2185
  %2339 = vmatpush1.msra.mxu0 %v2184
  %2340 = vmatprep.subr.mxu0 %v2193
  %2341 = vmatpush1.msra.mxu0 %v2192
  %2342 = vmatprep.subr.mxu0 %v2201
  %2343 = vmatpush1.msra.mxu0 %v2200
  %2344 = vmatprep.subr.mxu0 %v2209
  %2345 = vmatpush1.msra.mxu0 %v2208
  %2346 = vmatprep.subr.mxu0 %v2217
  %2347 = vmatpush1.msra.mxu0 %v2216
  %2348 = vmatprep.subr.mxu0 %v2225
  %2349 = vmatpush1.msra.mxu0 %v2224
  %2350 = vmatprep.subr.mxu0 %v2233
  %2351 = vmatpush1.msra.mxu0 %v2232
  %2352 = vmatprep.subr.mxu0 %v2241
  %2353 = vmatpush1.msra.mxu0 %v2240
  %2354 = vmatprep.subr.mxu0 %v2249
  %2355 = vmatpush1.msra.mxu0 %v2248
  %2356 = vmatprep.subr.mxu0 %v2257
  %2357 = vmatpush1.msra.mxu0 %v2256
  %2358 = vmatprep.subr.mxu0 %v2265
  %2359 = vmatpush1.msra.mxu0 %v2264
  %2360 = vmatprep.subr.mxu0 %v2273
  %2361 = vmatpush1.msra.mxu0 %v2272
  %2362 = vmatprep.subr.mxu0 %v2281
  %2363 = vmatpush1.msra.mxu0 %v2280
  %2364 = vmatprep.subr.mxu0 %v2289
  %2365 = vmatpush1.msra.mxu0 %v2288
  %2366 = vmatprep.subr.mxu0 %v2297
  %2367 = vmatpush1.msra.mxu0 %v2296
  %2368 = vmatprep.mubr.f32.mxu0 %v2047
  %2369 = vmatmul.mubr.f32.gmra.mrb[0].mxu0 %v2046
  %v2370 = vpop.f32.mrb[0].mxu0
  %v2371 = vadd.f32 0.0, %v2370
  %v2372 = vpop.f32.mrb[0].mxu0
  %v2373 = vadd.f32 0.0, %v2372
  %2374 = vdwg.mxu0
  %2375 = vmatprep.subr.mxu0 %v2051
  %2376 = vmatpush1.msra.mxu0 %v2050
  %2377 = vmatprep.subr.mxu0 %v2059
  %2378 = vmatpush1.msra.mxu0 %v2058
  %2379 = vmatprep.subr.mxu0 %v2067
  %2380 = vmatpush1.msra.mxu0 %v2066
  %2381 = vmatprep.subr.mxu0 %v2075
  %2382 = vmatpush1.msra.mxu0 %v2074
  %2383 = vmatprep.subr.mxu0 %v2083
  %2384 = vmatpush1.msra.mxu0 %v2082
  %2385 = vmatprep.subr.mxu0 %v2091
  %2386 = vmatpush1.msra.mxu0 %v2090
  %2387 = vmatprep.subr.mxu0 %v2099
  %2388 = vmatpush1.msra.mxu0 %v2098
  %2389 = vmatprep.subr.mxu0 %v2107
  %2390 = vmatpush1.msra.mxu0 %v2106
  %2391 = vmatprep.subr.mxu0 %v2115
  %2392 = vmatpush1.msra.mxu0 %v2114
  %2393 = vmatprep.subr.mxu0 %v2123
  %2394 = vmatpush1.msra.mxu0 %v2122
  %2395 = vmatprep.subr.mxu0 %v2131
  %2396 = vmatpush1.msra.mxu0 %v2130
  %2397 = vmatprep.subr.mxu0 %v2139
  %2398 = vmatpush1.msra.mxu0 %v2138
  %2399 = vmatprep.subr.mxu0 %v2147
  %2400 = vmatpush1.msra.mxu0 %v2146
  %2401 = vmatprep.subr.mxu0 %v2155
  %2402 = vmatpush1.msra.mxu0 %v2154
  %2403 = vmatprep.subr.mxu0 %v2163
  %2404 = vmatpush1.msra.mxu0 %v2162
  %2405 = vmatprep.subr.mxu0 %v2171
  %2406 = vmatpush1.msra.mxu0 %v2170
  %2407 = vmatprep.subr.mxu0 %v2179
  %2408 = vmatpush1.msra.mxu0 %v2178
  %2409 = vmatprep.subr.mxu0 %v2187
  %2410 = vmatpush1.msra.mxu0 %v2186
  %2411 = vmatprep.subr.mxu0 %v2195
  %2412 = vmatpush1.msra.mxu0 %v2194
  %2413 = vmatprep.subr.mxu0 %v2203
  %2414 = vmatpush1.msra.mxu0 %v2202
  %2415 = vmatprep.subr.mxu0 %v2211
  %2416 = vmatpush1.msra.mxu0 %v2210
  %2417 = vmatprep.subr.mxu0 %v2219
  %2418 = vmatpush1.msra.mxu0 %v2218
  %2419 = vmatprep.subr.mxu0 %v2227
  %2420 = vmatpush1.msra.mxu0 %v2226
  %2421 = vmatprep.subr.mxu0 %v2235
  %2422 = vmatpush1.msra.mxu0 %v2234
  %2423 = vmatprep.subr.mxu0 %v2243
  %2424 = vmatpush1.msra.mxu0 %v2242
  %2425 = vmatprep.subr.mxu0 %v2251
  %2426 = vmatpush1.msra.mxu0 %v2250
  %2427 = vmatprep.subr.mxu0 %v2259
  %2428 = vmatpush1.msra.mxu0 %v2258
  %2429 = vmatprep.subr.mxu0 %v2267
  %2430 = vmatpush1.msra.mxu0 %v2266
  %2431 = vmatprep.subr.mxu0 %v2275
  %2432 = vmatpush1.msra.mxu0 %v2274
  %2433 = vmatprep.subr.mxu0 %v2283
  %2434 = vmatpush1.msra.mxu0 %v2282
  %2435 = vmatprep.subr.mxu0 %v2291
  %2436 = vmatpush1.msra.mxu0 %v2290
  %2437 = vmatprep.subr.mxu0 %v2299
  %2438 = vmatpush1.msra.mxu0 %v2298
  %2439 = vmatprep.mubr.f32.mxu0 %v2047
  %2440 = vmatmul.mubr.f32.gmra.mrb[0].mxu0 %v2046
  %v2441 = vpop.f32.mrb[0].mxu0
  %v2442 = vadd.f32 0.0, %v2441
  %v2443 = vpop.f32.mrb[0].mxu0
  %v2444 = vadd.f32 0.0, %v2443
  %2445 = vdwg.mxu0
  %2446 = vmatprep.subr.mxu0 %v2053
  %2447 = vmatpush1.msra.mxu0 %v2052
  %2448 = vmatprep.subr.mxu0 %v2061
  %2449 = vmatpush1.msra.mxu0 %v2060
  %2450 = vmatprep.subr.mxu0 %v2069
  %2451 = vmatpush1.msra.mxu0 %v2068
  %2452 = vmatprep.subr.mxu0 %v2077
  %2453 = vmatpush1.msra.mxu0 %v2076
  %2454 = vmatprep.subr.mxu0 %v2085
  %2455 = vmatpush1.msra.mxu0 %v2084
  %2456 = vmatprep.subr.mxu0 %v2093
  %2457 = vmatpush1.msra.mxu0 %v2092
  %2458 = vmatprep.subr.mxu0 %v2101
  %2459 = vmatpush1.msra.mxu0 %v2100
  %2460 = vmatprep.subr.mxu0 %v2109
  %2461 = vmatpush1.msra.mxu0 %v2108
  %2462 = vmatprep.subr.mxu0 %v2117
  %2463 = vmatpush1.msra.mxu0 %v2116
  %2464 = vmatprep.subr.mxu0 %v2125
  %2465 = vmatpush1.msra.mxu0 %v2124
  %2466 = vmatprep.subr.mxu0 %v2133
  %2467 = vmatpush1.msra.mxu0 %v2132
  %2468 = vmatprep.subr.mxu0 %v2141
  %2469 = vmatpush1.msra.mxu0 %v2140
  %2470 = vmatprep.subr.mxu0 %v2149
  %2471 = vmatpush1.msra.mxu0 %v2148
  %2472 = vmatprep.subr.mxu0 %v2157
  %2473 = vmatpush1.msra.mxu0 %v2156
  %2474 = vmatprep.subr.mxu0 %v2165
  %2475 = vmatpush1.msra.mxu0 %v2164
  %2476 = vmatprep.subr.mxu0 %v2173
  %2477 = vmatpush1.msra.mxu0 %v2172
  %2478 = vmatprep.subr.mxu0 %v2181
  %2479 = vmatpush1.msra.mxu0 %v2180
  %2480 = vmatprep.subr.mxu0 %v2189
  %2481 = vmatpush1.msra.mxu0 %v2188
  %2482 = vmatprep.subr.mxu0 %v2197
  %2483 = vmatpush1.msra.mxu0 %v2196
  %2484 = vmatprep.subr.mxu0 %v2205
  %2485 = vmatpush1.msra.mxu0 %v2204
  %2486 = vmatprep.subr.mxu0 %v2213
  %2487 = vmatpush1.msra.mxu0 %v2212
  %2488 = vmatprep.subr.mxu0 %v2221
  %2489 = vmatpush1.msra.mxu0 %v2220
  %2490 = vmatprep.subr.mxu0 %v2229
  %2491 = vmatpush1.msra.mxu0 %v2228
  %2492 = vmatprep.subr.mxu0 %v2237
  %2493 = vmatpush1.msra.mxu0 %v2236
  %2494 = vmatprep.subr.mxu0 %v2245
  %2495 = vmatpush1.msra.mxu0 %v2244
  %2496 = vmatprep.subr.mxu0 %v2253
  %2497 = vmatpush1.msra.mxu0 %v2252
  %2498 = vmatprep.subr.mxu0 %v2261
  %2499 = vmatpush1.msra.mxu0 %v2260
  %2500 = vmatprep.subr.mxu0 %v2269
  %2501 = vmatpush1.msra.mxu0 %v2268
  %2502 = vmatprep.subr.mxu0 %v2277
  %2503 = vmatpush1.msra.mxu0 %v2276
  %2504 = vmatprep.subr.mxu0 %v2285
  %2505 = vmatpush1.msra.mxu0 %v2284
  %2506 = vmatprep.subr.mxu0 %v2293
  %2507 = vmatpush1.msra.mxu0 %v2292
  %2508 = vmatprep.subr.mxu0 %v2301
  %2509 = vmatpush1.msra.mxu0 %v2300
  %2510 = vmatprep.mubr.f32.mxu0 %v2047
  %2511 = vmatmul.mubr.f32.gmra.mrb[0].mxu0 %v2046
  %v2512 = vpop.f32.mrb[0].mxu0
  %v2513 = vadd.f32 0.0, %v2512
  %v2514 = vpop.f32.mrb[0].mxu0
  %v2515 = vadd.f32 0.0, %v2514
  %2516 = vdwg.mxu0
  %2517 = vmatprep.subr.mxu0 %v2055
  %2518 = vmatpush1.msra.mxu0 %v2054
  %2519 = vmatprep.subr.mxu0 %v2063
  %2520 = vmatpush1.msra.mxu0 %v2062
  %2521 = vmatprep.subr.mxu0 %v2071
  %2522 = vmatpush1.msra.mxu0 %v2070
  %2523 = vmatprep.subr.mxu0 %v2079
  %2524 = vmatpush1.msra.mxu0 %v2078
  %2525 = vmatprep.subr.mxu0 %v2087
  %2526 = vmatpush1.msra.mxu0 %v2086
  %2527 = vmatprep.subr.mxu0 %v2095
  %2528 = vmatpush1.msra.mxu0 %v2094
  %2529 = vmatprep.subr.mxu0 %v2103
  %2530 = vmatpush1.msra.mxu0 %v2102
  %2531 = vmatprep.subr.mxu0 %v2111
  %2532 = vmatpush1.msra.mxu0 %v2110
  %2533 = vmatprep.subr.mxu0 %v2119
  %2534 = vmatpush1.msra.mxu0 %v2118
  %2535 = vmatprep.subr.mxu0 %v2127
  %2536 = vmatpush1.msra.mxu0 %v2126
  %2537 = vmatprep.subr.mxu0 %v2135
  %2538 = vmatpush1.msra.mxu0 %v2134
  %2539 = vmatprep.subr.mxu0 %v2143
  %2540 = vmatpush1.msra.mxu0 %v2142
  %2541 = vmatprep.subr.mxu0 %v2151
  %2542 = vmatpush1.msra.mxu0 %v2150
  %2543 = vmatprep.subr.mxu0 %v2159
  %2544 = vmatpush1.msra.mxu0 %v2158
  %2545 = vmatprep.subr.mxu0 %v2167
  %2546 = vmatpush1.msra.mxu0 %v2166
  %2547 = vmatprep.subr.mxu0 %v2175
  %2548 = vmatpush1.msra.mxu0 %v2174
  %2549 = vmatprep.subr.mxu0 %v2183
  %2550 = vmatpush1.msra.mxu0 %v2182
  %2551 = vmatprep.subr.mxu0 %v2191
  %2552 = vmatpush1.msra.mxu0 %v2190
  %2553 = vmatprep.subr.mxu0 %v2199
  %2554 = vmatpush1.msra.mxu0 %v2198
  %2555 = vmatprep.subr.mxu0 %v2207
  %2556 = vmatpush1.msra.mxu0 %v2206
  %2557 = vmatprep.subr.mxu0 %v2215
  %2558 = vmatpush1.msra.mxu0 %v2214
  %2559 = vmatprep.subr.mxu0 %v2223
  %2560 = vmatpush1.msra.mxu0 %v2222
  %2561 = vmatprep.subr.mxu0 %v2231
  %2562 = vmatpush1.msra.mxu0 %v2230
  %2563 = vmatprep.subr.mxu0 %v2239
  %2564 = vmatpush1.msra.mxu0 %v2238
  %2565 = vmatprep.subr.mxu0 %v2247
  %2566 = vmatpush1.msra.mxu0 %v2246
  %2567 = vmatprep.subr.mxu0 %v2255
  %2568 = vmatpush1.msra.mxu0 %v2254
  %2569 = vmatprep.subr.mxu0 %v2263
  %2570 = vmatpush1.msra.mxu0 %v2262
  %2571 = vmatprep.subr.mxu0 %v2271
  %2572 = vmatpush1.msra.mxu0 %v2270
  %2573 = vmatprep.subr.mxu0 %v2279
  %2574 = vmatpush1.msra.mxu0 %v2278
  %2575 = vmatprep.subr.mxu0 %v2287
  %2576 = vmatpush1.msra.mxu0 %v2286
  %2577 = vmatprep.subr.mxu0 %v2295
  %2578 = vmatpush1.msra.mxu0 %v2294
  %2579 = vmatprep.subr.mxu0 %v2303
  %2580 = vmatpush1.msra.mxu0 %v2302
  %2581 = vmatprep.mubr.f32.mxu0 %v2047
  %2582 = vmatmul.mubr.f32.gmra.mrb[0].mxu0 %v2046
  %v2583 = vpop.f32.mrb[0].mxu0
  %v2584 = vadd.f32 0.0, %v2583
  %v2585 = vpop.f32.mrb[0].mxu0
  %v2586 = vadd.f32 0.0, %v2585
  %2587 = vdwg.mxu0
  %v2588 = vadd.f32 %v2513, %v786
  %v2589 = vadd.f32 %v2515, %v790
  %v2590 = vadd.f32 %v2584, %v794
  %v2591 = vadd.f32 %v2586, %v798
  %v2592 = vmul.f32 %v2588, 0.5
  %v2593 = vtanh.pop %v2592
  %v2594 = vmul.f32 %v2593, 0.5
  %v2595 = vadd.f32 %v2594, 0.5
  %v2596 = vmul.f32 %v2589, 0.5
  %v2597 = vtanh.pop %v2596
  %v2598 = vmul.f32 %v2597, 0.5
  %v2599 = vadd.f32 %v2598, 0.5
  %v2600 = vtanh.pop %v2590
  %v2601 = vmul.f32 %v2591, 0.5
  %v2602 = vtanh.pop %v2601
  %v2603 = vmul.f32 %v2602, 0.5
  %v2604 = vadd.f32 %v2603, 0.5
  %v2605 = vmul.f32 %v2599, %v2012
  %v2606 = vmul.f32 %v2595, %v2600
  %v2607 = vadd.f32 %v2605, %v2606
  %v2608 = vtanh.pop %v2607
  %v2609 = vmul.f32 %v2604, %v2608
  %2610 = vst [vmem:[#allocation3 + $0x8] sm:$0xff] %v2609
  %s2611 = smul.u32 4, 4
  %s2612 = smul.addr %s2611, 8
  %s2613 = scalar_lea.vmem [#allocation2], %s2612
  %v2614 = vld [vmem:[%s2613] sm:$0xff]
  %v2615 = vld [vmem:[%s2613 + $0x8] sm:$0xff]
  %v2616 = vld [vmem:[%s2613 + $0x10] sm:$0xff]
  %v2617 = vld [vmem:[%s2613 + $0x18] sm:$0xff]
  %v2618 = vadd.f32 %v2614, %v2371
  %v2619 = vadd.f32 %v2615, %v2373
  %v2620 = vadd.f32 %v2616, %v2442
  %v2621 = vadd.f32 %v2617, %v2444
  %v2622 = vmul.f32 %v2618, 0.5
  %v2623 = vtanh.pop %v2622
  %v2624 = vmul.f32 %v2623, 0.5
  %v2625 = vadd.f32 %v2624, 0.5
  %v2626 = vmul.f32 %v2619, 0.5
  %v2627 = vtanh.pop %v2626
  %v2628 = vmul.f32 %v2627, 0.5
  %v2629 = vadd.f32 %v2628, 0.5
  %v2630 = vtanh.pop %v2620
  %v2631 = vmul.f32 %v2621, 0.5
  %v2632 = vtanh.pop %v2631
  %v2633 = vmul.f32 %v2632, 0.5
  %v2634 = vadd.f32 %v2633, 0.5
  %v2635 = vmul.f32 %v2629, %v2042
  %v2636 = vmul.f32 %v2625, %v2630
  %v2637 = vadd.f32 %v2635, %v2636
  %v2638 = vtanh.pop %v2637
  %v2639 = vmul.f32 %v2634, %v2638
  %2640 = vst [vmem:[#allocation3] sm:$0xff] %v2639
  %v2641 = vld [vmem:[#allocation3] sm:$0xff]
  %v2642 = vld [vmem:[#allocation3 + $0x8] sm:$0xff]
  %v2643 = vld [vmem:[%s2] sm:$0xff]
  %v2644 = vld [vmem:[%s2 + $0x8] sm:$0xff]
  %v2645 = vld [vmem:[%s2 + $0x10] sm:$0xff]
  %v2646 = vld [vmem:[%s2 + $0x18] sm:$0xff]
  %v2647 = vld [vmem:[%s2 + $0x20] sm:$0xff]
  %v2648 = vld [vmem:[%s2 + $0x28] sm:$0xff]
  %v2649 = vld [vmem:[%s2 + $0x30] sm:$0xff]
  %v2650 = vld [vmem:[%s2 + $0x38] sm:$0xff]
  %v2651 = vld [vmem:[%s2 + $0x40] sm:$0xff]
  %v2652 = vld [vmem:[%s2 + $0x48] sm:$0xff]
  %v2653 = vld [vmem:[%s2 + $0x50] sm:$0xff]
  %v2654 = vld [vmem:[%s2 + $0x58] sm:$0xff]
  %v2655 = vld [vmem:[%s2 + $0x60] sm:$0xff]
  %v2656 = vld [vmem:[%s2 + $0x68] sm:$0xff]
  %v2657 = vld [vmem:[%s2 + $0x70] sm:$0xff]
  %v2658 = vld [vmem:[%s2 + $0x78] sm:$0xff]
  %v2659 = vld [vmem:[%s2 + $0x80] sm:$0xff]
  %v2660 = vld [vmem:[%s2 + $0x88] sm:$0xff]
  %v2661 = vld [vmem:[%s2 + $0x90] sm:$0xff]
  %v2662 = vld [vmem:[%s2 + $0x98] sm:$0xff]
  %v2663 = vld [vmem:[%s2 + $0xa0] sm:$0xff]
  %v2664 = vld [vmem:[%s2 + $0xa8] sm:$0xff]
  %v2665 = vld [vmem:[%s2 + $0xb0] sm:$0xff]
  %v2666 = vld [vmem:[%s2 + $0xb8] sm:$0xff]
  %v2667 = vld [vmem:[%s2 + $0xc0] sm:$0xff]
  %v2668 = vld [vmem:[%s2 + $0xc8] sm:$0xff]
  %v2669 = vld [vmem:[%s2 + $0xd0] sm:$0xff]
  %v2670 = vld [vmem:[%s2 + $0xd8] sm:$0xff]
  %v2671 = vld [vmem:[%s2 + $0xe0] sm:$0xff]
  %v2672 = vld [vmem:[%s2 + $0xe8] sm:$0xff]
  %v2673 = vld [vmem:[%s2 + $0xf0] sm:$0xff]
  %v2674 = vld [vmem:[%s2 + $0xf8] sm:$0xff]
  %v2675 = vld [vmem:[%s2 + $0x100] sm:$0xff]
  %v2676 = vld [vmem:[%s2 + $0x108] sm:$0xff]
  %v2677 = vld [vmem:[%s2 + $0x110] sm:$0xff]
  %v2678 = vld [vmem:[%s2 + $0x118] sm:$0xff]
  %v2679 = vld [vmem:[%s2 + $0x120] sm:$0xff]
  %v2680 = vld [vmem:[%s2 + $0x128] sm:$0xff]
  %v2681 = vld [vmem:[%s2 + $0x130] sm:$0xff]
  %v2682 = vld [vmem:[%s2 + $0x138] sm:$0xff]
  %v2683 = vld [vmem:[%s2 + $0x140] sm:$0xff]
  %v2684 = vld [vmem:[%s2 + $0x148] sm:$0xff]
  %v2685 = vld [vmem:[%s2 + $0x150] sm:$0xff]
  %v2686 = vld [vmem:[%s2 + $0x158] sm:$0xff]
  %v2687 = vld [vmem:[%s2 + $0x160] sm:$0xff]
  %v2688 = vld [vmem:[%s2 + $0x168] sm:$0xff]
  %v2689 = vld [vmem:[%s2 + $0x170] sm:$0xff]
  %v2690 = vld [vmem:[%s2 + $0x178] sm:$0xff]
  %v2691 = vld [vmem:[%s2 + $0x180] sm:$0xff]
  %v2692 = vld [vmem:[%s2 + $0x188] sm:$0xff]
  %v2693 = vld [vmem:[%s2 + $0x190] sm:$0xff]
  %v2694 = vld [vmem:[%s2 + $0x198] sm:$0xff]
  %v2695 = vld [vmem:[%s2 + $0x1a0] sm:$0xff]
  %v2696 = vld [vmem:[%s2 + $0x1a8] sm:$0xff]
  %v2697 = vld [vmem:[%s2 + $0x1b0] sm:$0xff]
  %v2698 = vld [vmem:[%s2 + $0x1b8] sm:$0xff]
  %v2699 = vld [vmem:[%s2 + $0x1c0] sm:$0xff]
  %v2700 = vld [vmem:[%s2 + $0x1c8] sm:$0xff]
  %v2701 = vld [vmem:[%s2 + $0x1d0] sm:$0xff]
  %v2702 = vld [vmem:[%s2 + $0x1d8] sm:$0xff]
  %v2703 = vld [vmem:[%s2 + $0x1e0] sm:$0xff]
  %v2704 = vld [vmem:[%s2 + $0x1e8] sm:$0xff]
  %v2705 = vld [vmem:[%s2 + $0x1f0] sm:$0xff]
  %v2706 = vld [vmem:[%s2 + $0x1f8] sm:$0xff]
  %v2707 = vld [vmem:[%s2 + $0x200] sm:$0xff]
  %v2708 = vld [vmem:[%s2 + $0x208] sm:$0xff]
  %v2709 = vld [vmem:[%s2 + $0x210] sm:$0xff]
  %v2710 = vld [vmem:[%s2 + $0x218] sm:$0xff]
  %v2711 = vld [vmem:[%s2 + $0x220] sm:$0xff]
  %v2712 = vld [vmem:[%s2 + $0x228] sm:$0xff]
  %v2713 = vld [vmem:[%s2 + $0x230] sm:$0xff]
  %v2714 = vld [vmem:[%s2 + $0x238] sm:$0xff]
  %v2715 = vld [vmem:[%s2 + $0x240] sm:$0xff]
  %v2716 = vld [vmem:[%s2 + $0x248] sm:$0xff]
  %v2717 = vld [vmem:[%s2 + $0x250] sm:$0xff]
  %v2718 = vld [vmem:[%s2 + $0x258] sm:$0xff]
  %v2719 = vld [vmem:[%s2 + $0x260] sm:$0xff]
  %v2720 = vld [vmem:[%s2 + $0x268] sm:$0xff]
  %v2721 = vld [vmem:[%s2 + $0x270] sm:$0xff]
  %v2722 = vld [vmem:[%s2 + $0x278] sm:$0xff]
  %v2723 = vld [vmem:[%s2 + $0x280] sm:$0xff]
  %v2724 = vld [vmem:[%s2 + $0x288] sm:$0xff]
  %v2725 = vld [vmem:[%s2 + $0x290] sm:$0xff]
  %v2726 = vld [vmem:[%s2 + $0x298] sm:$0xff]
  %v2727 = vld [vmem:[%s2 + $0x2a0] sm:$0xff]
  %v2728 = vld [vmem:[%s2 + $0x2a8] sm:$0xff]
  %v2729 = vld [vmem:[%s2 + $0x2b0] sm:$0xff]
  %v2730 = vld [vmem:[%s2 + $0x2b8] sm:$0xff]
  %v2731 = vld [vmem:[%s2 + $0x2c0] sm:$0xff]
  %v2732 = vld [vmem:[%s2 + $0x2c8] sm:$0xff]
  %v2733 = vld [vmem:[%s2 + $0x2d0] sm:$0xff]
  %v2734 = vld [vmem:[%s2 + $0x2d8] sm:$0xff]
  %v2735 = vld [vmem:[%s2 + $0x2e0] sm:$0xff]
  %v2736 = vld [vmem:[%s2 + $0x2e8] sm:$0xff]
  %v2737 = vld [vmem:[%s2 + $0x2f0] sm:$0xff]
  %v2738 = vld [vmem:[%s2 + $0x2f8] sm:$0xff]
  %v2739 = vld [vmem:[%s2 + $0x300] sm:$0xff]
  %v2740 = vld [vmem:[%s2 + $0x308] sm:$0xff]
  %v2741 = vld [vmem:[%s2 + $0x310] sm:$0xff]
  %v2742 = vld [vmem:[%s2 + $0x318] sm:$0xff]
  %v2743 = vld [vmem:[%s2 + $0x320] sm:$0xff]
  %v2744 = vld [vmem:[%s2 + $0x328] sm:$0xff]
  %v2745 = vld [vmem:[%s2 + $0x330] sm:$0xff]
  %v2746 = vld [vmem:[%s2 + $0x338] sm:$0xff]
  %v2747 = vld [vmem:[%s2 + $0x340] sm:$0xff]
  %v2748 = vld [vmem:[%s2 + $0x348] sm:$0xff]
  %v2749 = vld [vmem:[%s2 + $0x350] sm:$0xff]
  %v2750 = vld [vmem:[%s2 + $0x358] sm:$0xff]
  %v2751 = vld [vmem:[%s2 + $0x360] sm:$0xff]
  %v2752 = vld [vmem:[%s2 + $0x368] sm:$0xff]
  %v2753 = vld [vmem:[%s2 + $0x370] sm:$0xff]
  %v2754 = vld [vmem:[%s2 + $0x378] sm:$0xff]
  %v2755 = vld [vmem:[%s2 + $0x380] sm:$0xff]
  %v2756 = vld [vmem:[%s2 + $0x388] sm:$0xff]
  %v2757 = vld [vmem:[%s2 + $0x390] sm:$0xff]
  %v2758 = vld [vmem:[%s2 + $0x398] sm:$0xff]
  %v2759 = vld [vmem:[%s2 + $0x3a0] sm:$0xff]
  %v2760 = vld [vmem:[%s2 + $0x3a8] sm:$0xff]
  %v2761 = vld [vmem:[%s2 + $0x3b0] sm:$0xff]
  %v2762 = vld [vmem:[%s2 + $0x3b8] sm:$0xff]
  %v2763 = vld [vmem:[%s2 + $0x3c0] sm:$0xff]
  %v2764 = vld [vmem:[%s2 + $0x3c8] sm:$0xff]
  %v2765 = vld [vmem:[%s2 + $0x3d0] sm:$0xff]
  %v2766 = vld [vmem:[%s2 + $0x3d8] sm:$0xff]
  %v2767 = vld [vmem:[%s2 + $0x3e0] sm:$0xff]
  %v2768 = vld [vmem:[%s2 + $0x3e8] sm:$0xff]
  %v2769 = vld [vmem:[%s2 + $0x3f0] sm:$0xff]
  %v2770 = vld [vmem:[%s2 + $0x3f8] sm:$0xff]
  %v2771 = vld [vmem:[%s2 + $0x400] sm:$0xff]
  %v2772 = vld [vmem:[%s2 + $0x408] sm:$0xff]
  %v2773 = vld [vmem:[%s2 + $0x410] sm:$0xff]
  %v2774 = vld [vmem:[%s2 + $0x418] sm:$0xff]
  %v2775 = vld [vmem:[%s2 + $0x420] sm:$0xff]
  %v2776 = vld [vmem:[%s2 + $0x428] sm:$0xff]
  %v2777 = vld [vmem:[%s2 + $0x430] sm:$0xff]
  %v2778 = vld [vmem:[%s2 + $0x438] sm:$0xff]
  %v2779 = vld [vmem:[%s2 + $0x440] sm:$0xff]
  %v2780 = vld [vmem:[%s2 + $0x448] sm:$0xff]
  %v2781 = vld [vmem:[%s2 + $0x450] sm:$0xff]
  %v2782 = vld [vmem:[%s2 + $0x458] sm:$0xff]
  %v2783 = vld [vmem:[%s2 + $0x460] sm:$0xff]
  %v2784 = vld [vmem:[%s2 + $0x468] sm:$0xff]
  %v2785 = vld [vmem:[%s2 + $0x470] sm:$0xff]
  %v2786 = vld [vmem:[%s2 + $0x478] sm:$0xff]
  %v2787 = vld [vmem:[%s2 + $0x480] sm:$0xff]
  %v2788 = vld [vmem:[%s2 + $0x488] sm:$0xff]
  %v2789 = vld [vmem:[%s2 + $0x490] sm:$0xff]
  %v2790 = vld [vmem:[%s2 + $0x498] sm:$0xff]
  %v2791 = vld [vmem:[%s2 + $0x4a0] sm:$0xff]
  %v2792 = vld [vmem:[%s2 + $0x4a8] sm:$0xff]
  %v2793 = vld [vmem:[%s2 + $0x4b0] sm:$0xff]
  %v2794 = vld [vmem:[%s2 + $0x4b8] sm:$0xff]
  %v2795 = vld [vmem:[%s2 + $0x4c0] sm:$0xff]
  %v2796 = vld [vmem:[%s2 + $0x4c8] sm:$0xff]
  %v2797 = vld [vmem:[%s2 + $0x4d0] sm:$0xff]
  %v2798 = vld [vmem:[%s2 + $0x4d8] sm:$0xff]
  %v2799 = vld [vmem:[%s2 + $0x4e0] sm:$0xff]
  %v2800 = vld [vmem:[%s2 + $0x4e8] sm:$0xff]
  %v2801 = vld [vmem:[%s2 + $0x4f0] sm:$0xff]
  %v2802 = vld [vmem:[%s2 + $0x4f8] sm:$0xff]
  %v2803 = vld [vmem:[%s2 + $0x500] sm:$0xff]
  %v2804 = vld [vmem:[%s2 + $0x508] sm:$0xff]
  %v2805 = vld [vmem:[%s2 + $0x510] sm:$0xff]
  %v2806 = vld [vmem:[%s2 + $0x518] sm:$0xff]
  %v2807 = vld [vmem:[%s2 + $0x520] sm:$0xff]
  %v2808 = vld [vmem:[%s2 + $0x528] sm:$0xff]
  %v2809 = vld [vmem:[%s2 + $0x530] sm:$0xff]
  %v2810 = vld [vmem:[%s2 + $0x538] sm:$0xff]
  %v2811 = vld [vmem:[%s2 + $0x540] sm:$0xff]
  %v2812 = vld [vmem:[%s2 + $0x548] sm:$0xff]
  %v2813 = vld [vmem:[%s2 + $0x550] sm:$0xff]
  %v2814 = vld [vmem:[%s2 + $0x558] sm:$0xff]
  %v2815 = vld [vmem:[%s2 + $0x560] sm:$0xff]
  %v2816 = vld [vmem:[%s2 + $0x568] sm:$0xff]
  %v2817 = vld [vmem:[%s2 + $0x570] sm:$0xff]
  %v2818 = vld [vmem:[%s2 + $0x578] sm:$0xff]
  %v2819 = vld [vmem:[%s2 + $0x580] sm:$0xff]
  %v2820 = vld [vmem:[%s2 + $0x588] sm:$0xff]
  %v2821 = vld [vmem:[%s2 + $0x590] sm:$0xff]
  %v2822 = vld [vmem:[%s2 + $0x598] sm:$0xff]
  %v2823 = vld [vmem:[%s2 + $0x5a0] sm:$0xff]
  %v2824 = vld [vmem:[%s2 + $0x5a8] sm:$0xff]
  %v2825 = vld [vmem:[%s2 + $0x5b0] sm:$0xff]
  %v2826 = vld [vmem:[%s2 + $0x5b8] sm:$0xff]
  %v2827 = vld [vmem:[%s2 + $0x5c0] sm:$0xff]
  %v2828 = vld [vmem:[%s2 + $0x5c8] sm:$0xff]
  %v2829 = vld [vmem:[%s2 + $0x5d0] sm:$0xff]
  %v2830 = vld [vmem:[%s2 + $0x5d8] sm:$0xff]
  %v2831 = vld [vmem:[%s2 + $0x5e0] sm:$0xff]
  %v2832 = vld [vmem:[%s2 + $0x5e8] sm:$0xff]
  %v2833 = vld [vmem:[%s2 + $0x5f0] sm:$0xff]
  %v2834 = vld [vmem:[%s2 + $0x5f8] sm:$0xff]
  %v2835 = vld [vmem:[%s2 + $0x600] sm:$0xff]
  %v2836 = vld [vmem:[%s2 + $0x608] sm:$0xff]
  %v2837 = vld [vmem:[%s2 + $0x610] sm:$0xff]
  %v2838 = vld [vmem:[%s2 + $0x618] sm:$0xff]
  %v2839 = vld [vmem:[%s2 + $0x620] sm:$0xff]
  %v2840 = vld [vmem:[%s2 + $0x628] sm:$0xff]
  %v2841 = vld [vmem:[%s2 + $0x630] sm:$0xff]
  %v2842 = vld [vmem:[%s2 + $0x638] sm:$0xff]
  %v2843 = vld [vmem:[%s2 + $0x640] sm:$0xff]
  %v2844 = vld [vmem:[%s2 + $0x648] sm:$0xff]
  %v2845 = vld [vmem:[%s2 + $0x650] sm:$0xff]
  %v2846 = vld [vmem:[%s2 + $0x658] sm:$0xff]
  %v2847 = vld [vmem:[%s2 + $0x660] sm:$0xff]
  %v2848 = vld [vmem:[%s2 + $0x668] sm:$0xff]
  %v2849 = vld [vmem:[%s2 + $0x670] sm:$0xff]
  %v2850 = vld [vmem:[%s2 + $0x678] sm:$0xff]
  %v2851 = vld [vmem:[%s2 + $0x680] sm:$0xff]
  %v2852 = vld [vmem:[%s2 + $0x688] sm:$0xff]
  %v2853 = vld [vmem:[%s2 + $0x690] sm:$0xff]
  %v2854 = vld [vmem:[%s2 + $0x698] sm:$0xff]
  %v2855 = vld [vmem:[%s2 + $0x6a0] sm:$0xff]
  %v2856 = vld [vmem:[%s2 + $0x6a8] sm:$0xff]
  %v2857 = vld [vmem:[%s2 + $0x6b0] sm:$0xff]
  %v2858 = vld [vmem:[%s2 + $0x6b8] sm:$0xff]
  %v2859 = vld [vmem:[%s2 + $0x6c0] sm:$0xff]
  %v2860 = vld [vmem:[%s2 + $0x6c8] sm:$0xff]
  %v2861 = vld [vmem:[%s2 + $0x6d0] sm:$0xff]
  %v2862 = vld [vmem:[%s2 + $0x6d8] sm:$0xff]
  %v2863 = vld [vmem:[%s2 + $0x6e0] sm:$0xff]
  %v2864 = vld [vmem:[%s2 + $0x6e8] sm:$0xff]
  %v2865 = vld [vmem:[%s2 + $0x6f0] sm:$0xff]
  %v2866 = vld [vmem:[%s2 + $0x6f8] sm:$0xff]
  %v2867 = vld [vmem:[%s2 + $0x700] sm:$0xff]
  %v2868 = vld [vmem:[%s2 + $0x708] sm:$0xff]
  %v2869 = vld [vmem:[%s2 + $0x710] sm:$0xff]
  %v2870 = vld [vmem:[%s2 + $0x718] sm:$0xff]
  %v2871 = vld [vmem:[%s2 + $0x720] sm:$0xff]
  %v2872 = vld [vmem:[%s2 + $0x728] sm:$0xff]
  %v2873 = vld [vmem:[%s2 + $0x730] sm:$0xff]
  %v2874 = vld [vmem:[%s2 + $0x738] sm:$0xff]
  %v2875 = vld [vmem:[%s2 + $0x740] sm:$0xff]
  %v2876 = vld [vmem:[%s2 + $0x748] sm:$0xff]
  %v2877 = vld [vmem:[%s2 + $0x750] sm:$0xff]
  %v2878 = vld [vmem:[%s2 + $0x758] sm:$0xff]
  %v2879 = vld [vmem:[%s2 + $0x760] sm:$0xff]
  %v2880 = vld [vmem:[%s2 + $0x768] sm:$0xff]
  %v2881 = vld [vmem:[%s2 + $0x770] sm:$0xff]
  %v2882 = vld [vmem:[%s2 + $0x778] sm:$0xff]
  %v2883 = vld [vmem:[%s2 + $0x780] sm:$0xff]
  %v2884 = vld [vmem:[%s2 + $0x788] sm:$0xff]
  %v2885 = vld [vmem:[%s2 + $0x790] sm:$0xff]
  %v2886 = vld [vmem:[%s2 + $0x798] sm:$0xff]
  %v2887 = vld [vmem:[%s2 + $0x7a0] sm:$0xff]
  %v2888 = vld [vmem:[%s2 + $0x7a8] sm:$0xff]
  %v2889 = vld [vmem:[%s2 + $0x7b0] sm:$0xff]
  %v2890 = vld [vmem:[%s2 + $0x7b8] sm:$0xff]
  %v2891 = vld [vmem:[%s2 + $0x7c0] sm:$0xff]
  %v2892 = vld [vmem:[%s2 + $0x7c8] sm:$0xff]
  %v2893 = vld [vmem:[%s2 + $0x7d0] sm:$0xff]
  %v2894 = vld [vmem:[%s2 + $0x7d8] sm:$0xff]
  %v2895 = vld [vmem:[%s2 + $0x7e0] sm:$0xff]
  %v2896 = vld [vmem:[%s2 + $0x7e8] sm:$0xff]
  %v2897 = vld [vmem:[%s2 + $0x7f0] sm:$0xff]
  %v2898 = vld [vmem:[%s2 + $0x7f8] sm:$0xff]
  %2899 = vmatprep.subr.mxu0 %v2644
  %2900 = vmatpush1.msra.mxu0 %v2643
  %2901 = vmatprep.subr.mxu0 %v2652
  %2902 = vmatpush1.msra.mxu0 %v2651
  %2903 = vmatprep.subr.mxu0 %v2660
  %2904 = vmatpush1.msra.mxu0 %v2659
  %2905 = vmatprep.subr.mxu0 %v2668
  %2906 = vmatpush1.msra.mxu0 %v2667
  %2907 = vmatprep.subr.mxu0 %v2676
  %2908 = vmatpush1.msra.mxu0 %v2675
  %2909 = vmatprep.subr.mxu0 %v2684
  %2910 = vmatpush1.msra.mxu0 %v2683
  %2911 = vmatprep.subr.mxu0 %v2692
  %2912 = vmatpush1.msra.mxu0 %v2691
  %2913 = vmatprep.subr.mxu0 %v2700
  %2914 = vmatpush1.msra.mxu0 %v2699
  %2915 = vmatprep.subr.mxu0 %v2708
  %2916 = vmatpush1.msra.mxu0 %v2707
  %2917 = vmatprep.subr.mxu0 %v2716
  %2918 = vmatpush1.msra.mxu0 %v2715
  %2919 = vmatprep.subr.mxu0 %v2724
  %2920 = vmatpush1.msra.mxu0 %v2723
  %2921 = vmatprep.subr.mxu0 %v2732
  %2922 = vmatpush1.msra.mxu0 %v2731
  %2923 = vmatprep.subr.mxu0 %v2740
  %2924 = vmatpush1.msra.mxu0 %v2739
  %2925 = vmatprep.subr.mxu0 %v2748
  %2926 = vmatpush1.msra.mxu0 %v2747
  %2927 = vmatprep.subr.mxu0 %v2756
  %2928 = vmatpush1.msra.mxu0 %v2755
  %2929 = vmatprep.subr.mxu0 %v2764
  %2930 = vmatpush1.msra.mxu0 %v2763
  %2931 = vmatprep.subr.mxu0 %v2772
  %2932 = vmatpush1.msra.mxu0 %v2771
  %2933 = vmatprep.subr.mxu0 %v2780
  %2934 = vmatpush1.msra.mxu0 %v2779
  %2935 = vmatprep.subr.mxu0 %v2788
  %2936 = vmatpush1.msra.mxu0 %v2787
  %2937 = vmatprep.subr.mxu0 %v2796
  %2938 = vmatpush1.msra.mxu0 %v2795
  %2939 = vmatprep.subr.mxu0 %v2804
  %2940 = vmatpush1.msra.mxu0 %v2803
  %2941 = vmatprep.subr.mxu0 %v2812
  %2942 = vmatpush1.msra.mxu0 %v2811
  %2943 = vmatprep.subr.mxu0 %v2820
  %2944 = vmatpush1.msra.mxu0 %v2819
  %2945 = vmatprep.subr.mxu0 %v2828
  %2946 = vmatpush1.msra.mxu0 %v2827
  %2947 = vmatprep.subr.mxu0 %v2836
  %2948 = vmatpush1.msra.mxu0 %v2835
  %2949 = vmatprep.subr.mxu0 %v2844
  %2950 = vmatpush1.msra.mxu0 %v2843
  %2951 = vmatprep.subr.mxu0 %v2852
  %2952 = vmatpush1.msra.mxu0 %v2851
  %2953 = vmatprep.subr.mxu0 %v2860
  %2954 = vmatpush1.msra.mxu0 %v2859
  %2955 = vmatprep.subr.mxu0 %v2868
  %2956 = vmatpush1.msra.mxu0 %v2867
  %2957 = vmatprep.subr.mxu0 %v2876
  %2958 = vmatpush1.msra.mxu0 %v2875
  %2959 = vmatprep.subr.mxu0 %v2884
  %2960 = vmatpush1.msra.mxu0 %v2883
  %2961 = vmatprep.subr.mxu0 %v2892
  %2962 = vmatpush1.msra.mxu0 %v2891
  %2963 = vmatprep.mubr.f32.mxu0 %v2642
  %2964 = vmatmul.mubr.f32.gmra.mrb[0].mxu0 %v2641
  %v2965 = vpop.f32.mrb[0].mxu0
  %v2966 = vadd.f32 0.0, %v2965
  %v2967 = vpop.f32.mrb[0].mxu0
  %v2968 = vadd.f32 0.0, %v2967
  %2969 = vdwg.mxu0
  %2970 = vmatprep.subr.mxu0 %v2646
  %2971 = vmatpush1.msra.mxu0 %v2645
  %2972 = vmatprep.subr.mxu0 %v2654
  %2973 = vmatpush1.msra.mxu0 %v2653
  %2974 = vmatprep.subr.mxu0 %v2662
  %2975 = vmatpush1.msra.mxu0 %v2661
  %2976 = vmatprep.subr.mxu0 %v2670
  %2977 = vmatpush1.msra.mxu0 %v2669
  %2978 = vmatprep.subr.mxu0 %v2678
  %2979 = vmatpush1.msra.mxu0 %v2677
  %2980 = vmatprep.subr.mxu0 %v2686
  %2981 = vmatpush1.msra.mxu0 %v2685
  %2982 = vmatprep.subr.mxu0 %v2694
  %2983 = vmatpush1.msra.mxu0 %v2693
  %2984 = vmatprep.subr.mxu0 %v2702
  %2985 = vmatpush1.msra.mxu0 %v2701
  %2986 = vmatprep.subr.mxu0 %v2710
  %2987 = vmatpush1.msra.mxu0 %v2709
  %2988 = vmatprep.subr.mxu0 %v2718
  %2989 = vmatpush1.msra.mxu0 %v2717
  %2990 = vmatprep.subr.mxu0 %v2726
  %2991 = vmatpush1.msra.mxu0 %v2725
  %2992 = vmatprep.subr.mxu0 %v2734
  %2993 = vmatpush1.msra.mxu0 %v2733
  %2994 = vmatprep.subr.mxu0 %v2742
  %2995 = vmatpush1.msra.mxu0 %v2741
  %2996 = vmatprep.subr.mxu0 %v2750
  %2997 = vmatpush1.msra.mxu0 %v2749
  %2998 = vmatprep.subr.mxu0 %v2758
  %2999 = vmatpush1.msra.mxu0 %v2757
  %3000 = vmatprep.subr.mxu0 %v2766
  %3001 = vmatpush1.msra.mxu0 %v2765
  %3002 = vmatprep.subr.mxu0 %v2774
  %3003 = vmatpush1.msra.mxu0 %v2773
  %3004 = vmatprep.subr.mxu0 %v2782
  %3005 = vmatpush1.msra.mxu0 %v2781
  %3006 = vmatprep.subr.mxu0 %v2790
  %3007 = vmatpush1.msra.mxu0 %v2789
  %3008 = vmatprep.subr.mxu0 %v2798
  %3009 = vmatpush1.msra.mxu0 %v2797
  %3010 = vmatprep.subr.mxu0 %v2806
  %3011 = vmatpush1.msra.mxu0 %v2805
  %3012 = vmatprep.subr.mxu0 %v2814
  %3013 = vmatpush1.msra.mxu0 %v2813
  %3014 = vmatprep.subr.mxu0 %v2822
  %3015 = vmatpush1.msra.mxu0 %v2821
  %3016 = vmatprep.subr.mxu0 %v2830
  %3017 = vmatpush1.msra.mxu0 %v2829
  %3018 = vmatprep.subr.mxu0 %v2838
  %3019 = vmatpush1.msra.mxu0 %v2837
  %3020 = vmatprep.subr.mxu0 %v2846
  %3021 = vmatpush1.msra.mxu0 %v2845
  %3022 = vmatprep.subr.mxu0 %v2854
  %3023 = vmatpush1.msra.mxu0 %v2853
  %3024 = vmatprep.subr.mxu0 %v2862
  %3025 = vmatpush1.msra.mxu0 %v2861
  %3026 = vmatprep.subr.mxu0 %v2870
  %3027 = vmatpush1.msra.mxu0 %v2869
  %3028 = vmatprep.subr.mxu0 %v2878
  %3029 = vmatpush1.msra.mxu0 %v2877
  %3030 = vmatprep.subr.mxu0 %v2886
  %3031 = vmatpush1.msra.mxu0 %v2885
  %3032 = vmatprep.subr.mxu0 %v2894
  %3033 = vmatpush1.msra.mxu0 %v2893
  %3034 = vmatprep.mubr.f32.mxu0 %v2642
  %3035 = vmatmul.mubr.f32.gmra.mrb[0].mxu0 %v2641
  %v3036 = vpop.f32.mrb[0].mxu0
  %v3037 = vadd.f32 0.0, %v3036
  %v3038 = vpop.f32.mrb[0].mxu0
  %v3039 = vadd.f32 0.0, %v3038
  %3040 = vdwg.mxu0
  %3041 = vmatprep.subr.mxu0 %v2648
  %3042 = vmatpush1.msra.mxu0 %v2647
  %3043 = vmatprep.subr.mxu0 %v2656
  %3044 = vmatpush1.msra.mxu0 %v2655
  %3045 = vmatprep.subr.mxu0 %v2664
  %3046 = vmatpush1.msra.mxu0 %v2663
  %3047 = vmatprep.subr.mxu0 %v2672
  %3048 = vmatpush1.msra.mxu0 %v2671
  %3049 = vmatprep.subr.mxu0 %v2680
  %3050 = vmatpush1.msra.mxu0 %v2679
  %3051 = vmatprep.subr.mxu0 %v2688
  %3052 = vmatpush1.msra.mxu0 %v2687
  %3053 = vmatprep.subr.mxu0 %v2696
  %3054 = vmatpush1.msra.mxu0 %v2695
  %3055 = vmatprep.subr.mxu0 %v2704
  %3056 = vmatpush1.msra.mxu0 %v2703
  %3057 = vmatprep.subr.mxu0 %v2712
  %3058 = vmatpush1.msra.mxu0 %v2711
  %3059 = vmatprep.subr.mxu0 %v2720
  %3060 = vmatpush1.msra.mxu0 %v2719
  %3061 = vmatprep.subr.mxu0 %v2728
  %3062 = vmatpush1.msra.mxu0 %v2727
  %3063 = vmatprep.subr.mxu0 %v2736
  %3064 = vmatpush1.msra.mxu0 %v2735
  %3065 = vmatprep.subr.mxu0 %v2744
  %3066 = vmatpush1.msra.mxu0 %v2743
  %3067 = vmatprep.subr.mxu0 %v2752
  %3068 = vmatpush1.msra.mxu0 %v2751
  %3069 = vmatprep.subr.mxu0 %v2760
  %3070 = vmatpush1.msra.mxu0 %v2759
  %3071 = vmatprep.subr.mxu0 %v2768
  %3072 = vmatpush1.msra.mxu0 %v2767
  %3073 = vmatprep.subr.mxu0 %v2776
  %3074 = vmatpush1.msra.mxu0 %v2775
  %3075 = vmatprep.subr.mxu0 %v2784
  %3076 = vmatpush1.msra.mxu0 %v2783
  %3077 = vmatprep.subr.mxu0 %v2792
  %3078 = vmatpush1.msra.mxu0 %v2791
  %3079 = vmatprep.subr.mxu0 %v2800
  %3080 = vmatpush1.msra.mxu0 %v2799
  %3081 = vmatprep.subr.mxu0 %v2808
  %3082 = vmatpush1.msra.mxu0 %v2807
  %3083 = vmatprep.subr.mxu0 %v2816
  %3084 = vmatpush1.msra.mxu0 %v2815
  %3085 = vmatprep.subr.mxu0 %v2824
  %3086 = vmatpush1.msra.mxu0 %v2823
  %3087 = vmatprep.subr.mxu0 %v2832
  %3088 = vmatpush1.msra.mxu0 %v2831
  %3089 = vmatprep.subr.mxu0 %v2840
  %3090 = vmatpush1.msra.mxu0 %v2839
  %3091 = vmatprep.subr.mxu0 %v2848
  %3092 = vmatpush1.msra.mxu0 %v2847
  %3093 = vmatprep.subr.mxu0 %v2856
  %3094 = vmatpush1.msra.mxu0 %v2855
  %3095 = vmatprep.subr.mxu0 %v2864
  %3096 = vmatpush1.msra.mxu0 %v2863
  %3097 = vmatprep.subr.mxu0 %v2872
  %3098 = vmatpush1.msra.mxu0 %v2871
  %3099 = vmatprep.subr.mxu0 %v2880
  %3100 = vmatpush1.msra.mxu0 %v2879
  %3101 = vmatprep.subr.mxu0 %v2888
  %3102 = vmatpush1.msra.mxu0 %v2887
  %3103 = vmatprep.subr.mxu0 %v2896
  %3104 = vmatpush1.msra.mxu0 %v2895
  %3105 = vmatprep.mubr.f32.mxu0 %v2642
  %3106 = vmatmul.mubr.f32.gmra.mrb[0].mxu0 %v2641
  %v3107 = vpop.f32.mrb[0].mxu0
  %v3108 = vadd.f32 0.0, %v3107
  %v3109 = vpop.f32.mrb[0].mxu0
  %v3110 = vadd.f32 0.0, %v3109
  %3111 = vdwg.mxu0
  %3112 = vmatprep.subr.mxu0 %v2650
  %3113 = vmatpush1.msra.mxu0 %v2649
  %3114 = vmatprep.subr.mxu0 %v2658
  %3115 = vmatpush1.msra.mxu0 %v2657
  %3116 = vmatprep.subr.mxu0 %v2666
  %3117 = vmatpush1.msra.mxu0 %v2665
  %3118 = vmatprep.subr.mxu0 %v2674
  %3119 = vmatpush1.msra.mxu0 %v2673
  %3120 = vmatprep.subr.mxu0 %v2682
  %3121 = vmatpush1.msra.mxu0 %v2681
  %3122 = vmatprep.subr.mxu0 %v2690
  %3123 = vmatpush1.msra.mxu0 %v2689
  %3124 = vmatprep.subr.mxu0 %v2698
  %3125 = vmatpush1.msra.mxu0 %v2697
  %3126 = vmatprep.subr.mxu0 %v2706
  %3127 = vmatpush1.msra.mxu0 %v2705
  %3128 = vmatprep.subr.mxu0 %v2714
  %3129 = vmatpush1.msra.mxu0 %v2713
  %3130 = vmatprep.subr.mxu0 %v2722
  %3131 = vmatpush1.msra.mxu0 %v2721
  %3132 = vmatprep.subr.mxu0 %v2730
  %3133 = vmatpush1.msra.mxu0 %v2729
  %3134 = vmatprep.subr.mxu0 %v2738
  %3135 = vmatpush1.msra.mxu0 %v2737
  %3136 = vmatprep.subr.mxu0 %v2746
  %3137 = vmatpush1.msra.mxu0 %v2745
  %3138 = vmatprep.subr.mxu0 %v2754
  %3139 = vmatpush1.msra.mxu0 %v2753
  %3140 = vmatprep.subr.mxu0 %v2762
  %3141 = vmatpush1.msra.mxu0 %v2761
  %3142 = vmatprep.subr.mxu0 %v2770
  %3143 = vmatpush1.msra.mxu0 %v2769
  %3144 = vmatprep.subr.mxu0 %v2778
  %3145 = vmatpush1.msra.mxu0 %v2777
  %3146 = vmatprep.subr.mxu0 %v2786
  %3147 = vmatpush1.msra.mxu0 %v2785
  %3148 = vmatprep.subr.mxu0 %v2794
  %3149 = vmatpush1.msra.mxu0 %v2793
  %3150 = vmatprep.subr.mxu0 %v2802
  %3151 = vmatpush1.msra.mxu0 %v2801
  %3152 = vmatprep.subr.mxu0 %v2810
  %3153 = vmatpush1.msra.mxu0 %v2809
  %3154 = vmatprep.subr.mxu0 %v2818
  %3155 = vmatpush1.msra.mxu0 %v2817
  %3156 = vmatprep.subr.mxu0 %v2826
  %3157 = vmatpush1.msra.mxu0 %v2825
  %3158 = vmatprep.subr.mxu0 %v2834
  %3159 = vmatpush1.msra.mxu0 %v2833
  %3160 = vmatprep.subr.mxu0 %v2842
  %3161 = vmatpush1.msra.mxu0 %v2841
  %3162 = vmatprep.subr.mxu0 %v2850
  %3163 = vmatpush1.msra.mxu0 %v2849
  %3164 = vmatprep.subr.mxu0 %v2858
  %3165 = vmatpush1.msra.mxu0 %v2857
  %3166 = vmatprep.subr.mxu0 %v2866
  %3167 = vmatpush1.msra.mxu0 %v2865
  %3168 = vmatprep.subr.mxu0 %v2874
  %3169 = vmatpush1.msra.mxu0 %v2873
  %3170 = vmatprep.subr.mxu0 %v2882
  %3171 = vmatpush1.msra.mxu0 %v2881
  %3172 = vmatprep.subr.mxu0 %v2890
  %3173 = vmatpush1.msra.mxu0 %v2889
  %3174 = vmatprep.subr.mxu0 %v2898
  %3175 = vmatpush1.msra.mxu0 %v2897
  %3176 = vmatprep.mubr.f32.mxu0 %v2642
  %3177 = vmatmul.mubr.f32.gmra.mrb[0].mxu0 %v2641
  %v3178 = vpop.f32.mrb[0].mxu0
  %v3179 = vadd.f32 0.0, %v3178
  %v3180 = vpop.f32.mrb[0].mxu0
  %v3181 = vadd.f32 0.0, %v3180
  %3182 = vdwg.mxu0
  %v3183 = vadd.f32 %v3108, %v786
  %v3184 = vadd.f32 %v3110, %v790
  %v3185 = vadd.f32 %v3179, %v794
  %v3186 = vadd.f32 %v3181, %v798
  %v3187 = vmul.f32 %v3183, 0.5
  %v3188 = vtanh.pop %v3187
  %v3189 = vmul.f32 %v3188, 0.5
  %v3190 = vadd.f32 %v3189, 0.5
  %v3191 = vmul.f32 %v3184, 0.5
  %v3192 = vtanh.pop %v3191
  %v3193 = vmul.f32 %v3192, 0.5
  %v3194 = vadd.f32 %v3193, 0.5
  %v3195 = vtanh.pop %v3185
  %v3196 = vmul.f32 %v3186, 0.5
  %v3197 = vtanh.pop %v3196
  %v3198 = vmul.f32 %v3197, 0.5
  %v3199 = vadd.f32 %v3198, 0.5
  %v3200 = vmul.f32 %v3194, %v2607
  %v3201 = vmul.f32 %v3190, %v3195
  %v3202 = vadd.f32 %v3200, %v3201
  %v3203 = vtanh.pop %v3202
  %v3204 = vmul.f32 %v3199, %v3203
  %3205 = vst [vmem:[#allocation3 + $0x8] sm:$0xff] %v3204
  %s3206 = smul.u32 5, 4
  %s3207 = smul.addr %s3206, 8
  %s3208 = scalar_lea.vmem [#allocation2], %s3207
  %v3209 = vld [vmem:[%s3208] sm:$0xff]
  %v3210 = vld [vmem:[%s3208 + $0x8] sm:$0xff]
  %v3211 = vld [vmem:[%s3208 + $0x10] sm:$0xff]
  %v3212 = vld [vmem:[%s3208 + $0x18] sm:$0xff]
  %v3213 = vadd.f32 %v3209, %v2966
  %v3214 = vadd.f32 %v3210, %v2968
  %v3215 = vadd.f32 %v3211, %v3037
  %v3216 = vadd.f32 %v3212, %v3039
  %v3217 = vmul.f32 %v3213, 0.5
  %v3218 = vtanh.pop %v3217
  %v3219 = vmul.f32 %v3218, 0.5
  %v3220 = vadd.f32 %v3219, 0.5
  %v3221 = vmul.f32 %v3214, 0.5
  %v3222 = vtanh.pop %v3221
  %v3223 = vmul.f32 %v3222, 0.5
  %v3224 = vadd.f32 %v3223, 0.5
  %v3225 = vtanh.pop %v3215
  %v3226 = vmul.f32 %v3216, 0.5
  %v3227 = vtanh.pop %v3226
  %v3228 = vmul.f32 %v3227, 0.5
  %v3229 = vadd.f32 %v3228, 0.5
  %v3230 = vmul.f32 %v3224, %v2637
  %v3231 = vmul.f32 %v3220, %v3225
  %v3232 = vadd.f32 %v3230, %v3231
  %v3233 = vtanh.pop %v3232
  %v3234 = vmul.f32 %v3229, %v3233
  %3235 = vst [vmem:[#allocation3] sm:$0xff] %v3234
  %v3236 = vld [vmem:[#allocation3] sm:$0xff]
  %v3237 = vld [vmem:[#allocation3 + $0x8] sm:$0xff]
  %v3238 = vld [vmem:[%s2] sm:$0xff]
  %v3239 = vld [vmem:[%s2 + $0x8] sm:$0xff]
  %v3240 = vld [vmem:[%s2 + $0x10] sm:$0xff]
  %v3241 = vld [vmem:[%s2 + $0x18] sm:$0xff]
  %v3242 = vld [vmem:[%s2 + $0x20] sm:$0xff]
  %v3243 = vld [vmem:[%s2 + $0x28] sm:$0xff]
  %v3244 = vld [vmem:[%s2 + $0x30] sm:$0xff]
  %v3245 = vld [vmem:[%s2 + $0x38] sm:$0xff]
  %v3246 = vld [vmem:[%s2 + $0x40] sm:$0xff]
  %v3247 = vld [vmem:[%s2 + $0x48] sm:$0xff]
  %v3248 = vld [vmem:[%s2 + $0x50] sm:$0xff]
  %v3249 = vld [vmem:[%s2 + $0x58] sm:$0xff]
  %v3250 = vld [vmem:[%s2 + $0x60] sm:$0xff]
  %v3251 = vld [vmem:[%s2 + $0x68] sm:$0xff]
  %v3252 = vld [vmem:[%s2 + $0x70] sm:$0xff]
  %v3253 = vld [vmem:[%s2 + $0x78] sm:$0xff]
  %v3254 = vld [vmem:[%s2 + $0x80] sm:$0xff]
  %v3255 = vld [vmem:[%s2 + $0x88] sm:$0xff]
  %v3256 = vld [vmem:[%s2 + $0x90] sm:$0xff]
  %v3257 = vld [vmem:[%s2 + $0x98] sm:$0xff]
  %v3258 = vld [vmem:[%s2 + $0xa0] sm:$0xff]
  %v3259 = vld [vmem:[%s2 + $0xa8] sm:$0xff]
  %v3260 = vld [vmem:[%s2 + $0xb0] sm:$0xff]
  %v3261 = vld [vmem:[%s2 + $0xb8] sm:$0xff]
  %v3262 = vld [vmem:[%s2 + $0xc0] sm:$0xff]
  %v3263 = vld [vmem:[%s2 + $0xc8] sm:$0xff]
  %v3264 = vld [vmem:[%s2 + $0xd0] sm:$0xff]
  %v3265 = vld [vmem:[%s2 + $0xd8] sm:$0xff]
  %v3266 = vld [vmem:[%s2 + $0xe0] sm:$0xff]
  %v3267 = vld [vmem:[%s2 + $0xe8] sm:$0xff]
  %v3268 = vld [vmem:[%s2 + $0xf0] sm:$0xff]
  %v3269 = vld [vmem:[%s2 + $0xf8] sm:$0xff]
  %v3270 = vld [vmem:[%s2 + $0x100] sm:$0xff]
  %v3271 = vld [vmem:[%s2 + $0x108] sm:$0xff]
  %v3272 = vld [vmem:[%s2 + $0x110] sm:$0xff]
  %v3273 = vld [vmem:[%s2 + $0x118] sm:$0xff]
  %v3274 = vld [vmem:[%s2 + $0x120] sm:$0xff]
  %v3275 = vld [vmem:[%s2 + $0x128] sm:$0xff]
  %v3276 = vld [vmem:[%s2 + $0x130] sm:$0xff]
  %v3277 = vld [vmem:[%s2 + $0x138] sm:$0xff]
  %v3278 = vld [vmem:[%s2 + $0x140] sm:$0xff]
  %v3279 = vld [vmem:[%s2 + $0x148] sm:$0xff]
  %v3280 = vld [vmem:[%s2 + $0x150] sm:$0xff]
  %v3281 = vld [vmem:[%s2 + $0x158] sm:$0xff]
  %v3282 = vld [vmem:[%s2 + $0x160] sm:$0xff]
  %v3283 = vld [vmem:[%s2 + $0x168] sm:$0xff]
  %v3284 = vld [vmem:[%s2 + $0x170] sm:$0xff]
  %v3285 = vld [vmem:[%s2 + $0x178] sm:$0xff]
  %v3286 = vld [vmem:[%s2 + $0x180] sm:$0xff]
  %v3287 = vld [vmem:[%s2 + $0x188] sm:$0xff]
  %v3288 = vld [vmem:[%s2 + $0x190] sm:$0xff]
  %v3289 = vld [vmem:[%s2 + $0x198] sm:$0xff]
  %v3290 = vld [vmem:[%s2 + $0x1a0] sm:$0xff]
  %v3291 = vld [vmem:[%s2 + $0x1a8] sm:$0xff]
  %v3292 = vld [vmem:[%s2 + $0x1b0] sm:$0xff]
  %v3293 = vld [vmem:[%s2 + $0x1b8] sm:$0xff]
  %v3294 = vld [vmem:[%s2 + $0x1c0] sm:$0xff]
  %v3295 = vld [vmem:[%s2 + $0x1c8] sm:$0xff]
  %v3296 = vld [vmem:[%s2 + $0x1d0] sm:$0xff]
  %v3297 = vld [vmem:[%s2 + $0x1d8] sm:$0xff]
  %v3298 = vld [vmem:[%s2 + $0x1e0] sm:$0xff]
  %v3299 = vld [vmem:[%s2 + $0x1e8] sm:$0xff]
  %v3300 = vld [vmem:[%s2 + $0x1f0] sm:$0xff]
  %v3301 = vld [vmem:[%s2 + $0x1f8] sm:$0xff]
  %v3302 = vld [vmem:[%s2 + $0x200] sm:$0xff]
  %v3303 = vld [vmem:[%s2 + $0x208] sm:$0xff]
  %v3304 = vld [vmem:[%s2 + $0x210] sm:$0xff]
  %v3305 = vld [vmem:[%s2 + $0x218] sm:$0xff]
  %v3306 = vld [vmem:[%s2 + $0x220] sm:$0xff]
  %v3307 = vld [vmem:[%s2 + $0x228] sm:$0xff]
  %v3308 = vld [vmem:[%s2 + $0x230] sm:$0xff]
  %v3309 = vld [vmem:[%s2 + $0x238] sm:$0xff]
  %v3310 = vld [vmem:[%s2 + $0x240] sm:$0xff]
  %v3311 = vld [vmem:[%s2 + $0x248] sm:$0xff]
  %v3312 = vld [vmem:[%s2 + $0x250] sm:$0xff]
  %v3313 = vld [vmem:[%s2 + $0x258] sm:$0xff]
  %v3314 = vld [vmem:[%s2 + $0x260] sm:$0xff]
  %v3315 = vld [vmem:[%s2 + $0x268] sm:$0xff]
  %v3316 = vld [vmem:[%s2 + $0x270] sm:$0xff]
  %v3317 = vld [vmem:[%s2 + $0x278] sm:$0xff]
  %v3318 = vld [vmem:[%s2 + $0x280] sm:$0xff]
  %v3319 = vld [vmem:[%s2 + $0x288] sm:$0xff]
  %v3320 = vld [vmem:[%s2 + $0x290] sm:$0xff]
  %v3321 = vld [vmem:[%s2 + $0x298] sm:$0xff]
  %v3322 = vld [vmem:[%s2 + $0x2a0] sm:$0xff]
  %v3323 = vld [vmem:[%s2 + $0x2a8] sm:$0xff]
  %v3324 = vld [vmem:[%s2 + $0x2b0] sm:$0xff]
  %v3325 = vld [vmem:[%s2 + $0x2b8] sm:$0xff]
  %v3326 = vld [vmem:[%s2 + $0x2c0] sm:$0xff]
  %v3327 = vld [vmem:[%s2 + $0x2c8] sm:$0xff]
  %v3328 = vld [vmem:[%s2 + $0x2d0] sm:$0xff]
  %v3329 = vld [vmem:[%s2 + $0x2d8] sm:$0xff]
  %v3330 = vld [vmem:[%s2 + $0x2e0] sm:$0xff]
  %v3331 = vld [vmem:[%s2 + $0x2e8] sm:$0xff]
  %v3332 = vld [vmem:[%s2 + $0x2f0] sm:$0xff]
  %v3333 = vld [vmem:[%s2 + $0x2f8] sm:$0xff]
  %v3334 = vld [vmem:[%s2 + $0x300] sm:$0xff]
  %v3335 = vld [vmem:[%s2 + $0x308] sm:$0xff]
  %v3336 = vld [vmem:[%s2 + $0x310] sm:$0xff]
  %v3337 = vld [vmem:[%s2 + $0x318] sm:$0xff]
  %v3338 = vld [vmem:[%s2 + $0x320] sm:$0xff]
  %v3339 = vld [vmem:[%s2 + $0x328] sm:$0xff]
  %v3340 = vld [vmem:[%s2 + $0x330] sm:$0xff]
  %v3341 = vld [vmem:[%s2 + $0x338] sm:$0xff]
  %v3342 = vld [vmem:[%s2 + $0x340] sm:$0xff]
  %v3343 = vld [vmem:[%s2 + $0x348] sm:$0xff]
  %v3344 = vld [vmem:[%s2 + $0x350] sm:$0xff]
  %v3345 = vld [vmem:[%s2 + $0x358] sm:$0xff]
  %v3346 = vld [vmem:[%s2 + $0x360] sm:$0xff]
  %v3347 = vld [vmem:[%s2 + $0x368] sm:$0xff]
  %v3348 = vld [vmem:[%s2 + $0x370] sm:$0xff]
  %v3349 = vld [vmem:[%s2 + $0x378] sm:$0xff]
  %v3350 = vld [vmem:[%s2 + $0x380] sm:$0xff]
  %v3351 = vld [vmem:[%s2 + $0x388] sm:$0xff]
  %v3352 = vld [vmem:[%s2 + $0x390] sm:$0xff]
  %v3353 = vld [vmem:[%s2 + $0x398] sm:$0xff]
  %v3354 = vld [vmem:[%s2 + $0x3a0] sm:$0xff]
  %v3355 = vld [vmem:[%s2 + $0x3a8] sm:$0xff]
  %v3356 = vld [vmem:[%s2 + $0x3b0] sm:$0xff]
  %v3357 = vld [vmem:[%s2 + $0x3b8] sm:$0xff]
  %v3358 = vld [vmem:[%s2 + $0x3c0] sm:$0xff]
  %v3359 = vld [vmem:[%s2 + $0x3c8] sm:$0xff]
  %v3360 = vld [vmem:[%s2 + $0x3d0] sm:$0xff]
  %v3361 = vld [vmem:[%s2 + $0x3d8] sm:$0xff]
  %v3362 = vld [vmem:[%s2 + $0x3e0] sm:$0xff]
  %v3363 = vld [vmem:[%s2 + $0x3e8] sm:$0xff]
  %v3364 = vld [vmem:[%s2 + $0x3f0] sm:$0xff]
  %v3365 = vld [vmem:[%s2 + $0x3f8] sm:$0xff]
  %v3366 = vld [vmem:[%s2 + $0x400] sm:$0xff]
  %v3367 = vld [vmem:[%s2 + $0x408] sm:$0xff]
  %v3368 = vld [vmem:[%s2 + $0x410] sm:$0xff]
  %v3369 = vld [vmem:[%s2 + $0x418] sm:$0xff]
  %v3370 = vld [vmem:[%s2 + $0x420] sm:$0xff]
  %v3371 = vld [vmem:[%s2 + $0x428] sm:$0xff]
  %v3372 = vld [vmem:[%s2 + $0x430] sm:$0xff]
  %v3373 = vld [vmem:[%s2 + $0x438] sm:$0xff]
  %v3374 = vld [vmem:[%s2 + $0x440] sm:$0xff]
  %v3375 = vld [vmem:[%s2 + $0x448] sm:$0xff]
  %v3376 = vld [vmem:[%s2 + $0x450] sm:$0xff]
  %v3377 = vld [vmem:[%s2 + $0x458] sm:$0xff]
  %v3378 = vld [vmem:[%s2 + $0x460] sm:$0xff]
  %v3379 = vld [vmem:[%s2 + $0x468] sm:$0xff]
  %v3380 = vld [vmem:[%s2 + $0x470] sm:$0xff]
  %v3381 = vld [vmem:[%s2 + $0x478] sm:$0xff]
  %v3382 = vld [vmem:[%s2 + $0x480] sm:$0xff]
  %v3383 = vld [vmem:[%s2 + $0x488] sm:$0xff]
  %v3384 = vld [vmem:[%s2 + $0x490] sm:$0xff]
  %v3385 = vld [vmem:[%s2 + $0x498] sm:$0xff]
  %v3386 = vld [vmem:[%s2 + $0x4a0] sm:$0xff]
  %v3387 = vld [vmem:[%s2 + $0x4a8] sm:$0xff]
  %v3388 = vld [vmem:[%s2 + $0x4b0] sm:$0xff]
  %v3389 = vld [vmem:[%s2 + $0x4b8] sm:$0xff]
  %v3390 = vld [vmem:[%s2 + $0x4c0] sm:$0xff]
  %v3391 = vld [vmem:[%s2 + $0x4c8] sm:$0xff]
  %v3392 = vld [vmem:[%s2 + $0x4d0] sm:$0xff]
  %v3393 = vld [vmem:[%s2 + $0x4d8] sm:$0xff]
  %v3394 = vld [vmem:[%s2 + $0x4e0] sm:$0xff]
  %v3395 = vld [vmem:[%s2 + $0x4e8] sm:$0xff]
  %v3396 = vld [vmem:[%s2 + $0x4f0] sm:$0xff]
  %v3397 = vld [vmem:[%s2 + $0x4f8] sm:$0xff]
  %v3398 = vld [vmem:[%s2 + $0x500] sm:$0xff]
  %v3399 = vld [vmem:[%s2 + $0x508] sm:$0xff]
  %v3400 = vld [vmem:[%s2 + $0x510] sm:$0xff]
  %v3401 = vld [vmem:[%s2 + $0x518] sm:$0xff]
  %v3402 = vld [vmem:[%s2 + $0x520] sm:$0xff]
  %v3403 = vld [vmem:[%s2 + $0x528] sm:$0xff]
  %v3404 = vld [vmem:[%s2 + $0x530] sm:$0xff]
  %v3405 = vld [vmem:[%s2 + $0x538] sm:$0xff]
  %v3406 = vld [vmem:[%s2 + $0x540] sm:$0xff]
  %v3407 = vld [vmem:[%s2 + $0x548] sm:$0xff]
  %v3408 = vld [vmem:[%s2 + $0x550] sm:$0xff]
  %v3409 = vld [vmem:[%s2 + $0x558] sm:$0xff]
  %v3410 = vld [vmem:[%s2 + $0x560] sm:$0xff]
  %v3411 = vld [vmem:[%s2 + $0x568] sm:$0xff]
  %v3412 = vld [vmem:[%s2 + $0x570] sm:$0xff]
  %v3413 = vld [vmem:[%s2 + $0x578] sm:$0xff]
  %v3414 = vld [vmem:[%s2 + $0x580] sm:$0xff]
  %v3415 = vld [vmem:[%s2 + $0x588] sm:$0xff]
  %v3416 = vld [vmem:[%s2 + $0x590] sm:$0xff]
  %v3417 = vld [vmem:[%s2 + $0x598] sm:$0xff]
  %v3418 = vld [vmem:[%s2 + $0x5a0] sm:$0xff]
  %v3419 = vld [vmem:[%s2 + $0x5a8] sm:$0xff]
  %v3420 = vld [vmem:[%s2 + $0x5b0] sm:$0xff]
  %v3421 = vld [vmem:[%s2 + $0x5b8] sm:$0xff]
  %v3422 = vld [vmem:[%s2 + $0x5c0] sm:$0xff]
  %v3423 = vld [vmem:[%s2 + $0x5c8] sm:$0xff]
  %v3424 = vld [vmem:[%s2 + $0x5d0] sm:$0xff]
  %v3425 = vld [vmem:[%s2 + $0x5d8] sm:$0xff]
  %v3426 = vld [vmem:[%s2 + $0x5e0] sm:$0xff]
  %v3427 = vld [vmem:[%s2 + $0x5e8] sm:$0xff]
  %v3428 = vld [vmem:[%s2 + $0x5f0] sm:$0xff]
  %v3429 = vld [vmem:[%s2 + $0x5f8] sm:$0xff]
  %v3430 = vld [vmem:[%s2 + $0x600] sm:$0xff]
  %v3431 = vld [vmem:[%s2 + $0x608] sm:$0xff]
  %v3432 = vld [vmem:[%s2 + $0x610] sm:$0xff]
  %v3433 = vld [vmem:[%s2 + $0x618] sm:$0xff]
  %v3434 = vld [vmem:[%s2 + $0x620] sm:$0xff]
  %v3435 = vld [vmem:[%s2 + $0x628] sm:$0xff]
  %v3436 = vld [vmem:[%s2 + $0x630] sm:$0xff]
  %v3437 = vld [vmem:[%s2 + $0x638] sm:$0xff]
  %v3438 = vld [vmem:[%s2 + $0x640] sm:$0xff]
  %v3439 = vld [vmem:[%s2 + $0x648] sm:$0xff]
  %v3440 = vld [vmem:[%s2 + $0x650] sm:$0xff]
  %v3441 = vld [vmem:[%s2 + $0x658] sm:$0xff]
  %v3442 = vld [vmem:[%s2 + $0x660] sm:$0xff]
  %v3443 = vld [vmem:[%s2 + $0x668] sm:$0xff]
  %v3444 = vld [vmem:[%s2 + $0x670] sm:$0xff]
  %v3445 = vld [vmem:[%s2 + $0x678] sm:$0xff]
  %v3446 = vld [vmem:[%s2 + $0x680] sm:$0xff]
  %v3447 = vld [vmem:[%s2 + $0x688] sm:$0xff]
  %v3448 = vld [vmem:[%s2 + $0x690] sm:$0xff]
  %v3449 = vld [vmem:[%s2 + $0x698] sm:$0xff]
  %v3450 = vld [vmem:[%s2 + $0x6a0] sm:$0xff]
  %v3451 = vld [vmem:[%s2 + $0x6a8] sm:$0xff]
  %v3452 = vld [vmem:[%s2 + $0x6b0] sm:$0xff]
  %v3453 = vld [vmem:[%s2 + $0x6b8] sm:$0xff]
  %v3454 = vld [vmem:[%s2 + $0x6c0] sm:$0xff]
  %v3455 = vld [vmem:[%s2 + $0x6c8] sm:$0xff]
  %v3456 = vld [vmem:[%s2 + $0x6d0] sm:$0xff]
  %v3457 = vld [vmem:[%s2 + $0x6d8] sm:$0xff]
  %v3458 = vld [vmem:[%s2 + $0x6e0] sm:$0xff]
  %v3459 = vld [vmem:[%s2 + $0x6e8] sm:$0xff]
  %v3460 = vld [vmem:[%s2 + $0x6f0] sm:$0xff]
  %v3461 = vld [vmem:[%s2 + $0x6f8] sm:$0xff]
  %v3462 = vld [vmem:[%s2 + $0x700] sm:$0xff]
  %v3463 = vld [vmem:[%s2 + $0x708] sm:$0xff]
  %v3464 = vld [vmem:[%s2 + $0x710] sm:$0xff]
  %v3465 = vld [vmem:[%s2 + $0x718] sm:$0xff]
  %v3466 = vld [vmem:[%s2 + $0x720] sm:$0xff]
  %v3467 = vld [vmem:[%s2 + $0x728] sm:$0xff]
  %v3468 = vld [vmem:[%s2 + $0x730] sm:$0xff]
  %v3469 = vld [vmem:[%s2 + $0x738] sm:$0xff]
  %v3470 = vld [vmem:[%s2 + $0x740] sm:$0xff]
  %v3471 = vld [vmem:[%s2 + $0x748] sm:$0xff]
  %v3472 = vld [vmem:[%s2 + $0x750] sm:$0xff]
  %v3473 = vld [vmem:[%s2 + $0x758] sm:$0xff]
  %v3474 = vld [vmem:[%s2 + $0x760] sm:$0xff]
  %v3475 = vld [vmem:[%s2 + $0x768] sm:$0xff]
  %v3476 = vld [vmem:[%s2 + $0x770] sm:$0xff]
  %v3477 = vld [vmem:[%s2 + $0x778] sm:$0xff]
  %v3478 = vld [vmem:[%s2 + $0x780] sm:$0xff]
  %v3479 = vld [vmem:[%s2 + $0x788] sm:$0xff]
  %v3480 = vld [vmem:[%s2 + $0x790] sm:$0xff]
  %v3481 = vld [vmem:[%s2 + $0x798] sm:$0xff]
  %v3482 = vld [vmem:[%s2 + $0x7a0] sm:$0xff]
  %v3483 = vld [vmem:[%s2 + $0x7a8] sm:$0xff]
  %v3484 = vld [vmem:[%s2 + $0x7b0] sm:$0xff]
  %v3485 = vld [vmem:[%s2 + $0x7b8] sm:$0xff]
  %v3486 = vld [vmem:[%s2 + $0x7c0] sm:$0xff]
  %v3487 = vld [vmem:[%s2 + $0x7c8] sm:$0xff]
  %v3488 = vld [vmem:[%s2 + $0x7d0] sm:$0xff]
  %v3489 = vld [vmem:[%s2 + $0x7d8] sm:$0xff]
  %v3490 = vld [vmem:[%s2 + $0x7e0] sm:$0xff]
  %v3491 = vld [vmem:[%s2 + $0x7e8] sm:$0xff]
  %v3492 = vld [vmem:[%s2 + $0x7f0] sm:$0xff]
  %v3493 = vld [vmem:[%s2 + $0x7f8] sm:$0xff]
  %3494 = vmatprep.subr.mxu0 %v3239
  %3495 = vmatpush1.msra.mxu0 %v3238
  %3496 = vmatprep.subr.mxu0 %v3247
  %3497 = vmatpush1.msra.mxu0 %v3246
  %3498 = vmatprep.subr.mxu0 %v3255
  %3499 = vmatpush1.msra.mxu0 %v3254
  %3500 = vmatprep.subr.mxu0 %v3263
  %3501 = vmatpush1.msra.mxu0 %v3262
  %3502 = vmatprep.subr.mxu0 %v3271
  %3503 = vmatpush1.msra.mxu0 %v3270
  %3504 = vmatprep.subr.mxu0 %v3279
  %3505 = vmatpush1.msra.mxu0 %v3278
  %3506 = vmatprep.subr.mxu0 %v3287
  %3507 = vmatpush1.msra.mxu0 %v3286
  %3508 = vmatprep.subr.mxu0 %v3295
  %3509 = vmatpush1.msra.mxu0 %v3294
  %3510 = vmatprep.subr.mxu0 %v3303
  %3511 = vmatpush1.msra.mxu0 %v3302
  %3512 = vmatprep.subr.mxu0 %v3311
  %3513 = vmatpush1.msra.mxu0 %v3310
  %3514 = vmatprep.subr.mxu0 %v3319
  %3515 = vmatpush1.msra.mxu0 %v3318
  %3516 = vmatprep.subr.mxu0 %v3327
  %3517 = vmatpush1.msra.mxu0 %v3326
  %3518 = vmatprep.subr.mxu0 %v3335
  %3519 = vmatpush1.msra.mxu0 %v3334
  %3520 = vmatprep.subr.mxu0 %v3343
  %3521 = vmatpush1.msra.mxu0 %v3342
  %3522 = vmatprep.subr.mxu0 %v3351
  %3523 = vmatpush1.msra.mxu0 %v3350
  %3524 = vmatprep.subr.mxu0 %v3359
  %3525 = vmatpush1.msra.mxu0 %v3358
  %3526 = vmatprep.subr.mxu0 %v3367
  %3527 = vmatpush1.msra.mxu0 %v3366
  %3528 = vmatprep.subr.mxu0 %v3375
  %3529 = vmatpush1.msra.mxu0 %v3374
  %3530 = vmatprep.subr.mxu0 %v3383
  %3531 = vmatpush1.msra.mxu0 %v3382
  %3532 = vmatprep.subr.mxu0 %v3391
  %3533 = vmatpush1.msra.mxu0 %v3390
  %3534 = vmatprep.subr.mxu0 %v3399
  %3535 = vmatpush1.msra.mxu0 %v3398
  %3536 = vmatprep.subr.mxu0 %v3407
  %3537 = vmatpush1.msra.mxu0 %v3406
  %3538 = vmatprep.subr.mxu0 %v3415
  %3539 = vmatpush1.msra.mxu0 %v3414
  %3540 = vmatprep.subr.mxu0 %v3423
  %3541 = vmatpush1.msra.mxu0 %v3422
  %3542 = vmatprep.subr.mxu0 %v3431
  %3543 = vmatpush1.msra.mxu0 %v3430
  %3544 = vmatprep.subr.mxu0 %v3439
  %3545 = vmatpush1.msra.mxu0 %v3438
  %3546 = vmatprep.subr.mxu0 %v3447
  %3547 = vmatpush1.msra.mxu0 %v3446
  %3548 = vmatprep.subr.mxu0 %v3455
  %3549 = vmatpush1.msra.mxu0 %v3454
  %3550 = vmatprep.subr.mxu0 %v3463
  %3551 = vmatpush1.msra.mxu0 %v3462
  %3552 = vmatprep.subr.mxu0 %v3471
  %3553 = vmatpush1.msra.mxu0 %v3470
  %3554 = vmatprep.subr.mxu0 %v3479
  %3555 = vmatpush1.msra.mxu0 %v3478
  %3556 = vmatprep.subr.mxu0 %v3487
  %3557 = vmatpush1.msra.mxu0 %v3486
  %3558 = vmatprep.mubr.f32.mxu0 %v3237
  %3559 = vmatmul.mubr.f32.gmra.mrb[0].mxu0 %v3236
  %v3560 = vpop.f32.mrb[0].mxu0
  %v3561 = vadd.f32 0.0, %v3560
  %v3562 = vpop.f32.mrb[0].mxu0
  %v3563 = vadd.f32 0.0, %v3562
  %3564 = vdwg.mxu0
  %3565 = vmatprep.subr.mxu0 %v3241
  %3566 = vmatpush1.msra.mxu0 %v3240
  %3567 = vmatprep.subr.mxu0 %v3249
  %3568 = vmatpush1.msra.mxu0 %v3248
  %3569 = vmatprep.subr.mxu0 %v3257
  %3570 = vmatpush1.msra.mxu0 %v3256
  %3571 = vmatprep.subr.mxu0 %v3265
  %3572 = vmatpush1.msra.mxu0 %v3264
  %3573 = vmatprep.subr.mxu0 %v3273
  %3574 = vmatpush1.msra.mxu0 %v3272
  %3575 = vmatprep.subr.mxu0 %v3281
  %3576 = vmatpush1.msra.mxu0 %v3280
  %3577 = vmatprep.subr.mxu0 %v3289
  %3578 = vmatpush1.msra.mxu0 %v3288
  %3579 = vmatprep.subr.mxu0 %v3297
  %3580 = vmatpush1.msra.mxu0 %v3296
  %3581 = vmatprep.subr.mxu0 %v3305
  %3582 = vmatpush1.msra.mxu0 %v3304
  %3583 = vmatprep.subr.mxu0 %v3313
  %3584 = vmatpush1.msra.mxu0 %v3312
  %3585 = vmatprep.subr.mxu0 %v3321
  %3586 = vmatpush1.msra.mxu0 %v3320
  %3587 = vmatprep.subr.mxu0 %v3329
  %3588 = vmatpush1.msra.mxu0 %v3328
  %3589 = vmatprep.subr.mxu0 %v3337
  %3590 = vmatpush1.msra.mxu0 %v3336
  %3591 = vmatprep.subr.mxu0 %v3345
  %3592 = vmatpush1.msra.mxu0 %v3344
  %3593 = vmatprep.subr.mxu0 %v3353
  %3594 = vmatpush1.msra.mxu0 %v3352
  %3595 = vmatprep.subr.mxu0 %v3361
  %3596 = vmatpush1.msra.mxu0 %v3360
  %3597 = vmatprep.subr.mxu0 %v3369
  %3598 = vmatpush1.msra.mxu0 %v3368
  %3599 = vmatprep.subr.mxu0 %v3377
  %3600 = vmatpush1.msra.mxu0 %v3376
  %3601 = vmatprep.subr.mxu0 %v3385
  %3602 = vmatpush1.msra.mxu0 %v3384
  %3603 = vmatprep.subr.mxu0 %v3393
  %3604 = vmatpush1.msra.mxu0 %v3392
  %3605 = vmatprep.subr.mxu0 %v3401
  %3606 = vmatpush1.msra.mxu0 %v3400
  %3607 = vmatprep.subr.mxu0 %v3409
  %3608 = vmatpush1.msra.mxu0 %v3408
  %3609 = vmatprep.subr.mxu0 %v3417
  %3610 = vmatpush1.msra.mxu0 %v3416
  %3611 = vmatprep.subr.mxu0 %v3425
  %3612 = vmatpush1.msra.mxu0 %v3424
  %3613 = vmatprep.subr.mxu0 %v3433
  %3614 = vmatpush1.msra.mxu0 %v3432
  %3615 = vmatprep.subr.mxu0 %v3441
  %3616 = vmatpush1.msra.mxu0 %v3440
  %3617 = vmatprep.subr.mxu0 %v3449
  %3618 = vmatpush1.msra.mxu0 %v3448
  %3619 = vmatprep.subr.mxu0 %v3457
  %3620 = vmatpush1.msra.mxu0 %v3456
  %3621 = vmatprep.subr.mxu0 %v3465
  %3622 = vmatpush1.msra.mxu0 %v3464
  %3623 = vmatprep.subr.mxu0 %v3473
  %3624 = vmatpush1.msra.mxu0 %v3472
  %3625 = vmatprep.subr.mxu0 %v3481
  %3626 = vmatpush1.msra.mxu0 %v3480
  %3627 = vmatprep.subr.mxu0 %v3489
  %3628 = vmatpush1.msra.mxu0 %v3488
  %3629 = vmatprep.mubr.f32.mxu0 %v3237
  %3630 = vmatmul.mubr.f32.gmra.mrb[0].mxu0 %v3236
  %v3631 = vpop.f32.mrb[0].mxu0
  %v3632 = vadd.f32 0.0, %v3631
  %v3633 = vpop.f32.mrb[0].mxu0
  %v3634 = vadd.f32 0.0, %v3633
  %3635 = vdwg.mxu0
  %3636 = vmatprep.subr.mxu0 %v3243
  %3637 = vmatpush1.msra.mxu0 %v3242
  %3638 = vmatprep.subr.mxu0 %v3251
  %3639 = vmatpush1.msra.mxu0 %v3250
  %3640 = vmatprep.subr.mxu0 %v3259
  %3641 = vmatpush1.msra.mxu0 %v3258
  %3642 = vmatprep.subr.mxu0 %v3267
  %3643 = vmatpush1.msra.mxu0 %v3266
  %3644 = vmatprep.subr.mxu0 %v3275
  %3645 = vmatpush1.msra.mxu0 %v3274
  %3646 = vmatprep.subr.mxu0 %v3283
  %3647 = vmatpush1.msra.mxu0 %v3282
  %3648 = vmatprep.subr.mxu0 %v3291
  %3649 = vmatpush1.msra.mxu0 %v3290
  %3650 = vmatprep.subr.mxu0 %v3299
  %3651 = vmatpush1.msra.mxu0 %v3298
  %3652 = vmatprep.subr.mxu0 %v3307
  %3653 = vmatpush1.msra.mxu0 %v3306
  %3654 = vmatprep.subr.mxu0 %v3315
  %3655 = vmatpush1.msra.mxu0 %v3314
  %3656 = vmatprep.subr.mxu0 %v3323
  %3657 = vmatpush1.msra.mxu0 %v3322
  %3658 = vmatprep.subr.mxu0 %v3331
  %3659 = vmatpush1.msra.mxu0 %v3330
  %3660 = vmatprep.subr.mxu0 %v3339
  %3661 = vmatpush1.msra.mxu0 %v3338
  %3662 = vmatprep.subr.mxu0 %v3347
  %3663 = vmatpush1.msra.mxu0 %v3346
  %3664 = vmatprep.subr.mxu0 %v3355
  %3665 = vmatpush1.msra.mxu0 %v3354
  %3666 = vmatprep.subr.mxu0 %v3363
  %3667 = vmatpush1.msra.mxu0 %v3362
  %3668 = vmatprep.subr.mxu0 %v3371
  %3669 = vmatpush1.msra.mxu0 %v3370
  %3670 = vmatprep.subr.mxu0 %v3379
  %3671 = vmatpush1.msra.mxu0 %v3378
  %3672 = vmatprep.subr.mxu0 %v3387
  %3673 = vmatpush1.msra.mxu0 %v3386
  %3674 = vmatprep.subr.mxu0 %v3395
  %3675 = vmatpush1.msra.mxu0 %v3394
  %3676 = vmatprep.subr.mxu0 %v3403
  %3677 = vmatpush1.msra.mxu0 %v3402
  %3678 = vmatprep.subr.mxu0 %v3411
  %3679 = vmatpush1.msra.mxu0 %v3410
  %3680 = vmatprep.subr.mxu0 %v3419
  %3681 = vmatpush1.msra.mxu0 %v3418
  %3682 = vmatprep.subr.mxu0 %v3427
  %3683 = vmatpush1.msra.mxu0 %v3426
  %3684 = vmatprep.subr.mxu0 %v3435
  %3685 = vmatpush1.msra.mxu0 %v3434
  %3686 = vmatprep.subr.mxu0 %v3443
  %3687 = vmatpush1.msra.mxu0 %v3442
  %3688 = vmatprep.subr.mxu0 %v3451
  %3689 = vmatpush1.msra.mxu0 %v3450
  %3690 = vmatprep.subr.mxu0 %v3459
  %3691 = vmatpush1.msra.mxu0 %v3458
  %3692 = vmatprep.subr.mxu0 %v3467
  %3693 = vmatpush1.msra.mxu0 %v3466
  %3694 = vmatprep.subr.mxu0 %v3475
  %3695 = vmatpush1.msra.mxu0 %v3474
  %3696 = vmatprep.subr.mxu0 %v3483
  %3697 = vmatpush1.msra.mxu0 %v3482
  %3698 = vmatprep.subr.mxu0 %v3491
  %3699 = vmatpush1.msra.mxu0 %v3490
  %3700 = vmatprep.mubr.f32.mxu0 %v3237
  %3701 = vmatmul.mubr.f32.gmra.mrb[0].mxu0 %v3236
  %v3702 = vpop.f32.mrb[0].mxu0
  %v3703 = vadd.f32 0.0, %v3702
  %v3704 = vpop.f32.mrb[0].mxu0
  %v3705 = vadd.f32 0.0, %v3704
  %3706 = vdwg.mxu0
  %3707 = vmatprep.subr.mxu0 %v3245
  %3708 = vmatpush1.msra.mxu0 %v3244
  %3709 = vmatprep.subr.mxu0 %v3253
  %3710 = vmatpush1.msra.mxu0 %v3252
  %3711 = vmatprep.subr.mxu0 %v3261
  %3712 = vmatpush1.msra.mxu0 %v3260
  %3713 = vmatprep.subr.mxu0 %v3269
  %3714 = vmatpush1.msra.mxu0 %v3268
  %3715 = vmatprep.subr.mxu0 %v3277
  %3716 = vmatpush1.msra.mxu0 %v3276
  %3717 = vmatprep.subr.mxu0 %v3285
  %3718 = vmatpush1.msra.mxu0 %v3284
  %3719 = vmatprep.subr.mxu0 %v3293
  %3720 = vmatpush1.msra.mxu0 %v3292
  %3721 = vmatprep.subr.mxu0 %v3301
  %3722 = vmatpush1.msra.mxu0 %v3300
  %3723 = vmatprep.subr.mxu0 %v3309
  %3724 = vmatpush1.msra.mxu0 %v3308
  %3725 = vmatprep.subr.mxu0 %v3317
  %3726 = vmatpush1.msra.mxu0 %v3316
  %3727 = vmatprep.subr.mxu0 %v3325
  %3728 = vmatpush1.msra.mxu0 %v3324
  %3729 = vmatprep.subr.mxu0 %v3333
  %3730 = vmatpush1.msra.mxu0 %v3332
  %3731 = vmatprep.subr.mxu0 %v3341
  %3732 = vmatpush1.msra.mxu0 %v3340
  %3733 = vmatprep.subr.mxu0 %v3349
  %3734 = vmatpush1.msra.mxu0 %v3348
  %3735 = vmatprep.subr.mxu0 %v3357
  %3736 = vmatpush1.msra.mxu0 %v3356
  %3737 = vmatprep.subr.mxu0 %v3365
  %3738 = vmatpush1.msra.mxu0 %v3364
  %3739 = vmatprep.subr.mxu0 %v3373
  %3740 = vmatpush1.msra.mxu0 %v3372
  %3741 = vmatprep.subr.mxu0 %v3381
  %3742 = vmatpush1.msra.mxu0 %v3380
  %3743 = vmatprep.subr.mxu0 %v3389
  %3744 = vmatpush1.msra.mxu0 %v3388
  %3745 = vmatprep.subr.mxu0 %v3397
  %3746 = vmatpush1.msra.mxu0 %v3396
  %3747 = vmatprep.subr.mxu0 %v3405
  %3748 = vmatpush1.msra.mxu0 %v3404
  %3749 = vmatprep.subr.mxu0 %v3413
  %3750 = vmatpush1.msra.mxu0 %v3412
  %3751 = vmatprep.subr.mxu0 %v3421
  %3752 = vmatpush1.msra.mxu0 %v3420
  %3753 = vmatprep.subr.mxu0 %v3429
  %3754 = vmatpush1.msra.mxu0 %v3428
  %3755 = vmatprep.subr.mxu0 %v3437
  %3756 = vmatpush1.msra.mxu0 %v3436
  %3757 = vmatprep.subr.mxu0 %v3445
  %3758 = vmatpush1.msra.mxu0 %v3444
  %3759 = vmatprep.subr.mxu0 %v3453
  %3760 = vmatpush1.msra.mxu0 %v3452
  %3761 = vmatprep.subr.mxu0 %v3461
  %3762 = vmatpush1.msra.mxu0 %v3460
  %3763 = vmatprep.subr.mxu0 %v3469
  %3764 = vmatpush1.msra.mxu0 %v3468
  %3765 = vmatprep.subr.mxu0 %v3477
  %3766 = vmatpush1.msra.mxu0 %v3476
  %3767 = vmatprep.subr.mxu0 %v3485
  %3768 = vmatpush1.msra.mxu0 %v3484
  %3769 = vmatprep.subr.mxu0 %v3493
  %3770 = vmatpush1.msra.mxu0 %v3492
  %3771 = vmatprep.mubr.f32.mxu0 %v3237
  %3772 = vmatmul.mubr.f32.gmra.mrb[0].mxu0 %v3236
  %v3773 = vpop.f32.mrb[0].mxu0
  %v3774 = vadd.f32 0.0, %v3773
  %v3775 = vpop.f32.mrb[0].mxu0
  %v3776 = vadd.f32 0.0, %v3775
  %3777 = vdwg.mxu0
  %v3778 = vadd.f32 %v3703, %v786
  %v3779 = vadd.f32 %v3705, %v790
  %v3780 = vadd.f32 %v3774, %v794
  %v3781 = vadd.f32 %v3776, %v798
  %v3782 = vmul.f32 %v3778, 0.5
  %v3783 = vtanh.pop %v3782
  %v3784 = vmul.f32 %v3783, 0.5
  %v3785 = vadd.f32 %v3784, 0.5
  %v3786 = vmul.f32 %v3779, 0.5
  %v3787 = vtanh.pop %v3786
  %v3788 = vmul.f32 %v3787, 0.5
  %v3789 = vadd.f32 %v3788, 0.5
  %v3790 = vtanh.pop %v3780
  %v3791 = vmul.f32 %v3781, 0.5
  %v3792 = vtanh.pop %v3791
  %v3793 = vmul.f32 %v3792, 0.5
  %v3794 = vadd.f32 %v3793, 0.5
  %v3795 = vmul.f32 %v3789, %v3202
  %v3796 = vmul.f32 %v3785, %v3790
  %v3797 = vadd.f32 %v3795, %v3796
  %v3798 = vtanh.pop %v3797
  %v3799 = vmul.f32 %v3794, %v3798
  %3800 = vst [vmem:[#allocation3 + $0x8] sm:$0xff] %v3799
  %s3801 = smul.u32 6, 4
  %s3802 = smul.addr %s3801, 8
  %s3803 = scalar_lea.vmem [#allocation2], %s3802
  %v3804 = vld [vmem:[%s3803] sm:$0xff]
  %v3805 = vld [vmem:[%s3803 + $0x8] sm:$0xff]
  %v3806 = vld [vmem:[%s3803 + $0x10] sm:$0xff]
  %v3807 = vld [vmem:[%s3803 + $0x18] sm:$0xff]
  %v3808 = vadd.f32 %v3804, %v3561
  %v3809 = vadd.f32 %v3805, %v3563
  %v3810 = vadd.f32 %v3806, %v3632
  %v3811 = vadd.f32 %v3807, %v3634
  %v3812 = vmul.f32 %v3808, 0.5
  %v3813 = vtanh.pop %v3812
  %v3814 = vmul.f32 %v3813, 0.5
  %v3815 = vadd.f32 %v3814, 0.5
  %v3816 = vmul.f32 %v3809, 0.5
  %v3817 = vtanh.pop %v3816
  %v3818 = vmul.f32 %v3817, 0.5
  %v3819 = vadd.f32 %v3818, 0.5
  %v3820 = vtanh.pop %v3810
  %v3821 = vmul.f32 %v3811, 0.5
  %v3822 = vtanh.pop %v3821
  %v3823 = vmul.f32 %v3822, 0.5
  %v3824 = vadd.f32 %v3823, 0.5
  %v3825 = vmul.f32 %v3819, %v3232
  %v3826 = vmul.f32 %v3815, %v3820
  %v3827 = vadd.f32 %v3825, %v3826
  %v3828 = vtanh.pop %v3827
  %v3829 = vmul.f32 %v3824, %v3828
  %3830 = vst [vmem:[#allocation3] sm:$0xff] %v3829
  %v3831 = vld [vmem:[#allocation3] sm:$0xff]
  %v3832 = vld [vmem:[#allocation3 + $0x8] sm:$0xff]
  %v3833 = vld [vmem:[%s2] sm:$0xff]
  %v3834 = vld [vmem:[%s2 + $0x8] sm:$0xff]
  %v3835 = vld [vmem:[%s2 + $0x10] sm:$0xff]
  %v3836 = vld [vmem:[%s2 + $0x18] sm:$0xff]
  %v3837 = vld [vmem:[%s2 + $0x20] sm:$0xff]
  %v3838 = vld [vmem:[%s2 + $0x28] sm:$0xff]
  %v3839 = vld [vmem:[%s2 + $0x30] sm:$0xff]
  %v3840 = vld [vmem:[%s2 + $0x38] sm:$0xff]
  %v3841 = vld [vmem:[%s2 + $0x40] sm:$0xff]
  %v3842 = vld [vmem:[%s2 + $0x48] sm:$0xff]
  %v3843 = vld [vmem:[%s2 + $0x50] sm:$0xff]
  %v3844 = vld [vmem:[%s2 + $0x58] sm:$0xff]
  %v3845 = vld [vmem:[%s2 + $0x60] sm:$0xff]
  %v3846 = vld [vmem:[%s2 + $0x68] sm:$0xff]
  %v3847 = vld [vmem:[%s2 + $0x70] sm:$0xff]
  %v3848 = vld [vmem:[%s2 + $0x78] sm:$0xff]
  %v3849 = vld [vmem:[%s2 + $0x80] sm:$0xff]
  %v3850 = vld [vmem:[%s2 + $0x88] sm:$0xff]
  %v3851 = vld [vmem:[%s2 + $0x90] sm:$0xff]
  %v3852 = vld [vmem:[%s2 + $0x98] sm:$0xff]
  %v3853 = vld [vmem:[%s2 + $0xa0] sm:$0xff]
  %v3854 = vld [vmem:[%s2 + $0xa8] sm:$0xff]
  %v3855 = vld [vmem:[%s2 + $0xb0] sm:$0xff]
  %v3856 = vld [vmem:[%s2 + $0xb8] sm:$0xff]
  %v3857 = vld [vmem:[%s2 + $0xc0] sm:$0xff]
  %v3858 = vld [vmem:[%s2 + $0xc8] sm:$0xff]
  %v3859 = vld [vmem:[%s2 + $0xd0] sm:$0xff]
  %v3860 = vld [vmem:[%s2 + $0xd8] sm:$0xff]
  %v3861 = vld [vmem:[%s2 + $0xe0] sm:$0xff]
  %v3862 = vld [vmem:[%s2 + $0xe8] sm:$0xff]
  %v3863 = vld [vmem:[%s2 + $0xf0] sm:$0xff]
  %v3864 = vld [vmem:[%s2 + $0xf8] sm:$0xff]
  %v3865 = vld [vmem:[%s2 + $0x100] sm:$0xff]
  %v3866 = vld [vmem:[%s2 + $0x108] sm:$0xff]
  %v3867 = vld [vmem:[%s2 + $0x110] sm:$0xff]
  %v3868 = vld [vmem:[%s2 + $0x118] sm:$0xff]
  %v3869 = vld [vmem:[%s2 + $0x120] sm:$0xff]
  %v3870 = vld [vmem:[%s2 + $0x128] sm:$0xff]
  %v3871 = vld [vmem:[%s2 + $0x130] sm:$0xff]
  %v3872 = vld [vmem:[%s2 + $0x138] sm:$0xff]
  %v3873 = vld [vmem:[%s2 + $0x140] sm:$0xff]
  %v3874 = vld [vmem:[%s2 + $0x148] sm:$0xff]
  %v3875 = vld [vmem:[%s2 + $0x150] sm:$0xff]
  %v3876 = vld [vmem:[%s2 + $0x158] sm:$0xff]
  %v3877 = vld [vmem:[%s2 + $0x160] sm:$0xff]
  %v3878 = vld [vmem:[%s2 + $0x168] sm:$0xff]
  %v3879 = vld [vmem:[%s2 + $0x170] sm:$0xff]
  %v3880 = vld [vmem:[%s2 + $0x178] sm:$0xff]
  %v3881 = vld [vmem:[%s2 + $0x180] sm:$0xff]
  %v3882 = vld [vmem:[%s2 + $0x188] sm:$0xff]
  %v3883 = vld [vmem:[%s2 + $0x190] sm:$0xff]
  %v3884 = vld [vmem:[%s2 + $0x198] sm:$0xff]
  %v3885 = vld [vmem:[%s2 + $0x1a0] sm:$0xff]
  %v3886 = vld [vmem:[%s2 + $0x1a8] sm:$0xff]
  %v3887 = vld [vmem:[%s2 + $0x1b0] sm:$0xff]
  %v3888 = vld [vmem:[%s2 + $0x1b8] sm:$0xff]
  %v3889 = vld [vmem:[%s2 + $0x1c0] sm:$0xff]
  %v3890 = vld [vmem:[%s2 + $0x1c8] sm:$0xff]
  %v3891 = vld [vmem:[%s2 + $0x1d0] sm:$0xff]
  %v3892 = vld [vmem:[%s2 + $0x1d8] sm:$0xff]
  %v3893 = vld [vmem:[%s2 + $0x1e0] sm:$0xff]
  %v3894 = vld [vmem:[%s2 + $0x1e8] sm:$0xff]
  %v3895 = vld [vmem:[%s2 + $0x1f0] sm:$0xff]
  %v3896 = vld [vmem:[%s2 + $0x1f8] sm:$0xff]
  %v3897 = vld [vmem:[%s2 + $0x200] sm:$0xff]
  %v3898 = vld [vmem:[%s2 + $0x208] sm:$0xff]
  %v3899 = vld [vmem:[%s2 + $0x210] sm:$0xff]
  %v3900 = vld [vmem:[%s2 + $0x218] sm:$0xff]
  %v3901 = vld [vmem:[%s2 + $0x220] sm:$0xff]
  %v3902 = vld [vmem:[%s2 + $0x228] sm:$0xff]
  %v3903 = vld [vmem:[%s2 + $0x230] sm:$0xff]
  %v3904 = vld [vmem:[%s2 + $0x238] sm:$0xff]
  %v3905 = vld [vmem:[%s2 + $0x240] sm:$0xff]
  %v3906 = vld [vmem:[%s2 + $0x248] sm:$0xff]
  %v3907 = vld [vmem:[%s2 + $0x250] sm:$0xff]
  %v3908 = vld [vmem:[%s2 + $0x258] sm:$0xff]
  %v3909 = vld [vmem:[%s2 + $0x260] sm:$0xff]
  %v3910 = vld [vmem:[%s2 + $0x268] sm:$0xff]
  %v3911 = vld [vmem:[%s2 + $0x270] sm:$0xff]
  %v3912 = vld [vmem:[%s2 + $0x278] sm:$0xff]
  %v3913 = vld [vmem:[%s2 + $0x280] sm:$0xff]
  %v3914 = vld [vmem:[%s2 + $0x288] sm:$0xff]
  %v3915 = vld [vmem:[%s2 + $0x290] sm:$0xff]
  %v3916 = vld [vmem:[%s2 + $0x298] sm:$0xff]
  %v3917 = vld [vmem:[%s2 + $0x2a0] sm:$0xff]
  %v3918 = vld [vmem:[%s2 + $0x2a8] sm:$0xff]
  %v3919 = vld [vmem:[%s2 + $0x2b0] sm:$0xff]
  %v3920 = vld [vmem:[%s2 + $0x2b8] sm:$0xff]
  %v3921 = vld [vmem:[%s2 + $0x2c0] sm:$0xff]
  %v3922 = vld [vmem:[%s2 + $0x2c8] sm:$0xff]
  %v3923 = vld [vmem:[%s2 + $0x2d0] sm:$0xff]
  %v3924 = vld [vmem:[%s2 + $0x2d8] sm:$0xff]
  %v3925 = vld [vmem:[%s2 + $0x2e0] sm:$0xff]
  %v3926 = vld [vmem:[%s2 + $0x2e8] sm:$0xff]
  %v3927 = vld [vmem:[%s2 + $0x2f0] sm:$0xff]
  %v3928 = vld [vmem:[%s2 + $0x2f8] sm:$0xff]
  %v3929 = vld [vmem:[%s2 + $0x300] sm:$0xff]
  %v3930 = vld [vmem:[%s2 + $0x308] sm:$0xff]
  %v3931 = vld [vmem:[%s2 + $0x310] sm:$0xff]
  %v3932 = vld [vmem:[%s2 + $0x318] sm:$0xff]
  %v3933 = vld [vmem:[%s2 + $0x320] sm:$0xff]
  %v3934 = vld [vmem:[%s2 + $0x328] sm:$0xff]
  %v3935 = vld [vmem:[%s2 + $0x330] sm:$0xff]
  %v3936 = vld [vmem:[%s2 + $0x338] sm:$0xff]
  %v3937 = vld [vmem:[%s2 + $0x340] sm:$0xff]
  %v3938 = vld [vmem:[%s2 + $0x348] sm:$0xff]
  %v3939 = vld [vmem:[%s2 + $0x350] sm:$0xff]
  %v3940 = vld [vmem:[%s2 + $0x358] sm:$0xff]
  %v3941 = vld [vmem:[%s2 + $0x360] sm:$0xff]
  %v3942 = vld [vmem:[%s2 + $0x368] sm:$0xff]
  %v3943 = vld [vmem:[%s2 + $0x370] sm:$0xff]
  %v3944 = vld [vmem:[%s2 + $0x378] sm:$0xff]
  %v3945 = vld [vmem:[%s2 + $0x380] sm:$0xff]
  %v3946 = vld [vmem:[%s2 + $0x388] sm:$0xff]
  %v3947 = vld [vmem:[%s2 + $0x390] sm:$0xff]
  %v3948 = vld [vmem:[%s2 + $0x398] sm:$0xff]
  %v3949 = vld [vmem:[%s2 + $0x3a0] sm:$0xff]
  %v3950 = vld [vmem:[%s2 + $0x3a8] sm:$0xff]
  %v3951 = vld [vmem:[%s2 + $0x3b0] sm:$0xff]
  %v3952 = vld [vmem:[%s2 + $0x3b8] sm:$0xff]
  %v3953 = vld [vmem:[%s2 + $0x3c0] sm:$0xff]
  %v3954 = vld [vmem:[%s2 + $0x3c8] sm:$0xff]
  %v3955 = vld [vmem:[%s2 + $0x3d0] sm:$0xff]
  %v3956 = vld [vmem:[%s2 + $0x3d8] sm:$0xff]
  %v3957 = vld [vmem:[%s2 + $0x3e0] sm:$0xff]
  %v3958 = vld [vmem:[%s2 + $0x3e8] sm:$0xff]
  %v3959 = vld [vmem:[%s2 + $0x3f0] sm:$0xff]
  %v3960 = vld [vmem:[%s2 + $0x3f8] sm:$0xff]
  %v3961 = vld [vmem:[%s2 + $0x400] sm:$0xff]
  %v3962 = vld [vmem:[%s2 + $0x408] sm:$0xff]
  %v3963 = vld [vmem:[%s2 + $0x410] sm:$0xff]
  %v3964 = vld [vmem:[%s2 + $0x418] sm:$0xff]
  %v3965 = vld [vmem:[%s2 + $0x420] sm:$0xff]
  %v3966 = vld [vmem:[%s2 + $0x428] sm:$0xff]
  %v3967 = vld [vmem:[%s2 + $0x430] sm:$0xff]
  %v3968 = vld [vmem:[%s2 + $0x438] sm:$0xff]
  %v3969 = vld [vmem:[%s2 + $0x440] sm:$0xff]
  %v3970 = vld [vmem:[%s2 + $0x448] sm:$0xff]
  %v3971 = vld [vmem:[%s2 + $0x450] sm:$0xff]
  %v3972 = vld [vmem:[%s2 + $0x458] sm:$0xff]
  %v3973 = vld [vmem:[%s2 + $0x460] sm:$0xff]
  %v3974 = vld [vmem:[%s2 + $0x468] sm:$0xff]
  %v3975 = vld [vmem:[%s2 + $0x470] sm:$0xff]
  %v3976 = vld [vmem:[%s2 + $0x478] sm:$0xff]
  %v3977 = vld [vmem:[%s2 + $0x480] sm:$0xff]
  %v3978 = vld [vmem:[%s2 + $0x488] sm:$0xff]
  %v3979 = vld [vmem:[%s2 + $0x490] sm:$0xff]
  %v3980 = vld [vmem:[%s2 + $0x498] sm:$0xff]
  %v3981 = vld [vmem:[%s2 + $0x4a0] sm:$0xff]
  %v3982 = vld [vmem:[%s2 + $0x4a8] sm:$0xff]
  %v3983 = vld [vmem:[%s2 + $0x4b0] sm:$0xff]
  %v3984 = vld [vmem:[%s2 + $0x4b8] sm:$0xff]
  %v3985 = vld [vmem:[%s2 + $0x4c0] sm:$0xff]
  %v3986 = vld [vmem:[%s2 + $0x4c8] sm:$0xff]
  %v3987 = vld [vmem:[%s2 + $0x4d0] sm:$0xff]
  %v3988 = vld [vmem:[%s2 + $0x4d8] sm:$0xff]
  %v3989 = vld [vmem:[%s2 + $0x4e0] sm:$0xff]
  %v3990 = vld [vmem:[%s2 + $0x4e8] sm:$0xff]
  %v3991 = vld [vmem:[%s2 + $0x4f0] sm:$0xff]
  %v3992 = vld [vmem:[%s2 + $0x4f8] sm:$0xff]
  %v3993 = vld [vmem:[%s2 + $0x500] sm:$0xff]
  %v3994 = vld [vmem:[%s2 + $0x508] sm:$0xff]
  %v3995 = vld [vmem:[%s2 + $0x510] sm:$0xff]
  %v3996 = vld [vmem:[%s2 + $0x518] sm:$0xff]
  %v3997 = vld [vmem:[%s2 + $0x520] sm:$0xff]
  %v3998 = vld [vmem:[%s2 + $0x528] sm:$0xff]
  %v3999 = vld [vmem:[%s2 + $0x530] sm:$0xff]
  %v4000 = vld [vmem:[%s2 + $0x538] sm:$0xff]
  %v4001 = vld [vmem:[%s2 + $0x540] sm:$0xff]
  %v4002 = vld [vmem:[%s2 + $0x548] sm:$0xff]
  %v4003 = vld [vmem:[%s2 + $0x550] sm:$0xff]
  %v4004 = vld [vmem:[%s2 + $0x558] sm:$0xff]
  %v4005 = vld [vmem:[%s2 + $0x560] sm:$0xff]
  %v4006 = vld [vmem:[%s2 + $0x568] sm:$0xff]
  %v4007 = vld [vmem:[%s2 + $0x570] sm:$0xff]
  %v4008 = vld [vmem:[%s2 + $0x578] sm:$0xff]
  %v4009 = vld [vmem:[%s2 + $0x580] sm:$0xff]
  %v4010 = vld [vmem:[%s2 + $0x588] sm:$0xff]
  %v4011 = vld [vmem:[%s2 + $0x590] sm:$0xff]
  %v4012 = vld [vmem:[%s2 + $0x598] sm:$0xff]
  %v4013 = vld [vmem:[%s2 + $0x5a0] sm:$0xff]
  %v4014 = vld [vmem:[%s2 + $0x5a8] sm:$0xff]
  %v4015 = vld [vmem:[%s2 + $0x5b0] sm:$0xff]
  %v4016 = vld [vmem:[%s2 + $0x5b8] sm:$0xff]
  %v4017 = vld [vmem:[%s2 + $0x5c0] sm:$0xff]
  %v4018 = vld [vmem:[%s2 + $0x5c8] sm:$0xff]
  %v4019 = vld [vmem:[%s2 + $0x5d0] sm:$0xff]
  %v4020 = vld [vmem:[%s2 + $0x5d8] sm:$0xff]
  %v4021 = vld [vmem:[%s2 + $0x5e0] sm:$0xff]
  %v4022 = vld [vmem:[%s2 + $0x5e8] sm:$0xff]
  %v4023 = vld [vmem:[%s2 + $0x5f0] sm:$0xff]
  %v4024 = vld [vmem:[%s2 + $0x5f8] sm:$0xff]
  %v4025 = vld [vmem:[%s2 + $0x600] sm:$0xff]
  %v4026 = vld [vmem:[%s2 + $0x608] sm:$0xff]
  %v4027 = vld [vmem:[%s2 + $0x610] sm:$0xff]
  %v4028 = vld [vmem:[%s2 + $0x618] sm:$0xff]
  %v4029 = vld [vmem:[%s2 + $0x620] sm:$0xff]
  %v4030 = vld [vmem:[%s2 + $0x628] sm:$0xff]
  %v4031 = vld [vmem:[%s2 + $0x630] sm:$0xff]
  %v4032 = vld [vmem:[%s2 + $0x638] sm:$0xff]
  %v4033 = vld [vmem:[%s2 + $0x640] sm:$0xff]
  %v4034 = vld [vmem:[%s2 + $0x648] sm:$0xff]
  %v4035 = vld [vmem:[%s2 + $0x650] sm:$0xff]
  %v4036 = vld [vmem:[%s2 + $0x658] sm:$0xff]
  %v4037 = vld [vmem:[%s2 + $0x660] sm:$0xff]
  %v4038 = vld [vmem:[%s2 + $0x668] sm:$0xff]
  %v4039 = vld [vmem:[%s2 + $0x670] sm:$0xff]
  %v4040 = vld [vmem:[%s2 + $0x678] sm:$0xff]
  %v4041 = vld [vmem:[%s2 + $0x680] sm:$0xff]
  %v4042 = vld [vmem:[%s2 + $0x688] sm:$0xff]
  %v4043 = vld [vmem:[%s2 + $0x690] sm:$0xff]
  %v4044 = vld [vmem:[%s2 + $0x698] sm:$0xff]
  %v4045 = vld [vmem:[%s2 + $0x6a0] sm:$0xff]
  %v4046 = vld [vmem:[%s2 + $0x6a8] sm:$0xff]
  %v4047 = vld [vmem:[%s2 + $0x6b0] sm:$0xff]
  %v4048 = vld [vmem:[%s2 + $0x6b8] sm:$0xff]
  %v4049 = vld [vmem:[%s2 + $0x6c0] sm:$0xff]
  %v4050 = vld [vmem:[%s2 + $0x6c8] sm:$0xff]
  %v4051 = vld [vmem:[%s2 + $0x6d0] sm:$0xff]
  %v4052 = vld [vmem:[%s2 + $0x6d8] sm:$0xff]
  %v4053 = vld [vmem:[%s2 + $0x6e0] sm:$0xff]
  %v4054 = vld [vmem:[%s2 + $0x6e8] sm:$0xff]
  %v4055 = vld [vmem:[%s2 + $0x6f0] sm:$0xff]
  %v4056 = vld [vmem:[%s2 + $0x6f8] sm:$0xff]
  %v4057 = vld [vmem:[%s2 + $0x700] sm:$0xff]
  %v4058 = vld [vmem:[%s2 + $0x708] sm:$0xff]
  %v4059 = vld [vmem:[%s2 + $0x710] sm:$0xff]
  %v4060 = vld [vmem:[%s2 + $0x718] sm:$0xff]
  %v4061 = vld [vmem:[%s2 + $0x720] sm:$0xff]
  %v4062 = vld [vmem:[%s2 + $0x728] sm:$0xff]
  %v4063 = vld [vmem:[%s2 + $0x730] sm:$0xff]
  %v4064 = vld [vmem:[%s2 + $0x738] sm:$0xff]
  %v4065 = vld [vmem:[%s2 + $0x740] sm:$0xff]
  %v4066 = vld [vmem:[%s2 + $0x748] sm:$0xff]
  %v4067 = vld [vmem:[%s2 + $0x750] sm:$0xff]
  %v4068 = vld [vmem:[%s2 + $0x758] sm:$0xff]
  %v4069 = vld [vmem:[%s2 + $0x760] sm:$0xff]
  %v4070 = vld [vmem:[%s2 + $0x768] sm:$0xff]
  %v4071 = vld [vmem:[%s2 + $0x770] sm:$0xff]
  %v4072 = vld [vmem:[%s2 + $0x778] sm:$0xff]
  %v4073 = vld [vmem:[%s2 + $0x780] sm:$0xff]
  %v4074 = vld [vmem:[%s2 + $0x788] sm:$0xff]
  %v4075 = vld [vmem:[%s2 + $0x790] sm:$0xff]
  %v4076 = vld [vmem:[%s2 + $0x798] sm:$0xff]
  %v4077 = vld [vmem:[%s2 + $0x7a0] sm:$0xff]
  %v4078 = vld [vmem:[%s2 + $0x7a8] sm:$0xff]
  %v4079 = vld [vmem:[%s2 + $0x7b0] sm:$0xff]
  %v4080 = vld [vmem:[%s2 + $0x7b8] sm:$0xff]
  %v4081 = vld [vmem:[%s2 + $0x7c0] sm:$0xff]
  %v4082 = vld [vmem:[%s2 + $0x7c8] sm:$0xff]
  %v4083 = vld [vmem:[%s2 + $0x7d0] sm:$0xff]
  %v4084 = vld [vmem:[%s2 + $0x7d8] sm:$0xff]
  %v4085 = vld [vmem:[%s2 + $0x7e0] sm:$0xff]
  %v4086 = vld [vmem:[%s2 + $0x7e8] sm:$0xff]
  %v4087 = vld [vmem:[%s2 + $0x7f0] sm:$0xff]
  %v4088 = vld [vmem:[%s2 + $0x7f8] sm:$0xff]
  %4089 = vmatprep.subr.mxu0 %v3834
  %4090 = vmatpush1.msra.mxu0 %v3833
  %4091 = vmatprep.subr.mxu0 %v3842
  %4092 = vmatpush1.msra.mxu0 %v3841
  %4093 = vmatprep.subr.mxu0 %v3850
  %4094 = vmatpush1.msra.mxu0 %v3849
  %4095 = vmatprep.subr.mxu0 %v3858
  %4096 = vmatpush1.msra.mxu0 %v3857
  %4097 = vmatprep.subr.mxu0 %v3866
  %4098 = vmatpush1.msra.mxu0 %v3865
  %4099 = vmatprep.subr.mxu0 %v3874
  %4100 = vmatpush1.msra.mxu0 %v3873
  %4101 = vmatprep.subr.mxu0 %v3882
  %4102 = vmatpush1.msra.mxu0 %v3881
  %4103 = vmatprep.subr.mxu0 %v3890
  %4104 = vmatpush1.msra.mxu0 %v3889
  %4105 = vmatprep.subr.mxu0 %v3898
  %4106 = vmatpush1.msra.mxu0 %v3897
  %4107 = vmatprep.subr.mxu0 %v3906
  %4108 = vmatpush1.msra.mxu0 %v3905
  %4109 = vmatprep.subr.mxu0 %v3914
  %4110 = vmatpush1.msra.mxu0 %v3913
  %4111 = vmatprep.subr.mxu0 %v3922
  %4112 = vmatpush1.msra.mxu0 %v3921
  %4113 = vmatprep.subr.mxu0 %v3930
  %4114 = vmatpush1.msra.mxu0 %v3929
  %4115 = vmatprep.subr.mxu0 %v3938
  %4116 = vmatpush1.msra.mxu0 %v3937
  %4117 = vmatprep.subr.mxu0 %v3946
  %4118 = vmatpush1.msra.mxu0 %v3945
  %4119 = vmatprep.subr.mxu0 %v3954
  %4120 = vmatpush1.msra.mxu0 %v3953
  %4121 = vmatprep.subr.mxu0 %v3962
  %4122 = vmatpush1.msra.mxu0 %v3961
  %4123 = vmatprep.subr.mxu0 %v3970
  %4124 = vmatpush1.msra.mxu0 %v3969
  %4125 = vmatprep.subr.mxu0 %v3978
  %4126 = vmatpush1.msra.mxu0 %v3977
  %4127 = vmatprep.subr.mxu0 %v3986
  %4128 = vmatpush1.msra.mxu0 %v3985
  %4129 = vmatprep.subr.mxu0 %v3994
  %4130 = vmatpush1.msra.mxu0 %v3993
  %4131 = vmatprep.subr.mxu0 %v4002
  %4132 = vmatpush1.msra.mxu0 %v4001
  %4133 = vmatprep.subr.mxu0 %v4010
  %4134 = vmatpush1.msra.mxu0 %v4009
  %4135 = vmatprep.subr.mxu0 %v4018
  %4136 = vmatpush1.msra.mxu0 %v4017
  %4137 = vmatprep.subr.mxu0 %v4026
  %4138 = vmatpush1.msra.mxu0 %v4025
  %4139 = vmatprep.subr.mxu0 %v4034
  %4140 = vmatpush1.msra.mxu0 %v4033
  %4141 = vmatprep.subr.mxu0 %v4042
  %4142 = vmatpush1.msra.mxu0 %v4041
  %4143 = vmatprep.subr.mxu0 %v4050
  %4144 = vmatpush1.msra.mxu0 %v4049
  %4145 = vmatprep.subr.mxu0 %v4058
  %4146 = vmatpush1.msra.mxu0 %v4057
  %4147 = vmatprep.subr.mxu0 %v4066
  %4148 = vmatpush1.msra.mxu0 %v4065
  %4149 = vmatprep.subr.mxu0 %v4074
  %4150 = vmatpush1.msra.mxu0 %v4073
  %4151 = vmatprep.subr.mxu0 %v4082
  %4152 = vmatpush1.msra.mxu0 %v4081
  %4153 = vmatprep.mubr.f32.mxu0 %v3832
  %4154 = vmatmul.mubr.f32.gmra.mrb[0].mxu0 %v3831
  %v4155 = vpop.f32.mrb[0].mxu0
  %v4156 = vadd.f32 0.0, %v4155
  %v4157 = vpop.f32.mrb[0].mxu0
  %v4158 = vadd.f32 0.0, %v4157
  %4159 = vdwg.mxu0
  %4160 = vmatprep.subr.mxu0 %v3836
  %4161 = vmatpush1.msra.mxu0 %v3835
  %4162 = vmatprep.subr.mxu0 %v3844
  %4163 = vmatpush1.msra.mxu0 %v3843
  %4164 = vmatprep.subr.mxu0 %v3852
  %4165 = vmatpush1.msra.mxu0 %v3851
  %4166 = vmatprep.subr.mxu0 %v3860
  %4167 = vmatpush1.msra.mxu0 %v3859
  %4168 = vmatprep.subr.mxu0 %v3868
  %4169 = vmatpush1.msra.mxu0 %v3867
  %4170 = vmatprep.subr.mxu0 %v3876
  %4171 = vmatpush1.msra.mxu0 %v3875
  %4172 = vmatprep.subr.mxu0 %v3884
  %4173 = vmatpush1.msra.mxu0 %v3883
  %4174 = vmatprep.subr.mxu0 %v3892
  %4175 = vmatpush1.msra.mxu0 %v3891
  %4176 = vmatprep.subr.mxu0 %v3900
  %4177 = vmatpush1.msra.mxu0 %v3899
  %4178 = vmatprep.subr.mxu0 %v3908
  %4179 = vmatpush1.msra.mxu0 %v3907
  %4180 = vmatprep.subr.mxu0 %v3916
  %4181 = vmatpush1.msra.mxu0 %v3915
  %4182 = vmatprep.subr.mxu0 %v3924
  %4183 = vmatpush1.msra.mxu0 %v3923
  %4184 = vmatprep.subr.mxu0 %v3932
  %4185 = vmatpush1.msra.mxu0 %v3931
  %4186 = vmatprep.subr.mxu0 %v3940
  %4187 = vmatpush1.msra.mxu0 %v3939
  %4188 = vmatprep.subr.mxu0 %v3948
  %4189 = vmatpush1.msra.mxu0 %v3947
  %4190 = vmatprep.subr.mxu0 %v3956
  %4191 = vmatpush1.msra.mxu0 %v3955
  %4192 = vmatprep.subr.mxu0 %v3964
  %4193 = vmatpush1.msra.mxu0 %v3963
  %4194 = vmatprep.subr.mxu0 %v3972
  %4195 = vmatpush1.msra.mxu0 %v3971
  %4196 = vmatprep.subr.mxu0 %v3980
  %4197 = vmatpush1.msra.mxu0 %v3979
  %4198 = vmatprep.subr.mxu0 %v3988
  %4199 = vmatpush1.msra.mxu0 %v3987
  %4200 = vmatprep.subr.mxu0 %v3996
  %4201 = vmatpush1.msra.mxu0 %v3995
  %4202 = vmatprep.subr.mxu0 %v4004
  %4203 = vmatpush1.msra.mxu0 %v4003
  %4204 = vmatprep.subr.mxu0 %v4012
  %4205 = vmatpush1.msra.mxu0 %v4011
  %4206 = vmatprep.subr.mxu0 %v4020
  %4207 = vmatpush1.msra.mxu0 %v4019
  %4208 = vmatprep.subr.mxu0 %v4028
  %4209 = vmatpush1.msra.mxu0 %v4027
  %4210 = vmatprep.subr.mxu0 %v4036
  %4211 = vmatpush1.msra.mxu0 %v4035
  %4212 = vmatprep.subr.mxu0 %v4044
  %4213 = vmatpush1.msra.mxu0 %v4043
  %4214 = vmatprep.subr.mxu0 %v4052
  %4215 = vmatpush1.msra.mxu0 %v4051
  %4216 = vmatprep.subr.mxu0 %v4060
  %4217 = vmatpush1.msra.mxu0 %v4059
  %4218 = vmatprep.subr.mxu0 %v4068
  %4219 = vmatpush1.msra.mxu0 %v4067
  %4220 = vmatprep.subr.mxu0 %v4076
  %4221 = vmatpush1.msra.mxu0 %v4075
  %4222 = vmatprep.subr.mxu0 %v4084
  %4223 = vmatpush1.msra.mxu0 %v4083
  %4224 = vmatprep.mubr.f32.mxu0 %v3832
  %4225 = vmatmul.mubr.f32.gmra.mrb[0].mxu0 %v3831
  %v4226 = vpop.f32.mrb[0].mxu0
  %v4227 = vadd.f32 0.0, %v4226
  %v4228 = vpop.f32.mrb[0].mxu0
  %v4229 = vadd.f32 0.0, %v4228
  %4230 = vdwg.mxu0
  %4231 = vmatprep.subr.mxu0 %v3838
  %4232 = vmatpush1.msra.mxu0 %v3837
  %4233 = vmatprep.subr.mxu0 %v3846
  %4234 = vmatpush1.msra.mxu0 %v3845
  %4235 = vmatprep.subr.mxu0 %v3854
  %4236 = vmatpush1.msra.mxu0 %v3853
  %4237 = vmatprep.subr.mxu0 %v3862
  %4238 = vmatpush1.msra.mxu0 %v3861
  %4239 = vmatprep.subr.mxu0 %v3870
  %4240 = vmatpush1.msra.mxu0 %v3869
  %4241 = vmatprep.subr.mxu0 %v3878
  %4242 = vmatpush1.msra.mxu0 %v3877
  %4243 = vmatprep.subr.mxu0 %v3886
  %4244 = vmatpush1.msra.mxu0 %v3885
  %4245 = vmatprep.subr.mxu0 %v3894
  %4246 = vmatpush1.msra.mxu0 %v3893
  %4247 = vmatprep.subr.mxu0 %v3902
  %4248 = vmatpush1.msra.mxu0 %v3901
  %4249 = vmatprep.subr.mxu0 %v3910
  %4250 = vmatpush1.msra.mxu0 %v3909
  %4251 = vmatprep.subr.mxu0 %v3918
  %4252 = vmatpush1.msra.mxu0 %v3917
  %4253 = vmatprep.subr.mxu0 %v3926
  %4254 = vmatpush1.msra.mxu0 %v3925
  %4255 = vmatprep.subr.mxu0 %v3934
  %4256 = vmatpush1.msra.mxu0 %v3933
  %4257 = vmatprep.subr.mxu0 %v3942
  %4258 = vmatpush1.msra.mxu0 %v3941
  %4259 = vmatprep.subr.mxu0 %v3950
  %4260 = vmatpush1.msra.mxu0 %v3949
  %4261 = vmatprep.subr.mxu0 %v3958
  %4262 = vmatpush1.msra.mxu0 %v3957
  %4263 = vmatprep.subr.mxu0 %v3966
  %4264 = vmatpush1.msra.mxu0 %v3965
  %4265 = vmatprep.subr.mxu0 %v3974
  %4266 = vmatpush1.msra.mxu0 %v3973
  %4267 = vmatprep.subr.mxu0 %v3982
  %4268 = vmatpush1.msra.mxu0 %v3981
  %4269 = vmatprep.subr.mxu0 %v3990
  %4270 = vmatpush1.msra.mxu0 %v3989
  %4271 = vmatprep.subr.mxu0 %v3998
  %4272 = vmatpush1.msra.mxu0 %v3997
  %4273 = vmatprep.subr.mxu0 %v4006
  %4274 = vmatpush1.msra.mxu0 %v4005
  %4275 = vmatprep.subr.mxu0 %v4014
  %4276 = vmatpush1.msra.mxu0 %v4013
  %4277 = vmatprep.subr.mxu0 %v4022
  %4278 = vmatpush1.msra.mxu0 %v4021
  %4279 = vmatprep.subr.mxu0 %v4030
  %4280 = vmatpush1.msra.mxu0 %v4029
  %4281 = vmatprep.subr.mxu0 %v4038
  %4282 = vmatpush1.msra.mxu0 %v4037
  %4283 = vmatprep.subr.mxu0 %v4046
  %4284 = vmatpush1.msra.mxu0 %v4045
  %4285 = vmatprep.subr.mxu0 %v4054
  %4286 = vmatpush1.msra.mxu0 %v4053
  %4287 = vmatprep.subr.mxu0 %v4062
  %4288 = vmatpush1.msra.mxu0 %v4061
  %4289 = vmatprep.subr.mxu0 %v4070
  %4290 = vmatpush1.msra.mxu0 %v4069
  %4291 = vmatprep.subr.mxu0 %v4078
  %4292 = vmatpush1.msra.mxu0 %v4077
  %4293 = vmatprep.subr.mxu0 %v4086
  %4294 = vmatpush1.msra.mxu0 %v4085
  %4295 = vmatprep.mubr.f32.mxu0 %v3832
  %4296 = vmatmul.mubr.f32.gmra.mrb[0].mxu0 %v3831
  %v4297 = vpop.f32.mrb[0].mxu0
  %v4298 = vadd.f32 0.0, %v4297
  %v4299 = vpop.f32.mrb[0].mxu0
  %v4300 = vadd.f32 0.0, %v4299
  %4301 = vdwg.mxu0
  %4302 = vmatprep.subr.mxu0 %v3840
  %4303 = vmatpush1.msra.mxu0 %v3839
  %4304 = vmatprep.subr.mxu0 %v3848
  %4305 = vmatpush1.msra.mxu0 %v3847
  %4306 = vmatprep.subr.mxu0 %v3856
  %4307 = vmatpush1.msra.mxu0 %v3855
  %4308 = vmatprep.subr.mxu0 %v3864
  %4309 = vmatpush1.msra.mxu0 %v3863
  %4310 = vmatprep.subr.mxu0 %v3872
  %4311 = vmatpush1.msra.mxu0 %v3871
  %4312 = vmatprep.subr.mxu0 %v3880
  %4313 = vmatpush1.msra.mxu0 %v3879
  %4314 = vmatprep.subr.mxu0 %v3888
  %4315 = vmatpush1.msra.mxu0 %v3887
  %4316 = vmatprep.subr.mxu0 %v3896
  %4317 = vmatpush1.msra.mxu0 %v3895
  %4318 = vmatprep.subr.mxu0 %v3904
  %4319 = vmatpush1.msra.mxu0 %v3903
  %4320 = vmatprep.subr.mxu0 %v3912
  %4321 = vmatpush1.msra.mxu0 %v3911
  %4322 = vmatprep.subr.mxu0 %v3920
  %4323 = vmatpush1.msra.mxu0 %v3919
  %4324 = vmatprep.subr.mxu0 %v3928
  %4325 = vmatpush1.msra.mxu0 %v3927
  %4326 = vmatprep.subr.mxu0 %v3936
  %4327 = vmatpush1.msra.mxu0 %v3935
  %4328 = vmatprep.subr.mxu0 %v3944
  %4329 = vmatpush1.msra.mxu0 %v3943
  %4330 = vmatprep.subr.mxu0 %v3952
  %4331 = vmatpush1.msra.mxu0 %v3951
  %4332 = vmatprep.subr.mxu0 %v3960
  %4333 = vmatpush1.msra.mxu0 %v3959
  %4334 = vmatprep.subr.mxu0 %v3968
  %4335 = vmatpush1.msra.mxu0 %v3967
  %4336 = vmatprep.subr.mxu0 %v3976
  %4337 = vmatpush1.msra.mxu0 %v3975
  %4338 = vmatprep.subr.mxu0 %v3984
  %4339 = vmatpush1.msra.mxu0 %v3983
  %4340 = vmatprep.subr.mxu0 %v3992
  %4341 = vmatpush1.msra.mxu0 %v3991
  %4342 = vmatprep.subr.mxu0 %v4000
  %4343 = vmatpush1.msra.mxu0 %v3999
  %4344 = vmatprep.subr.mxu0 %v4008
  %4345 = vmatpush1.msra.mxu0 %v4007
  %4346 = vmatprep.subr.mxu0 %v4016
  %4347 = vmatpush1.msra.mxu0 %v4015
  %4348 = vmatprep.subr.mxu0 %v4024
  %4349 = vmatpush1.msra.mxu0 %v4023
  %4350 = vmatprep.subr.mxu0 %v4032
  %4351 = vmatpush1.msra.mxu0 %v4031
  %4352 = vmatprep.subr.mxu0 %v4040
  %4353 = vmatpush1.msra.mxu0 %v4039
  %4354 = vmatprep.subr.mxu0 %v4048
  %4355 = vmatpush1.msra.mxu0 %v4047
  %4356 = vmatprep.subr.mxu0 %v4056
  %4357 = vmatpush1.msra.mxu0 %v4055
  %4358 = vmatprep.subr.mxu0 %v4064
  %4359 = vmatpush1.msra.mxu0 %v4063
  %4360 = vmatprep.subr.mxu0 %v4072
  %4361 = vmatpush1.msra.mxu0 %v4071
  %4362 = vmatprep.subr.mxu0 %v4080
  %4363 = vmatpush1.msra.mxu0 %v4079
  %4364 = vmatprep.subr.mxu0 %v4088
  %4365 = vmatpush1.msra.mxu0 %v4087
  %4366 = vmatprep.mubr.f32.mxu0 %v3832
  %4367 = vmatmul.mubr.f32.gmra.mrb[0].mxu0 %v3831
  %v4368 = vpop.f32.mrb[0].mxu0
  %v4369 = vadd.f32 0.0, %v4368
  %v4370 = vpop.f32.mrb[0].mxu0
  %v4371 = vadd.f32 0.0, %v4370
  %4372 = vdwg.mxu0
  %v4373 = vadd.f32 %v4298, %v786
  %v4374 = vadd.f32 %v4300, %v790
  %v4375 = vadd.f32 %v4369, %v794
  %v4376 = vadd.f32 %v4371, %v798
  %v4377 = vmul.f32 %v4373, 0.5
  %v4378 = vtanh.pop %v4377
  %v4379 = vmul.f32 %v4378, 0.5
  %v4380 = vadd.f32 %v4379, 0.5
  %v4381 = vmul.f32 %v4374, 0.5
  %v4382 = vtanh.pop %v4381
  %v4383 = vmul.f32 %v4382, 0.5
  %v4384 = vadd.f32 %v4383, 0.5
  %v4385 = vtanh.pop %v4375
  %v4386 = vmul.f32 %v4376, 0.5
  %v4387 = vtanh.pop %v4386
  %v4388 = vmul.f32 %v4387, 0.5
  %v4389 = vadd.f32 %v4388, 0.5
  %v4390 = vmul.f32 %v4384, %v3797
  %v4391 = vmul.f32 %v4380, %v4385
  %v4392 = vadd.f32 %v4390, %v4391
  %v4393 = vtanh.pop %v4392
  %v4394 = vmul.f32 %v4389, %v4393
  %4395 = vst [vmem:[#allocation3 + $0x8] sm:$0xff] %v4394
  %s4396 = smul.u32 7, 4
  %s4397 = smul.addr %s4396, 8
  %s4398 = scalar_lea.vmem [#allocation2], %s4397
  %v4399 = vld [vmem:[%s4398] sm:$0xff]
  %v4400 = vld [vmem:[%s4398 + $0x8] sm:$0xff]
  %v4401 = vld [vmem:[%s4398 + $0x10] sm:$0xff]
  %v4402 = vld [vmem:[%s4398 + $0x18] sm:$0xff]
  %v4403 = vadd.f32 %v4399, %v4156
  %v4404 = vadd.f32 %v4400, %v4158
  %v4405 = vadd.f32 %v4401, %v4227
  %v4406 = vadd.f32 %v4402, %v4229
  %v4407 = vmul.f32 %v4403, 0.5
  %v4408 = vtanh.pop %v4407
  %v4409 = vmul.f32 %v4408, 0.5
  %v4410 = vadd.f32 %v4409, 0.5
  %v4411 = vmul.f32 %v4404, 0.5
  %v4412 = vtanh.pop %v4411
  %v4413 = vmul.f32 %v4412, 0.5
  %v4414 = vadd.f32 %v4413, 0.5
  %v4415 = vtanh.pop %v4405
  %v4416 = vmul.f32 %v4406, 0.5
  %v4417 = vtanh.pop %v4416
  %v4418 = vmul.f32 %v4417, 0.5
  %v4419 = vadd.f32 %v4418, 0.5
  %v4420 = vmul.f32 %v4414, %v3827
  %v4421 = vmul.f32 %v4410, %v4415
  %v4422 = vadd.f32 %v4420, %v4421
  %v4423 = vtanh.pop %v4422
  %v4424 = vmul.f32 %v4419, %v4423
  %4425 = vst [vmem:[#allocation3] sm:$0xff] %v4424
  %v4426 = vld [vmem:[#allocation3] sm:$0xff]
  %v4427 = vld [vmem:[#allocation3 + $0x8] sm:$0xff]
  %v4428 = vld [vmem:[%s2 + $0x20] sm:$0xff]
  %v4429 = vld [vmem:[%s2 + $0x28] sm:$0xff]
  %v4430 = vld [vmem:[%s2 + $0x30] sm:$0xff]
  %v4431 = vld [vmem:[%s2 + $0x38] sm:$0xff]
  %v4432 = vld [vmem:[%s2 + $0x60] sm:$0xff]
  %v4433 = vld [vmem:[%s2 + $0x68] sm:$0xff]
  %v4434 = vld [vmem:[%s2 + $0x70] sm:$0xff]
  %v4435 = vld [vmem:[%s2 + $0x78] sm:$0xff]
  %v4436 = vld [vmem:[%s2 + $0xa0] sm:$0xff]
  %v4437 = vld [vmem:[%s2 + $0xa8] sm:$0xff]
  %v4438 = vld [vmem:[%s2 + $0xb0] sm:$0xff]
  %v4439 = vld [vmem:[%s2 + $0xb8] sm:$0xff]
  %v4440 = vld [vmem:[%s2 + $0xe0] sm:$0xff]
  %v4441 = vld [vmem:[%s2 + $0xe8] sm:$0xff]
  %v4442 = vld [vmem:[%s2 + $0xf0] sm:$0xff]
  %v4443 = vld [vmem:[%s2 + $0xf8] sm:$0xff]
  %v4444 = vld [vmem:[%s2 + $0x120] sm:$0xff]
  %v4445 = vld [vmem:[%s2 + $0x128] sm:$0xff]
  %v4446 = vld [vmem:[%s2 + $0x130] sm:$0xff]
  %v4447 = vld [vmem:[%s2 + $0x138] sm:$0xff]
  %v4448 = vld [vmem:[%s2 + $0x160] sm:$0xff]
  %v4449 = vld [vmem:[%s2 + $0x168] sm:$0xff]
  %v4450 = vld [vmem:[%s2 + $0x170] sm:$0xff]
  %v4451 = vld [vmem:[%s2 + $0x178] sm:$0xff]
  %v4452 = vld [vmem:[%s2 + $0x1a0] sm:$0xff]
  %v4453 = vld [vmem:[%s2 + $0x1a8] sm:$0xff]
  %v4454 = vld [vmem:[%s2 + $0x1b0] sm:$0xff]
  %v4455 = vld [vmem:[%s2 + $0x1b8] sm:$0xff]
  %v4456 = vld [vmem:[%s2 + $0x1e0] sm:$0xff]
  %v4457 = vld [vmem:[%s2 + $0x1e8] sm:$0xff]
  %v4458 = vld [vmem:[%s2 + $0x1f0] sm:$0xff]
  %v4459 = vld [vmem:[%s2 + $0x1f8] sm:$0xff]
  %v4460 = vld [vmem:[%s2 + $0x220] sm:$0xff]
  %v4461 = vld [vmem:[%s2 + $0x228] sm:$0xff]
  %v4462 = vld [vmem:[%s2 + $0x230] sm:$0xff]
  %v4463 = vld [vmem:[%s2 + $0x238] sm:$0xff]
  %v4464 = vld [vmem:[%s2 + $0x260] sm:$0xff]
  %v4465 = vld [vmem:[%s2 + $0x268] sm:$0xff]
  %v4466 = vld [vmem:[%s2 + $0x270] sm:$0xff]
  %v4467 = vld [vmem:[%s2 + $0x278] sm:$0xff]
  %v4468 = vld [vmem:[%s2 + $0x2a0] sm:$0xff]
  %v4469 = vld [vmem:[%s2 + $0x2a8] sm:$0xff]
  %v4470 = vld [vmem:[%s2 + $0x2b0] sm:$0xff]
  %v4471 = vld [vmem:[%s2 + $0x2b8] sm:$0xff]
  %v4472 = vld [vmem:[%s2 + $0x2e0] sm:$0xff]
  %v4473 = vld [vmem:[%s2 + $0x2e8] sm:$0xff]
  %v4474 = vld [vmem:[%s2 + $0x2f0] sm:$0xff]
  %v4475 = vld [vmem:[%s2 + $0x2f8] sm:$0xff]
  %v4476 = vld [vmem:[%s2 + $0x320] sm:$0xff]
  %v4477 = vld [vmem:[%s2 + $0x328] sm:$0xff]
  %v4478 = vld [vmem:[%s2 + $0x330] sm:$0xff]
  %v4479 = vld [vmem:[%s2 + $0x338] sm:$0xff]
  %v4480 = vld [vmem:[%s2 + $0x360] sm:$0xff]
  %v4481 = vld [vmem:[%s2 + $0x368] sm:$0xff]
  %v4482 = vld [vmem:[%s2 + $0x370] sm:$0xff]
  %v4483 = vld [vmem:[%s2 + $0x378] sm:$0xff]
  %v4484 = vld [vmem:[%s2 + $0x3a0] sm:$0xff]
  %v4485 = vld [vmem:[%s2 + $0x3a8] sm:$0xff]
  %v4486 = vld [vmem:[%s2 + $0x3b0] sm:$0xff]
  %v4487 = vld [vmem:[%s2 + $0x3b8] sm:$0xff]
  %v4488 = vld [vmem:[%s2 + $0x3e0] sm:$0xff]
  %v4489 = vld [vmem:[%s2 + $0x3e8] sm:$0xff]
  %v4490 = vld [vmem:[%s2 + $0x3f0] sm:$0xff]
  %v4491 = vld [vmem:[%s2 + $0x3f8] sm:$0xff]
  %v4492 = vld [vmem:[%s2 + $0x420] sm:$0xff]
  %v4493 = vld [vmem:[%s2 + $0x428] sm:$0xff]
  %v4494 = vld [vmem:[%s2 + $0x430] sm:$0xff]
  %v4495 = vld [vmem:[%s2 + $0x438] sm:$0xff]
  %v4496 = vld [vmem:[%s2 + $0x460] sm:$0xff]
  %v4497 = vld [vmem:[%s2 + $0x468] sm:$0xff]
  %v4498 = vld [vmem:[%s2 + $0x470] sm:$0xff]
  %v4499 = vld [vmem:[%s2 + $0x478] sm:$0xff]
  %v4500 = vld [vmem:[%s2 + $0x4a0] sm:$0xff]
  %v4501 = vld [vmem:[%s2 + $0x4a8] sm:$0xff]
  %v4502 = vld [vmem:[%s2 + $0x4b0] sm:$0xff]
  %v4503 = vld [vmem:[%s2 + $0x4b8] sm:$0xff]
  %v4504 = vld [vmem:[%s2 + $0x4e0] sm:$0xff]
  %v4505 = vld [vmem:[%s2 + $0x4e8] sm:$0xff]
  %v4506 = vld [vmem:[%s2 + $0x4f0] sm:$0xff]
  %v4507 = vld [vmem:[%s2 + $0x4f8] sm:$0xff]
  %v4508 = vld [vmem:[%s2 + $0x520] sm:$0xff]
  %v4509 = vld [vmem:[%s2 + $0x528] sm:$0xff]
  %v4510 = vld [vmem:[%s2 + $0x530] sm:$0xff]
  %v4511 = vld [vmem:[%s2 + $0x538] sm:$0xff]
  %v4512 = vld [vmem:[%s2 + $0x560] sm:$0xff]
  %v4513 = vld [vmem:[%s2 + $0x568] sm:$0xff]
  %v4514 = vld [vmem:[%s2 + $0x570] sm:$0xff]
  %v4515 = vld [vmem:[%s2 + $0x578] sm:$0xff]
  %v4516 = vld [vmem:[%s2 + $0x5a0] sm:$0xff]
  %v4517 = vld [vmem:[%s2 + $0x5a8] sm:$0xff]
  %v4518 = vld [vmem:[%s2 + $0x5b0] sm:$0xff]
  %v4519 = vld [vmem:[%s2 + $0x5b8] sm:$0xff]
  %v4520 = vld [vmem:[%s2 + $0x5e0] sm:$0xff]
  %v4521 = vld [vmem:[%s2 + $0x5e8] sm:$0xff]
  %v4522 = vld [vmem:[%s2 + $0x5f0] sm:$0xff]
  %v4523 = vld [vmem:[%s2 + $0x5f8] sm:$0xff]
  %v4524 = vld [vmem:[%s2 + $0x620] sm:$0xff]
  %v4525 = vld [vmem:[%s2 + $0x628] sm:$0xff]
  %v4526 = vld [vmem:[%s2 + $0x630] sm:$0xff]
  %v4527 = vld [vmem:[%s2 + $0x638] sm:$0xff]
  %v4528 = vld [vmem:[%s2 + $0x660] sm:$0xff]
  %v4529 = vld [vmem:[%s2 + $0x668] sm:$0xff]
  %v4530 = vld [vmem:[%s2 + $0x670] sm:$0xff]
  %v4531 = vld [vmem:[%s2 + $0x678] sm:$0xff]
  %v4532 = vld [vmem:[%s2 + $0x6a0] sm:$0xff]
  %v4533 = vld [vmem:[%s2 + $0x6a8] sm:$0xff]
  %v4534 = vld [vmem:[%s2 + $0x6b0] sm:$0xff]
  %v4535 = vld [vmem:[%s2 + $0x6b8] sm:$0xff]
  %v4536 = vld [vmem:[%s2 + $0x6e0] sm:$0xff]
  %v4537 = vld [vmem:[%s2 + $0x6e8] sm:$0xff]
  %v4538 = vld [vmem:[%s2 + $0x6f0] sm:$0xff]
  %v4539 = vld [vmem:[%s2 + $0x6f8] sm:$0xff]
  %v4540 = vld [vmem:[%s2 + $0x720] sm:$0xff]
  %v4541 = vld [vmem:[%s2 + $0x728] sm:$0xff]
  %v4542 = vld [vmem:[%s2 + $0x730] sm:$0xff]
  %v4543 = vld [vmem:[%s2 + $0x738] sm:$0xff]
  %v4544 = vld [vmem:[%s2 + $0x760] sm:$0xff]
  %v4545 = vld [vmem:[%s2 + $0x768] sm:$0xff]
  %v4546 = vld [vmem:[%s2 + $0x770] sm:$0xff]
  %v4547 = vld [vmem:[%s2 + $0x778] sm:$0xff]
  %v4548 = vld [vmem:[%s2 + $0x7a0] sm:$0xff]
  %v4549 = vld [vmem:[%s2 + $0x7a8] sm:$0xff]
  %v4550 = vld [vmem:[%s2 + $0x7b0] sm:$0xff]
  %v4551 = vld [vmem:[%s2 + $0x7b8] sm:$0xff]
  %v4552 = vld [vmem:[%s2 + $0x7e0] sm:$0xff]
  %v4553 = vld [vmem:[%s2 + $0x7e8] sm:$0xff]
  %v4554 = vld [vmem:[%s2 + $0x7f0] sm:$0xff]
  %v4555 = vld [vmem:[%s2 + $0x7f8] sm:$0xff]
  %4556 = vmatprep.subr.mxu0 %v4429
  %4557 = vmatpush1.msra.mxu0 %v4428
  %4558 = vmatprep.subr.mxu0 %v4433
  %4559 = vmatpush1.msra.mxu0 %v4432
  %4560 = vmatprep.subr.mxu0 %v4437
  %4561 = vmatpush1.msra.mxu0 %v4436
  %4562 = vmatprep.subr.mxu0 %v4441
  %4563 = vmatpush1.msra.mxu0 %v4440
  %4564 = vmatprep.subr.mxu0 %v4445
  %4565 = vmatpush1.msra.mxu0 %v4444
  %4566 = vmatprep.subr.mxu0 %v4449
  %4567 = vmatpush1.msra.mxu0 %v4448
  %4568 = vmatprep.subr.mxu0 %v4453
  %4569 = vmatpush1.msra.mxu0 %v4452
  %4570 = vmatprep.subr.mxu0 %v4457
  %4571 = vmatpush1.msra.mxu0 %v4456
  %4572 = vmatprep.subr.mxu0 %v4461
  %4573 = vmatpush1.msra.mxu0 %v4460
  %4574 = vmatprep.subr.mxu0 %v4465
  %4575 = vmatpush1.msra.mxu0 %v4464
  %4576 = vmatprep.subr.mxu0 %v4469
  %4577 = vmatpush1.msra.mxu0 %v4468
  %4578 = vmatprep.subr.mxu0 %v4473
  %4579 = vmatpush1.msra.mxu0 %v4472
  %4580 = vmatprep.subr.mxu0 %v4477
  %4581 = vmatpush1.msra.mxu0 %v4476
  %4582 = vmatprep.subr.mxu0 %v4481
  %4583 = vmatpush1.msra.mxu0 %v4480
  %4584 = vmatprep.subr.mxu0 %v4485
  %4585 = vmatpush1.msra.mxu0 %v4484
  %4586 = vmatprep.subr.mxu0 %v4489
  %4587 = vmatpush1.msra.mxu0 %v4488
  %4588 = vmatprep.subr.mxu0 %v4493
  %4589 = vmatpush1.msra.mxu0 %v4492
  %4590 = vmatprep.subr.mxu0 %v4497
  %4591 = vmatpush1.msra.mxu0 %v4496
  %4592 = vmatprep.subr.mxu0 %v4501
  %4593 = vmatpush1.msra.mxu0 %v4500
  %4594 = vmatprep.subr.mxu0 %v4505
  %4595 = vmatpush1.msra.mxu0 %v4504
  %4596 = vmatprep.subr.mxu0 %v4509
  %4597 = vmatpush1.msra.mxu0 %v4508
  %4598 = vmatprep.subr.mxu0 %v4513
  %4599 = vmatpush1.msra.mxu0 %v4512
  %4600 = vmatprep.subr.mxu0 %v4517
  %4601 = vmatpush1.msra.mxu0 %v4516
  %4602 = vmatprep.subr.mxu0 %v4521
  %4603 = vmatpush1.msra.mxu0 %v4520
  %4604 = vmatprep.subr.mxu0 %v4525
  %4605 = vmatpush1.msra.mxu0 %v4524
  %4606 = vmatprep.subr.mxu0 %v4529
  %4607 = vmatpush1.msra.mxu0 %v4528
  %4608 = vmatprep.subr.mxu0 %v4533
  %4609 = vmatpush1.msra.mxu0 %v4532
  %4610 = vmatprep.subr.mxu0 %v4537
  %4611 = vmatpush1.msra.mxu0 %v4536
  %4612 = vmatprep.subr.mxu0 %v4541
  %4613 = vmatpush1.msra.mxu0 %v4540
  %4614 = vmatprep.subr.mxu0 %v4545
  %4615 = vmatpush1.msra.mxu0 %v4544
  %4616 = vmatprep.subr.mxu0 %v4549
  %4617 = vmatpush1.msra.mxu0 %v4548
  %4618 = vmatprep.subr.mxu0 %v4553
  %4619 = vmatpush1.msra.mxu0 %v4552
  %4620 = vmatprep.mubr.f32.mxu0 %v4427
  %4621 = vmatmul.mubr.f32.gmra.mrb[0].mxu0 %v4426
  %v4622 = vpop.f32.mrb[0].mxu0
  %v4623 = vadd.f32 0.0, %v4622
  %v4624 = vpop.f32.mrb[0].mxu0
  %v4625 = vadd.f32 0.0, %v4624
  %4626 = vdwg.mxu0
  %4627 = vmatprep.subr.mxu0 %v4431
  %4628 = vmatpush1.msra.mxu0 %v4430
  %4629 = vmatprep.subr.mxu0 %v4435
  %4630 = vmatpush1.msra.mxu0 %v4434
  %4631 = vmatprep.subr.mxu0 %v4439
  %4632 = vmatpush1.msra.mxu0 %v4438
  %4633 = vmatprep.subr.mxu0 %v4443
  %4634 = vmatpush1.msra.mxu0 %v4442
  %4635 = vmatprep.subr.mxu0 %v4447
  %4636 = vmatpush1.msra.mxu0 %v4446
  %4637 = vmatprep.subr.mxu0 %v4451
  %4638 = vmatpush1.msra.mxu0 %v4450
  %4639 = vmatprep.subr.mxu0 %v4455
  %4640 = vmatpush1.msra.mxu0 %v4454
  %4641 = vmatprep.subr.mxu0 %v4459
  %4642 = vmatpush1.msra.mxu0 %v4458
  %4643 = vmatprep.subr.mxu0 %v4463
  %4644 = vmatpush1.msra.mxu0 %v4462
  %4645 = vmatprep.subr.mxu0 %v4467
  %4646 = vmatpush1.msra.mxu0 %v4466
  %4647 = vmatprep.subr.mxu0 %v4471
  %4648 = vmatpush1.msra.mxu0 %v4470
  %4649 = vmatprep.subr.mxu0 %v4475
  %4650 = vmatpush1.msra.mxu0 %v4474
  %4651 = vmatprep.subr.mxu0 %v4479
  %4652 = vmatpush1.msra.mxu0 %v4478
  %4653 = vmatprep.subr.mxu0 %v4483
  %4654 = vmatpush1.msra.mxu0 %v4482
  %4655 = vmatprep.subr.mxu0 %v4487
  %4656 = vmatpush1.msra.mxu0 %v4486
  %4657 = vmatprep.subr.mxu0 %v4491
  %4658 = vmatpush1.msra.mxu0 %v4490
  %4659 = vmatprep.subr.mxu0 %v4495
  %4660 = vmatpush1.msra.mxu0 %v4494
  %4661 = vmatprep.subr.mxu0 %v4499
  %4662 = vmatpush1.msra.mxu0 %v4498
  %4663 = vmatprep.subr.mxu0 %v4503
  %4664 = vmatpush1.msra.mxu0 %v4502
  %4665 = vmatprep.subr.mxu0 %v4507
  %4666 = vmatpush1.msra.mxu0 %v4506
  %4667 = vmatprep.subr.mxu0 %v4511
  %4668 = vmatpush1.msra.mxu0 %v4510
  %4669 = vmatprep.subr.mxu0 %v4515
  %4670 = vmatpush1.msra.mxu0 %v4514
  %4671 = vmatprep.subr.mxu0 %v4519
  %4672 = vmatpush1.msra.mxu0 %v4518
  %4673 = vmatprep.subr.mxu0 %v4523
  %4674 = vmatpush1.msra.mxu0 %v4522
  %4675 = vmatprep.subr.mxu0 %v4527
  %4676 = vmatpush1.msra.mxu0 %v4526
  %4677 = vmatprep.subr.mxu0 %v4531
  %4678 = vmatpush1.msra.mxu0 %v4530
  %4679 = vmatprep.subr.mxu0 %v4535
  %4680 = vmatpush1.msra.mxu0 %v4534
  %4681 = vmatprep.subr.mxu0 %v4539
  %4682 = vmatpush1.msra.mxu0 %v4538
  %4683 = vmatprep.subr.mxu0 %v4543
  %4684 = vmatpush1.msra.mxu0 %v4542
  %4685 = vmatprep.subr.mxu0 %v4547
  %4686 = vmatpush1.msra.mxu0 %v4546
  %4687 = vmatprep.subr.mxu0 %v4551
  %4688 = vmatpush1.msra.mxu0 %v4550
  %4689 = vmatprep.subr.mxu0 %v4555
  %4690 = vmatpush1.msra.mxu0 %v4554
  %4691 = vmatprep.mubr.f32.mxu0 %v4427
  %4692 = vmatmul.mubr.f32.gmra.mrb[0].mxu0 %v4426
  %v4693 = vpop.f32.mrb[0].mxu0
  %v4694 = vadd.f32 0.0, %v4693
  %v4695 = vpop.f32.mrb[0].mxu0
  %v4696 = vadd.f32 0.0, %v4695
  %4697 = vdwg.mxu0
  %v4698 = vadd.f32 %v4623, %v786
  %v4699 = vadd.f32 %v4625, %v790
  %v4700 = vadd.f32 %v4694, %v794
  %v4701 = vadd.f32 %v4696, %v798
  %v4702 = vmul.f32 %v4698, 0.5
  %v4703 = vtanh.pop %v4702
  %v4704 = vmul.f32 %v4703, 0.5
  %v4705 = vadd.f32 %v4704, 0.5
  %v4706 = vmul.f32 %v4699, 0.5
  %v4707 = vtanh.pop %v4706
  %v4708 = vmul.f32 %v4707, 0.5
  %v4709 = vadd.f32 %v4708, 0.5
  %v4710 = vtanh.pop %v4700
  %v4711 = vmul.f32 %v4701, 0.5
  %v4712 = vtanh.pop %v4711
  %v4713 = vmul.f32 %v4712, 0.5
  %v4714 = vadd.f32 %v4713, 0.5
  %v4715 = vmul.f32 %v4709, %v4392
  %v4716 = vmul.f32 %v4705, %v4710
  %v4717 = vadd.f32 %v4715, %v4716
  %v4718 = vtanh.pop %v4717
  %v4719 = vmul.f32 %v4714, %v4718
  %4720 = vst [vmem:[#allocation3 + $0x8] sm:$0xff] %v4719
  %v4721 = vld [vmem:[%s3] sm:$0xff]
  %v4722 = vld [vmem:[%s3 + $0x8] sm:$0xff]
  %v4723 = vld [vmem:[%s3 + $0x10] sm:$0xff]
  %v4724 = vld [vmem:[%s3 + $0x18] sm:$0xff]
  %v4725 = vld [vmem:[%s3 + $0x20] sm:$0xff]
  %v4726 = vld [vmem:[%s3 + $0x28] sm:$0xff]
  %v4727 = vld [vmem:[%s3 + $0x30] sm:$0xff]
  %v4728 = vld [vmem:[%s3 + $0x38] sm:$0xff]
  %v4729 = vld [vmem:[%s3 + $0x40] sm:$0xff]
  %v4730 = vld [vmem:[%s3 + $0x48] sm:$0xff]
  %v4731 = vld [vmem:[%s3 + $0x50] sm:$0xff]
  %v4732 = vld [vmem:[%s3 + $0x58] sm:$0xff]
  %v4733 = vld [vmem:[%s3 + $0x60] sm:$0xff]
  %v4734 = vld [vmem:[%s3 + $0x68] sm:$0xff]
  %v4735 = vld [vmem:[%s3 + $0x70] sm:$0xff]
  %v4736 = vld [vmem:[%s3 + $0x78] sm:$0xff]
  %v4737 = vld [vmem:[%s3 + $0x80] sm:$0x1]
  %v4738 = vld [vmem:[#allocation3 + $0x8] sm:$0xff]
  %v4739 = vlaneseq
  %v4740 = vshrl.u32 %v4739, 7
  %v4741 = vsub.s32 0, %v4740
  %v4742 = vrot.slane %v4737, %v4741
  %4743 = vmatprep.subr.mxu0 0.0
  %4744 = vmatpush1.msra.mxu0 %v4721
  %4745 = vmatprep.subr.mxu0 0.0
  %4746 = vmatpush1.msra.mxu0 %v4722
  %4747 = vmatprep.subr.mxu0 0.0
  %4748 = vmatpush1.msra.mxu0 %v4723
  %4749 = vmatprep.subr.mxu0 0.0
  %4750 = vmatpush1.msra.mxu0 %v4724
  %4751 = vmatprep.subr.mxu0 0.0
  %4752 = vmatpush1.msra.mxu0 %v4725
  %4753 = vmatprep.subr.mxu0 0.0
  %4754 = vmatpush1.msra.mxu0 %v4726
  %4755 = vmatprep.subr.mxu0 0.0
  %4756 = vmatpush1.msra.mxu0 %v4727
  %4757 = vmatprep.subr.mxu0 0.0
  %4758 = vmatpush1.msra.mxu0 %v4728
  %4759 = vmatprep.subr.mxu0 0.0
  %4760 = vmatpush1.msra.mxu0 %v4729
  %4761 = vmatprep.subr.mxu0 0.0
  %4762 = vmatpush1.msra.mxu0 %v4730
  %4763 = vmatprep.subr.mxu0 0.0
  %4764 = vmatpush1.msra.mxu0 %v4731
  %4765 = vmatprep.subr.mxu0 0.0
  %4766 = vmatpush1.msra.mxu0 %v4732
  %4767 = vmatprep.subr.mxu0 0.0
  %4768 = vmatpush1.msra.mxu0 %v4733
  %4769 = vmatprep.subr.mxu0 0.0
  %4770 = vmatpush1.msra.mxu0 %v4734
  %4771 = vmatprep.subr.mxu0 0.0
  %4772 = vmatpush1.msra.mxu0 %v4735
  %4773 = vmatprep.subr.mxu0 0.0
  %4774 = vmatpush1.msra.mxu0 %v4736
  %4775 = vmatprep.subr.mxu0 0.0
  %4776 = vmatpush1.msra.mxu0 0.0
  %4777 = vmatprep.subr.mxu0 0.0
  %4778 = vmatpush1.msra.mxu0 0.0
  %4779 = vmatprep.subr.mxu0 0.0
  %4780 = vmatpush1.msra.mxu0 0.0
  %4781 = vmatprep.subr.mxu0 0.0
  %4782 = vmatpush1.msra.mxu0 0.0
  %4783 = vmatprep.subr.mxu0 0.0
  %4784 = vmatpush1.msra.mxu0 0.0
  %4785 = vmatprep.subr.mxu0 0.0
  %4786 = vmatpush1.msra.mxu0 0.0
  %4787 = vmatprep.subr.mxu0 0.0
  %4788 = vmatpush1.msra.mxu0 0.0
  %4789 = vmatprep.subr.mxu0 0.0
  %4790 = vmatpush1.msra.mxu0 0.0
  %4791 = vmatprep.subr.mxu0 0.0
  %4792 = vmatpush1.msra.mxu0 0.0
  %4793 = vmatprep.subr.mxu0 0.0
  %4794 = vmatpush1.msra.mxu0 0.0
  %4795 = vmatprep.subr.mxu0 0.0
  %4796 = vmatpush1.msra.mxu0 0.0
  %4797 = vmatprep.subr.mxu0 0.0
  %4798 = vmatpush1.msra.mxu0 0.0
  %4799 = vmatprep.subr.mxu0 0.0
  %4800 = vmatpush1.msra.mxu0 0.0
  %4801 = vmatprep.subr.mxu0 0.0
  %4802 = vmatpush1.msra.mxu0 0.0
  %4803 = vmatprep.subr.mxu0 0.0
  %4804 = vmatpush1.msra.mxu0 0.0
  %4805 = vmatprep.subr.mxu0 0.0
  %4806 = vmatpush1.msra.mxu0 0.0
  %4807 = vmatprep.mubr.f32.mxu0 0.0
  %4808 = vmatmul.mubr.f32.gmra.mrb[0].mxu0 %v4738
  %v4809 = vpop.f32.mrb[0].mxu0
  %v4810 = vadd.f32 %v4742, %v4809
  %v4811 = vpop.f32.mrb[0].mxu0
  %4812 = vdwg.mxu0
  %4813 = vst [vmem:[%s4] sm:$0xff] %v4810
  // Predicated region
  $region18: #{motion_predictor_multistep.1} parent=0 // pred_check
    _
  $region19: #{motion_predictor_multistep.1} parent=0 // pred_check_branch
    %4815 = sbr.rel (0) target = $region21
  $region20: #{motion_predictor_multistep.1} parent=0 // pred_region
    _
  $region21: #{motion_predictor_multistep.1} parent=0 // pred_fallthru
    _
  // Predicated region
  $region22: #{motion_predictor_multistep.1} parent=0 // pred_check
    _
  $region23: #{motion_predictor_multistep.1} parent=0 // pred_check_branch
    %4817 = sbr.rel (0) target = $region25
  $region24: #{motion_predictor_multistep.1} parent=0 // pred_region
    _
  $region25: #{motion_predictor_multistep.1} parent=0 // pred_fallthru
    _

</llo_original>
